<compile_context>
chip_gen: v6e
topology: v6e:2x2x1
jax: 0.10.0
libtpu: 0.0.40
codegen_flags: <defaults>
</compile_context>

<pallas_src>
import functools

import jax
import jax.numpy as jnp
from jax.experimental import pallas as pl
from jax.experimental.pallas import tpu as pltpu

D_MODEL = 512
N_HEADS = 8
HEAD_DIM = D_MODEL // N_HEADS
D_FF = 512
LN_EPS = 1e-5


# ----------------------------------------------------------------------------
# Fused encoder-block kernel body.
#   xq_ref : (BT, TQ, D) f32  — residual-stream rows handled by this grid step
#   xkv_ref: (BT, S,  D) f32  — full sequence rows used to build K/V
# When TQ == S the wrapper passes a single x block and xq_ref is xkv_ref.
# ----------------------------------------------------------------------------
def _encoder_block_body(
    xq_ref, xkv_ref,
    wq_ref, bq_ref, wkv_ref, bkv_ref, wo_ref, bo_ref,
    g1_ref, bt1_ref, w1_ref, bf1_ref, w2_ref, bf2_ref,
    g2_ref, bt2_ref,
    o_ref,
    *, bf16_exp,
):
    BT, TQ, D = xq_ref.shape
    S = xkv_ref.shape[1]
    Mq = BT * TQ
    Mk = BT * S

    xq = xq_ref[...].reshape(Mq, D)          # f32 residual stream (query rows)
    xq_bf = xq.astype(jnp.bfloat16)
    if xkv_ref is xq_ref:                    # shared block (TQ == S): load once
        xkv_bf = xq_bf
    else:
        xkv_bf = xkv_ref[...].reshape(Mk, D).astype(jnp.bfloat16)

    # --- full-width projections (MXU sees 512 / 1024-wide dims) ---
    # 1/sqrt(Dh) is already folded into Wq/bq in the wrapper (exact: 1/8).
    q = jnp.dot(xq_bf, wq_ref[...], preferred_element_type=jnp.float32) + bq_ref[...]
    kv = jnp.dot(xkv_bf, wkv_ref[...], preferred_element_type=jnp.float32) + bkv_ref[...]

    q_bf = q.astype(jnp.bfloat16).reshape(BT, TQ, D)
    k_bf = kv[:, :D].astype(jnp.bfloat16).reshape(BT, S, D)
    v_bf = kv[:, D:].astype(jnp.bfloat16).reshape(BT, S, D)

    # --- attention: per-head scores/softmax/context (head_dim-64 contractions
    # are inherent), contexts concatenated to a lane-dense (Mq, 512) operand ---
    ctx_parts = []
    for h in range(N_HEADS):
        lo = h * HEAD_DIM
        hi = lo + HEAD_DIM
        s = jnp.einsum("bqd,bkd->bqk", q_bf[:, :, lo:hi], k_bf[:, :, lo:hi],
                       preferred_element_type=jnp.float32)        # (BT, TQ, S) f32
        s = s - jnp.max(s, axis=-1, keepdims=True)
        if bf16_exp:
            # bf16 EUP (v6e/v7x): ~2x exp throughput; stats stay f32.
            p = jnp.exp(s.astype(jnp.bfloat16)).astype(jnp.float32)
        else:
            p = jnp.exp(s)
        p = p * pl.reciprocal(jnp.sum(p, axis=-1, keepdims=True), approx=True)
        ctx_parts.append(
            jnp.einsum("bqk,bkd->bqd", p.astype(jnp.bfloat16), v_bf[:, :, lo:hi],
                       preferred_element_type=jnp.float32))        # (BT, TQ, Dh)
    ctx = jnp.concatenate(ctx_parts, axis=-1).reshape(Mq, D).astype(jnp.bfloat16)
    attn = jnp.dot(ctx, wo_ref[...], preferred_element_type=jnp.float32) + bo_ref[...]

    # --- residual + LayerNorm 1 (f32) ---
    h1 = xq + attn
    mu1 = jnp.mean(h1, axis=-1, keepdims=True)
    var1 = jnp.mean((h1 - mu1) ** 2, axis=-1, keepdims=True)
    h1n = (h1 - mu1) * jax.lax.rsqrt(var1 + LN_EPS) * g1_ref[...] + bt1_ref[...]

    # --- feed-forward (bf16 operands, f32 accumulation) ---
    f = jnp.dot(h1n.astype(jnp.bfloat16), w1_ref[...],
                preferred_element_type=jnp.float32) + bf1_ref[...]
    f = jnp.maximum(f, 0.0)
    f = jnp.dot(f.astype(jnp.bfloat16), w2_ref[...],
                preferred_element_type=jnp.float32) + bf2_ref[...]

    # --- residual + LayerNorm 2 (f32) ---
    h2 = h1n + f
    mu2 = jnp.mean(h2, axis=-1, keepdims=True)
    var2 = jnp.mean((h2 - mu2) ** 2, axis=-1, keepdims=True)
    h2n = (h2 - mu2) * jax.lax.rsqrt(var2 + LN_EPS) * g2_ref[...] + bt2_ref[...]

    o_ref[...] = h2n.reshape(BT, TQ, D)


def encoder_block_kernel_shared(x_ref, *rest, bf16_exp=False):
    _encoder_block_body(x_ref, x_ref, *rest, bf16_exp=bf16_exp)


def encoder_block_kernel_split(xq_ref, xkv_ref, *rest, bf16_exp=False):
    _encoder_block_body(xq_ref, xkv_ref, *rest, bf16_exp=bf16_exp)


# ----------------------------------------------------------------------------
# Generation-aware VMEM budgeting and tile picking
# ----------------------------------------------------------------------------
def _vmem_capacity_bytes():
    try:
        return int(pltpu.get_tpu_info().vmem_capacity_bytes)
    except Exception:
        return 128 * 1024 * 1024


def _vmem_limit_bytes():
    # ~3/4 of physical VMEM (48 MiB on v7x's 64 MiB, 96 MiB on v5e/v6e's 128 MiB)
    cap = _vmem_capacity_bytes()
    return max(32 * 1024 * 1024, min((cap * 3) // 4, 96 * 1024 * 1024))


def _block_vmem_estimate(bt, tq, S):
    """Rough per-grid-step VMEM bytes: double-buffered weights + I/O tiles,
    f32/bf16 activation temporaries and live score state."""
    mq, mk = bt * tq, bt * S
    weights = 2 * (6 * D_MODEL * D_MODEL * 2 + 16 * D_MODEL * 4)   # bf16 mats + f32 vecs, x2 buffers
    io = 2 * 4 * D_MODEL * (2 * mq + mk)                           # xq + out + xkv, x2 buffers
    act_q = mq * D_MODEL * 56                                      # q-row f32/bf16 temporaries
    act_kv = mk * D_MODEL * 14                                     # kv projections + bf16 copies
    scores = bt * tq * S * 40                                      # few heads' (TQ,S) s/p live at once
    return weights + io + act_q + act_kv + scores


def pick_tiles(B, S):
    """Pick (batch_tile, query_tile): fit the VMEM budget, prefer >=2 grid steps,
    prefer full-sequence query tiles (no redundant K/V recompute), and grow the
    batch tile toward a per-step row target (512 rows on 128-MiB parts, else 256)."""
    budget = _vmem_limit_bytes()
    row_target = 512 if _vmem_capacity_bytes() >= 96 * 1024 * 1024 else 256

    bt_divs = [d for d in range(1, B + 1) if B % d == 0]
    tq_divs = [t for t in range(1, S + 1) if S % t == 0 and (t % 8 == 0 or t == S)]

    fits = [(bt, tq) for bt in bt_divs for tq in tq_divs
            if _block_vmem_estimate(bt, tq, S) <= budget]
    if not fits:
        fits = [(1, min(tq_divs))]   # smallest tiles; let the compiler cope

    multi = [c for c in fits if (B // c[0]) * (S // c[1]) >= 2]
    pool = multi if multi else fits

    best_tq = max(tq for _, tq in pool)
    bts = sorted(bt for bt, tq in pool if tq == best_tq)
    for bt in bts:
        if bt * best_tq >= row_target:
            return bt, best_tq
    return bts[-1], best_tq


def _bf16_exp_ok():
    # bf16 EUP exists on v6e and later; keep f32 exp on v5e/v4 and unknown chips.
    try:
        kind = jax.devices()[0].device_kind.lower()
    except Exception:
        return False
    return ("v6" in kind) or ("v7" in kind)


def _block_cost(B, S, bt, tq, kparams):
    M = B * S
    nq = S // tq
    n_steps = (B // bt) * nq
    w_bytes = sum(int(p.size) * p.dtype.itemsize for p in kparams)
    # Q proj + (K/V proj, recomputed per q-tile) + scores/ctx + Wo + FFN
    flops = 2 * M * D_MODEL * (D_MODEL + 2 * D_MODEL * nq + 2 * S + D_MODEL + 2 * D_FF)
    transcendentals = B * N_HEADS * S * S + 3 * M
    bytes_accessed = 4 * M * D_MODEL * (2 + nq) + w_bytes * n_steps
    return pl.CostEstimate(flops=int(flops),
                           transcendentals=int(transcendentals),
                           bytes_accessed=int(bytes_accessed))


# ----------------------------------------------------------------------------
# Wrapper
# ----------------------------------------------------------------------------
def encoder_block_pallas(x, kparams, bt, tq, bf16_exp):
    """x: (B, S, D) f32; kparams: 14 kernel-layout arrays (bf16 matmul weights)."""
    B, S, D = x.shape
    assert B % bt == 0 and S % tq == 0
    nb, nq = B // bt, S // tq
    shared = tq == S

    in_specs = [pl.BlockSpec((bt, tq, D), lambda b, q: (b, q, 0))]
    operands = [x]
    if not shared:
        in_specs.append(pl.BlockSpec((bt, S, D), lambda b, q: (b, 0, 0)))
        operands.append(x)
    # Grid-invariant weight blocks (all 2-D).
    in_specs += [pl.BlockSpec(p.shape, lambda b, q: (0, 0)) for p in kparams]

    kernel = functools.partial(
        encoder_block_kernel_shared if shared else encoder_block_kernel_split,
        bf16_exp=bf16_exp)

    return pl.pallas_call(
        kernel,
        out_shape=jax.ShapeDtypeStruct((B, S, D), jnp.float32),
        grid_spec=pltpu.PrefetchScalarGridSpec(
            num_scalar_prefetch=0,
            grid=(nb, nq),
            in_specs=in_specs,
            out_specs=pl.BlockSpec((bt, tq, D), lambda b, q: (b, q, 0)),
        ),
        compiler_params=pltpu.CompilerParams(
            dimension_semantics=("parallel", "parallel"),
            vmem_limit_bytes=_vmem_limit_bytes(),
        ),
        cost_estimate=_block_cost(B, S, bt, tq, kparams),
    )(*operands, *kparams)


def prepare_block_params(p):
    """Module-layout f32 params -> kernel layout: bf16 matmul weights, fused
    (D, 2D) K/V weight, 1/sqrt(Dh) folded into Wq/bq (exact, power of two)."""
    (wq, bq, wk, bk, wv, bv, wo, bo, g1, bt1, w1, bf1, w2, bf2, g2, bt2) = p
    scale = jnp.float32(1.0 / 8.0)                      # 1/sqrt(64), exact
    row = lambda v, n: v.reshape(1, n).astype(jnp.float32)
    wkv = jnp.concatenate([wk, wv], axis=1)             # (D, 2D), cols = [K | V]
    bkv = jnp.concatenate([row(bk, D_MODEL), row(bv, D_MODEL)], axis=1)
    return [
        (wq * scale).astype(jnp.bfloat16), row(bq, D_MODEL) * scale,
        wkv.astype(jnp.bfloat16), bkv,
        wo.astype(jnp.bfloat16), row(bo, D_MODEL),
        row(g1, D_MODEL), row(bt1, D_MODEL),
        w1.astype(jnp.bfloat16), row(bf1, D_FF),
        w2.astype(jnp.bfloat16), row(bf2, D_MODEL),
        row(g2, D_MODEL), row(bt2, D_MODEL),
    ]


# ----------------------------------------------------------------------------
# Parameter init (deterministic, synthetic) and glue
# ----------------------------------------------------------------------------
def init_block_params(key):
    ks = jax.random.split(key, 6)
    std = 0.02

    def mat(k, shp):
        return (std * jax.random.normal(k, shp)).astype(jnp.float32)

    zeros_row = jnp.zeros((1, D_MODEL), jnp.float32)
    ones_row = jnp.ones((1, D_MODEL), jnp.float32)
    return [
        mat(ks[0], (D_MODEL, D_MODEL)), zeros_row,      # Wq, bq
        mat(ks[1], (D_MODEL, D_MODEL)), zeros_row,      # Wk, bk
        mat(ks[2], (D_MODEL, D_MODEL)), zeros_row,      # Wv, bv
        mat(ks[3], (D_MODEL, D_MODEL)), zeros_row,      # Wo, bo
        ones_row, zeros_row,                            # LN1 gamma, beta
        mat(ks[4], (D_MODEL, D_FF)), jnp.zeros((1, D_FF), jnp.float32),   # W1, b1
        mat(ks[5], (D_FF, D_MODEL)), zeros_row,         # W2, b2
        ones_row, zeros_row,                            # LN2 gamma, beta
    ]


def sinusoidal_pe(seq_len, d_model):
    pos = jnp.arange(seq_len, dtype=jnp.float32)[:, None]
    i = jnp.arange(0, d_model, 2, dtype=jnp.float32)
    div = jnp.exp(-jnp.log(10000.0) * i / d_model)
    pe = jnp.zeros((seq_len, d_model), jnp.float32)
    pe = pe.at[:, 0::2].set(jnp.sin(pos * div))
    pe = pe.at[:, 1::2].set(jnp.cos(pos * div))
    return pe


def transformer_encoder(x, all_block_params, positional_encoding=False):
    # Upstream forward's flag name has a typo, so the default path never adds PE.
    if positional_encoding:
        x = x + sinusoidal_pe(x.shape[1], x.shape[2])[None]
    B, S, _ = x.shape
    bt, tq = pick_tiles(B, S)
    bf16_exp = _bf16_exp_ok()
    for bp in all_block_params:
        x = encoder_block_pallas(x, prepare_block_params(bp), bt, tq, bf16_exp)
    return x


# ----------------------------------------------------------------------------
# Pure-JAX reference for the self-check. It mirrors the kernel's matmul
# numerics (bf16 operands, f32 accumulation); remaining deltas are the approx
# softmax reciprocal and (on v6e/v7x) the bf16 exp — both << tolerance.
# ----------------------------------------------------------------------------
def _ref_block(x, p):
    (wq, bq, wk, bk, wv, bv, wo, bo, g1, bt1, w1, bf1, w2, bf2, g2, bt2) = p
    B, S, D = x.shape
    bf = lambda a: a.astype(jnp.bfloat16)

    def mm(a, b):
        return jnp.einsum("...ij,jk->...ik", bf(a), bf(b),
                          preferred_element_type=jnp.float32)

    q = mm(x, wq) + bq
    k = mm(x, wk) + bk
    v = mm(x, wv) + bv
    qh = q.reshape(B, S, N_HEADS, HEAD_DIM).transpose(0, 2, 1, 3)
    kh = k.reshape(B, S, N_HEADS, HEAD_DIM).transpose(0, 2, 1, 3)
    vh = v.reshape(B, S, N_HEADS, HEAD_DIM).transpose(0, 2, 1, 3)
    s = jnp.einsum("bhqd,bhkd->bhqk", bf(qh), bf(kh),
                   preferred_element_type=jnp.float32) / jnp.sqrt(jnp.float32(HEAD_DIM))
    p_attn = jax.nn.softmax(s, axis=-1)
    ctx = jnp.einsum("bhqk,bhkd->bhqd", bf(p_attn), bf(vh),
                     preferred_element_type=jnp.float32)
    ctx = ctx.transpose(0, 2, 1, 3).reshape(B, S, D)
    attn = mm(ctx, wo) + bo

    def ln(h, g, b):
        mu = jnp.mean(h, axis=-1, keepdims=True)
        var = jnp.mean((h - mu) ** 2, axis=-1, keepdims=True)
        return (h - mu) * jax.lax.rsqrt(var + LN_EPS) * g + b

    h1 = ln(x + attn, g1, bt1)
    f = jnp.maximum(mm(h1, w1) + bf1, 0.0)
    f = mm(f, w2) + bf2
    return ln(h1 + f, g2, bt2)


def reference(x, all_block_params, positional_encoding=False):
    if positional_encoding:
        x = x + sinusoidal_pe(x.shape[1], x.shape[2])[None]
    for bp in all_block_params:
        x = _ref_block(x, bp)
    return x


if __name__ == "__main__":
    key = jax.random.PRNGKey(0)
    k_x, k_p = jax.random.split(key)

    B, S = 2, 8          # small demo shapes; d_model fixed at 512 by the module
    N_BLOCKS = 2

    x = jax.random.normal(k_x, (B, S, D_MODEL), dtype=jnp.float32)
    block_keys = jax.random.split(k_p, N_BLOCKS)
    all_params = [init_block_params(k) for k in block_keys]

    out = transformer_encoder(x, all_params, positional_encoding=False)
    out = jax.block_until_ready(out)

    ref = reference(x, all_params, positional_encoding=False)
    if not jnp.allclose(out, ref, atol=2e-2, rtol=2e-2):
        raise AssertionError(
            f"mismatch vs reference, max abs diff = {float(jnp.max(jnp.abs(out - ref)))}"
        )

    print("KERNEL_OK")
</pallas_src>

<mosaic_0001>
module attributes {stable_mosaic.version = 11 : i64} {
  func.func @encoder_block_kernel_shared(%arg0: i32, %arg1: i32, %arg2: memref<1x8x512xf32, #tpu.memory_space<vmem>>, %arg3: memref<512x512xbf16, #tpu.memory_space<vmem>>, %arg4: memref<1x512xf32, #tpu.memory_space<vmem>>, %arg5: memref<512x1024xbf16, #tpu.memory_space<vmem>>, %arg6: memref<1x1024xf32, #tpu.memory_space<vmem>>, %arg7: memref<512x512xbf16, #tpu.memory_space<vmem>>, %arg8: memref<1x512xf32, #tpu.memory_space<vmem>>, %arg9: memref<1x512xf32, #tpu.memory_space<vmem>>, %arg10: memref<1x512xf32, #tpu.memory_space<vmem>>, %arg11: memref<512x512xbf16, #tpu.memory_space<vmem>>, %arg12: memref<1x512xf32, #tpu.memory_space<vmem>>, %arg13: memref<512x512xbf16, #tpu.memory_space<vmem>>, %arg14: memref<1x512xf32, #tpu.memory_space<vmem>>, %arg15: memref<1x512xf32, #tpu.memory_space<vmem>>, %arg16: memref<1x512xf32, #tpu.memory_space<vmem>>, %arg17: memref<1x8x512xf32, #tpu.memory_space<vmem>>) attributes {dimension_semantics = [#tpu.dimension_semantics<parallel>, #tpu.dimension_semantics<parallel>], iteration_bounds = array<i64: 2, 1>, scalar_prefetch = 0 : i64, scratch_operands = 0 : i64, tpu.core_type = #tpu.core_type<tc>, window_params = [{transform_indices = @transform_0, window_bounds = array<i64: 1, 8, 512>}, {pipeline_mode = #tpu.pipeline_mode<synchronous>, transform_indices = @transform_1, window_bounds = array<i64: 512, 512>}, {pipeline_mode = #tpu.pipeline_mode<synchronous>, transform_indices = @transform_2, window_bounds = array<i64: 1, 512>}, {pipeline_mode = #tpu.pipeline_mode<synchronous>, transform_indices = @transform_3, window_bounds = array<i64: 512, 1024>}, {pipeline_mode = #tpu.pipeline_mode<synchronous>, transform_indices = @transform_4, window_bounds = array<i64: 1, 1024>}, {pipeline_mode = #tpu.pipeline_mode<synchronous>, transform_indices = @transform_5, window_bounds = array<i64: 512, 512>}, {pipeline_mode = #tpu.pipeline_mode<synchronous>, transform_indices = @transform_6, window_bounds = array<i64: 1, 512>}, {pipeline_mode = #tpu.pipeline_mode<synchronous>, transform_indices = @transform_7, window_bounds = array<i64: 1, 512>}, {pipeline_mode = #tpu.pipeline_mode<synchronous>, transform_indices = @transform_8, window_bounds = array<i64: 1, 512>}, {pipeline_mode = #tpu.pipeline_mode<synchronous>, transform_indices = @transform_9, window_bounds = array<i64: 512, 512>}, {pipeline_mode = #tpu.pipeline_mode<synchronous>, transform_indices = @transform_10, window_bounds = array<i64: 1, 512>}, {pipeline_mode = #tpu.pipeline_mode<synchronous>, transform_indices = @transform_11, window_bounds = array<i64: 512, 512>}, {pipeline_mode = #tpu.pipeline_mode<synchronous>, transform_indices = @transform_12, window_bounds = array<i64: 1, 512>}, {pipeline_mode = #tpu.pipeline_mode<synchronous>, transform_indices = @transform_13, window_bounds = array<i64: 1, 512>}, {pipeline_mode = #tpu.pipeline_mode<synchronous>, transform_indices = @transform_14, window_bounds = array<i64: 1, 512>}, {transform_indices = @transform_15, window_bounds = array<i64: 1, 8, 512>}]} {
    %c0 = arith.constant 0 : index
    %c0_0 = arith.constant 0 : index
    %c0_1 = arith.constant 0 : index
    %0 = vector.load %arg2[%c0, %c0_0, %c0_1] : memref<1x8x512xf32, #tpu.memory_space<vmem>>, vector<1x8x512xf32>
    %1 = vector.shape_cast %0 : vector<1x8x512xf32> to vector<8x512xf32>
    %2 = arith.truncf %1 : vector<8x512xf32> to vector<8x512xbf16>
    %c0_2 = arith.constant 0 : index
    %c0_3 = arith.constant 0 : index
    %3 = vector.load %arg3[%c0_2, %c0_3] : memref<512x512xbf16, #tpu.memory_space<vmem>>, vector<512x512xbf16>
    %cst = arith.constant dense<0.000000e+00> : vector<8x512xf32>
    %4 = tpu.matmul %2, %3, %cst {dimension_numbers = #tpu.dot_dimension_numbers<[1], [0], [0], [1], [0, 0, 1, 1], [], []>} : vector<8x512xbf16>, vector<512x512xbf16>, vector<8x512xf32> -> vector<8x512xf32>
    %c0_4 = arith.constant 0 : index
    %c0_5 = arith.constant 0 : index
    %5 = vector.load %arg4[%c0_4, %c0_5] : memref<1x512xf32, #tpu.memory_space<vmem>>, vector<1x512xf32>
    %6 = vector.broadcast %5 : vector<1x512xf32> to vector<8x512xf32>
    %7 = arith.addf %4, %6 : vector<8x512xf32>
    %c0_6 = arith.constant 0 : index
    %c0_7 = arith.constant 0 : index
    %8 = vector.load %arg5[%c0_6, %c0_7] : memref<512x1024xbf16, #tpu.memory_space<vmem>>, vector<512x1024xbf16>
    %cst_8 = arith.constant dense<0.000000e+00> : vector<8x1024xf32>
    %9 = tpu.matmul %2, %8, %cst_8 {dimension_numbers = #tpu.dot_dimension_numbers<[1], [0], [0], [1], [0, 0, 1, 1], [], []>} : vector<8x512xbf16>, vector<512x1024xbf16>, vector<8x1024xf32> -> vector<8x1024xf32>
    %c0_9 = arith.constant 0 : index
    %c0_10 = arith.constant 0 : index
    %10 = vector.load %arg6[%c0_9, %c0_10] : memref<1x1024xf32, #tpu.memory_space<vmem>>, vector<1x1024xf32>
    %11 = vector.broadcast %10 : vector<1x1024xf32> to vector<8x1024xf32>
    %12 = arith.addf %9, %11 : vector<8x1024xf32>
    %13 = arith.truncf %7 : vector<8x512xf32> to vector<8x512xbf16>
    %14 = vector.shape_cast %13 : vector<8x512xbf16> to vector<1x8x512xbf16>
    %15 = vector.extract_strided_slice %12 {offsets = [0, 0], sizes = [8, 512], strides = [1, 1]} : vector<8x1024xf32> to vector<8x512xf32>
    %16 = arith.truncf %15 : vector<8x512xf32> to vector<8x512xbf16>
    %17 = vector.shape_cast %16 : vector<8x512xbf16> to vector<1x8x512xbf16>
    %18 = vector.extract_strided_slice %12 {offsets = [0, 512], sizes = [8, 512], strides = [1, 1]} : vector<8x1024xf32> to vector<8x512xf32>
    %19 = arith.truncf %18 : vector<8x512xf32> to vector<8x512xbf16>
    %20 = vector.shape_cast %19 : vector<8x512xbf16> to vector<1x8x512xbf16>
    %21 = vector.extract_strided_slice %14 {offsets = [0, 0, 0], sizes = [1, 8, 64], strides = [1, 1, 1]} : vector<1x8x512xbf16> to vector<1x8x64xbf16>
    %22 = vector.extract_strided_slice %17 {offsets = [0, 0, 0], sizes = [1, 8, 64], strides = [1, 1, 1]} : vector<1x8x512xbf16> to vector<1x8x64xbf16>
    "tpu.trace_start"() <{level = 10 : i32, message = "bqd,bkd->bqk"}> : () -> ()
    %cst_11 = arith.constant dense<0.000000e+00> : vector<1x8x8xf32>
    %23 = tpu.matmul %21, %22, %cst_11 {dimension_numbers = #tpu.dot_dimension_numbers<[2], [2], [1], [1], [0, 0, 0, 1, 1, 1], [0], [0]>} : vector<1x8x64xbf16>, vector<1x8x64xbf16>, vector<1x8x8xf32> -> vector<1x8x8xf32>
    "tpu.trace_stop"() : () -> ()
    %cst_12 = arith.constant dense<0xFF800000> : vector<1x8xf32>
    %24 = vector.multi_reduction <maximumf>, %23, %cst_12 [2] : vector<1x8x8xf32> to vector<1x8xf32>
    %25 = vector.shape_cast %24 : vector<1x8xf32> to vector<1x8x1xf32>
    %26 = vector.broadcast %25 : vector<1x8x1xf32> to vector<1x8x8xf32>
    %27 = arith.subf %23, %26 : vector<1x8x8xf32>
    %28 = math.exp %27 : vector<1x8x8xf32>
    %cst_13 = arith.constant dense<0.000000e+00> : vector<1x8xf32>
    %29 = vector.multi_reduction <add>, %28, %cst_13 [2] : vector<1x8x8xf32> to vector<1x8xf32>
    %30 = vector.shape_cast %29 : vector<1x8xf32> to vector<1x8x1xf32>
    %31 = tpu.reciprocal %30 {approx = true} : vector<1x8x1xf32> -> vector<1x8x1xf32>
    %32 = vector.broadcast %31 : vector<1x8x1xf32> to vector<1x8x8xf32>
    %33 = arith.mulf %28, %32 : vector<1x8x8xf32>
    %34 = arith.truncf %33 : vector<1x8x8xf32> to vector<1x8x8xbf16>
    %35 = vector.extract_strided_slice %20 {offsets = [0, 0, 0], sizes = [1, 8, 64], strides = [1, 1, 1]} : vector<1x8x512xbf16> to vector<1x8x64xbf16>
    "tpu.trace_start"() <{level = 10 : i32, message = "bqk,bkd->bqd"}> : () -> ()
    %cst_14 = arith.constant dense<0.000000e+00> : vector<1x8x64xf32>
    %36 = tpu.matmul %34, %35, %cst_14 {dimension_numbers = #tpu.dot_dimension_numbers<[2], [1], [1], [2], [0, 0, 0, 1, 1, 2], [0], [0]>} : vector<1x8x8xbf16>, vector<1x8x64xbf16>, vector<1x8x64xf32> -> vector<1x8x64xf32>
    "tpu.trace_stop"() : () -> ()
    %37 = vector.extract_strided_slice %14 {offsets = [0, 0, 64], sizes = [1, 8, 64], strides = [1, 1, 1]} : vector<1x8x512xbf16> to vector<1x8x64xbf16>
    %38 = vector.extract_strided_slice %17 {offsets = [0, 0, 64], sizes = [1, 8, 64], strides = [1, 1, 1]} : vector<1x8x512xbf16> to vector<1x8x64xbf16>
    "tpu.trace_start"() <{level = 10 : i32, message = "bqd,bkd->bqk"}> : () -> ()
    %cst_15 = arith.constant dense<0.000000e+00> : vector<1x8x8xf32>
    %39 = tpu.matmul %37, %38, %cst_15 {dimension_numbers = #tpu.dot_dimension_numbers<[2], [2], [1], [1], [0, 0, 0, 1, 1, 1], [0], [0]>} : vector<1x8x64xbf16>, vector<1x8x64xbf16>, vector<1x8x8xf32> -> vector<1x8x8xf32>
    "tpu.trace_stop"() : () -> ()
    %cst_16 = arith.constant dense<0xFF800000> : vector<1x8xf32>
    %40 = vector.multi_reduction <maximumf>, %39, %cst_16 [2] : vector<1x8x8xf32> to vector<1x8xf32>
    %41 = vector.shape_cast %40 : vector<1x8xf32> to vector<1x8x1xf32>
    %42 = vector.broadcast %41 : vector<1x8x1xf32> to vector<1x8x8xf32>
    %43 = arith.subf %39, %42 : vector<1x8x8xf32>
    %44 = math.exp %43 : vector<1x8x8xf32>
    %cst_17 = arith.constant dense<0.000000e+00> : vector<1x8xf32>
    %45 = vector.multi_reduction <add>, %44, %cst_17 [2] : vector<1x8x8xf32> to vector<1x8xf32>
    %46 = vector.shape_cast %45 : vector<1x8xf32> to vector<1x8x1xf32>
    %47 = tpu.reciprocal %46 {approx = true} : vector<1x8x1xf32> -> vector<1x8x1xf32>
    %48 = vector.broadcast %47 : vector<1x8x1xf32> to vector<1x8x8xf32>
    %49 = arith.mulf %44, %48 : vector<1x8x8xf32>
    %50 = arith.truncf %49 : vector<1x8x8xf32> to vector<1x8x8xbf16>
    %51 = vector.extract_strided_slice %20 {offsets = [0, 0, 64], sizes = [1, 8, 64], strides = [1, 1, 1]} : vector<1x8x512xbf16> to vector<1x8x64xbf16>
    "tpu.trace_start"() <{level = 10 : i32, message = "bqk,bkd->bqd"}> : () -> ()
    %cst_18 = arith.constant dense<0.000000e+00> : vector<1x8x64xf32>
    %52 = tpu.matmul %50, %51, %cst_18 {dimension_numbers = #tpu.dot_dimension_numbers<[2], [1], [1], [2], [0, 0, 0, 1, 1, 2], [0], [0]>} : vector<1x8x8xbf16>, vector<1x8x64xbf16>, vector<1x8x64xf32> -> vector<1x8x64xf32>
    "tpu.trace_stop"() : () -> ()
    %53 = vector.extract_strided_slice %14 {offsets = [0, 0, 128], sizes = [1, 8, 64], strides = [1, 1, 1]} : vector<1x8x512xbf16> to vector<1x8x64xbf16>
    %54 = vector.extract_strided_slice %17 {offsets = [0, 0, 128], sizes = [1, 8, 64], strides = [1, 1, 1]} : vector<1x8x512xbf16> to vector<1x8x64xbf16>
    "tpu.trace_start"() <{level = 10 : i32, message = "bqd,bkd->bqk"}> : () -> ()
    %cst_19 = arith.constant dense<0.000000e+00> : vector<1x8x8xf32>
    %55 = tpu.matmul %53, %54, %cst_19 {dimension_numbers = #tpu.dot_dimension_numbers<[2], [2], [1], [1], [0, 0, 0, 1, 1, 1], [0], [0]>} : vector<1x8x64xbf16>, vector<1x8x64xbf16>, vector<1x8x8xf32> -> vector<1x8x8xf32>
    "tpu.trace_stop"() : () -> ()
    %cst_20 = arith.constant dense<0xFF800000> : vector<1x8xf32>
    %56 = vector.multi_reduction <maximumf>, %55, %cst_20 [2] : vector<1x8x8xf32> to vector<1x8xf32>
    %57 = vector.shape_cast %56 : vector<1x8xf32> to vector<1x8x1xf32>
    %58 = vector.broadcast %57 : vector<1x8x1xf32> to vector<1x8x8xf32>
    %59 = arith.subf %55, %58 : vector<1x8x8xf32>
    %60 = math.exp %59 : vector<1x8x8xf32>
    %cst_21 = arith.constant dense<0.000000e+00> : vector<1x8xf32>
    %61 = vector.multi_reduction <add>, %60, %cst_21 [2] : vector<1x8x8xf32> to vector<1x8xf32>
    %62 = vector.shape_cast %61 : vector<1x8xf32> to vector<1x8x1xf32>
    %63 = tpu.reciprocal %62 {approx = true} : vector<1x8x1xf32> -> vector<1x8x1xf32>
    %64 = vector.broadcast %63 : vector<1x8x1xf32> to vector<1x8x8xf32>
    %65 = arith.mulf %60, %64 : vector<1x8x8xf32>
    %66 = arith.truncf %65 : vector<1x8x8xf32> to vector<1x8x8xbf16>
    %67 = vector.extract_strided_slice %20 {offsets = [0, 0, 128], sizes = [1, 8, 64], strides = [1, 1, 1]} : vector<1x8x512xbf16> to vector<1x8x64xbf16>
    "tpu.trace_start"() <{level = 10 : i32, message = "bqk,bkd->bqd"}> : () -> ()
    %cst_22 = arith.constant dense<0.000000e+00> : vector<1x8x64xf32>
    %68 = tpu.matmul %66, %67, %cst_22 {dimension_numbers = #tpu.dot_dimension_numbers<[2], [1], [1], [2], [0, 0, 0, 1, 1, 2], [0], [0]>} : vector<1x8x8xbf16>, vector<1x8x64xbf16>, vector<1x8x64xf32> -> vector<1x8x64xf32>
    "tpu.trace_stop"() : () -> ()
    %69 = vector.extract_strided_slice %14 {offsets = [0, 0, 192], sizes = [1, 8, 64], strides = [1, 1, 1]} : vector<1x8x512xbf16> to vector<1x8x64xbf16>
    %70 = vector.extract_strided_slice %17 {offsets = [0, 0, 192], sizes = [1, 8, 64], strides = [1, 1, 1]} : vector<1x8x512xbf16> to vector<1x8x64xbf16>
    "tpu.trace_start"() <{level = 10 : i32, message = "bqd,bkd->bqk"}> : () -> ()
    %cst_23 = arith.constant dense<0.000000e+00> : vector<1x8x8xf32>
    %71 = tpu.matmul %69, %70, %cst_23 {dimension_numbers = #tpu.dot_dimension_numbers<[2], [2], [1], [1], [0, 0, 0, 1, 1, 1], [0], [0]>} : vector<1x8x64xbf16>, vector<1x8x64xbf16>, vector<1x8x8xf32> -> vector<1x8x8xf32>
    "tpu.trace_stop"() : () -> ()
    %cst_24 = arith.constant dense<0xFF800000> : vector<1x8xf32>
    %72 = vector.multi_reduction <maximumf>, %71, %cst_24 [2] : vector<1x8x8xf32> to vector<1x8xf32>
    %73 = vector.shape_cast %72 : vector<1x8xf32> to vector<1x8x1xf32>
    %74 = vector.broadcast %73 : vector<1x8x1xf32> to vector<1x8x8xf32>
    %75 = arith.subf %71, %74 : vector<1x8x8xf32>
    %76 = math.exp %75 : vector<1x8x8xf32>
    %cst_25 = arith.constant dense<0.000000e+00> : vector<1x8xf32>
    %77 = vector.multi_reduction <add>, %76, %cst_25 [2] : vector<1x8x8xf32> to vector<1x8xf32>
    %78 = vector.shape_cast %77 : vector<1x8xf32> to vector<1x8x1xf32>
    %79 = tpu.reciprocal %78 {approx = true} : vector<1x8x1xf32> -> vector<1x8x1xf32>
    %80 = vector.broadcast %79 : vector<1x8x1xf32> to vector<1x8x8xf32>
    %81 = arith.mulf %76, %80 : vector<1x8x8xf32>
    %82 = arith.truncf %81 : vector<1x8x8xf32> to vector<1x8x8xbf16>
    %83 = vector.extract_strided_slice %20 {offsets = [0, 0, 192], sizes = [1, 8, 64], strides = [1, 1, 1]} : vector<1x8x512xbf16> to vector<1x8x64xbf16>
    "tpu.trace_start"() <{level = 10 : i32, message = "bqk,bkd->bqd"}> : () -> ()
    %cst_26 = arith.constant dense<0.000000e+00> : vector<1x8x64xf32>
    %84 = tpu.matmul %82, %83, %cst_26 {dimension_numbers = #tpu.dot_dimension_numbers<[2], [1], [1], [2], [0, 0, 0, 1, 1, 2], [0], [0]>} : vector<1x8x8xbf16>, vector<1x8x64xbf16>, vector<1x8x64xf32> -> vector<1x8x64xf32>
    "tpu.trace_stop"() : () -> ()
    %85 = vector.extract_strided_slice %14 {offsets = [0, 0, 256], sizes = [1, 8, 64], strides = [1, 1, 1]} : vector<1x8x512xbf16> to vector<1x8x64xbf16>
    %86 = vector.extract_strided_slice %17 {offsets = [0, 0, 256], sizes = [1, 8, 64], strides = [1, 1, 1]} : vector<1x8x512xbf16> to vector<1x8x64xbf16>
    "tpu.trace_start"() <{level = 10 : i32, message = "bqd,bkd->bqk"}> : () -> ()
    %cst_27 = arith.constant dense<0.000000e+00> : vector<1x8x8xf32>
    %87 = tpu.matmul %85, %86, %cst_27 {dimension_numbers = #tpu.dot_dimension_numbers<[2], [2], [1], [1], [0, 0, 0, 1, 1, 1], [0], [0]>} : vector<1x8x64xbf16>, vector<1x8x64xbf16>, vector<1x8x8xf32> -> vector<1x8x8xf32>
    "tpu.trace_stop"() : () -> ()
    %cst_28 = arith.constant dense<0xFF800000> : vector<1x8xf32>
    %88 = vector.multi_reduction <maximumf>, %87, %cst_28 [2] : vector<1x8x8xf32> to vector<1x8xf32>
    %89 = vector.shape_cast %88 : vector<1x8xf32> to vector<1x8x1xf32>
    %90 = vector.broadcast %89 : vector<1x8x1xf32> to vector<1x8x8xf32>
    %91 = arith.subf %87, %90 : vector<1x8x8xf32>
    %92 = math.exp %91 : vector<1x8x8xf32>
    %cst_29 = arith.constant dense<0.000000e+00> : vector<1x8xf32>
    %93 = vector.multi_reduction <add>, %92, %cst_29 [2] : vector<1x8x8xf32> to vector<1x8xf32>
    %94 = vector.shape_cast %93 : vector<1x8xf32> to vector<1x8x1xf32>
    %95 = tpu.reciprocal %94 {approx = true} : vector<1x8x1xf32> -> vector<1x8x1xf32>
    %96 = vector.broadcast %95 : vector<1x8x1xf32> to vector<1x8x8xf32>
    %97 = arith.mulf %92, %96 : vector<1x8x8xf32>
    %98 = arith.truncf %97 : vector<1x8x8xf32> to vector<1x8x8xbf16>
    %99 = vector.extract_strided_slice %20 {offsets = [0, 0, 256], sizes = [1, 8, 64], strides = [1, 1, 1]} : vector<1x8x512xbf16> to vector<1x8x64xbf16>
    "tpu.trace_start"() <{level = 10 : i32, message = "bqk,bkd->bqd"}> : () -> ()
    %cst_30 = arith.constant dense<0.000000e+00> : vector<1x8x64xf32>
    %100 = tpu.matmul %98, %99, %cst_30 {dimension_numbers = #tpu.dot_dimension_numbers<[2], [1], [1], [2], [0, 0, 0, 1, 1, 2], [0], [0]>} : vector<1x8x8xbf16>, vector<1x8x64xbf16>, vector<1x8x64xf32> -> vector<1x8x64xf32>
    "tpu.trace_stop"() : () -> ()
    %101 = vector.extract_strided_slice %14 {offsets = [0, 0, 320], sizes = [1, 8, 64], strides = [1, 1, 1]} : vector<1x8x512xbf16> to vector<1x8x64xbf16>
    %102 = vector.extract_strided_slice %17 {offsets = [0, 0, 320], sizes = [1, 8, 64], strides = [1, 1, 1]} : vector<1x8x512xbf16> to vector<1x8x64xbf16>
    "tpu.trace_start"() <{level = 10 : i32, message = "bqd,bkd->bqk"}> : () -> ()
    %cst_31 = arith.constant dense<0.000000e+00> : vector<1x8x8xf32>
    %103 = tpu.matmul %101, %102, %cst_31 {dimension_numbers = #tpu.dot_dimension_numbers<[2], [2], [1], [1], [0, 0, 0, 1, 1, 1], [0], [0]>} : vector<1x8x64xbf16>, vector<1x8x64xbf16>, vector<1x8x8xf32> -> vector<1x8x8xf32>
    "tpu.trace_stop"() : () -> ()
    %cst_32 = arith.constant dense<0xFF800000> : vector<1x8xf32>
    %104 = vector.multi_reduction <maximumf>, %103, %cst_32 [2] : vector<1x8x8xf32> to vector<1x8xf32>
    %105 = vector.shape_cast %104 : vector<1x8xf32> to vector<1x8x1xf32>
    %106 = vector.broadcast %105 : vector<1x8x1xf32> to vector<1x8x8xf32>
    %107 = arith.subf %103, %106 : vector<1x8x8xf32>
    %108 = math.exp %107 : vector<1x8x8xf32>
    %cst_33 = arith.constant dense<0.000000e+00> : vector<1x8xf32>
    %109 = vector.multi_reduction <add>, %108, %cst_33 [2] : vector<1x8x8xf32> to vector<1x8xf32>
    %110 = vector.shape_cast %109 : vector<1x8xf32> to vector<1x8x1xf32>
    %111 = tpu.reciprocal %110 {approx = true} : vector<1x8x1xf32> -> vector<1x8x1xf32>
    %112 = vector.broadcast %111 : vector<1x8x1xf32> to vector<1x8x8xf32>
    %113 = arith.mulf %108, %112 : vector<1x8x8xf32>
    %114 = arith.truncf %113 : vector<1x8x8xf32> to vector<1x8x8xbf16>
    %115 = vector.extract_strided_slice %20 {offsets = [0, 0, 320], sizes = [1, 8, 64], strides = [1, 1, 1]} : vector<1x8x512xbf16> to vector<1x8x64xbf16>
    "tpu.trace_start"() <{level = 10 : i32, message = "bqk,bkd->bqd"}> : () -> ()
    %cst_34 = arith.constant dense<0.000000e+00> : vector<1x8x64xf32>
    %116 = tpu.matmul %114, %115, %cst_34 {dimension_numbers = #tpu.dot_dimension_numbers<[2], [1], [1], [2], [0, 0, 0, 1, 1, 2], [0], [0]>} : vector<1x8x8xbf16>, vector<1x8x64xbf16>, vector<1x8x64xf32> -> vector<1x8x64xf32>
    "tpu.trace_stop"() : () -> ()
    %117 = vector.extract_strided_slice %14 {offsets = [0, 0, 384], sizes = [1, 8, 64], strides = [1, 1, 1]} : vector<1x8x512xbf16> to vector<1x8x64xbf16>
    %118 = vector.extract_strided_slice %17 {offsets = [0, 0, 384], sizes = [1, 8, 64], strides = [1, 1, 1]} : vector<1x8x512xbf16> to vector<1x8x64xbf16>
    "tpu.trace_start"() <{level = 10 : i32, message = "bqd,bkd->bqk"}> : () -> ()
    %cst_35 = arith.constant dense<0.000000e+00> : vector<1x8x8xf32>
    %119 = tpu.matmul %117, %118, %cst_35 {dimension_numbers = #tpu.dot_dimension_numbers<[2], [2], [1], [1], [0, 0, 0, 1, 1, 1], [0], [0]>} : vector<1x8x64xbf16>, vector<1x8x64xbf16>, vector<1x8x8xf32> -> vector<1x8x8xf32>
    "tpu.trace_stop"() : () -> ()
    %cst_36 = arith.constant dense<0xFF800000> : vector<1x8xf32>
    %120 = vector.multi_reduction <maximumf>, %119, %cst_36 [2] : vector<1x8x8xf32> to vector<1x8xf32>
    %121 = vector.shape_cast %120 : vector<1x8xf32> to vector<1x8x1xf32>
    %122 = vector.broadcast %121 : vector<1x8x1xf32> to vector<1x8x8xf32>
    %123 = arith.subf %119, %122 : vector<1x8x8xf32>
    %124 = math.exp %123 : vector<1x8x8xf32>
    %cst_37 = arith.constant dense<0.000000e+00> : vector<1x8xf32>
    %125 = vector.multi_reduction <add>, %124, %cst_37 [2] : vector<1x8x8xf32> to vector<1x8xf32>
    %126 = vector.shape_cast %125 : vector<1x8xf32> to vector<1x8x1xf32>
    %127 = tpu.reciprocal %126 {approx = true} : vector<1x8x1xf32> -> vector<1x8x1xf32>
    %128 = vector.broadcast %127 : vector<1x8x1xf32> to vector<1x8x8xf32>
    %129 = arith.mulf %124, %128 : vector<1x8x8xf32>
    %130 = arith.truncf %129 : vector<1x8x8xf32> to vector<1x8x8xbf16>
    %131 = vector.extract_strided_slice %20 {offsets = [0, 0, 384], sizes = [1, 8, 64], strides = [1, 1, 1]} : vector<1x8x512xbf16> to vector<1x8x64xbf16>
    "tpu.trace_start"() <{level = 10 : i32, message = "bqk,bkd->bqd"}> : () -> ()
    %cst_38 = arith.constant dense<0.000000e+00> : vector<1x8x64xf32>
    %132 = tpu.matmul %130, %131, %cst_38 {dimension_numbers = #tpu.dot_dimension_numbers<[2], [1], [1], [2], [0, 0, 0, 1, 1, 2], [0], [0]>} : vector<1x8x8xbf16>, vector<1x8x64xbf16>, vector<1x8x64xf32> -> vector<1x8x64xf32>
    "tpu.trace_stop"() : () -> ()
    %133 = vector.extract_strided_slice %14 {offsets = [0, 0, 448], sizes = [1, 8, 64], strides = [1, 1, 1]} : vector<1x8x512xbf16> to vector<1x8x64xbf16>
    %134 = vector.extract_strided_slice %17 {offsets = [0, 0, 448], sizes = [1, 8, 64], strides = [1, 1, 1]} : vector<1x8x512xbf16> to vector<1x8x64xbf16>
    "tpu.trace_start"() <{level = 10 : i32, message = "bqd,bkd->bqk"}> : () -> ()
    %cst_39 = arith.constant dense<0.000000e+00> : vector<1x8x8xf32>
    %135 = tpu.matmul %133, %134, %cst_39 {dimension_numbers = #tpu.dot_dimension_numbers<[2], [2], [1], [1], [0, 0, 0, 1, 1, 1], [0], [0]>} : vector<1x8x64xbf16>, vector<1x8x64xbf16>, vector<1x8x8xf32> -> vector<1x8x8xf32>
    "tpu.trace_stop"() : () -> ()
    %cst_40 = arith.constant dense<0xFF800000> : vector<1x8xf32>
    %136 = vector.multi_reduction <maximumf>, %135, %cst_40 [2] : vector<1x8x8xf32> to vector<1x8xf32>
    %137 = vector.shape_cast %136 : vector<1x8xf32> to vector<1x8x1xf32>
    %138 = vector.broadcast %137 : vector<1x8x1xf32> to vector<1x8x8xf32>
    %139 = arith.subf %135, %138 : vector<1x8x8xf32>
    %140 = math.exp %139 : vector<1x8x8xf32>
    %cst_41 = arith.constant dense<0.000000e+00> : vector<1x8xf32>
    %141 = vector.multi_reduction <add>, %140, %cst_41 [2] : vector<1x8x8xf32> to vector<1x8xf32>
    %142 = vector.shape_cast %141 : vector<1x8xf32> to vector<1x8x1xf32>
    %143 = tpu.reciprocal %142 {approx = true} : vector<1x8x1xf32> -> vector<1x8x1xf32>
    %144 = vector.broadcast %143 : vector<1x8x1xf32> to vector<1x8x8xf32>
    %145 = arith.mulf %140, %144 : vector<1x8x8xf32>
    %146 = arith.truncf %145 : vector<1x8x8xf32> to vector<1x8x8xbf16>
    %147 = vector.extract_strided_slice %20 {offsets = [0, 0, 448], sizes = [1, 8, 64], strides = [1, 1, 1]} : vector<1x8x512xbf16> to vector<1x8x64xbf16>
    "tpu.trace_start"() <{level = 10 : i32, message = "bqk,bkd->bqd"}> : () -> ()
    %cst_42 = arith.constant dense<0.000000e+00> : vector<1x8x64xf32>
    %148 = tpu.matmul %146, %147, %cst_42 {dimension_numbers = #tpu.dot_dimension_numbers<[2], [1], [1], [2], [0, 0, 0, 1, 1, 2], [0], [0]>} : vector<1x8x8xbf16>, vector<1x8x64xbf16>, vector<1x8x64xf32> -> vector<1x8x64xf32>
    "tpu.trace_stop"() : () -> ()
    %149 = tpu.concatenate %36, %52, %68, %84, %100, %116, %132, %148 in 2 : vector<1x8x64xf32>, vector<1x8x64xf32>, vector<1x8x64xf32>, vector<1x8x64xf32>, vector<1x8x64xf32>, vector<1x8x64xf32>, vector<1x8x64xf32>, vector<1x8x64xf32> -> vector<1x8x512xf32>
    %150 = vector.shape_cast %149 : vector<1x8x512xf32> to vector<8x512xf32>
    %151 = arith.truncf %150 : vector<8x512xf32> to vector<8x512xbf16>
    %c0_43 = arith.constant 0 : index
    %c0_44 = arith.constant 0 : index
    %152 = vector.load %arg7[%c0_43, %c0_44] : memref<512x512xbf16, #tpu.memory_space<vmem>>, vector<512x512xbf16>
    %cst_45 = arith.constant dense<0.000000e+00> : vector<8x512xf32>
    %153 = tpu.matmul %151, %152, %cst_45 {dimension_numbers = #tpu.dot_dimension_numbers<[1], [0], [0], [1], [0, 0, 1, 1], [], []>} : vector<8x512xbf16>, vector<512x512xbf16>, vector<8x512xf32> -> vector<8x512xf32>
    %c0_46 = arith.constant 0 : index
    %c0_47 = arith.constant 0 : index
    %154 = vector.load %arg8[%c0_46, %c0_47] : memref<1x512xf32, #tpu.memory_space<vmem>>, vector<1x512xf32>
    %155 = vector.broadcast %154 : vector<1x512xf32> to vector<8x512xf32>
    %156 = arith.addf %153, %155 : vector<8x512xf32>
    %157 = arith.addf %1, %156 : vector<8x512xf32>
    %cst_48 = arith.constant dense<0.000000e+00> : vector<8xf32>
    %158 = vector.multi_reduction <add>, %157, %cst_48 [1] : vector<8x512xf32> to vector<8xf32>
    %159 = vector.shape_cast %158 : vector<8xf32> to vector<8x1xf32>
    %cst_49 = arith.constant 5.120000e+02 : f32
    %160 = vector.broadcast %cst_49 : f32 to vector<8x1xf32>
    %161 = arith.divf %159, %160 : vector<8x1xf32>
    %162 = vector.broadcast %161 : vector<8x1xf32> to vector<8x512xf32>
    %163 = arith.subf %157, %162 : vector<8x512xf32>
    %164 = arith.mulf %163, %163 : vector<8x512xf32>
    %cst_50 = arith.constant dense<0.000000e+00> : vector<8xf32>
    %165 = vector.multi_reduction <add>, %164, %cst_50 [1] : vector<8x512xf32> to vector<8xf32>
    %166 = vector.shape_cast %165 : vector<8xf32> to vector<8x1xf32>
    %cst_51 = arith.constant 5.120000e+02 : f32
    %167 = vector.broadcast %cst_51 : f32 to vector<8x1xf32>
    %168 = arith.divf %166, %167 : vector<8x1xf32>
    %169 = vector.broadcast %161 : vector<8x1xf32> to vector<8x512xf32>
    %170 = arith.subf %157, %169 : vector<8x512xf32>
    %cst_52 = arith.constant 9.99999974E-6 : f32
    %171 = vector.broadcast %cst_52 : f32 to vector<8x1xf32>
    %172 = arith.addf %168, %171 : vector<8x1xf32>
    %173 = math.rsqrt %172 : vector<8x1xf32>
    %174 = vector.broadcast %173 : vector<8x1xf32> to vector<8x512xf32>
    %175 = arith.mulf %170, %174 : vector<8x512xf32>
    %c0_53 = arith.constant 0 : index
    %c0_54 = arith.constant 0 : index
    %176 = vector.load %arg9[%c0_53, %c0_54] : memref<1x512xf32, #tpu.memory_space<vmem>>, vector<1x512xf32>
    %177 = vector.broadcast %176 : vector<1x512xf32> to vector<8x512xf32>
    %178 = arith.mulf %175, %177 : vector<8x512xf32>
    %c0_55 = arith.constant 0 : index
    %c0_56 = arith.constant 0 : index
    %179 = vector.load %arg10[%c0_55, %c0_56] : memref<1x512xf32, #tpu.memory_space<vmem>>, vector<1x512xf32>
    %180 = vector.broadcast %179 : vector<1x512xf32> to vector<8x512xf32>
    %181 = arith.addf %178, %180 : vector<8x512xf32>
    %182 = arith.truncf %181 : vector<8x512xf32> to vector<8x512xbf16>
    %c0_57 = arith.constant 0 : index
    %c0_58 = arith.constant 0 : index
    %183 = vector.load %arg11[%c0_57, %c0_58] : memref<512x512xbf16, #tpu.memory_space<vmem>>, vector<512x512xbf16>
    %cst_59 = arith.constant dense<0.000000e+00> : vector<8x512xf32>
    %184 = tpu.matmul %182, %183, %cst_59 {dimension_numbers = #tpu.dot_dimension_numbers<[1], [0], [0], [1], [0, 0, 1, 1], [], []>} : vector<8x512xbf16>, vector<512x512xbf16>, vector<8x512xf32> -> vector<8x512xf32>
    %c0_60 = arith.constant 0 : index
    %c0_61 = arith.constant 0 : index
    %185 = vector.load %arg12[%c0_60, %c0_61] : memref<1x512xf32, #tpu.memory_space<vmem>>, vector<1x512xf32>
    %186 = vector.broadcast %185 : vector<1x512xf32> to vector<8x512xf32>
    %187 = arith.addf %184, %186 : vector<8x512xf32>
    %cst_62 = arith.constant 0.000000e+00 : f32
    %188 = vector.broadcast %cst_62 : f32 to vector<8x512xf32>
    %189 = arith.maximumf %187, %188 : vector<8x512xf32>
    %190 = arith.truncf %189 : vector<8x512xf32> to vector<8x512xbf16>
    %c0_63 = arith.constant 0 : index
    %c0_64 = arith.constant 0 : index
    %191 = vector.load %arg13[%c0_63, %c0_64] : memref<512x512xbf16, #tpu.memory_space<vmem>>, vector<512x512xbf16>
    %cst_65 = arith.constant dense<0.000000e+00> : vector<8x512xf32>
    %192 = tpu.matmul %190, %191, %cst_65 {dimension_numbers = #tpu.dot_dimension_numbers<[1], [0], [0], [1], [0, 0, 1, 1], [], []>} : vector<8x512xbf16>, vector<512x512xbf16>, vector<8x512xf32> -> vector<8x512xf32>
    %c0_66 = arith.constant 0 : index
    %c0_67 = arith.constant 0 : index
    %193 = vector.load %arg14[%c0_66, %c0_67] : memref<1x512xf32, #tpu.memory_space<vmem>>, vector<1x512xf32>
    %194 = vector.broadcast %193 : vector<1x512xf32> to vector<8x512xf32>
    %195 = arith.addf %192, %194 : vector<8x512xf32>
    %196 = arith.addf %181, %195 : vector<8x512xf32>
    %cst_68 = arith.constant dense<0.000000e+00> : vector<8xf32>
    %197 = vector.multi_reduction <add>, %196, %cst_68 [1] : vector<8x512xf32> to vector<8xf32>
    %198 = vector.shape_cast %197 : vector<8xf32> to vector<8x1xf32>
    %cst_69 = arith.constant 5.120000e+02 : f32
    %199 = vector.broadcast %cst_69 : f32 to vector<8x1xf32>
    %200 = arith.divf %198, %199 : vector<8x1xf32>
    %201 = vector.broadcast %200 : vector<8x1xf32> to vector<8x512xf32>
    %202 = arith.subf %196, %201 : vector<8x512xf32>
    %203 = arith.mulf %202, %202 : vector<8x512xf32>
    %cst_70 = arith.constant dense<0.000000e+00> : vector<8xf32>
    %204 = vector.multi_reduction <add>, %203, %cst_70 [1] : vector<8x512xf32> to vector<8xf32>
    %205 = vector.shape_cast %204 : vector<8xf32> to vector<8x1xf32>
    %cst_71 = arith.constant 5.120000e+02 : f32
    %206 = vector.broadcast %cst_71 : f32 to vector<8x1xf32>
    %207 = arith.divf %205, %206 : vector<8x1xf32>
    %208 = vector.broadcast %200 : vector<8x1xf32> to vector<8x512xf32>
    %209 = arith.subf %196, %208 : vector<8x512xf32>
    %cst_72 = arith.constant 9.99999974E-6 : f32
    %210 = vector.broadcast %cst_72 : f32 to vector<8x1xf32>
    %211 = arith.addf %207, %210 : vector<8x1xf32>
    %212 = math.rsqrt %211 : vector<8x1xf32>
    %213 = vector.broadcast %212 : vector<8x1xf32> to vector<8x512xf32>
    %214 = arith.mulf %209, %213 : vector<8x512xf32>
    %c0_73 = arith.constant 0 : index
    %c0_74 = arith.constant 0 : index
    %215 = vector.load %arg15[%c0_73, %c0_74] : memref<1x512xf32, #tpu.memory_space<vmem>>, vector<1x512xf32>
    %216 = vector.broadcast %215 : vector<1x512xf32> to vector<8x512xf32>
    %217 = arith.mulf %214, %216 : vector<8x512xf32>
    %c0_75 = arith.constant 0 : index
    %c0_76 = arith.constant 0 : index
    %218 = vector.load %arg16[%c0_75, %c0_76] : memref<1x512xf32, #tpu.memory_space<vmem>>, vector<1x512xf32>
    %219 = vector.broadcast %218 : vector<1x512xf32> to vector<8x512xf32>
    %220 = arith.addf %217, %219 : vector<8x512xf32>
    %221 = vector.shape_cast %220 : vector<8x512xf32> to vector<1x8x512xf32>
    %c0_77 = arith.constant 0 : index
    %c0_78 = arith.constant 0 : index
    %c0_79 = arith.constant 0 : index
    %222 = vector.load %arg17[%c0_77, %c0_78, %c0_79] : memref<1x8x512xf32, #tpu.memory_space<vmem>>, vector<1x8x512xf32>
    tpu.vector_store %arg17[%c0_77, %c0_78, %c0_79], %221 {strides = array<i32>} : memref<1x8x512xf32, #tpu.memory_space<vmem>>, vector<1x8x512xf32>,
    return
  }
  func.func @transform_0(%arg0: i32, %arg1: i32) -> (i32, i32, i32) {
    %c0_i32 = arith.constant 0 : i32
    %c0_i32_0 = arith.constant 0 : i32
    return %arg0, %arg1, %c0_i32 : i32, i32, i32
  }
  func.func @transform_1(%arg0: i32, %arg1: i32) -> (i32, i32) {
    %c0_i32 = arith.constant 0 : i32
    %c0_i32_0 = arith.constant 0 : i32
    %c0_i32_1 = arith.constant 0 : i32
    return %c0_i32, %c0_i32_0 : i32, i32
  }
  func.func @transform_2(%arg0: i32, %arg1: i32) -> (i32, i32) {
    %c0_i32 = arith.constant 0 : i32
    %c0_i32_0 = arith.constant 0 : i32
    %c0_i32_1 = arith.constant 0 : i32
    return %c0_i32, %c0_i32_0 : i32, i32
  }
  func.func @transform_3(%arg0: i32, %arg1: i32) -> (i32, i32) {
    %c0_i32 = arith.constant 0 : i32
    %c0_i32_0 = arith.constant 0 : i32
    %c0_i32_1 = arith.constant 0 : i32
    return %c0_i32, %c0_i32_0 : i32, i32
  }
  func.func @transform_4(%arg0: i32, %arg1: i32) -> (i32, i32) {
    %c0_i32 = arith.constant 0 : i32
    %c0_i32_0 = arith.constant 0 : i32
    %c0_i32_1 = arith.constant 0 : i32
    return %c0_i32, %c0_i32_0 : i32, i32
  }
  func.func @transform_5(%arg0: i32, %arg1: i32) -> (i32, i32) {
    %c0_i32 = arith.constant 0 : i32
    %c0_i32_0 = arith.constant 0 : i32
    %c0_i32_1 = arith.constant 0 : i32
    return %c0_i32, %c0_i32_0 : i32, i32
  }
  func.func @transform_6(%arg0: i32, %arg1: i32) -> (i32, i32) {
    %c0_i32 = arith.constant 0 : i32
    %c0_i32_0 = arith.constant 0 : i32
    %c0_i32_1 = arith.constant 0 : i32
    return %c0_i32, %c0_i32_0 : i32, i32
  }
  func.func @transform_7(%arg0: i32, %arg1: i32) -> (i32, i32) {
    %c0_i32 = arith.constant 0 : i32
    %c0_i32_0 = arith.constant 0 : i32
    %c0_i32_1 = arith.constant 0 : i32
    return %c0_i32, %c0_i32_0 : i32, i32
  }
  func.func @transform_8(%arg0: i32, %arg1: i32) -> (i32, i32) {
    %c0_i32 = arith.constant 0 : i32
    %c0_i32_0 = arith.constant 0 : i32
    %c0_i32_1 = arith.constant 0 : i32
    return %c0_i32, %c0_i32_0 : i32, i32
  }
  func.func @transform_9(%arg0: i32, %arg1: i32) -> (i32, i32) {
    %c0_i32 = arith.constant 0 : i32
    %c0_i32_0 = arith.constant 0 : i32
    %c0_i32_1 = arith.constant 0 : i32
    return %c0_i32, %c0_i32_0 : i32, i32
  }
  func.func @transform_10(%arg0: i32, %arg1: i32) -> (i32, i32) {
    %c0_i32 = arith.constant 0 : i32
    %c0_i32_0 = arith.constant 0 : i32
    %c0_i32_1 = arith.constant 0 : i32
    return %c0_i32, %c0_i32_0 : i32, i32
  }
  func.func @transform_11(%arg0: i32, %arg1: i32) -> (i32, i32) {
    %c0_i32 = arith.constant 0 : i32
    %c0_i32_0 = arith.constant 0 : i32
    %c0_i32_1 = arith.constant 0 : i32
    return %c0_i32, %c0_i32_0 : i32, i32
  }
  func.func @transform_12(%arg0: i32, %arg1: i32) -> (i32, i32) {
    %c0_i32 = arith.constant 0 : i32
    %c0_i32_0 = arith.constant 0 : i32
    %c0_i32_1 = arith.constant 0 : i32
    return %c0_i32, %c0_i32_0 : i32, i32
  }
  func.func @transform_13(%arg0: i32, %arg1: i32) -> (i32, i32) {
    %c0_i32 = arith.constant 0 : i32
    %c0_i32_0 = arith.constant 0 : i32
    %c0_i32_1 = arith.constant 0 : i32
    return %c0_i32, %c0_i32_0 : i32, i32
  }
  func.func @transform_14(%arg0: i32, %arg1: i32) -> (i32, i32) {
    %c0_i32 = arith.constant 0 : i32
    %c0_i32_0 = arith.constant 0 : i32
    %c0_i32_1 = arith.constant 0 : i32
    return %c0_i32, %c0_i32_0 : i32, i32
  }
  func.func @transform_15(%arg0: i32, %arg1: i32) -> (i32, i32, i32) {
    %c0_i32 = arith.constant 0 : i32
    %c0_i32_0 = arith.constant 0 : i32
    return %arg0, %arg1, %c0_i32 : i32, i32, i32
  }
}

</mosaic_0001>

<llo_original>
// kernel: tpu_custom_call.1
$region0: #{tpu_custom_call.1}
  #allocation0 [shape = 'u32[]', space=smem, size = 0x4, offset = 0x4, fixed_abs, tag = 'smem constant byte address 0x4 - core index']
  #allocation1 [shape = 'u32[144,128]{1,0:T(1,128)}', space=vmem, size = 0x12000, scoped, tag = 'internal scratch']
  %s0 = inlined_call_operand.hbm [shape: f32[2,8,512], index: 0, kind: input, shape index: {}]
  %s1 = inlined_call_operand.hbm [shape: bf16[512,512], index: 1, kind: input, shape index: {}]
  %s2 = inlined_call_operand.hbm [shape: f32[1,512], index: 2, kind: input, shape index: {}]
  %s3 = inlined_call_operand.hbm [shape: bf16[512,1024], index: 3, kind: input, shape index: {}]
  %s4 = inlined_call_operand.hbm [shape: f32[1,1024], index: 4, kind: input, shape index: {}]
  %s5 = inlined_call_operand.hbm [shape: bf16[512,512], index: 5, kind: input, shape index: {}]
  %s6 = inlined_call_operand.vmem [shape: f32[1,512], index: 6, kind: input, shape index: {}]
  %s7 = inlined_call_operand.vmem [shape: f32[1,512], index: 7, kind: input, shape index: {}]
  %s8 = inlined_call_operand.vmem [shape: f32[1,512], index: 8, kind: input, shape index: {}]
  %s9 = inlined_call_operand.hbm [shape: bf16[512,512], index: 9, kind: input, shape index: {}]
  %s10 = inlined_call_operand.vmem [shape: f32[1,512], index: 10, kind: input, shape index: {}]
  %s11 = inlined_call_operand.hbm [shape: bf16[512,512], index: 11, kind: input, shape index: {}]
  %s12 = inlined_call_operand.vmem [shape: f32[1,512], index: 12, kind: input, shape index: {}]
  %s13 = inlined_call_operand.hbm [shape: f32[1,512], index: 13, kind: input, shape index: {}]
  %s14 = inlined_call_operand.vmem [shape: f32[1,512], index: 14, kind: input, shape index: {}]
  %s15 = inlined_call_operand.hbm [shape: f32[2,8,512], index: 15, kind: output, shape index: {}]
  %s16 = sld [smem:[#allocation0]]
  $region129: #{tpu_custom_call.1} parent=0
    _
  %s18 = ssub.s32 1, %s16
  %s19 = scalar_select 0, %s18, %s16
  $region1: #{tpu_custom_call.1} parent=0
    #allocation2 [shape = 'u8[32768]{0}', space=vmem, size = 0x8000, scoped, tag = 'input window, operand 0']
    #allocation3 [shape = 's32[2]{0}', space=sflag, size = 0x8, scoped, tag = 'scoped memory for tpu_custom_call.1']
    #allocation4 [shape = 's32[2]{0}', space=sflag, size = 0x8, scoped, tag = 'scoped memory for tpu_custom_call.1']
    #allocation5 [shape = 'u8[524288]{0}', space=vmem, size = 0x80000, scoped, tag = 'input window, operand 1, single buffered']
    #allocation6 [shape = 's32[1]{0}', space=sflag, size = 0x4, scoped, tag = 'scoped memory for tpu_custom_call.1']
    #allocation7 [shape = 'u8[2048]{0}', space=vmem, size = 0x800, scoped, tag = 'input window, operand 2, single buffered']
    #allocation8 [shape = 'u8[1048576]{0}', space=vmem, size = 0x100000, scoped, tag = 'input window, operand 3, single buffered']
    #allocation9 [shape = 's32[1]{0}', space=sflag, size = 0x4, scoped, tag = 'scoped memory for tpu_custom_call.1']
    #allocation10 [shape = 'u8[4096]{0}', space=vmem, size = 0x1000, scoped, tag = 'input window, operand 4, single buffered']
    #allocation11 [shape = 'u8[524288]{0}', space=vmem, size = 0x80000, scoped, tag = 'input window, operand 5, single buffered']
    #allocation12 [shape = 's32[1]{0}', space=sflag, size = 0x4, scoped, tag = 'scoped memory for tpu_custom_call.1']
    #allocation13 [shape = 'u8[524288]{0}', space=vmem, size = 0x80000, scoped, tag = 'input window, operand 9, single buffered']
    #allocation14 [shape = 'u8[524288]{0}', space=vmem, size = 0x80000, scoped, tag = 'input window, operand 11, single buffered']
    #allocation15 [shape = 's32[1]{0}', space=sflag, size = 0x4, scoped, tag = 'scoped memory for tpu_custom_call.1']
    #allocation16 [shape = 'u8[2048]{0}', space=vmem, size = 0x800, scoped, tag = 'input window, operand 13, single buffered']
    #allocation17 [shape = 'u8[32768]{0}', space=vmem, size = 0x8000, scoped, tag = 'output window, operand 0']
    %20 = vsyncpa [#allocation3], 0
    %s21 = scalar_lea.sflag [#allocation3], 1
    %22 = vsyncpa %s21, 0
    %23 = vsyncpa [#allocation6], 0
    %24 = vsyncpa [#allocation9], 0
    %25 = vsyncpa [#allocation12], 0
    %26 = vsyncpa [#allocation15], 0
    %27 = vsyncpa [#allocation4], 0
    %s28 = scalar_lea.sflag [#allocation4], 1
    %29 = vsyncpa %s28, 0
    loop: start=0, step=1, limit=4
    $region2: #{tpu_custom_call.1} parent=1 // loop_pre_header
      _
    $region3: #{tpu_custom_call.1} parent=1 // loop_header
      %s31 = sphi 0, %s35
      %p32 = scmp.ge.s32.totalorder %s31, 4
      %s38 = sphi 0, %s50
      %s39 = sphi 0, %s46
      %s40 = sphi 0, %s38
      %s41 = sphi 0, %s39
      %s42 = sphi 0, %s40
      %s43 = sphi 0, %s41
      %s55 = sphi 0, %s57
      %s58 = sphi 0, %s55
      %s59 = sphi 0, %s58
      %s75 = sphi 0, %s59
      %s79 = sphi 0, %s79
      %s81 = sphi 0, %s79
      %s82 = sphi 0, %s81
      %s96 = sphi 0, %s82
      %s100 = sphi 0, %s100
      %s102 = sphi 0, %s100
      %s103 = sphi 0, %s102
      %s117 = sphi 0, %s103
      %s121 = sphi 0, %s121
      %s123 = sphi 0, %s121
      %s124 = sphi 0, %s123
      %s138 = sphi 0, %s124
      %s142 = sphi 0, %s142
      %s144 = sphi 0, %s142
      %s145 = sphi 0, %s144
      %s159 = sphi 0, %s145
      %s163 = sphi 0, %s163
      %s165 = sphi 0, %s163
      %s166 = sphi 0, %s165
      %s180 = sphi 0, %s166
      %s184 = sphi 0, %s184
      %s186 = sphi 0, %s184
      %s187 = sphi 0, %s186
      %s201 = sphi 0, %s187
      %s205 = sphi 0, %s205
      %s207 = sphi 0, %s205
      %s208 = sphi 0, %s207
      %s222 = sphi 0, %s208
      %s226 = sphi 0, %s226
      %s228 = sphi 0, %s226
      %s229 = sphi 0, %s228
      %s243 = sphi 0, %s229
      %s247 = sphi 0, %s247
      %s249 = sphi 0, %s247
      %s250 = sphi 0, %s249
      %s264 = sphi 0, %s250
      %s268 = sphi 0, %s268
      %s270 = sphi 0, %s268
      %s271 = sphi 0, %s270
      %s285 = sphi 0, %s271
      %s289 = sphi 0, %s289
      %s291 = sphi 0, %s289
      %s292 = sphi 0, %s291
      %s306 = sphi 0, %s292
      %s310 = sphi 0, %s310
      %s312 = sphi 0, %s310
      %s313 = sphi 0, %s312
      %s327 = sphi 0, %s313
      %s331 = sphi 0, %s331
      %s333 = sphi 0, %s331
      %s334 = sphi 0, %s333
      %s348 = sphi 0, %s334
      %s352 = sphi 0, %s352
      %s354 = sphi 0, %s352
      %s355 = sphi 0, %s354
      %s369 = sphi 0, %s355
      %s377 = sphi 0, %s379
      %s380 = sphi 0, %s377
      %s381 = sphi 0, %s380
      %s397 = sphi 0, %s381
    $region4: #{tpu_custom_call.1} parent=1 // loop_header_branch
      %34 = sbr.rel (%p32) target = $region8
    $region5: #{tpu_custom_call.1} parent=1 // loop_body
      %s36 = ssub.s32 %s31, 1
      %s37 = ssub.s32 %s31, 2
      %s44 = sadd.s32 1, %s39
      %p45 = scmp.ge.s32.totalorder %s44, 1
      %s46 = scalar_select %p45, 0, %s44
      %s47 = sadd.s32 1, %s38
      %s48 = scalar_select %p45, %s47, %s38
      %p49 = scmp.ge.s32.totalorder %s48, 2
      %s50 = scalar_select %p49, 0, %s48
      %s51 = ssub.s32 %s38, %s50
      %s52 = ssub.s32 %s39, %s46
      %s53 = sor.u32 %s51, %s52
      %p54 = scmp.eq.s32.totalorder %s53, 0
      %s56 = sadd.s32 %s55, 1
      %s57 = scalar_select %p54, %s55, %s56
      %p60 = pneg %p54
      %p61 = scmp.eq.s32.totalorder %s31, 1
      %p62 = por %p60, %p61
      %p63 = scmp.ne.s32.totalorder %s55, %s58
      %p64 = scmp.eq.s32.totalorder %s31, 0
      %p65 = por %p63, %p64
      %p66 = scmp.ne.s32.totalorder %s55, %s58
      %p67 = scmp.eq.s32.totalorder %s36, 1
      %p68 = por %p66, %p67
      %p69 = scmp.ne.s32.totalorder %s58, %s59
      %p70 = scmp.eq.s32.totalorder %s36, 0
      %p71 = por %p69, %p70
      %p72 = scmp.ne.s32.totalorder %s58, %s59
      %p73 = scmp.eq.s32.totalorder %s37, 1
      %p74 = por %p72, %p73
      %p76 = scmp.ne.s32.totalorder %s59, %s75
      %p77 = scmp.eq.s32.totalorder %s37, 0
      %p78 = por %p76, %p77
      %s80 = sadd.s32 %s79, 1
      %p83 = scmp.eq.s32.totalorder %s31, 1
      %p84 = scmp.ne.s32.totalorder %s79, %s81
      %p85 = scmp.eq.s32.totalorder %s31, 0
      %p86 = por %p84, %p85
      %p87 = scmp.ne.s32.totalorder %s79, %s81
      %p88 = scmp.eq.s32.totalorder %s36, 1
      %p89 = por %p87, %p88
      %p90 = scmp.ne.s32.totalorder %s81, %s82
      %p91 = scmp.eq.s32.totalorder %s36, 0
      %p92 = por %p90, %p91
      %p93 = scmp.ne.s32.totalorder %s81, %s82
      %p94 = scmp.eq.s32.totalorder %s37, 1
      %p95 = por %p93, %p94
      %p97 = scmp.ne.s32.totalorder %s82, %s96
      %p98 = scmp.eq.s32.totalorder %s37, 0
      %p99 = por %p97, %p98
      %s101 = sadd.s32 %s100, 1
      %p104 = scmp.eq.s32.totalorder %s31, 1
      %p105 = scmp.ne.s32.totalorder %s100, %s102
      %p106 = scmp.eq.s32.totalorder %s31, 0
      %p107 = por %p105, %p106
      %p108 = scmp.ne.s32.totalorder %s100, %s102
      %p109 = scmp.eq.s32.totalorder %s36, 1
      %p110 = por %p108, %p109
      %p111 = scmp.ne.s32.totalorder %s102, %s103
      %p112 = scmp.eq.s32.totalorder %s36, 0
      %p113 = por %p111, %p112
      %p114 = scmp.ne.s32.totalorder %s102, %s103
      %p115 = scmp.eq.s32.totalorder %s37, 1
      %p116 = por %p114, %p115
      %p118 = scmp.ne.s32.totalorder %s103, %s117
      %p119 = scmp.eq.s32.totalorder %s37, 0
      %p120 = por %p118, %p119
      %s122 = sadd.s32 %s121, 1
      %p125 = scmp.eq.s32.totalorder %s31, 1
      %p126 = scmp.ne.s32.totalorder %s121, %s123
      %p127 = scmp.eq.s32.totalorder %s31, 0
      %p128 = por %p126, %p127
      %p129 = scmp.ne.s32.totalorder %s121, %s123
      %p130 = scmp.eq.s32.totalorder %s36, 1
      %p131 = por %p129, %p130
      %p132 = scmp.ne.s32.totalorder %s123, %s124
      %p133 = scmp.eq.s32.totalorder %s36, 0
      %p134 = por %p132, %p133
      %p135 = scmp.ne.s32.totalorder %s123, %s124
      %p136 = scmp.eq.s32.totalorder %s37, 1
      %p137 = por %p135, %p136
      %p139 = scmp.ne.s32.totalorder %s124, %s138
      %p140 = scmp.eq.s32.totalorder %s37, 0
      %p141 = por %p139, %p140
      %s143 = sadd.s32 %s142, 1
      %p146 = scmp.eq.s32.totalorder %s31, 1
      %p147 = scmp.ne.s32.totalorder %s142, %s144
      %p148 = scmp.eq.s32.totalorder %s31, 0
      %p149 = por %p147, %p148
      %p150 = scmp.ne.s32.totalorder %s142, %s144
      %p151 = scmp.eq.s32.totalorder %s36, 1
      %p152 = por %p150, %p151
      %p153 = scmp.ne.s32.totalorder %s144, %s145
      %p154 = scmp.eq.s32.totalorder %s36, 0
      %p155 = por %p153, %p154
      %p156 = scmp.ne.s32.totalorder %s144, %s145
      %p157 = scmp.eq.s32.totalorder %s37, 1
      %p158 = por %p156, %p157
      %p160 = scmp.ne.s32.totalorder %s145, %s159
      %p161 = scmp.eq.s32.totalorder %s37, 0
      %p162 = por %p160, %p161
      %s164 = sadd.s32 %s163, 1
      %p167 = scmp.eq.s32.totalorder %s31, 1
      %p168 = scmp.ne.s32.totalorder %s163, %s165
      %p169 = scmp.eq.s32.totalorder %s31, 0
      %p170 = por %p168, %p169
      %p171 = scmp.ne.s32.totalorder %s163, %s165
      %p172 = scmp.eq.s32.totalorder %s36, 1
      %p173 = por %p171, %p172
      %p174 = scmp.ne.s32.totalorder %s165, %s166
      %p175 = scmp.eq.s32.totalorder %s36, 0
      %p176 = por %p174, %p175
      %p177 = scmp.ne.s32.totalorder %s165, %s166
      %p178 = scmp.eq.s32.totalorder %s37, 1
      %p179 = por %p177, %p178
      %p181 = scmp.ne.s32.totalorder %s166, %s180
      %p182 = scmp.eq.s32.totalorder %s37, 0
      %p183 = por %p181, %p182
      %s185 = sadd.s32 %s184, 1
      %p188 = scmp.eq.s32.totalorder %s31, 1
      %p189 = scmp.ne.s32.totalorder %s184, %s186
      %p190 = scmp.eq.s32.totalorder %s31, 0
      %p191 = por %p189, %p190
      %p192 = scmp.ne.s32.totalorder %s184, %s186
      %p193 = scmp.eq.s32.totalorder %s36, 1
      %p194 = por %p192, %p193
      %p195 = scmp.ne.s32.totalorder %s186, %s187
      %p196 = scmp.eq.s32.totalorder %s36, 0
      %p197 = por %p195, %p196
      %p198 = scmp.ne.s32.totalorder %s186, %s187
      %p199 = scmp.eq.s32.totalorder %s37, 1
      %p200 = por %p198, %p199
      %p202 = scmp.ne.s32.totalorder %s187, %s201
      %p203 = scmp.eq.s32.totalorder %s37, 0
      %p204 = por %p202, %p203
      %s206 = sadd.s32 %s205, 1
      %p209 = scmp.eq.s32.totalorder %s31, 1
      %p210 = scmp.ne.s32.totalorder %s205, %s207
      %p211 = scmp.eq.s32.totalorder %s31, 0
      %p212 = por %p210, %p211
      %p213 = scmp.ne.s32.totalorder %s205, %s207
      %p214 = scmp.eq.s32.totalorder %s36, 1
      %p215 = por %p213, %p214
      %p216 = scmp.ne.s32.totalorder %s207, %s208
      %p217 = scmp.eq.s32.totalorder %s36, 0
      %p218 = por %p216, %p217
      %p219 = scmp.ne.s32.totalorder %s207, %s208
      %p220 = scmp.eq.s32.totalorder %s37, 1
      %p221 = por %p219, %p220
      %p223 = scmp.ne.s32.totalorder %s208, %s222
      %p224 = scmp.eq.s32.totalorder %s37, 0
      %p225 = por %p223, %p224
      %s227 = sadd.s32 %s226, 1
      %p230 = scmp.eq.s32.totalorder %s31, 1
      %p231 = scmp.ne.s32.totalorder %s226, %s228
      %p232 = scmp.eq.s32.totalorder %s31, 0
      %p233 = por %p231, %p232
      %p234 = scmp.ne.s32.totalorder %s226, %s228
      %p235 = scmp.eq.s32.totalorder %s36, 1
      %p236 = por %p234, %p235
      %p237 = scmp.ne.s32.totalorder %s228, %s229
      %p238 = scmp.eq.s32.totalorder %s36, 0
      %p239 = por %p237, %p238
      %p240 = scmp.ne.s32.totalorder %s228, %s229
      %p241 = scmp.eq.s32.totalorder %s37, 1
      %p242 = por %p240, %p241
      %p244 = scmp.ne.s32.totalorder %s229, %s243
      %p245 = scmp.eq.s32.totalorder %s37, 0
      %p246 = por %p244, %p245
      %s248 = sadd.s32 %s247, 1
      %p251 = scmp.eq.s32.totalorder %s31, 1
      %p252 = scmp.ne.s32.totalorder %s247, %s249
      %p253 = scmp.eq.s32.totalorder %s31, 0
      %p254 = por %p252, %p253
      %p255 = scmp.ne.s32.totalorder %s247, %s249
      %p256 = scmp.eq.s32.totalorder %s36, 1
      %p257 = por %p255, %p256
      %p258 = scmp.ne.s32.totalorder %s249, %s250
      %p259 = scmp.eq.s32.totalorder %s36, 0
      %p260 = por %p258, %p259
      %p261 = scmp.ne.s32.totalorder %s249, %s250
      %p262 = scmp.eq.s32.totalorder %s37, 1
      %p263 = por %p261, %p262
      %p265 = scmp.ne.s32.totalorder %s250, %s264
      %p266 = scmp.eq.s32.totalorder %s37, 0
      %p267 = por %p265, %p266
      %s269 = sadd.s32 %s268, 1
      %p272 = scmp.eq.s32.totalorder %s31, 1
      %p273 = scmp.ne.s32.totalorder %s268, %s270
      %p274 = scmp.eq.s32.totalorder %s31, 0
      %p275 = por %p273, %p274
      %p276 = scmp.ne.s32.totalorder %s268, %s270
      %p277 = scmp.eq.s32.totalorder %s36, 1
      %p278 = por %p276, %p277
      %p279 = scmp.ne.s32.totalorder %s270, %s271
      %p280 = scmp.eq.s32.totalorder %s36, 0
      %p281 = por %p279, %p280
      %p282 = scmp.ne.s32.totalorder %s270, %s271
      %p283 = scmp.eq.s32.totalorder %s37, 1
      %p284 = por %p282, %p283
      %p286 = scmp.ne.s32.totalorder %s271, %s285
      %p287 = scmp.eq.s32.totalorder %s37, 0
      %p288 = por %p286, %p287
      %s290 = sadd.s32 %s289, 1
      %p293 = scmp.eq.s32.totalorder %s31, 1
      %p294 = scmp.ne.s32.totalorder %s289, %s291
      %p295 = scmp.eq.s32.totalorder %s31, 0
      %p296 = por %p294, %p295
      %p297 = scmp.ne.s32.totalorder %s289, %s291
      %p298 = scmp.eq.s32.totalorder %s36, 1
      %p299 = por %p297, %p298
      %p300 = scmp.ne.s32.totalorder %s291, %s292
      %p301 = scmp.eq.s32.totalorder %s36, 0
      %p302 = por %p300, %p301
      %p303 = scmp.ne.s32.totalorder %s291, %s292
      %p304 = scmp.eq.s32.totalorder %s37, 1
      %p305 = por %p303, %p304
      %p307 = scmp.ne.s32.totalorder %s292, %s306
      %p308 = scmp.eq.s32.totalorder %s37, 0
      %p309 = por %p307, %p308
      %s311 = sadd.s32 %s310, 1
      %p314 = scmp.eq.s32.totalorder %s31, 1
      %p315 = scmp.ne.s32.totalorder %s310, %s312
      %p316 = scmp.eq.s32.totalorder %s31, 0
      %p317 = por %p315, %p316
      %p318 = scmp.ne.s32.totalorder %s310, %s312
      %p319 = scmp.eq.s32.totalorder %s36, 1
      %p320 = por %p318, %p319
      %p321 = scmp.ne.s32.totalorder %s312, %s313
      %p322 = scmp.eq.s32.totalorder %s36, 0
      %p323 = por %p321, %p322
      %p324 = scmp.ne.s32.totalorder %s312, %s313
      %p325 = scmp.eq.s32.totalorder %s37, 1
      %p326 = por %p324, %p325
      %p328 = scmp.ne.s32.totalorder %s313, %s327
      %p329 = scmp.eq.s32.totalorder %s37, 0
      %p330 = por %p328, %p329
      %s332 = sadd.s32 %s331, 1
      %p335 = scmp.eq.s32.totalorder %s31, 1
      %p336 = scmp.ne.s32.totalorder %s331, %s333
      %p337 = scmp.eq.s32.totalorder %s31, 0
      %p338 = por %p336, %p337
      %p339 = scmp.ne.s32.totalorder %s331, %s333
      %p340 = scmp.eq.s32.totalorder %s36, 1
      %p341 = por %p339, %p340
      %p342 = scmp.ne.s32.totalorder %s333, %s334
      %p343 = scmp.eq.s32.totalorder %s36, 0
      %p344 = por %p342, %p343
      %p345 = scmp.ne.s32.totalorder %s333, %s334
      %p346 = scmp.eq.s32.totalorder %s37, 1
      %p347 = por %p345, %p346
      %p349 = scmp.ne.s32.totalorder %s334, %s348
      %p350 = scmp.eq.s32.totalorder %s37, 0
      %p351 = por %p349, %p350
      %s353 = sadd.s32 %s352, 1
      %p356 = scmp.eq.s32.totalorder %s31, 1
      %p357 = scmp.ne.s32.totalorder %s352, %s354
      %p358 = scmp.eq.s32.totalorder %s31, 0
      %p359 = por %p357, %p358
      %p360 = scmp.ne.s32.totalorder %s352, %s354
      %p361 = scmp.eq.s32.totalorder %s36, 1
      %p362 = por %p360, %p361
      %p363 = scmp.ne.s32.totalorder %s354, %s355
      %p364 = scmp.eq.s32.totalorder %s36, 0
      %p365 = por %p363, %p364
      %p366 = scmp.ne.s32.totalorder %s354, %s355
      %p367 = scmp.eq.s32.totalorder %s37, 1
      %p368 = por %p366, %p367
      %p370 = scmp.ne.s32.totalorder %s355, %s369
      %p371 = scmp.eq.s32.totalorder %s37, 0
      %p372 = por %p370, %p371
      %s373 = ssub.s32 %s38, %s50
      %s374 = ssub.s32 %s39, %s46
      %s375 = sor.u32 %s373, %s374
      %p376 = scmp.eq.s32.totalorder %s375, 0
      %s378 = sadd.s32 %s377, 1
      %s379 = scalar_select %p376, %s377, %s378
      %p382 = pneg %p376
      %p383 = scmp.eq.s32.totalorder %s31, 1
      %p384 = por %p382, %p383
      %p385 = scmp.ne.s32.totalorder %s377, %s380
      %p386 = scmp.eq.s32.totalorder %s31, 0
      %p387 = por %p385, %p386
      %p388 = scmp.ne.s32.totalorder %s377, %s380
      %p389 = scmp.eq.s32.totalorder %s36, 1
      %p390 = por %p388, %p389
      %p391 = scmp.ne.s32.totalorder %s380, %s381
      %p392 = scmp.eq.s32.totalorder %s36, 0
      %p393 = por %p391, %p392
      %p394 = scmp.ne.s32.totalorder %s380, %s381
      %p395 = scmp.eq.s32.totalorder %s37, 1
      %p396 = por %p394, %p395
      %p398 = scmp.ne.s32.totalorder %s381, %s397
      %p399 = scmp.eq.s32.totalorder %s37, 0
      %p400 = por %p398, %p399
      %p401 = scmp.le.s32.totalorder 1, %s31
      %p402 = scmp.lt.s32.totalorder %s31, 3
      %p403 = pnand %p401, %p402
      %p404 = pneg %p403
      // Predicated region
      $region9: #{tpu_custom_call.1} parent=5 // pred_check
        _
      $region10: #{tpu_custom_call.1} parent=5 // pred_check_branch
        %406 = sbr.rel (%p403) target = $region12
      $region11: #{tpu_custom_call.1} parent=5 // pred_region
        %s407 = ssub.s32 %s31, 1
        // Predicated region
        $region13: #{tpu_custom_call.1} parent=11 // pred_check
          %p408 = pneg %p92
        $region14: #{tpu_custom_call.1} parent=11 // pred_check_branch
          %410 = sbr.rel (%p408) target = $region16
        $region15: #{tpu_custom_call.1} parent=11 // pred_region
          %s412 = ssub.s32 16384, 16384
          %413 = vsyncadd [#allocation6], %s412
          %s414 = sshll.u32 [#allocation5], 4
          %s415 = int_to_ptr.vmem [resolvable:$true] %s414
          %420 = dma.hbm_to_vmem [thread:$0]  %s1, 16384, %s415, [#allocation6], 256, 256, 16
        $region16: #{tpu_custom_call.1} parent=11 // pred_fallthru
          _
        // Predicated region
        $region17: #{tpu_custom_call.1} parent=11 // pred_check
          %p421 = pneg %p113
        $region18: #{tpu_custom_call.1} parent=11 // pred_check_branch
          %423 = sbr.rel (%p421) target = $region20
        $region19: #{tpu_custom_call.1} parent=11 // pred_region
          %s425 = ssub.s32 64, 64
          %426 = vsyncadd [#allocation6], %s425
          %s428 = sshll.u32 [#allocation7], 4
          %s429 = int_to_ptr.vmem [resolvable:$true] %s428
          %431 = dma.hbm_to_vmem [thread:$0]  %s2, 64, %s429, [#allocation6]
        $region20: #{tpu_custom_call.1} parent=11 // pred_fallthru
          _
        // Predicated region
        $region21: #{tpu_custom_call.1} parent=11 // pred_check
          %p432 = pneg %p134
        $region22: #{tpu_custom_call.1} parent=11 // pred_check_branch
          %434 = sbr.rel (%p432) target = $region24
        $region23: #{tpu_custom_call.1} parent=11 // pred_region
          %s436 = ssub.s32 32768, 32768
          %437 = vsyncadd [#allocation9], %s436
          %s438 = sshll.u32 [#allocation8], 4
          %s439 = int_to_ptr.vmem [resolvable:$true] %s438
          %444 = dma.hbm_to_vmem [thread:$0]  %s3, 32768, %s439, [#allocation9], 512, 512, 32
        $region24: #{tpu_custom_call.1} parent=11 // pred_fallthru
          _
        // Predicated region
        $region25: #{tpu_custom_call.1} parent=11 // pred_check
          %p445 = pneg %p155
        $region26: #{tpu_custom_call.1} parent=11 // pred_check_branch
          %447 = sbr.rel (%p445) target = $region28
        $region27: #{tpu_custom_call.1} parent=11 // pred_region
          %s449 = ssub.s32 128, 128
          %450 = vsyncadd [#allocation9], %s449
          %s452 = sshll.u32 [#allocation10], 4
          %s453 = int_to_ptr.vmem [resolvable:$true] %s452
          %455 = dma.hbm_to_vmem [thread:$0]  %s4, 128, %s453, [#allocation9]
        $region28: #{tpu_custom_call.1} parent=11 // pred_fallthru
          _
        // Predicated region
        $region29: #{tpu_custom_call.1} parent=11 // pred_check
          %p456 = pneg %p176
        $region30: #{tpu_custom_call.1} parent=11 // pred_check_branch
          %458 = sbr.rel (%p456) target = $region32
        $region31: #{tpu_custom_call.1} parent=11 // pred_region
          %s460 = ssub.s32 16384, 16384
          %461 = vsyncadd [#allocation12], %s460
          %s462 = sshll.u32 [#allocation11], 4
          %s463 = int_to_ptr.vmem [resolvable:$true] %s462
          %468 = dma.hbm_to_vmem [thread:$0]  %s5, 16384, %s463, [#allocation12], 256, 256, 16
        $region32: #{tpu_custom_call.1} parent=11 // pred_fallthru
          _
        // Predicated region
        $region33: #{tpu_custom_call.1} parent=11 // pred_check
          %p469 = pneg %p197
        $region34: #{tpu_custom_call.1} parent=11 // pred_check_branch
          %471 = sbr.rel (%p469) target = $region36
        $region35: #{tpu_custom_call.1} parent=11 // pred_region
          _
        $region36: #{tpu_custom_call.1} parent=11 // pred_fallthru
          _
        // Predicated region
        $region37: #{tpu_custom_call.1} parent=11 // pred_check
          %p472 = pneg %p218
        $region38: #{tpu_custom_call.1} parent=11 // pred_check_branch
          %474 = sbr.rel (%p472) target = $region40
        $region39: #{tpu_custom_call.1} parent=11 // pred_region
          _
        $region40: #{tpu_custom_call.1} parent=11 // pred_fallthru
          _
        // Predicated region
        $region41: #{tpu_custom_call.1} parent=11 // pred_check
          %p475 = pneg %p239
        $region42: #{tpu_custom_call.1} parent=11 // pred_check_branch
          %477 = sbr.rel (%p475) target = $region44
        $region43: #{tpu_custom_call.1} parent=11 // pred_region
          _
        $region44: #{tpu_custom_call.1} parent=11 // pred_fallthru
          _
        // Predicated region
        $region45: #{tpu_custom_call.1} parent=11 // pred_check
          %p478 = pneg %p260
        $region46: #{tpu_custom_call.1} parent=11 // pred_check_branch
          %480 = sbr.rel (%p478) target = $region48
        $region47: #{tpu_custom_call.1} parent=11 // pred_region
          %s482 = ssub.s32 16384, 16384
          %483 = vsyncadd [#allocation12], %s482
          %s484 = sshll.u32 [#allocation13], 4
          %s485 = int_to_ptr.vmem [resolvable:$true] %s484
          %490 = dma.hbm_to_vmem [thread:$0]  %s9, 16384, %s485, [#allocation12], 256, 256, 16
        $region48: #{tpu_custom_call.1} parent=11 // pred_fallthru
          _
        // Predicated region
        $region49: #{tpu_custom_call.1} parent=11 // pred_check
          %p491 = pneg %p281
        $region50: #{tpu_custom_call.1} parent=11 // pred_check_branch
          %493 = sbr.rel (%p491) target = $region52
        $region51: #{tpu_custom_call.1} parent=11 // pred_region
          _
        $region52: #{tpu_custom_call.1} parent=11 // pred_fallthru
          _
        // Predicated region
        $region53: #{tpu_custom_call.1} parent=11 // pred_check
          %p494 = pneg %p302
        $region54: #{tpu_custom_call.1} parent=11 // pred_check_branch
          %496 = sbr.rel (%p494) target = $region56
        $region55: #{tpu_custom_call.1} parent=11 // pred_region
          %s498 = ssub.s32 16384, 16384
          %499 = vsyncadd [#allocation15], %s498
          %s500 = sshll.u32 [#allocation14], 4
          %s501 = int_to_ptr.vmem [resolvable:$true] %s500
          %506 = dma.hbm_to_vmem [thread:$0]  %s11, 16384, %s501, [#allocation15], 256, 256, 16
        $region56: #{tpu_custom_call.1} parent=11 // pred_fallthru
          _
        // Predicated region
        $region57: #{tpu_custom_call.1} parent=11 // pred_check
          %p507 = pneg %p323
        $region58: #{tpu_custom_call.1} parent=11 // pred_check_branch
          %509 = sbr.rel (%p507) target = $region60
        $region59: #{tpu_custom_call.1} parent=11 // pred_region
          _
        $region60: #{tpu_custom_call.1} parent=11 // pred_fallthru
          _
        // Predicated region
        $region61: #{tpu_custom_call.1} parent=11 // pred_check
          %p510 = pneg %p344
        $region62: #{tpu_custom_call.1} parent=11 // pred_check_branch
          %512 = sbr.rel (%p510) target = $region64
        $region63: #{tpu_custom_call.1} parent=11 // pred_region
          %s514 = ssub.s32 64, 64
          %515 = vsyncadd [#allocation15], %s514
          %s517 = sshll.u32 [#allocation16], 4
          %s518 = int_to_ptr.vmem [resolvable:$true] %s517
          %520 = dma.hbm_to_vmem [thread:$0]  %s13, 64, %s518, [#allocation15]
        $region64: #{tpu_custom_call.1} parent=11 // pred_fallthru
          _
        // Predicated region
        $region65: #{tpu_custom_call.1} parent=11 // pred_check
          %p521 = pneg %p365
        $region66: #{tpu_custom_call.1} parent=11 // pred_check_branch
          %523 = sbr.rel (%p521) target = $region68
        $region67: #{tpu_custom_call.1} parent=11 // pred_region
          _
        $region68: #{tpu_custom_call.1} parent=11 // pred_fallthru
          _
      $region12: #{tpu_custom_call.1} parent=5 // pred_fallthru
        _
      %p524 = scmp.lt.s32.totalorder %s31, 2
      // Predicated region
      $region69: #{tpu_custom_call.1} parent=5 // pred_check
        %p525 = pneg %p524
      $region70: #{tpu_custom_call.1} parent=5 // pred_check_branch
        %527 = sbr.rel (%p525) target = $region72
      $region71: #{tpu_custom_call.1} parent=5 // pred_region
        // Predicated region
        $region73: #{tpu_custom_call.1} parent=71 // pred_check
          %p528 = pneg %p65
        $region74: #{tpu_custom_call.1} parent=71 // pred_check_branch
          %530 = sbr.rel (%p528) target = $region76
        $region75: #{tpu_custom_call.1} parent=71 // pred_region
          %s531 = sand.u32 %s55, 1
          %s532 = scalar_lea.sflag [#allocation3], %s531
          %s533 = sand.u32 %s55, 1
          %s534 = smul.addr %s533, 32
          %s535 = scalar_lea.vmem [#allocation2], %s534
          %s537 = ssub.s32 512, 512
          %538 = vsyncadd %s532, %s537
          %s539 = smul.addr %s39, 4
          %s540 = smul.addr %s38, 4
          %s541 = sadd.s32 %s539, %s540
          %s542 = smul.addr %s541, 128
          %s543 = scalar_lea.hbm %s0, %s542
          %s545 = sshll.u32 %s535, 4
          %s546 = int_to_ptr.vmem [resolvable:$true] %s545
          %548 = dma.hbm_to_vmem [thread:$0]  %s543, 512, %s546, %s532
        $region76: #{tpu_custom_call.1} parent=71 // pred_fallthru
          _
      $region72: #{tpu_custom_call.1} parent=5 // pred_fallthru
        _
      %p549 = scmp.le.s32.totalorder 1, %s31
      %p550 = scmp.lt.s32.totalorder %s31, 3
      %p551 = pnand %p549, %p550
      %p552 = pneg %p551
      // Predicated region
      $region77: #{tpu_custom_call.1} parent=5 // pred_check
        _
      $region78: #{tpu_custom_call.1} parent=5 // pred_check_branch
        %554 = sbr.rel (%p551) target = $region80
      $region79: #{tpu_custom_call.1} parent=5 // pred_region
        %s555 = ssub.s32 %s31, 1
        %s556 = sand.u32 %s58, 1
        %s557 = scalar_lea.sflag [#allocation3], %s556
        %s558 = sand.u32 %s58, 1
        %s559 = smul.addr %s558, 32
        %s560 = scalar_lea.vmem [#allocation2], %s559
        // Predicated region
        $region81: #{tpu_custom_call.1} parent=79 // pred_check
          %p561 = pneg %p71
        $region82: #{tpu_custom_call.1} parent=79 // pred_check_branch
          %563 = sbr.rel (%p561) target = $region84
        $region83: #{tpu_custom_call.1} parent=79 // pred_region
          %564 = dma.done %s557, 512
        $region84: #{tpu_custom_call.1} parent=79 // pred_fallthru
          _
        // Predicated region
        $region85: #{tpu_custom_call.1} parent=79 // pred_check
          %p565 = pneg %p92
        $region86: #{tpu_custom_call.1} parent=79 // pred_check_branch
          %567 = sbr.rel (%p565) target = $region88
        $region87: #{tpu_custom_call.1} parent=79 // pred_region
          %568 = dma.done [#allocation6], 16384
        $region88: #{tpu_custom_call.1} parent=79 // pred_fallthru
          _
        // Predicated region
        $region89: #{tpu_custom_call.1} parent=79 // pred_check
          %p569 = pneg %p113
        $region90: #{tpu_custom_call.1} parent=79 // pred_check_branch
          %571 = sbr.rel (%p569) target = $region92
        $region91: #{tpu_custom_call.1} parent=79 // pred_region
          %572 = dma.done [#allocation6], 64
        $region92: #{tpu_custom_call.1} parent=79 // pred_fallthru
          _
        // Predicated region
        $region93: #{tpu_custom_call.1} parent=79 // pred_check
          %p573 = pneg %p134
        $region94: #{tpu_custom_call.1} parent=79 // pred_check_branch
          %575 = sbr.rel (%p573) target = $region96
        $region95: #{tpu_custom_call.1} parent=79 // pred_region
          %576 = dma.done [#allocation9], 32768
        $region96: #{tpu_custom_call.1} parent=79 // pred_fallthru
          _
        // Predicated region
        $region97: #{tpu_custom_call.1} parent=79 // pred_check
          %p577 = pneg %p155
        $region98: #{tpu_custom_call.1} parent=79 // pred_check_branch
          %579 = sbr.rel (%p577) target = $region100
        $region99: #{tpu_custom_call.1} parent=79 // pred_region
          %580 = dma.done [#allocation9], 128
        $region100: #{tpu_custom_call.1} parent=79 // pred_fallthru
          _
        // Predicated region
        $region101: #{tpu_custom_call.1} parent=79 // pred_check
          %p581 = pneg %p176
        $region102: #{tpu_custom_call.1} parent=79 // pred_check_branch
          %583 = sbr.rel (%p581) target = $region104
        $region103: #{tpu_custom_call.1} parent=79 // pred_region
          %584 = dma.done [#allocation12], 16384
        $region104: #{tpu_custom_call.1} parent=79 // pred_fallthru
          _
        // Predicated region
        $region105: #{tpu_custom_call.1} parent=79 // pred_check
          %p585 = pneg %p260
        $region106: #{tpu_custom_call.1} parent=79 // pred_check_branch
          %587 = sbr.rel (%p585) target = $region108
        $region107: #{tpu_custom_call.1} parent=79 // pred_region
          %588 = dma.done [#allocation12], 16384
        $region108: #{tpu_custom_call.1} parent=79 // pred_fallthru
          _
        // Predicated region
        $region109: #{tpu_custom_call.1} parent=79 // pred_check
          %p589 = pneg %p302
        $region110: #{tpu_custom_call.1} parent=79 // pred_check_branch
          %591 = sbr.rel (%p589) target = $region112
        $region111: #{tpu_custom_call.1} parent=79 // pred_region
          %592 = dma.done [#allocation15], 16384
        $region112: #{tpu_custom_call.1} parent=79 // pred_fallthru
          _
        // Predicated region
        $region113: #{tpu_custom_call.1} parent=79 // pred_check
          %p593 = pneg %p344
        $region114: #{tpu_custom_call.1} parent=79 // pred_check_branch
          %595 = sbr.rel (%p593) target = $region116
        $region115: #{tpu_custom_call.1} parent=79 // pred_region
          %596 = dma.done [#allocation15], 64
        $region116: #{tpu_custom_call.1} parent=79 // pred_fallthru
          _
        %s597 = sand.u32 %s58, 1
        %s598 = scalar_lea.sflag [#allocation3], %s597
        %s599 = sand.u32 %s58, 1
        %s600 = smul.addr %s599, 32
        %s601 = scalar_lea.vmem [#allocation2], %s600
        %p602 = pneg %p71
        %p603 = pneg %p68
        %p604 = pneg %p92
        %p605 = pneg %p89
        %p606 = pneg %p113
        %p607 = pneg %p110
        %p608 = pneg %p134
        %p609 = pneg %p131
        %p610 = pneg %p155
        %p611 = pneg %p152
        %p612 = pneg %p176
        %p613 = pneg %p173
        %p614 = pneg %p197
        %p615 = pneg %p194
        %p616 = pneg %p218
        %p617 = pneg %p215
        %p618 = pneg %p239
        %p619 = pneg %p236
        %p620 = pneg %p260
        %p621 = pneg %p257
        %p622 = pneg %p281
        %p623 = pneg %p278
        %p624 = pneg %p302
        %p625 = pneg %p299
        %p626 = pneg %p323
        %p627 = pneg %p320
        %p628 = pneg %p344
        %p629 = pneg %p341
        %p630 = pneg %p365
        %p631 = pneg %p362
        %p632 = pneg %p393
        %p633 = pneg %p390
        %s634 = sand.u32 %s380, 1
        %s635 = scalar_lea.sflag [#allocation4], %s634
        %s636 = sand.u32 %s380, 1
        %s637 = smul.addr %s636, 32
        %s638 = scalar_lea.vmem [#allocation17], %s637
        %v640 = vld [vmem:[%s560] sm:$0xff]
        %v641 = vld [vmem:[%s560 + $0x8] sm:$0xff]
        %v642 = vld [vmem:[%s560 + $0x10] sm:$0xff]
        %v643 = vld [vmem:[%s560 + $0x18] sm:$0xff]
        %v644 = vpack.c.bf16 %v640, %v640
        %v645 = vpack.c.bf16 %v641, %v641
        %v646 = vpack.c.bf16 %v642, %v642
        %v647 = vpack.c.bf16 %v643, %v643
        %v648 = vld [vmem:[#allocation5] sm:$0xff]
        %v649 = vld [vmem:[#allocation5 + $0x8] sm:$0xff]
        %v650 = vld [vmem:[#allocation5 + $0x10] sm:$0xff]
        %v651 = vld [vmem:[#allocation5 + $0x18] sm:$0xff]
        %v652 = vld [vmem:[#allocation5 + $0x20] sm:$0xff]
        %v653 = vld [vmem:[#allocation5 + $0x28] sm:$0xff]
        %v654 = vld [vmem:[#allocation5 + $0x30] sm:$0xff]
        %v655 = vld [vmem:[#allocation5 + $0x38] sm:$0xff]
        %v656 = vld [vmem:[#allocation5 + $0x40] sm:$0xff]
        %v657 = vld [vmem:[#allocation5 + $0x48] sm:$0xff]
        %v658 = vld [vmem:[#allocation5 + $0x50] sm:$0xff]
        %v659 = vld [vmem:[#allocation5 + $0x58] sm:$0xff]
        %v660 = vld [vmem:[#allocation5 + $0x60] sm:$0xff]
        %v661 = vld [vmem:[#allocation5 + $0x68] sm:$0xff]
        %v662 = vld [vmem:[#allocation5 + $0x70] sm:$0xff]
        %v663 = vld [vmem:[#allocation5 + $0x78] sm:$0xff]
        %v664 = vld [vmem:[#allocation5 + $0x80] sm:$0xff]
        %v665 = vld [vmem:[#allocation5 + $0x88] sm:$0xff]
        %v666 = vld [vmem:[#allocation5 + $0x90] sm:$0xff]
        %v667 = vld [vmem:[#allocation5 + $0x98] sm:$0xff]
        %v668 = vld [vmem:[#allocation5 + $0xa0] sm:$0xff]
        %v669 = vld [vmem:[#allocation5 + $0xa8] sm:$0xff]
        %v670 = vld [vmem:[#allocation5 + $0xb0] sm:$0xff]
        %v671 = vld [vmem:[#allocation5 + $0xb8] sm:$0xff]
        %v672 = vld [vmem:[#allocation5 + $0xc0] sm:$0xff]
        %v673 = vld [vmem:[#allocation5 + $0xc8] sm:$0xff]
        %v674 = vld [vmem:[#allocation5 + $0xd0] sm:$0xff]
        %v675 = vld [vmem:[#allocation5 + $0xd8] sm:$0xff]
        %v676 = vld [vmem:[#allocation5 + $0xe0] sm:$0xff]
        %v677 = vld [vmem:[#allocation5 + $0xe8] sm:$0xff]
        %v678 = vld [vmem:[#allocation5 + $0xf0] sm:$0xff]
        %v679 = vld [vmem:[#allocation5 + $0xf8] sm:$0xff]
        %v680 = vld [vmem:[#allocation5 + $0x100] sm:$0xff]
        %v681 = vld [vmem:[#allocation5 + $0x108] sm:$0xff]
        %v682 = vld [vmem:[#allocation5 + $0x110] sm:$0xff]
        %v683 = vld [vmem:[#allocation5 + $0x118] sm:$0xff]
        %v684 = vld [vmem:[#allocation5 + $0x120] sm:$0xff]
        %v685 = vld [vmem:[#allocation5 + $0x128] sm:$0xff]
        %v686 = vld [vmem:[#allocation5 + $0x130] sm:$0xff]
        %v687 = vld [vmem:[#allocation5 + $0x138] sm:$0xff]
        %v688 = vld [vmem:[#allocation5 + $0x140] sm:$0xff]
        %v689 = vld [vmem:[#allocation5 + $0x148] sm:$0xff]
        %v690 = vld [vmem:[#allocation5 + $0x150] sm:$0xff]
        %v691 = vld [vmem:[#allocation5 + $0x158] sm:$0xff]
        %v692 = vld [vmem:[#allocation5 + $0x160] sm:$0xff]
        %v693 = vld [vmem:[#allocation5 + $0x168] sm:$0xff]
        %v694 = vld [vmem:[#allocation5 + $0x170] sm:$0xff]
        %v695 = vld [vmem:[#allocation5 + $0x178] sm:$0xff]
        %v696 = vld [vmem:[#allocation5 + $0x180] sm:$0xff]
        %v697 = vld [vmem:[#allocation5 + $0x188] sm:$0xff]
        %v698 = vld [vmem:[#allocation5 + $0x190] sm:$0xff]
        %v699 = vld [vmem:[#allocation5 + $0x198] sm:$0xff]
        %v700 = vld [vmem:[#allocation5 + $0x1a0] sm:$0xff]
        %v701 = vld [vmem:[#allocation5 + $0x1a8] sm:$0xff]
        %v702 = vld [vmem:[#allocation5 + $0x1b0] sm:$0xff]
        %v703 = vld [vmem:[#allocation5 + $0x1b8] sm:$0xff]
        %v704 = vld [vmem:[#allocation5 + $0x1c0] sm:$0xff]
        %v705 = vld [vmem:[#allocation5 + $0x1c8] sm:$0xff]
        %v706 = vld [vmem:[#allocation5 + $0x1d0] sm:$0xff]
        %v707 = vld [vmem:[#allocation5 + $0x1d8] sm:$0xff]
        %v708 = vld [vmem:[#allocation5 + $0x1e0] sm:$0xff]
        %v709 = vld [vmem:[#allocation5 + $0x1e8] sm:$0xff]
        %v710 = vld [vmem:[#allocation5 + $0x1f0] sm:$0xff]
        %v711 = vld [vmem:[#allocation5 + $0x1f8] sm:$0xff]
        %v712 = vld [vmem:[#allocation5 + $0x200] sm:$0xff]
        %v713 = vld [vmem:[#allocation5 + $0x208] sm:$0xff]
        %v714 = vld [vmem:[#allocation5 + $0x210] sm:$0xff]
        %v715 = vld [vmem:[#allocation5 + $0x218] sm:$0xff]
        %v716 = vld [vmem:[#allocation5 + $0x220] sm:$0xff]
        %v717 = vld [vmem:[#allocation5 + $0x228] sm:$0xff]
        %v718 = vld [vmem:[#allocation5 + $0x230] sm:$0xff]
        %v719 = vld [vmem:[#allocation5 + $0x238] sm:$0xff]
        %v720 = vld [vmem:[#allocation5 + $0x240] sm:$0xff]
        %v721 = vld [vmem:[#allocation5 + $0x248] sm:$0xff]
        %v722 = vld [vmem:[#allocation5 + $0x250] sm:$0xff]
        %v723 = vld [vmem:[#allocation5 + $0x258] sm:$0xff]
        %v724 = vld [vmem:[#allocation5 + $0x260] sm:$0xff]
        %v725 = vld [vmem:[#allocation5 + $0x268] sm:$0xff]
        %v726 = vld [vmem:[#allocation5 + $0x270] sm:$0xff]
        %v727 = vld [vmem:[#allocation5 + $0x278] sm:$0xff]
        %v728 = vld [vmem:[#allocation5 + $0x280] sm:$0xff]
        %v729 = vld [vmem:[#allocation5 + $0x288] sm:$0xff]
        %v730 = vld [vmem:[#allocation5 + $0x290] sm:$0xff]
        %v731 = vld [vmem:[#allocation5 + $0x298] sm:$0xff]
        %v732 = vld [vmem:[#allocation5 + $0x2a0] sm:$0xff]
        %v733 = vld [vmem:[#allocation5 + $0x2a8] sm:$0xff]
        %v734 = vld [vmem:[#allocation5 + $0x2b0] sm:$0xff]
        %v735 = vld [vmem:[#allocation5 + $0x2b8] sm:$0xff]
        %v736 = vld [vmem:[#allocation5 + $0x2c0] sm:$0xff]
        %v737 = vld [vmem:[#allocation5 + $0x2c8] sm:$0xff]
        %v738 = vld [vmem:[#allocation5 + $0x2d0] sm:$0xff]
        %v739 = vld [vmem:[#allocation5 + $0x2d8] sm:$0xff]
        %v740 = vld [vmem:[#allocation5 + $0x2e0] sm:$0xff]
        %v741 = vld [vmem:[#allocation5 + $0x2e8] sm:$0xff]
        %v742 = vld [vmem:[#allocation5 + $0x2f0] sm:$0xff]
        %v743 = vld [vmem:[#allocation5 + $0x2f8] sm:$0xff]
        %v744 = vld [vmem:[#allocation5 + $0x300] sm:$0xff]
        %v745 = vld [vmem:[#allocation5 + $0x308] sm:$0xff]
        %v746 = vld [vmem:[#allocation5 + $0x310] sm:$0xff]
        %v747 = vld [vmem:[#allocation5 + $0x318] sm:$0xff]
        %v748 = vld [vmem:[#allocation5 + $0x320] sm:$0xff]
        %v749 = vld [vmem:[#allocation5 + $0x328] sm:$0xff]
        %v750 = vld [vmem:[#allocation5 + $0x330] sm:$0xff]
        %v751 = vld [vmem:[#allocation5 + $0x338] sm:$0xff]
        %v752 = vld [vmem:[#allocation5 + $0x340] sm:$0xff]
        %v753 = vld [vmem:[#allocation5 + $0x348] sm:$0xff]
        %v754 = vld [vmem:[#allocation5 + $0x350] sm:$0xff]
        %v755 = vld [vmem:[#allocation5 + $0x358] sm:$0xff]
        %v756 = vld [vmem:[#allocation5 + $0x360] sm:$0xff]
        %v757 = vld [vmem:[#allocation5 + $0x368] sm:$0xff]
        %v758 = vld [vmem:[#allocation5 + $0x370] sm:$0xff]
        %v759 = vld [vmem:[#allocation5 + $0x378] sm:$0xff]
        %v760 = vld [vmem:[#allocation5 + $0x380] sm:$0xff]
        %v761 = vld [vmem:[#allocation5 + $0x388] sm:$0xff]
        %v762 = vld [vmem:[#allocation5 + $0x390] sm:$0xff]
        %v763 = vld [vmem:[#allocation5 + $0x398] sm:$0xff]
        %v764 = vld [vmem:[#allocation5 + $0x3a0] sm:$0xff]
        %v765 = vld [vmem:[#allocation5 + $0x3a8] sm:$0xff]
        %v766 = vld [vmem:[#allocation5 + $0x3b0] sm:$0xff]
        %v767 = vld [vmem:[#allocation5 + $0x3b8] sm:$0xff]
        %v768 = vld [vmem:[#allocation5 + $0x3c0] sm:$0xff]
        %v769 = vld [vmem:[#allocation5 + $0x3c8] sm:$0xff]
        %v770 = vld [vmem:[#allocation5 + $0x3d0] sm:$0xff]
        %v771 = vld [vmem:[#allocation5 + $0x3d8] sm:$0xff]
        %v772 = vld [vmem:[#allocation5 + $0x3e0] sm:$0xff]
        %v773 = vld [vmem:[#allocation5 + $0x3e8] sm:$0xff]
        %v774 = vld [vmem:[#allocation5 + $0x3f0] sm:$0xff]
        %v775 = vld [vmem:[#allocation5 + $0x3f8] sm:$0xff]
        %v776 = vld [vmem:[#allocation7] sm:$0xf]
        %v778 = vlaneseq
        %v779 = vshrl.u32 %v778, 7
        %v780 = vsub.s32 0, %v779
        %v781 = vrot.slane %v776, %v780
        %v782 = vlaneseq
        %v783 = vshrl.u32 %v782, 7
        %v784 = vsub.s32 1, %v783
        %v785 = vrot.slane %v776, %v784
        %v786 = vlaneseq
        %v787 = vshrl.u32 %v786, 7
        %v788 = vsub.s32 2, %v787
        %v789 = vrot.slane %v776, %v788
        %v790 = vlaneseq
        %v791 = vshrl.u32 %v790, 7
        %v792 = vsub.s32 3, %v791
        %v793 = vrot.slane %v776, %v792
        %v926 = vunpack.c.l.b16 %v648
        %v927 = vunpack.c.h.b16 %v648
        %v928 = vunpack.c.l.b16 %v649
        %v929 = vunpack.c.h.b16 %v649
        %v930 = vunpack.c.l.b16 %v650
        %v931 = vunpack.c.h.b16 %v650
        %v932 = vunpack.c.l.b16 %v651
        %v933 = vunpack.c.h.b16 %v651
        %v934 = vunpack.c.l.b16 %v652
        %v935 = vunpack.c.h.b16 %v652
        %v936 = vunpack.c.l.b16 %v653
        %v937 = vunpack.c.h.b16 %v653
        %v938 = vunpack.c.l.b16 %v654
        %v939 = vunpack.c.h.b16 %v654
        %v940 = vunpack.c.l.b16 %v655
        %v941 = vunpack.c.h.b16 %v655
        %v942 = vunpack.c.l.b16 %v656
        %v943 = vunpack.c.h.b16 %v656
        %v944 = vunpack.c.l.b16 %v657
        %v945 = vunpack.c.h.b16 %v657
        %v946 = vunpack.c.l.b16 %v658
        %v947 = vunpack.c.h.b16 %v658
        %v948 = vunpack.c.l.b16 %v659
        %v949 = vunpack.c.h.b16 %v659
        %v950 = vunpack.c.l.b16 %v660
        %v951 = vunpack.c.h.b16 %v660
        %v952 = vunpack.c.l.b16 %v661
        %v953 = vunpack.c.h.b16 %v661
        %v954 = vunpack.c.l.b16 %v662
        %v955 = vunpack.c.h.b16 %v662
        %v956 = vunpack.c.l.b16 %v663
        %v957 = vunpack.c.h.b16 %v663
        %v958 = vunpack.c.l.b16 %v664
        %v959 = vunpack.c.h.b16 %v664
        %v960 = vunpack.c.l.b16 %v665
        %v961 = vunpack.c.h.b16 %v665
        %v962 = vunpack.c.l.b16 %v666
        %v963 = vunpack.c.h.b16 %v666
        %v964 = vunpack.c.l.b16 %v667
        %v965 = vunpack.c.h.b16 %v667
        %v966 = vunpack.c.l.b16 %v668
        %v967 = vunpack.c.h.b16 %v668
        %v968 = vunpack.c.l.b16 %v669
        %v969 = vunpack.c.h.b16 %v669
        %v970 = vunpack.c.l.b16 %v670
        %v971 = vunpack.c.h.b16 %v670
        %v972 = vunpack.c.l.b16 %v671
        %v973 = vunpack.c.h.b16 %v671
        %v974 = vunpack.c.l.b16 %v672
        %v975 = vunpack.c.h.b16 %v672
        %v976 = vunpack.c.l.b16 %v673
        %v977 = vunpack.c.h.b16 %v673
        %v978 = vunpack.c.l.b16 %v674
        %v979 = vunpack.c.h.b16 %v674
        %v980 = vunpack.c.l.b16 %v675
        %v981 = vunpack.c.h.b16 %v675
        %v982 = vunpack.c.l.b16 %v676
        %v983 = vunpack.c.h.b16 %v676
        %v984 = vunpack.c.l.b16 %v677
        %v985 = vunpack.c.h.b16 %v677
        %v986 = vunpack.c.l.b16 %v678
        %v987 = vunpack.c.h.b16 %v678
        %v988 = vunpack.c.l.b16 %v679
        %v989 = vunpack.c.h.b16 %v679
        %v990 = vunpack.c.l.b16 %v680
        %v991 = vunpack.c.h.b16 %v680
        %v992 = vunpack.c.l.b16 %v681
        %v993 = vunpack.c.h.b16 %v681
        %v994 = vunpack.c.l.b16 %v682
        %v995 = vunpack.c.h.b16 %v682
        %v996 = vunpack.c.l.b16 %v683
        %v997 = vunpack.c.h.b16 %v683
        %v998 = vunpack.c.l.b16 %v684
        %v999 = vunpack.c.h.b16 %v684
        %v1000 = vunpack.c.l.b16 %v685
        %v1001 = vunpack.c.h.b16 %v685
        %v1002 = vunpack.c.l.b16 %v686
        %v1003 = vunpack.c.h.b16 %v686
        %v1004 = vunpack.c.l.b16 %v687
        %v1005 = vunpack.c.h.b16 %v687
        %v1006 = vunpack.c.l.b16 %v688
        %v1007 = vunpack.c.h.b16 %v688
        %v1008 = vunpack.c.l.b16 %v689
        %v1009 = vunpack.c.h.b16 %v689
        %v1010 = vunpack.c.l.b16 %v690
        %v1011 = vunpack.c.h.b16 %v690
        %v1012 = vunpack.c.l.b16 %v691
        %v1013 = vunpack.c.h.b16 %v691
        %v1014 = vunpack.c.l.b16 %v692
        %v1015 = vunpack.c.h.b16 %v692
        %v1016 = vunpack.c.l.b16 %v693
        %v1017 = vunpack.c.h.b16 %v693
        %v1018 = vunpack.c.l.b16 %v694
        %v1019 = vunpack.c.h.b16 %v694
        %v1020 = vunpack.c.l.b16 %v695
        %v1021 = vunpack.c.h.b16 %v695
        %v1022 = vunpack.c.l.b16 %v696
        %v1023 = vunpack.c.h.b16 %v696
        %v1024 = vunpack.c.l.b16 %v697
        %v1025 = vunpack.c.h.b16 %v697
        %v1026 = vunpack.c.l.b16 %v698
        %v1027 = vunpack.c.h.b16 %v698
        %v1028 = vunpack.c.l.b16 %v699
        %v1029 = vunpack.c.h.b16 %v699
        %v1030 = vunpack.c.l.b16 %v700
        %v1031 = vunpack.c.h.b16 %v700
        %v1032 = vunpack.c.l.b16 %v701
        %v1033 = vunpack.c.h.b16 %v701
        %v1034 = vunpack.c.l.b16 %v702
        %v1035 = vunpack.c.h.b16 %v702
        %v1036 = vunpack.c.l.b16 %v703
        %v1037 = vunpack.c.h.b16 %v703
        %v1038 = vunpack.c.l.b16 %v704
        %v1039 = vunpack.c.h.b16 %v704
        %v1040 = vunpack.c.l.b16 %v705
        %v1041 = vunpack.c.h.b16 %v705
        %v1042 = vunpack.c.l.b16 %v706
        %v1043 = vunpack.c.h.b16 %v706
        %v1044 = vunpack.c.l.b16 %v707
        %v1045 = vunpack.c.h.b16 %v707
        %v1046 = vunpack.c.l.b16 %v708
        %v1047 = vunpack.c.h.b16 %v708
        %v1048 = vunpack.c.l.b16 %v709
        %v1049 = vunpack.c.h.b16 %v709
        %v1050 = vunpack.c.l.b16 %v710
        %v1051 = vunpack.c.h.b16 %v710
        %v1052 = vunpack.c.l.b16 %v711
        %v1053 = vunpack.c.h.b16 %v711
        %v1054 = vunpack.c.l.b16 %v712
        %v1055 = vunpack.c.h.b16 %v712
        %v1056 = vunpack.c.l.b16 %v713
        %v1057 = vunpack.c.h.b16 %v713
        %v1058 = vunpack.c.l.b16 %v714
        %v1059 = vunpack.c.h.b16 %v714
        %v1060 = vunpack.c.l.b16 %v715
        %v1061 = vunpack.c.h.b16 %v715
        %v1062 = vunpack.c.l.b16 %v716
        %v1063 = vunpack.c.h.b16 %v716
        %v1064 = vunpack.c.l.b16 %v717
        %v1065 = vunpack.c.h.b16 %v717
        %v1066 = vunpack.c.l.b16 %v718
        %v1067 = vunpack.c.h.b16 %v718
        %v1068 = vunpack.c.l.b16 %v719
        %v1069 = vunpack.c.h.b16 %v719
        %v1070 = vunpack.c.l.b16 %v720
        %v1071 = vunpack.c.h.b16 %v720
        %v1072 = vunpack.c.l.b16 %v721
        %v1073 = vunpack.c.h.b16 %v721
        %v1074 = vunpack.c.l.b16 %v722
        %v1075 = vunpack.c.h.b16 %v722
        %v1076 = vunpack.c.l.b16 %v723
        %v1077 = vunpack.c.h.b16 %v723
        %v1078 = vunpack.c.l.b16 %v724
        %v1079 = vunpack.c.h.b16 %v724
        %v1080 = vunpack.c.l.b16 %v725
        %v1081 = vunpack.c.h.b16 %v725
        %v1082 = vunpack.c.l.b16 %v726
        %v1083 = vunpack.c.h.b16 %v726
        %v1084 = vunpack.c.l.b16 %v727
        %v1085 = vunpack.c.h.b16 %v727
        %v1086 = vunpack.c.l.b16 %v728
        %v1087 = vunpack.c.h.b16 %v728
        %v1088 = vunpack.c.l.b16 %v729
        %v1089 = vunpack.c.h.b16 %v729
        %v1090 = vunpack.c.l.b16 %v730
        %v1091 = vunpack.c.h.b16 %v730
        %v1092 = vunpack.c.l.b16 %v731
        %v1093 = vunpack.c.h.b16 %v731
        %v1094 = vunpack.c.l.b16 %v732
        %v1095 = vunpack.c.h.b16 %v732
        %v1096 = vunpack.c.l.b16 %v733
        %v1097 = vunpack.c.h.b16 %v733
        %v1098 = vunpack.c.l.b16 %v734
        %v1099 = vunpack.c.h.b16 %v734
        %v1100 = vunpack.c.l.b16 %v735
        %v1101 = vunpack.c.h.b16 %v735
        %v1102 = vunpack.c.l.b16 %v736
        %v1103 = vunpack.c.h.b16 %v736
        %v1104 = vunpack.c.l.b16 %v737
        %v1105 = vunpack.c.h.b16 %v737
        %v1106 = vunpack.c.l.b16 %v738
        %v1107 = vunpack.c.h.b16 %v738
        %v1108 = vunpack.c.l.b16 %v739
        %v1109 = vunpack.c.h.b16 %v739
        %v1110 = vunpack.c.l.b16 %v740
        %v1111 = vunpack.c.h.b16 %v740
        %v1112 = vunpack.c.l.b16 %v741
        %v1113 = vunpack.c.h.b16 %v741
        %v1114 = vunpack.c.l.b16 %v742
        %v1115 = vunpack.c.h.b16 %v742
        %v1116 = vunpack.c.l.b16 %v743
        %v1117 = vunpack.c.h.b16 %v743
        %v1118 = vunpack.c.l.b16 %v744
        %v1119 = vunpack.c.h.b16 %v744
        %v1120 = vunpack.c.l.b16 %v745
        %v1121 = vunpack.c.h.b16 %v745
        %v1122 = vunpack.c.l.b16 %v746
        %v1123 = vunpack.c.h.b16 %v746
        %v1124 = vunpack.c.l.b16 %v747
        %v1125 = vunpack.c.h.b16 %v747
        %v1126 = vunpack.c.l.b16 %v748
        %v1127 = vunpack.c.h.b16 %v748
        %v1128 = vunpack.c.l.b16 %v749
        %v1129 = vunpack.c.h.b16 %v749
        %v1130 = vunpack.c.l.b16 %v750
        %v1131 = vunpack.c.h.b16 %v750
        %v1132 = vunpack.c.l.b16 %v751
        %v1133 = vunpack.c.h.b16 %v751
        %v1134 = vunpack.c.l.b16 %v752
        %v1135 = vunpack.c.h.b16 %v752
        %v1136 = vunpack.c.l.b16 %v753
        %v1137 = vunpack.c.h.b16 %v753
        %v1138 = vunpack.c.l.b16 %v754
        %v1139 = vunpack.c.h.b16 %v754
        %v1140 = vunpack.c.l.b16 %v755
        %v1141 = vunpack.c.h.b16 %v755
        %v1142 = vunpack.c.l.b16 %v756
        %v1143 = vunpack.c.h.b16 %v756
        %v1144 = vunpack.c.l.b16 %v757
        %v1145 = vunpack.c.h.b16 %v757
        %v1146 = vunpack.c.l.b16 %v758
        %v1147 = vunpack.c.h.b16 %v758
        %v1148 = vunpack.c.l.b16 %v759
        %v1149 = vunpack.c.h.b16 %v759
        %v1150 = vunpack.c.l.b16 %v760
        %v1151 = vunpack.c.h.b16 %v760
        %v1152 = vunpack.c.l.b16 %v761
        %v1153 = vunpack.c.h.b16 %v761
        %v1154 = vunpack.c.l.b16 %v762
        %v1155 = vunpack.c.h.b16 %v762
        %v1156 = vunpack.c.l.b16 %v763
        %v1157 = vunpack.c.h.b16 %v763
        %v1158 = vunpack.c.l.b16 %v764
        %v1159 = vunpack.c.h.b16 %v764
        %v1160 = vunpack.c.l.b16 %v765
        %v1161 = vunpack.c.h.b16 %v765
        %v1162 = vunpack.c.l.b16 %v766
        %v1163 = vunpack.c.h.b16 %v766
        %v1164 = vunpack.c.l.b16 %v767
        %v1165 = vunpack.c.h.b16 %v767
        %v1166 = vunpack.c.l.b16 %v768
        %v1167 = vunpack.c.h.b16 %v768
        %v1168 = vunpack.c.l.b16 %v769
        %v1169 = vunpack.c.h.b16 %v769
        %v1170 = vunpack.c.l.b16 %v770
        %v1171 = vunpack.c.h.b16 %v770
        %v1172 = vunpack.c.l.b16 %v771
        %v1173 = vunpack.c.h.b16 %v771
        %v1174 = vunpack.c.l.b16 %v772
        %v1175 = vunpack.c.h.b16 %v772
        %v1176 = vunpack.c.l.b16 %v773
        %v1177 = vunpack.c.h.b16 %v773
        %v1178 = vunpack.c.l.b16 %v774
        %v1179 = vunpack.c.h.b16 %v774
        %v1180 = vunpack.c.l.b16 %v775
        %v1181 = vunpack.c.h.b16 %v775
        %v1182 = vpack.c.b16 %v930, %v926
        %v1183 = vpack.c.b16 %v931, %v927
        %v1184 = vpack.c.b16 %v932, %v928
        %v1185 = vpack.c.b16 %v933, %v929
        %v1186 = vpack.c.b16 %v938, %v934
        %v1187 = vpack.c.b16 %v939, %v935
        %v1188 = vpack.c.b16 %v940, %v936
        %v1189 = vpack.c.b16 %v941, %v937
        %v1190 = vpack.c.b16 %v946, %v942
        %v1191 = vpack.c.b16 %v947, %v943
        %v1192 = vpack.c.b16 %v948, %v944
        %v1193 = vpack.c.b16 %v949, %v945
        %v1194 = vpack.c.b16 %v954, %v950
        %v1195 = vpack.c.b16 %v955, %v951
        %v1196 = vpack.c.b16 %v956, %v952
        %v1197 = vpack.c.b16 %v957, %v953
        %v1198 = vpack.c.b16 %v962, %v958
        %v1199 = vpack.c.b16 %v963, %v959
        %v1200 = vpack.c.b16 %v964, %v960
        %v1201 = vpack.c.b16 %v965, %v961
        %v1202 = vpack.c.b16 %v970, %v966
        %v1203 = vpack.c.b16 %v971, %v967
        %v1204 = vpack.c.b16 %v972, %v968
        %v1205 = vpack.c.b16 %v973, %v969
        %v1206 = vpack.c.b16 %v978, %v974
        %v1207 = vpack.c.b16 %v979, %v975
        %v1208 = vpack.c.b16 %v980, %v976
        %v1209 = vpack.c.b16 %v981, %v977
        %v1210 = vpack.c.b16 %v986, %v982
        %v1211 = vpack.c.b16 %v987, %v983
        %v1212 = vpack.c.b16 %v988, %v984
        %v1213 = vpack.c.b16 %v989, %v985
        %v1214 = vpack.c.b16 %v994, %v990
        %v1215 = vpack.c.b16 %v995, %v991
        %v1216 = vpack.c.b16 %v996, %v992
        %v1217 = vpack.c.b16 %v997, %v993
        %v1218 = vpack.c.b16 %v1002, %v998
        %v1219 = vpack.c.b16 %v1003, %v999
        %v1220 = vpack.c.b16 %v1004, %v1000
        %v1221 = vpack.c.b16 %v1005, %v1001
        %v1222 = vpack.c.b16 %v1010, %v1006
        %v1223 = vpack.c.b16 %v1011, %v1007
        %v1224 = vpack.c.b16 %v1012, %v1008
        %v1225 = vpack.c.b16 %v1013, %v1009
        %v1226 = vpack.c.b16 %v1018, %v1014
        %v1227 = vpack.c.b16 %v1019, %v1015
        %v1228 = vpack.c.b16 %v1020, %v1016
        %v1229 = vpack.c.b16 %v1021, %v1017
        %v1230 = vpack.c.b16 %v1026, %v1022
        %v1231 = vpack.c.b16 %v1027, %v1023
        %v1232 = vpack.c.b16 %v1028, %v1024
        %v1233 = vpack.c.b16 %v1029, %v1025
        %v1234 = vpack.c.b16 %v1034, %v1030
        %v1235 = vpack.c.b16 %v1035, %v1031
        %v1236 = vpack.c.b16 %v1036, %v1032
        %v1237 = vpack.c.b16 %v1037, %v1033
        %v1238 = vpack.c.b16 %v1042, %v1038
        %v1239 = vpack.c.b16 %v1043, %v1039
        %v1240 = vpack.c.b16 %v1044, %v1040
        %v1241 = vpack.c.b16 %v1045, %v1041
        %v1242 = vpack.c.b16 %v1050, %v1046
        %v1243 = vpack.c.b16 %v1051, %v1047
        %v1244 = vpack.c.b16 %v1052, %v1048
        %v1245 = vpack.c.b16 %v1053, %v1049
        %v1246 = vpack.c.b16 %v1058, %v1054
        %v1247 = vpack.c.b16 %v1059, %v1055
        %v1248 = vpack.c.b16 %v1060, %v1056
        %v1249 = vpack.c.b16 %v1061, %v1057
        %v1250 = vpack.c.b16 %v1066, %v1062
        %v1251 = vpack.c.b16 %v1067, %v1063
        %v1252 = vpack.c.b16 %v1068, %v1064
        %v1253 = vpack.c.b16 %v1069, %v1065
        %v1254 = vpack.c.b16 %v1074, %v1070
        %v1255 = vpack.c.b16 %v1075, %v1071
        %v1256 = vpack.c.b16 %v1076, %v1072
        %v1257 = vpack.c.b16 %v1077, %v1073
        %v1258 = vpack.c.b16 %v1082, %v1078
        %v1259 = vpack.c.b16 %v1083, %v1079
        %v1260 = vpack.c.b16 %v1084, %v1080
        %v1261 = vpack.c.b16 %v1085, %v1081
        %v1262 = vpack.c.b16 %v1090, %v1086
        %v1263 = vpack.c.b16 %v1091, %v1087
        %v1264 = vpack.c.b16 %v1092, %v1088
        %v1265 = vpack.c.b16 %v1093, %v1089
        %v1266 = vpack.c.b16 %v1098, %v1094
        %v1267 = vpack.c.b16 %v1099, %v1095
        %v1268 = vpack.c.b16 %v1100, %v1096
        %v1269 = vpack.c.b16 %v1101, %v1097
        %v1270 = vpack.c.b16 %v1106, %v1102
        %v1271 = vpack.c.b16 %v1107, %v1103
        %v1272 = vpack.c.b16 %v1108, %v1104
        %v1273 = vpack.c.b16 %v1109, %v1105
        %v1274 = vpack.c.b16 %v1114, %v1110
        %v1275 = vpack.c.b16 %v1115, %v1111
        %v1276 = vpack.c.b16 %v1116, %v1112
        %v1277 = vpack.c.b16 %v1117, %v1113
        %v1278 = vpack.c.b16 %v1122, %v1118
        %v1279 = vpack.c.b16 %v1123, %v1119
        %v1280 = vpack.c.b16 %v1124, %v1120
        %v1281 = vpack.c.b16 %v1125, %v1121
        %v1282 = vpack.c.b16 %v1130, %v1126
        %v1283 = vpack.c.b16 %v1131, %v1127
        %v1284 = vpack.c.b16 %v1132, %v1128
        %v1285 = vpack.c.b16 %v1133, %v1129
        %v1286 = vpack.c.b16 %v1138, %v1134
        %v1287 = vpack.c.b16 %v1139, %v1135
        %v1288 = vpack.c.b16 %v1140, %v1136
        %v1289 = vpack.c.b16 %v1141, %v1137
        %v1290 = vpack.c.b16 %v1146, %v1142
        %v1291 = vpack.c.b16 %v1147, %v1143
        %v1292 = vpack.c.b16 %v1148, %v1144
        %v1293 = vpack.c.b16 %v1149, %v1145
        %v1294 = vpack.c.b16 %v1154, %v1150
        %v1295 = vpack.c.b16 %v1155, %v1151
        %v1296 = vpack.c.b16 %v1156, %v1152
        %v1297 = vpack.c.b16 %v1157, %v1153
        %v1298 = vpack.c.b16 %v1162, %v1158
        %v1299 = vpack.c.b16 %v1163, %v1159
        %v1300 = vpack.c.b16 %v1164, %v1160
        %v1301 = vpack.c.b16 %v1165, %v1161
        %v1302 = vpack.c.b16 %v1170, %v1166
        %v1303 = vpack.c.b16 %v1171, %v1167
        %v1304 = vpack.c.b16 %v1172, %v1168
        %v1305 = vpack.c.b16 %v1173, %v1169
        %v1306 = vpack.c.b16 %v1178, %v1174
        %v1307 = vpack.c.b16 %v1179, %v1175
        %v1308 = vpack.c.b16 %v1180, %v1176
        %v1309 = vpack.c.b16 %v1181, %v1177
        %1438 = vmatprep.subr.bf16.mxu0 %v1211
        %1439 = vmatpush1.bf16.msra.mxu0 %v1210
        %1440 = vmatprep.subr.bf16.mxu0 %v1207
        %1441 = vmatpush1.bf16.msra.mxu0 %v1206
        %1442 = vmatprep.subr.bf16.mxu0 %v1203
        %1443 = vmatpush1.bf16.msra.mxu0 %v1202
        %1444 = vmatprep.subr.bf16.mxu0 %v1199
        %1445 = vmatpush1.bf16.msra.mxu0 %v1198
        %1446 = vmatprep.subr.bf16.mxu0 %v1195
        %1447 = vmatpush1.bf16.msra.mxu0 %v1194
        %1448 = vmatprep.subr.bf16.mxu0 %v1191
        %1449 = vmatpush1.bf16.msra.mxu0 %v1190
        %1450 = vmatprep.subr.bf16.mxu0 %v1187
        %1451 = vmatpush1.bf16.msra.mxu0 %v1186
        %1452 = vmatprep.subr.bf16.mxu0 %v1183
        %1453 = vmatpush1.bf16.msra.mxu0 %v1182
        %1454 = vmatprep.subr.bf16.mxu0 %v1243
        %1455 = vmatpush2.bf16.msra.mxu0 %v1242
        %1456 = vmatprep.subr.bf16.mxu0 %v1239
        %1457 = vmatpush2.bf16.msra.mxu0 %v1238
        %1458 = vmatprep.subr.bf16.mxu0 %v1235
        %1459 = vmatpush2.bf16.msra.mxu0 %v1234
        %1460 = vmatprep.subr.bf16.mxu0 %v1231
        %1461 = vmatpush2.bf16.msra.mxu0 %v1230
        %1462 = vmatprep.subr.bf16.mxu0 %v1227
        %1463 = vmatpush2.bf16.msra.mxu0 %v1226
        %1464 = vmatprep.subr.bf16.mxu0 %v1223
        %1465 = vmatpush2.bf16.msra.mxu0 %v1222
        %1466 = vmatprep.subr.bf16.mxu0 %v1219
        %1467 = vmatpush2.bf16.msra.mxu0 %v1218
        %1468 = vmatprep.subr.bf16.mxu0 %v1215
        %1469 = vmatpush2.bf16.msra.mxu0 %v1214
        %1470 = vmatprep.mubr.bf16.mxu0 %v645
        %1471 = vmatmul.mubr.bf16.gmra.mxu0 %v644
        %v1472 = vpop.f32.mrf.mxu0
        %v1473 = vadd.f32 %v781, %v1472
        %v1474 = vpop.f32.mrf.mxu0
        %v1475 = vadd.f32 %v785, %v1474
        %v1476 = vpop.f32.mrf.mxu0
        %v1477 = vpop.f32.mrf.mxu0
        %1478 = vdwg.mxu0
        %1479 = vmatprep.subr.bf16.mxu0 %v1275
        %1480 = vmatpush1.bf16.msra.mxu0 %v1274
        %1481 = vmatprep.subr.bf16.mxu0 %v1271
        %1482 = vmatpush1.bf16.msra.mxu0 %v1270
        %1483 = vmatprep.subr.bf16.mxu0 %v1267
        %1484 = vmatpush1.bf16.msra.mxu0 %v1266
        %1485 = vmatprep.subr.bf16.mxu0 %v1263
        %1486 = vmatpush1.bf16.msra.mxu0 %v1262
        %1487 = vmatprep.subr.bf16.mxu0 %v1259
        %1488 = vmatpush1.bf16.msra.mxu0 %v1258
        %1489 = vmatprep.subr.bf16.mxu0 %v1255
        %1490 = vmatpush1.bf16.msra.mxu0 %v1254
        %1491 = vmatprep.subr.bf16.mxu0 %v1251
        %1492 = vmatpush1.bf16.msra.mxu0 %v1250
        %1493 = vmatprep.subr.bf16.mxu0 %v1247
        %1494 = vmatpush1.bf16.msra.mxu0 %v1246
        %1495 = vmatprep.subr.bf16.mxu0 %v1307
        %1496 = vmatpush2.bf16.msra.mxu0 %v1306
        %1497 = vmatprep.subr.bf16.mxu0 %v1303
        %1498 = vmatpush2.bf16.msra.mxu0 %v1302
        %1499 = vmatprep.subr.bf16.mxu0 %v1299
        %1500 = vmatpush2.bf16.msra.mxu0 %v1298
        %1501 = vmatprep.subr.bf16.mxu0 %v1295
        %1502 = vmatpush2.bf16.msra.mxu0 %v1294
        %1503 = vmatprep.subr.bf16.mxu0 %v1291
        %1504 = vmatpush2.bf16.msra.mxu0 %v1290
        %1505 = vmatprep.subr.bf16.mxu0 %v1287
        %1506 = vmatpush2.bf16.msra.mxu0 %v1286
        %1507 = vmatprep.subr.bf16.mxu0 %v1283
        %1508 = vmatpush2.bf16.msra.mxu0 %v1282
        %1509 = vmatprep.subr.bf16.mxu0 %v1279
        %1510 = vmatpush2.bf16.msra.mxu0 %v1278
        %1511 = vmatprep.mubr.bf16.mxu0 %v647
        %1512 = vmatmul.mubr.bf16.gmra.mxu0 %v646
        %v1513 = vpop.f32.mrf.mxu0
        %v1514 = vadd.f32 %v1473, %v1513
        %v1515 = vpop.f32.mrf.mxu0
        %v1516 = vadd.f32 %v1475, %v1515
        %v1517 = vpop.f32.mrf.mxu0
        %v1518 = vpop.f32.mrf.mxu0
        %1519 = vdwg.mxu0
        %1520 = vmatprep.subr.bf16.mxu0 %v1213
        %1521 = vmatpush1.bf16.msra.mxu0 %v1212
        %1522 = vmatprep.subr.bf16.mxu0 %v1209
        %1523 = vmatpush1.bf16.msra.mxu0 %v1208
        %1524 = vmatprep.subr.bf16.mxu0 %v1205
        %1525 = vmatpush1.bf16.msra.mxu0 %v1204
        %1526 = vmatprep.subr.bf16.mxu0 %v1201
        %1527 = vmatpush1.bf16.msra.mxu0 %v1200
        %1528 = vmatprep.subr.bf16.mxu0 %v1197
        %1529 = vmatpush1.bf16.msra.mxu0 %v1196
        %1530 = vmatprep.subr.bf16.mxu0 %v1193
        %1531 = vmatpush1.bf16.msra.mxu0 %v1192
        %1532 = vmatprep.subr.bf16.mxu0 %v1189
        %1533 = vmatpush1.bf16.msra.mxu0 %v1188
        %1534 = vmatprep.subr.bf16.mxu0 %v1185
        %1535 = vmatpush1.bf16.msra.mxu0 %v1184
        %1536 = vmatprep.subr.bf16.mxu0 %v1245
        %1537 = vmatpush2.bf16.msra.mxu0 %v1244
        %1538 = vmatprep.subr.bf16.mxu0 %v1241
        %1539 = vmatpush2.bf16.msra.mxu0 %v1240
        %1540 = vmatprep.subr.bf16.mxu0 %v1237
        %1541 = vmatpush2.bf16.msra.mxu0 %v1236
        %1542 = vmatprep.subr.bf16.mxu0 %v1233
        %1543 = vmatpush2.bf16.msra.mxu0 %v1232
        %1544 = vmatprep.subr.bf16.mxu0 %v1229
        %1545 = vmatpush2.bf16.msra.mxu0 %v1228
        %1546 = vmatprep.subr.bf16.mxu0 %v1225
        %1547 = vmatpush2.bf16.msra.mxu0 %v1224
        %1548 = vmatprep.subr.bf16.mxu0 %v1221
        %1549 = vmatpush2.bf16.msra.mxu0 %v1220
        %1550 = vmatprep.subr.bf16.mxu0 %v1217
        %1551 = vmatpush2.bf16.msra.mxu0 %v1216
        %1552 = vmatprep.mubr.bf16.mxu0 %v645
        %1553 = vmatmul.mubr.bf16.gmra.mxu0 %v644
        %v1554 = vpop.f32.mrf.mxu0
        %v1555 = vadd.f32 %v789, %v1554
        %v1556 = vpop.f32.mrf.mxu0
        %v1557 = vadd.f32 %v793, %v1556
        %v1558 = vpop.f32.mrf.mxu0
        %v1559 = vpop.f32.mrf.mxu0
        %1560 = vdwg.mxu0
        %1561 = vmatprep.subr.bf16.mxu0 %v1277
        %1562 = vmatpush1.bf16.msra.mxu0 %v1276
        %1563 = vmatprep.subr.bf16.mxu0 %v1273
        %1564 = vmatpush1.bf16.msra.mxu0 %v1272
        %1565 = vmatprep.subr.bf16.mxu0 %v1269
        %1566 = vmatpush1.bf16.msra.mxu0 %v1268
        %1567 = vmatprep.subr.bf16.mxu0 %v1265
        %1568 = vmatpush1.bf16.msra.mxu0 %v1264
        %1569 = vmatprep.subr.bf16.mxu0 %v1261
        %1570 = vmatpush1.bf16.msra.mxu0 %v1260
        %1571 = vmatprep.subr.bf16.mxu0 %v1257
        %1572 = vmatpush1.bf16.msra.mxu0 %v1256
        %1573 = vmatprep.subr.bf16.mxu0 %v1253
        %1574 = vmatpush1.bf16.msra.mxu0 %v1252
        %1575 = vmatprep.subr.bf16.mxu0 %v1249
        %1576 = vmatpush1.bf16.msra.mxu0 %v1248
        %1577 = vmatprep.subr.bf16.mxu0 %v1309
        %1578 = vmatpush2.bf16.msra.mxu0 %v1308
        %1579 = vmatprep.subr.bf16.mxu0 %v1305
        %1580 = vmatpush2.bf16.msra.mxu0 %v1304
        %1581 = vmatprep.subr.bf16.mxu0 %v1301
        %1582 = vmatpush2.bf16.msra.mxu0 %v1300
        %1583 = vmatprep.subr.bf16.mxu0 %v1297
        %1584 = vmatpush2.bf16.msra.mxu0 %v1296
        %1585 = vmatprep.subr.bf16.mxu0 %v1293
        %1586 = vmatpush2.bf16.msra.mxu0 %v1292
        %1587 = vmatprep.subr.bf16.mxu0 %v1289
        %1588 = vmatpush2.bf16.msra.mxu0 %v1288
        %1589 = vmatprep.subr.bf16.mxu0 %v1285
        %1590 = vmatpush2.bf16.msra.mxu0 %v1284
        %1591 = vmatprep.subr.bf16.mxu0 %v1281
        %1592 = vmatpush2.bf16.msra.mxu0 %v1280
        %1593 = vmatprep.mubr.bf16.mxu0 %v647
        %1594 = vmatmul.mubr.bf16.gmra.mxu0 %v646
        %v1595 = vpop.f32.mrf.mxu0
        %v1596 = vadd.f32 %v1555, %v1595
        %v1597 = vpop.f32.mrf.mxu0
        %v1598 = vadd.f32 %v1557, %v1597
        %v1599 = vpop.f32.mrf.mxu0
        %v1600 = vpop.f32.mrf.mxu0
        %1601 = vdwg.mxu0
        %v1602 = vld [vmem:[#allocation8] sm:$0xff]
        %v1603 = vld [vmem:[#allocation8 + $0x8] sm:$0xff]
        %v1604 = vld [vmem:[#allocation8 + $0x10] sm:$0xff]
        %v1605 = vld [vmem:[#allocation8 + $0x18] sm:$0xff]
        %v1606 = vld [vmem:[#allocation8 + $0x20] sm:$0xff]
        %v1607 = vld [vmem:[#allocation8 + $0x28] sm:$0xff]
        %v1608 = vld [vmem:[#allocation8 + $0x30] sm:$0xff]
        %v1609 = vld [vmem:[#allocation8 + $0x38] sm:$0xff]
        %v1610 = vld [vmem:[#allocation8 + $0x40] sm:$0xff]
        %v1611 = vld [vmem:[#allocation8 + $0x48] sm:$0xff]
        %v1612 = vld [vmem:[#allocation8 + $0x50] sm:$0xff]
        %v1613 = vld [vmem:[#allocation8 + $0x58] sm:$0xff]
        %v1614 = vld [vmem:[#allocation8 + $0x60] sm:$0xff]
        %v1615 = vld [vmem:[#allocation8 + $0x68] sm:$0xff]
        %v1616 = vld [vmem:[#allocation8 + $0x70] sm:$0xff]
        %v1617 = vld [vmem:[#allocation8 + $0x78] sm:$0xff]
        %v1618 = vld [vmem:[#allocation8 + $0x80] sm:$0xff]
        %v1619 = vld [vmem:[#allocation8 + $0x88] sm:$0xff]
        %v1620 = vld [vmem:[#allocation8 + $0x90] sm:$0xff]
        %v1621 = vld [vmem:[#allocation8 + $0x98] sm:$0xff]
        %v1622 = vld [vmem:[#allocation8 + $0xa0] sm:$0xff]
        %v1623 = vld [vmem:[#allocation8 + $0xa8] sm:$0xff]
        %v1624 = vld [vmem:[#allocation8 + $0xb0] sm:$0xff]
        %v1625 = vld [vmem:[#allocation8 + $0xb8] sm:$0xff]
        %v1626 = vld [vmem:[#allocation8 + $0xc0] sm:$0xff]
        %v1627 = vld [vmem:[#allocation8 + $0xc8] sm:$0xff]
        %v1628 = vld [vmem:[#allocation8 + $0xd0] sm:$0xff]
        %v1629 = vld [vmem:[#allocation8 + $0xd8] sm:$0xff]
        %v1630 = vld [vmem:[#allocation8 + $0xe0] sm:$0xff]
        %v1631 = vld [vmem:[#allocation8 + $0xe8] sm:$0xff]
        %v1632 = vld [vmem:[#allocation8 + $0xf0] sm:$0xff]
        %v1633 = vld [vmem:[#allocation8 + $0xf8] sm:$0xff]
        %v1634 = vld [vmem:[#allocation8 + $0x100] sm:$0xff]
        %v1635 = vld [vmem:[#allocation8 + $0x108] sm:$0xff]
        %v1636 = vld [vmem:[#allocation8 + $0x110] sm:$0xff]
        %v1637 = vld [vmem:[#allocation8 + $0x118] sm:$0xff]
        %v1638 = vld [vmem:[#allocation8 + $0x120] sm:$0xff]
        %v1639 = vld [vmem:[#allocation8 + $0x128] sm:$0xff]
        %v1640 = vld [vmem:[#allocation8 + $0x130] sm:$0xff]
        %v1641 = vld [vmem:[#allocation8 + $0x138] sm:$0xff]
        %v1642 = vld [vmem:[#allocation8 + $0x140] sm:$0xff]
        %v1643 = vld [vmem:[#allocation8 + $0x148] sm:$0xff]
        %v1644 = vld [vmem:[#allocation8 + $0x150] sm:$0xff]
        %v1645 = vld [vmem:[#allocation8 + $0x158] sm:$0xff]
        %v1646 = vld [vmem:[#allocation8 + $0x160] sm:$0xff]
        %v1647 = vld [vmem:[#allocation8 + $0x168] sm:$0xff]
        %v1648 = vld [vmem:[#allocation8 + $0x170] sm:$0xff]
        %v1649 = vld [vmem:[#allocation8 + $0x178] sm:$0xff]
        %v1650 = vld [vmem:[#allocation8 + $0x180] sm:$0xff]
        %v1651 = vld [vmem:[#allocation8 + $0x188] sm:$0xff]
        %v1652 = vld [vmem:[#allocation8 + $0x190] sm:$0xff]
        %v1653 = vld [vmem:[#allocation8 + $0x198] sm:$0xff]
        %v1654 = vld [vmem:[#allocation8 + $0x1a0] sm:$0xff]
        %v1655 = vld [vmem:[#allocation8 + $0x1a8] sm:$0xff]
        %v1656 = vld [vmem:[#allocation8 + $0x1b0] sm:$0xff]
        %v1657 = vld [vmem:[#allocation8 + $0x1b8] sm:$0xff]
        %v1658 = vld [vmem:[#allocation8 + $0x1c0] sm:$0xff]
        %v1659 = vld [vmem:[#allocation8 + $0x1c8] sm:$0xff]
        %v1660 = vld [vmem:[#allocation8 + $0x1d0] sm:$0xff]
        %v1661 = vld [vmem:[#allocation8 + $0x1d8] sm:$0xff]
        %v1662 = vld [vmem:[#allocation8 + $0x1e0] sm:$0xff]
        %v1663 = vld [vmem:[#allocation8 + $0x1e8] sm:$0xff]
        %v1664 = vld [vmem:[#allocation8 + $0x1f0] sm:$0xff]
        %v1665 = vld [vmem:[#allocation8 + $0x1f8] sm:$0xff]
        %v1666 = vld [vmem:[#allocation8 + $0x200] sm:$0xff]
        %v1667 = vld [vmem:[#allocation8 + $0x208] sm:$0xff]
        %v1668 = vld [vmem:[#allocation8 + $0x210] sm:$0xff]
        %v1669 = vld [vmem:[#allocation8 + $0x218] sm:$0xff]
        %v1670 = vld [vmem:[#allocation8 + $0x220] sm:$0xff]
        %v1671 = vld [vmem:[#allocation8 + $0x228] sm:$0xff]
        %v1672 = vld [vmem:[#allocation8 + $0x230] sm:$0xff]
        %v1673 = vld [vmem:[#allocation8 + $0x238] sm:$0xff]
        %v1674 = vld [vmem:[#allocation8 + $0x240] sm:$0xff]
        %v1675 = vld [vmem:[#allocation8 + $0x248] sm:$0xff]
        %v1676 = vld [vmem:[#allocation8 + $0x250] sm:$0xff]
        %v1677 = vld [vmem:[#allocation8 + $0x258] sm:$0xff]
        %v1678 = vld [vmem:[#allocation8 + $0x260] sm:$0xff]
        %v1679 = vld [vmem:[#allocation8 + $0x268] sm:$0xff]
        %v1680 = vld [vmem:[#allocation8 + $0x270] sm:$0xff]
        %v1681 = vld [vmem:[#allocation8 + $0x278] sm:$0xff]
        %v1682 = vld [vmem:[#allocation8 + $0x280] sm:$0xff]
        %v1683 = vld [vmem:[#allocation8 + $0x288] sm:$0xff]
        %v1684 = vld [vmem:[#allocation8 + $0x290] sm:$0xff]
        %v1685 = vld [vmem:[#allocation8 + $0x298] sm:$0xff]
        %v1686 = vld [vmem:[#allocation8 + $0x2a0] sm:$0xff]
        %v1687 = vld [vmem:[#allocation8 + $0x2a8] sm:$0xff]
        %v1688 = vld [vmem:[#allocation8 + $0x2b0] sm:$0xff]
        %v1689 = vld [vmem:[#allocation8 + $0x2b8] sm:$0xff]
        %v1690 = vld [vmem:[#allocation8 + $0x2c0] sm:$0xff]
        %v1691 = vld [vmem:[#allocation8 + $0x2c8] sm:$0xff]
        %v1692 = vld [vmem:[#allocation8 + $0x2d0] sm:$0xff]
        %v1693 = vld [vmem:[#allocation8 + $0x2d8] sm:$0xff]
        %v1694 = vld [vmem:[#allocation8 + $0x2e0] sm:$0xff]
        %v1695 = vld [vmem:[#allocation8 + $0x2e8] sm:$0xff]
        %v1696 = vld [vmem:[#allocation8 + $0x2f0] sm:$0xff]
        %v1697 = vld [vmem:[#allocation8 + $0x2f8] sm:$0xff]
        %v1698 = vld [vmem:[#allocation8 + $0x300] sm:$0xff]
        %v1699 = vld [vmem:[#allocation8 + $0x308] sm:$0xff]
        %v1700 = vld [vmem:[#allocation8 + $0x310] sm:$0xff]
        %v1701 = vld [vmem:[#allocation8 + $0x318] sm:$0xff]
        %v1702 = vld [vmem:[#allocation8 + $0x320] sm:$0xff]
        %v1703 = vld [vmem:[#allocation8 + $0x328] sm:$0xff]
        %v1704 = vld [vmem:[#allocation8 + $0x330] sm:$0xff]
        %v1705 = vld [vmem:[#allocation8 + $0x338] sm:$0xff]
        %v1706 = vld [vmem:[#allocation8 + $0x340] sm:$0xff]
        %v1707 = vld [vmem:[#allocation8 + $0x348] sm:$0xff]
        %v1708 = vld [vmem:[#allocation8 + $0x350] sm:$0xff]
        %v1709 = vld [vmem:[#allocation8 + $0x358] sm:$0xff]
        %v1710 = vld [vmem:[#allocation8 + $0x360] sm:$0xff]
        %v1711 = vld [vmem:[#allocation8 + $0x368] sm:$0xff]
        %v1712 = vld [vmem:[#allocation8 + $0x370] sm:$0xff]
        %v1713 = vld [vmem:[#allocation8 + $0x378] sm:$0xff]
        %v1714 = vld [vmem:[#allocation8 + $0x380] sm:$0xff]
        %v1715 = vld [vmem:[#allocation8 + $0x388] sm:$0xff]
        %v1716 = vld [vmem:[#allocation8 + $0x390] sm:$0xff]
        %v1717 = vld [vmem:[#allocation8 + $0x398] sm:$0xff]
        %v1718 = vld [vmem:[#allocation8 + $0x3a0] sm:$0xff]
        %v1719 = vld [vmem:[#allocation8 + $0x3a8] sm:$0xff]
        %v1720 = vld [vmem:[#allocation8 + $0x3b0] sm:$0xff]
        %v1721 = vld [vmem:[#allocation8 + $0x3b8] sm:$0xff]
        %v1722 = vld [vmem:[#allocation8 + $0x3c0] sm:$0xff]
        %v1723 = vld [vmem:[#allocation8 + $0x3c8] sm:$0xff]
        %v1724 = vld [vmem:[#allocation8 + $0x3d0] sm:$0xff]
        %v1725 = vld [vmem:[#allocation8 + $0x3d8] sm:$0xff]
        %v1726 = vld [vmem:[#allocation8 + $0x3e0] sm:$0xff]
        %v1727 = vld [vmem:[#allocation8 + $0x3e8] sm:$0xff]
        %v1728 = vld [vmem:[#allocation8 + $0x3f0] sm:$0xff]
        %v1729 = vld [vmem:[#allocation8 + $0x3f8] sm:$0xff]
        %v1730 = vld [vmem:[#allocation8 + $0x400] sm:$0xff]
        %v1731 = vld [vmem:[#allocation8 + $0x408] sm:$0xff]
        %v1732 = vld [vmem:[#allocation8 + $0x410] sm:$0xff]
        %v1733 = vld [vmem:[#allocation8 + $0x418] sm:$0xff]
        %v1734 = vld [vmem:[#allocation8 + $0x420] sm:$0xff]
        %v1735 = vld [vmem:[#allocation8 + $0x428] sm:$0xff]
        %v1736 = vld [vmem:[#allocation8 + $0x430] sm:$0xff]
        %v1737 = vld [vmem:[#allocation8 + $0x438] sm:$0xff]
        %v1738 = vld [vmem:[#allocation8 + $0x440] sm:$0xff]
        %v1739 = vld [vmem:[#allocation8 + $0x448] sm:$0xff]
        %v1740 = vld [vmem:[#allocation8 + $0x450] sm:$0xff]
        %v1741 = vld [vmem:[#allocation8 + $0x458] sm:$0xff]
        %v1742 = vld [vmem:[#allocation8 + $0x460] sm:$0xff]
        %v1743 = vld [vmem:[#allocation8 + $0x468] sm:$0xff]
        %v1744 = vld [vmem:[#allocation8 + $0x470] sm:$0xff]
        %v1745 = vld [vmem:[#allocation8 + $0x478] sm:$0xff]
        %v1746 = vld [vmem:[#allocation8 + $0x480] sm:$0xff]
        %v1747 = vld [vmem:[#allocation8 + $0x488] sm:$0xff]
        %v1748 = vld [vmem:[#allocation8 + $0x490] sm:$0xff]
        %v1749 = vld [vmem:[#allocation8 + $0x498] sm:$0xff]
        %v1750 = vld [vmem:[#allocation8 + $0x4a0] sm:$0xff]
        %v1751 = vld [vmem:[#allocation8 + $0x4a8] sm:$0xff]
        %v1752 = vld [vmem:[#allocation8 + $0x4b0] sm:$0xff]
        %v1753 = vld [vmem:[#allocation8 + $0x4b8] sm:$0xff]
        %v1754 = vld [vmem:[#allocation8 + $0x4c0] sm:$0xff]
        %v1755 = vld [vmem:[#allocation8 + $0x4c8] sm:$0xff]
        %v1756 = vld [vmem:[#allocation8 + $0x4d0] sm:$0xff]
        %v1757 = vld [vmem:[#allocation8 + $0x4d8] sm:$0xff]
        %v1758 = vld [vmem:[#allocation8 + $0x4e0] sm:$0xff]
        %v1759 = vld [vmem:[#allocation8 + $0x4e8] sm:$0xff]
        %v1760 = vld [vmem:[#allocation8 + $0x4f0] sm:$0xff]
        %v1761 = vld [vmem:[#allocation8 + $0x4f8] sm:$0xff]
        %v1762 = vld [vmem:[#allocation8 + $0x500] sm:$0xff]
        %v1763 = vld [vmem:[#allocation8 + $0x508] sm:$0xff]
        %v1764 = vld [vmem:[#allocation8 + $0x510] sm:$0xff]
        %v1765 = vld [vmem:[#allocation8 + $0x518] sm:$0xff]
        %v1766 = vld [vmem:[#allocation8 + $0x520] sm:$0xff]
        %v1767 = vld [vmem:[#allocation8 + $0x528] sm:$0xff]
        %v1768 = vld [vmem:[#allocation8 + $0x530] sm:$0xff]
        %v1769 = vld [vmem:[#allocation8 + $0x538] sm:$0xff]
        %v1770 = vld [vmem:[#allocation8 + $0x540] sm:$0xff]
        %v1771 = vld [vmem:[#allocation8 + $0x548] sm:$0xff]
        %v1772 = vld [vmem:[#allocation8 + $0x550] sm:$0xff]
        %v1773 = vld [vmem:[#allocation8 + $0x558] sm:$0xff]
        %v1774 = vld [vmem:[#allocation8 + $0x560] sm:$0xff]
        %v1775 = vld [vmem:[#allocation8 + $0x568] sm:$0xff]
        %v1776 = vld [vmem:[#allocation8 + $0x570] sm:$0xff]
        %v1777 = vld [vmem:[#allocation8 + $0x578] sm:$0xff]
        %v1778 = vld [vmem:[#allocation8 + $0x580] sm:$0xff]
        %v1779 = vld [vmem:[#allocation8 + $0x588] sm:$0xff]
        %v1780 = vld [vmem:[#allocation8 + $0x590] sm:$0xff]
        %v1781 = vld [vmem:[#allocation8 + $0x598] sm:$0xff]
        %v1782 = vld [vmem:[#allocation8 + $0x5a0] sm:$0xff]
        %v1783 = vld [vmem:[#allocation8 + $0x5a8] sm:$0xff]
        %v1784 = vld [vmem:[#allocation8 + $0x5b0] sm:$0xff]
        %v1785 = vld [vmem:[#allocation8 + $0x5b8] sm:$0xff]
        %v1786 = vld [vmem:[#allocation8 + $0x5c0] sm:$0xff]
        %v1787 = vld [vmem:[#allocation8 + $0x5c8] sm:$0xff]
        %v1788 = vld [vmem:[#allocation8 + $0x5d0] sm:$0xff]
        %v1789 = vld [vmem:[#allocation8 + $0x5d8] sm:$0xff]
        %v1790 = vld [vmem:[#allocation8 + $0x5e0] sm:$0xff]
        %v1791 = vld [vmem:[#allocation8 + $0x5e8] sm:$0xff]
        %v1792 = vld [vmem:[#allocation8 + $0x5f0] sm:$0xff]
        %v1793 = vld [vmem:[#allocation8 + $0x5f8] sm:$0xff]
        %v1794 = vld [vmem:[#allocation8 + $0x600] sm:$0xff]
        %v1795 = vld [vmem:[#allocation8 + $0x608] sm:$0xff]
        %v1796 = vld [vmem:[#allocation8 + $0x610] sm:$0xff]
        %v1797 = vld [vmem:[#allocation8 + $0x618] sm:$0xff]
        %v1798 = vld [vmem:[#allocation8 + $0x620] sm:$0xff]
        %v1799 = vld [vmem:[#allocation8 + $0x628] sm:$0xff]
        %v1800 = vld [vmem:[#allocation8 + $0x630] sm:$0xff]
        %v1801 = vld [vmem:[#allocation8 + $0x638] sm:$0xff]
        %v1802 = vld [vmem:[#allocation8 + $0x640] sm:$0xff]
        %v1803 = vld [vmem:[#allocation8 + $0x648] sm:$0xff]
        %v1804 = vld [vmem:[#allocation8 + $0x650] sm:$0xff]
        %v1805 = vld [vmem:[#allocation8 + $0x658] sm:$0xff]
        %v1806 = vld [vmem:[#allocation8 + $0x660] sm:$0xff]
        %v1807 = vld [vmem:[#allocation8 + $0x668] sm:$0xff]
        %v1808 = vld [vmem:[#allocation8 + $0x670] sm:$0xff]
        %v1809 = vld [vmem:[#allocation8 + $0x678] sm:$0xff]
        %v1810 = vld [vmem:[#allocation8 + $0x680] sm:$0xff]
        %v1811 = vld [vmem:[#allocation8 + $0x688] sm:$0xff]
        %v1812 = vld [vmem:[#allocation8 + $0x690] sm:$0xff]
        %v1813 = vld [vmem:[#allocation8 + $0x698] sm:$0xff]
        %v1814 = vld [vmem:[#allocation8 + $0x6a0] sm:$0xff]
        %v1815 = vld [vmem:[#allocation8 + $0x6a8] sm:$0xff]
        %v1816 = vld [vmem:[#allocation8 + $0x6b0] sm:$0xff]
        %v1817 = vld [vmem:[#allocation8 + $0x6b8] sm:$0xff]
        %v1818 = vld [vmem:[#allocation8 + $0x6c0] sm:$0xff]
        %v1819 = vld [vmem:[#allocation8 + $0x6c8] sm:$0xff]
        %v1820 = vld [vmem:[#allocation8 + $0x6d0] sm:$0xff]
        %v1821 = vld [vmem:[#allocation8 + $0x6d8] sm:$0xff]
        %v1822 = vld [vmem:[#allocation8 + $0x6e0] sm:$0xff]
        %v1823 = vld [vmem:[#allocation8 + $0x6e8] sm:$0xff]
        %v1824 = vld [vmem:[#allocation8 + $0x6f0] sm:$0xff]
        %v1825 = vld [vmem:[#allocation8 + $0x6f8] sm:$0xff]
        %v1826 = vld [vmem:[#allocation8 + $0x700] sm:$0xff]
        %v1827 = vld [vmem:[#allocation8 + $0x708] sm:$0xff]
        %v1828 = vld [vmem:[#allocation8 + $0x710] sm:$0xff]
        %v1829 = vld [vmem:[#allocation8 + $0x718] sm:$0xff]
        %v1830 = vld [vmem:[#allocation8 + $0x720] sm:$0xff]
        %v1831 = vld [vmem:[#allocation8 + $0x728] sm:$0xff]
        %v1832 = vld [vmem:[#allocation8 + $0x730] sm:$0xff]
        %v1833 = vld [vmem:[#allocation8 + $0x738] sm:$0xff]
        %v1834 = vld [vmem:[#allocation8 + $0x740] sm:$0xff]
        %v1835 = vld [vmem:[#allocation8 + $0x748] sm:$0xff]
        %v1836 = vld [vmem:[#allocation8 + $0x750] sm:$0xff]
        %v1837 = vld [vmem:[#allocation8 + $0x758] sm:$0xff]
        %v1838 = vld [vmem:[#allocation8 + $0x760] sm:$0xff]
        %v1839 = vld [vmem:[#allocation8 + $0x768] sm:$0xff]
        %v1840 = vld [vmem:[#allocation8 + $0x770] sm:$0xff]
        %v1841 = vld [vmem:[#allocation8 + $0x778] sm:$0xff]
        %v1842 = vld [vmem:[#allocation8 + $0x780] sm:$0xff]
        %v1843 = vld [vmem:[#allocation8 + $0x788] sm:$0xff]
        %v1844 = vld [vmem:[#allocation8 + $0x790] sm:$0xff]
        %v1845 = vld [vmem:[#allocation8 + $0x798] sm:$0xff]
        %v1846 = vld [vmem:[#allocation8 + $0x7a0] sm:$0xff]
        %v1847 = vld [vmem:[#allocation8 + $0x7a8] sm:$0xff]
        %v1848 = vld [vmem:[#allocation8 + $0x7b0] sm:$0xff]
        %v1849 = vld [vmem:[#allocation8 + $0x7b8] sm:$0xff]
        %v1850 = vld [vmem:[#allocation8 + $0x7c0] sm:$0xff]
        %v1851 = vld [vmem:[#allocation8 + $0x7c8] sm:$0xff]
        %v1852 = vld [vmem:[#allocation8 + $0x7d0] sm:$0xff]
        %v1853 = vld [vmem:[#allocation8 + $0x7d8] sm:$0xff]
        %v1854 = vld [vmem:[#allocation8 + $0x7e0] sm:$0xff]
        %v1855 = vld [vmem:[#allocation8 + $0x7e8] sm:$0xff]
        %v1856 = vld [vmem:[#allocation8 + $0x7f0] sm:$0xff]
        %v1857 = vld [vmem:[#allocation8 + $0x7f8] sm:$0xff]
        %v1858 = vld [vmem:[#allocation10] sm:$0xff]
        %v1860 = vlaneseq
        %v1861 = vshrl.u32 %v1860, 7
        %v1862 = vsub.s32 0, %v1861
        %v1863 = vrot.slane %v1858, %v1862
        %v1864 = vlaneseq
        %v1865 = vshrl.u32 %v1864, 7
        %v1866 = vsub.s32 1, %v1865
        %v1867 = vrot.slane %v1858, %v1866
        %v1868 = vlaneseq
        %v1869 = vshrl.u32 %v1868, 7
        %v1870 = vsub.s32 2, %v1869
        %v1871 = vrot.slane %v1858, %v1870
        %v1872 = vlaneseq
        %v1873 = vshrl.u32 %v1872, 7
        %v1874 = vsub.s32 3, %v1873
        %v1875 = vrot.slane %v1858, %v1874
        %v1876 = vlaneseq
        %v1877 = vshrl.u32 %v1876, 7
        %v1878 = vsub.s32 4, %v1877
        %v1879 = vrot.slane %v1858, %v1878
        %v1880 = vlaneseq
        %v1881 = vshrl.u32 %v1880, 7
        %v1882 = vsub.s32 5, %v1881
        %v1883 = vrot.slane %v1858, %v1882
        %v1884 = vlaneseq
        %v1885 = vshrl.u32 %v1884, 7
        %v1886 = vsub.s32 6, %v1885
        %v1887 = vrot.slane %v1858, %v1886
        %v1888 = vlaneseq
        %v1889 = vshrl.u32 %v1888, 7
        %v1890 = vsub.s32 7, %v1889
        %v1891 = vrot.slane %v1858, %v1890
        %v2156 = vunpack.c.l.b16 %v1602
        %v2157 = vunpack.c.h.b16 %v1602
        %v2158 = vunpack.c.l.b16 %v1603
        %v2159 = vunpack.c.h.b16 %v1603
        %v2160 = vunpack.c.l.b16 %v1604
        %v2161 = vunpack.c.h.b16 %v1604
        %v2162 = vunpack.c.l.b16 %v1605
        %v2163 = vunpack.c.h.b16 %v1605
        %v2164 = vunpack.c.l.b16 %v1606
        %v2165 = vunpack.c.h.b16 %v1606
        %v2166 = vunpack.c.l.b16 %v1607
        %v2167 = vunpack.c.h.b16 %v1607
        %v2168 = vunpack.c.l.b16 %v1608
        %v2169 = vunpack.c.h.b16 %v1608
        %v2170 = vunpack.c.l.b16 %v1609
        %v2171 = vunpack.c.h.b16 %v1609
        %v2172 = vunpack.c.l.b16 %v1610
        %v2173 = vunpack.c.h.b16 %v1610
        %v2174 = vunpack.c.l.b16 %v1611
        %v2175 = vunpack.c.h.b16 %v1611
        %v2176 = vunpack.c.l.b16 %v1612
        %v2177 = vunpack.c.h.b16 %v1612
        %v2178 = vunpack.c.l.b16 %v1613
        %v2179 = vunpack.c.h.b16 %v1613
        %v2180 = vunpack.c.l.b16 %v1614
        %v2181 = vunpack.c.h.b16 %v1614
        %v2182 = vunpack.c.l.b16 %v1615
        %v2183 = vunpack.c.h.b16 %v1615
        %v2184 = vunpack.c.l.b16 %v1616
        %v2185 = vunpack.c.h.b16 %v1616
        %v2186 = vunpack.c.l.b16 %v1617
        %v2187 = vunpack.c.h.b16 %v1617
        %v2188 = vunpack.c.l.b16 %v1618
        %v2189 = vunpack.c.h.b16 %v1618
        %v2190 = vunpack.c.l.b16 %v1619
        %v2191 = vunpack.c.h.b16 %v1619
        %v2192 = vunpack.c.l.b16 %v1620
        %v2193 = vunpack.c.h.b16 %v1620
        %v2194 = vunpack.c.l.b16 %v1621
        %v2195 = vunpack.c.h.b16 %v1621
        %v2196 = vunpack.c.l.b16 %v1622
        %v2197 = vunpack.c.h.b16 %v1622
        %v2198 = vunpack.c.l.b16 %v1623
        %v2199 = vunpack.c.h.b16 %v1623
        %v2200 = vunpack.c.l.b16 %v1624
        %v2201 = vunpack.c.h.b16 %v1624
        %v2202 = vunpack.c.l.b16 %v1625
        %v2203 = vunpack.c.h.b16 %v1625
        %v2204 = vunpack.c.l.b16 %v1626
        %v2205 = vunpack.c.h.b16 %v1626
        %v2206 = vunpack.c.l.b16 %v1627
        %v2207 = vunpack.c.h.b16 %v1627
        %v2208 = vunpack.c.l.b16 %v1628
        %v2209 = vunpack.c.h.b16 %v1628
        %v2210 = vunpack.c.l.b16 %v1629
        %v2211 = vunpack.c.h.b16 %v1629
        %v2212 = vunpack.c.l.b16 %v1630
        %v2213 = vunpack.c.h.b16 %v1630
        %v2214 = vunpack.c.l.b16 %v1631
        %v2215 = vunpack.c.h.b16 %v1631
        %v2216 = vunpack.c.l.b16 %v1632
        %v2217 = vunpack.c.h.b16 %v1632
        %v2218 = vunpack.c.l.b16 %v1633
        %v2219 = vunpack.c.h.b16 %v1633
        %v2220 = vunpack.c.l.b16 %v1634
        %v2221 = vunpack.c.h.b16 %v1634
        %v2222 = vunpack.c.l.b16 %v1635
        %v2223 = vunpack.c.h.b16 %v1635
        %v2224 = vunpack.c.l.b16 %v1636
        %v2225 = vunpack.c.h.b16 %v1636
        %v2226 = vunpack.c.l.b16 %v1637
        %v2227 = vunpack.c.h.b16 %v1637
        %v2228 = vunpack.c.l.b16 %v1638
        %v2229 = vunpack.c.h.b16 %v1638
        %v2230 = vunpack.c.l.b16 %v1639
        %v2231 = vunpack.c.h.b16 %v1639
        %v2232 = vunpack.c.l.b16 %v1640
        %v2233 = vunpack.c.h.b16 %v1640
        %v2234 = vunpack.c.l.b16 %v1641
        %v2235 = vunpack.c.h.b16 %v1641
        %v2236 = vunpack.c.l.b16 %v1642
        %v2237 = vunpack.c.h.b16 %v1642
        %v2238 = vunpack.c.l.b16 %v1643
        %v2239 = vunpack.c.h.b16 %v1643
        %v2240 = vunpack.c.l.b16 %v1644
        %v2241 = vunpack.c.h.b16 %v1644
        %v2242 = vunpack.c.l.b16 %v1645
        %v2243 = vunpack.c.h.b16 %v1645
        %v2244 = vunpack.c.l.b16 %v1646
        %v2245 = vunpack.c.h.b16 %v1646
        %v2246 = vunpack.c.l.b16 %v1647
        %v2247 = vunpack.c.h.b16 %v1647
        %v2248 = vunpack.c.l.b16 %v1648
        %v2249 = vunpack.c.h.b16 %v1648
        %v2250 = vunpack.c.l.b16 %v1649
        %v2251 = vunpack.c.h.b16 %v1649
        %v2252 = vunpack.c.l.b16 %v1650
        %v2253 = vunpack.c.h.b16 %v1650
        %v2254 = vunpack.c.l.b16 %v1651
        %v2255 = vunpack.c.h.b16 %v1651
        %v2256 = vunpack.c.l.b16 %v1652
        %v2257 = vunpack.c.h.b16 %v1652
        %v2258 = vunpack.c.l.b16 %v1653
        %v2259 = vunpack.c.h.b16 %v1653
        %v2260 = vunpack.c.l.b16 %v1654
        %v2261 = vunpack.c.h.b16 %v1654
        %v2262 = vunpack.c.l.b16 %v1655
        %v2263 = vunpack.c.h.b16 %v1655
        %v2264 = vunpack.c.l.b16 %v1656
        %v2265 = vunpack.c.h.b16 %v1656
        %v2266 = vunpack.c.l.b16 %v1657
        %v2267 = vunpack.c.h.b16 %v1657
        %v2268 = vunpack.c.l.b16 %v1658
        %v2269 = vunpack.c.h.b16 %v1658
        %v2270 = vunpack.c.l.b16 %v1659
        %v2271 = vunpack.c.h.b16 %v1659
        %v2272 = vunpack.c.l.b16 %v1660
        %v2273 = vunpack.c.h.b16 %v1660
        %v2274 = vunpack.c.l.b16 %v1661
        %v2275 = vunpack.c.h.b16 %v1661
        %v2276 = vunpack.c.l.b16 %v1662
        %v2277 = vunpack.c.h.b16 %v1662
        %v2278 = vunpack.c.l.b16 %v1663
        %v2279 = vunpack.c.h.b16 %v1663
        %v2280 = vunpack.c.l.b16 %v1664
        %v2281 = vunpack.c.h.b16 %v1664
        %v2282 = vunpack.c.l.b16 %v1665
        %v2283 = vunpack.c.h.b16 %v1665
        %v2284 = vunpack.c.l.b16 %v1666
        %v2285 = vunpack.c.h.b16 %v1666
        %v2286 = vunpack.c.l.b16 %v1667
        %v2287 = vunpack.c.h.b16 %v1667
        %v2288 = vunpack.c.l.b16 %v1668
        %v2289 = vunpack.c.h.b16 %v1668
        %v2290 = vunpack.c.l.b16 %v1669
        %v2291 = vunpack.c.h.b16 %v1669
        %v2292 = vunpack.c.l.b16 %v1670
        %v2293 = vunpack.c.h.b16 %v1670
        %v2294 = vunpack.c.l.b16 %v1671
        %v2295 = vunpack.c.h.b16 %v1671
        %v2296 = vunpack.c.l.b16 %v1672
        %v2297 = vunpack.c.h.b16 %v1672
        %v2298 = vunpack.c.l.b16 %v1673
        %v2299 = vunpack.c.h.b16 %v1673
        %v2300 = vunpack.c.l.b16 %v1674
        %v2301 = vunpack.c.h.b16 %v1674
        %v2302 = vunpack.c.l.b16 %v1675
        %v2303 = vunpack.c.h.b16 %v1675
        %v2304 = vunpack.c.l.b16 %v1676
        %v2305 = vunpack.c.h.b16 %v1676
        %v2306 = vunpack.c.l.b16 %v1677
        %v2307 = vunpack.c.h.b16 %v1677
        %v2308 = vunpack.c.l.b16 %v1678
        %v2309 = vunpack.c.h.b16 %v1678
        %v2310 = vunpack.c.l.b16 %v1679
        %v2311 = vunpack.c.h.b16 %v1679
        %v2312 = vunpack.c.l.b16 %v1680
        %v2313 = vunpack.c.h.b16 %v1680
        %v2314 = vunpack.c.l.b16 %v1681
        %v2315 = vunpack.c.h.b16 %v1681
        %v2316 = vunpack.c.l.b16 %v1682
        %v2317 = vunpack.c.h.b16 %v1682
        %v2318 = vunpack.c.l.b16 %v1683
        %v2319 = vunpack.c.h.b16 %v1683
        %v2320 = vunpack.c.l.b16 %v1684
        %v2321 = vunpack.c.h.b16 %v1684
        %v2322 = vunpack.c.l.b16 %v1685
        %v2323 = vunpack.c.h.b16 %v1685
        %v2324 = vunpack.c.l.b16 %v1686
        %v2325 = vunpack.c.h.b16 %v1686
        %v2326 = vunpack.c.l.b16 %v1687
        %v2327 = vunpack.c.h.b16 %v1687
        %v2328 = vunpack.c.l.b16 %v1688
        %v2329 = vunpack.c.h.b16 %v1688
        %v2330 = vunpack.c.l.b16 %v1689
        %v2331 = vunpack.c.h.b16 %v1689
        %v2332 = vunpack.c.l.b16 %v1690
        %v2333 = vunpack.c.h.b16 %v1690
        %v2334 = vunpack.c.l.b16 %v1691
        %v2335 = vunpack.c.h.b16 %v1691
        %v2336 = vunpack.c.l.b16 %v1692
        %v2337 = vunpack.c.h.b16 %v1692
        %v2338 = vunpack.c.l.b16 %v1693
        %v2339 = vunpack.c.h.b16 %v1693
        %v2340 = vunpack.c.l.b16 %v1694
        %v2341 = vunpack.c.h.b16 %v1694
        %v2342 = vunpack.c.l.b16 %v1695
        %v2343 = vunpack.c.h.b16 %v1695
        %v2344 = vunpack.c.l.b16 %v1696
        %v2345 = vunpack.c.h.b16 %v1696
        %v2346 = vunpack.c.l.b16 %v1697
        %v2347 = vunpack.c.h.b16 %v1697
        %v2348 = vunpack.c.l.b16 %v1698
        %v2349 = vunpack.c.h.b16 %v1698
        %v2350 = vunpack.c.l.b16 %v1699
        %v2351 = vunpack.c.h.b16 %v1699
        %v2352 = vunpack.c.l.b16 %v1700
        %v2353 = vunpack.c.h.b16 %v1700
        %v2354 = vunpack.c.l.b16 %v1701
        %v2355 = vunpack.c.h.b16 %v1701
        %v2356 = vunpack.c.l.b16 %v1702
        %v2357 = vunpack.c.h.b16 %v1702
        %v2358 = vunpack.c.l.b16 %v1703
        %v2359 = vunpack.c.h.b16 %v1703
        %v2360 = vunpack.c.l.b16 %v1704
        %v2361 = vunpack.c.h.b16 %v1704
        %v2362 = vunpack.c.l.b16 %v1705
        %v2363 = vunpack.c.h.b16 %v1705
        %v2364 = vunpack.c.l.b16 %v1706
        %v2365 = vunpack.c.h.b16 %v1706
        %v2366 = vunpack.c.l.b16 %v1707
        %v2367 = vunpack.c.h.b16 %v1707
        %v2368 = vunpack.c.l.b16 %v1708
        %v2369 = vunpack.c.h.b16 %v1708
        %v2370 = vunpack.c.l.b16 %v1709
        %v2371 = vunpack.c.h.b16 %v1709
        %v2372 = vunpack.c.l.b16 %v1710
        %v2373 = vunpack.c.h.b16 %v1710
        %v2374 = vunpack.c.l.b16 %v1711
        %v2375 = vunpack.c.h.b16 %v1711
        %v2376 = vunpack.c.l.b16 %v1712
        %v2377 = vunpack.c.h.b16 %v1712
        %v2378 = vunpack.c.l.b16 %v1713
        %v2379 = vunpack.c.h.b16 %v1713
        %v2380 = vunpack.c.l.b16 %v1714
        %v2381 = vunpack.c.h.b16 %v1714
        %v2382 = vunpack.c.l.b16 %v1715
        %v2383 = vunpack.c.h.b16 %v1715
        %v2384 = vunpack.c.l.b16 %v1716
        %v2385 = vunpack.c.h.b16 %v1716
        %v2386 = vunpack.c.l.b16 %v1717
        %v2387 = vunpack.c.h.b16 %v1717
        %v2388 = vunpack.c.l.b16 %v1718
        %v2389 = vunpack.c.h.b16 %v1718
        %v2390 = vunpack.c.l.b16 %v1719
        %v2391 = vunpack.c.h.b16 %v1719
        %v2392 = vunpack.c.l.b16 %v1720
        %v2393 = vunpack.c.h.b16 %v1720
        %v2394 = vunpack.c.l.b16 %v1721
        %v2395 = vunpack.c.h.b16 %v1721
        %v2396 = vunpack.c.l.b16 %v1722
        %v2397 = vunpack.c.h.b16 %v1722
        %v2398 = vunpack.c.l.b16 %v1723
        %v2399 = vunpack.c.h.b16 %v1723
        %v2400 = vunpack.c.l.b16 %v1724
        %v2401 = vunpack.c.h.b16 %v1724
        %v2402 = vunpack.c.l.b16 %v1725
        %v2403 = vunpack.c.h.b16 %v1725
        %v2404 = vunpack.c.l.b16 %v1726
        %v2405 = vunpack.c.h.b16 %v1726
        %v2406 = vunpack.c.l.b16 %v1727
        %v2407 = vunpack.c.h.b16 %v1727
        %v2408 = vunpack.c.l.b16 %v1728
        %v2409 = vunpack.c.h.b16 %v1728
        %v2410 = vunpack.c.l.b16 %v1729
        %v2411 = vunpack.c.h.b16 %v1729
        %v2412 = vunpack.c.l.b16 %v1730
        %v2413 = vunpack.c.h.b16 %v1730
        %v2414 = vunpack.c.l.b16 %v1731
        %v2415 = vunpack.c.h.b16 %v1731
        %v2416 = vunpack.c.l.b16 %v1732
        %v2417 = vunpack.c.h.b16 %v1732
        %v2418 = vunpack.c.l.b16 %v1733
        %v2419 = vunpack.c.h.b16 %v1733
        %v2420 = vunpack.c.l.b16 %v1734
        %v2421 = vunpack.c.h.b16 %v1734
        %v2422 = vunpack.c.l.b16 %v1735
        %v2423 = vunpack.c.h.b16 %v1735
        %v2424 = vunpack.c.l.b16 %v1736
        %v2425 = vunpack.c.h.b16 %v1736
        %v2426 = vunpack.c.l.b16 %v1737
        %v2427 = vunpack.c.h.b16 %v1737
        %v2428 = vunpack.c.l.b16 %v1738
        %v2429 = vunpack.c.h.b16 %v1738
        %v2430 = vunpack.c.l.b16 %v1739
        %v2431 = vunpack.c.h.b16 %v1739
        %v2432 = vunpack.c.l.b16 %v1740
        %v2433 = vunpack.c.h.b16 %v1740
        %v2434 = vunpack.c.l.b16 %v1741
        %v2435 = vunpack.c.h.b16 %v1741
        %v2436 = vunpack.c.l.b16 %v1742
        %v2437 = vunpack.c.h.b16 %v1742
        %v2438 = vunpack.c.l.b16 %v1743
        %v2439 = vunpack.c.h.b16 %v1743
        %v2440 = vunpack.c.l.b16 %v1744
        %v2441 = vunpack.c.h.b16 %v1744
        %v2442 = vunpack.c.l.b16 %v1745
        %v2443 = vunpack.c.h.b16 %v1745
        %v2444 = vunpack.c.l.b16 %v1746
        %v2445 = vunpack.c.h.b16 %v1746
        %v2446 = vunpack.c.l.b16 %v1747
        %v2447 = vunpack.c.h.b16 %v1747
        %v2448 = vunpack.c.l.b16 %v1748
        %v2449 = vunpack.c.h.b16 %v1748
        %v2450 = vunpack.c.l.b16 %v1749
        %v2451 = vunpack.c.h.b16 %v1749
        %v2452 = vunpack.c.l.b16 %v1750
        %v2453 = vunpack.c.h.b16 %v1750
        %v2454 = vunpack.c.l.b16 %v1751
        %v2455 = vunpack.c.h.b16 %v1751
        %v2456 = vunpack.c.l.b16 %v1752
        %v2457 = vunpack.c.h.b16 %v1752
        %v2458 = vunpack.c.l.b16 %v1753
        %v2459 = vunpack.c.h.b16 %v1753
        %v2460 = vunpack.c.l.b16 %v1754
        %v2461 = vunpack.c.h.b16 %v1754
        %v2462 = vunpack.c.l.b16 %v1755
        %v2463 = vunpack.c.h.b16 %v1755
        %v2464 = vunpack.c.l.b16 %v1756
        %v2465 = vunpack.c.h.b16 %v1756
        %v2466 = vunpack.c.l.b16 %v1757
        %v2467 = vunpack.c.h.b16 %v1757
        %v2468 = vunpack.c.l.b16 %v1758
        %v2469 = vunpack.c.h.b16 %v1758
        %v2470 = vunpack.c.l.b16 %v1759
        %v2471 = vunpack.c.h.b16 %v1759
        %v2472 = vunpack.c.l.b16 %v1760
        %v2473 = vunpack.c.h.b16 %v1760
        %v2474 = vunpack.c.l.b16 %v1761
        %v2475 = vunpack.c.h.b16 %v1761
        %v2476 = vunpack.c.l.b16 %v1762
        %v2477 = vunpack.c.h.b16 %v1762
        %v2478 = vunpack.c.l.b16 %v1763
        %v2479 = vunpack.c.h.b16 %v1763
        %v2480 = vunpack.c.l.b16 %v1764
        %v2481 = vunpack.c.h.b16 %v1764
        %v2482 = vunpack.c.l.b16 %v1765
        %v2483 = vunpack.c.h.b16 %v1765
        %v2484 = vunpack.c.l.b16 %v1766
        %v2485 = vunpack.c.h.b16 %v1766
        %v2486 = vunpack.c.l.b16 %v1767
        %v2487 = vunpack.c.h.b16 %v1767
        %v2488 = vunpack.c.l.b16 %v1768
        %v2489 = vunpack.c.h.b16 %v1768
        %v2490 = vunpack.c.l.b16 %v1769
        %v2491 = vunpack.c.h.b16 %v1769
        %v2492 = vunpack.c.l.b16 %v1770
        %v2493 = vunpack.c.h.b16 %v1770
        %v2494 = vunpack.c.l.b16 %v1771
        %v2495 = vunpack.c.h.b16 %v1771
        %v2496 = vunpack.c.l.b16 %v1772
        %v2497 = vunpack.c.h.b16 %v1772
        %v2498 = vunpack.c.l.b16 %v1773
        %v2499 = vunpack.c.h.b16 %v1773
        %v2500 = vunpack.c.l.b16 %v1774
        %v2501 = vunpack.c.h.b16 %v1774
        %v2502 = vunpack.c.l.b16 %v1775
        %v2503 = vunpack.c.h.b16 %v1775
        %v2504 = vunpack.c.l.b16 %v1776
        %v2505 = vunpack.c.h.b16 %v1776
        %v2506 = vunpack.c.l.b16 %v1777
        %v2507 = vunpack.c.h.b16 %v1777
        %v2508 = vunpack.c.l.b16 %v1778
        %v2509 = vunpack.c.h.b16 %v1778
        %v2510 = vunpack.c.l.b16 %v1779
        %v2511 = vunpack.c.h.b16 %v1779
        %v2512 = vunpack.c.l.b16 %v1780
        %v2513 = vunpack.c.h.b16 %v1780
        %v2514 = vunpack.c.l.b16 %v1781
        %v2515 = vunpack.c.h.b16 %v1781
        %v2516 = vunpack.c.l.b16 %v1782
        %v2517 = vunpack.c.h.b16 %v1782
        %v2518 = vunpack.c.l.b16 %v1783
        %v2519 = vunpack.c.h.b16 %v1783
        %v2520 = vunpack.c.l.b16 %v1784
        %v2521 = vunpack.c.h.b16 %v1784
        %v2522 = vunpack.c.l.b16 %v1785
        %v2523 = vunpack.c.h.b16 %v1785
        %v2524 = vunpack.c.l.b16 %v1786
        %v2525 = vunpack.c.h.b16 %v1786
        %v2526 = vunpack.c.l.b16 %v1787
        %v2527 = vunpack.c.h.b16 %v1787
        %v2528 = vunpack.c.l.b16 %v1788
        %v2529 = vunpack.c.h.b16 %v1788
        %v2530 = vunpack.c.l.b16 %v1789
        %v2531 = vunpack.c.h.b16 %v1789
        %v2532 = vunpack.c.l.b16 %v1790
        %v2533 = vunpack.c.h.b16 %v1790
        %v2534 = vunpack.c.l.b16 %v1791
        %v2535 = vunpack.c.h.b16 %v1791
        %v2536 = vunpack.c.l.b16 %v1792
        %v2537 = vunpack.c.h.b16 %v1792
        %v2538 = vunpack.c.l.b16 %v1793
        %v2539 = vunpack.c.h.b16 %v1793
        %v2540 = vunpack.c.l.b16 %v1794
        %v2541 = vunpack.c.h.b16 %v1794
        %v2542 = vunpack.c.l.b16 %v1795
        %v2543 = vunpack.c.h.b16 %v1795
        %v2544 = vunpack.c.l.b16 %v1796
        %v2545 = vunpack.c.h.b16 %v1796
        %v2546 = vunpack.c.l.b16 %v1797
        %v2547 = vunpack.c.h.b16 %v1797
        %v2548 = vunpack.c.l.b16 %v1798
        %v2549 = vunpack.c.h.b16 %v1798
        %v2550 = vunpack.c.l.b16 %v1799
        %v2551 = vunpack.c.h.b16 %v1799
        %v2552 = vunpack.c.l.b16 %v1800
        %v2553 = vunpack.c.h.b16 %v1800
        %v2554 = vunpack.c.l.b16 %v1801
        %v2555 = vunpack.c.h.b16 %v1801
        %v2556 = vunpack.c.l.b16 %v1802
        %v2557 = vunpack.c.h.b16 %v1802
        %v2558 = vunpack.c.l.b16 %v1803
        %v2559 = vunpack.c.h.b16 %v1803
        %v2560 = vunpack.c.l.b16 %v1804
        %v2561 = vunpack.c.h.b16 %v1804
        %v2562 = vunpack.c.l.b16 %v1805
        %v2563 = vunpack.c.h.b16 %v1805
        %v2564 = vunpack.c.l.b16 %v1806
        %v2565 = vunpack.c.h.b16 %v1806
        %v2566 = vunpack.c.l.b16 %v1807
        %v2567 = vunpack.c.h.b16 %v1807
        %v2568 = vunpack.c.l.b16 %v1808
        %v2569 = vunpack.c.h.b16 %v1808
        %v2570 = vunpack.c.l.b16 %v1809
        %v2571 = vunpack.c.h.b16 %v1809
        %v2572 = vunpack.c.l.b16 %v1810
        %v2573 = vunpack.c.h.b16 %v1810
        %v2574 = vunpack.c.l.b16 %v1811
        %v2575 = vunpack.c.h.b16 %v1811
        %v2576 = vunpack.c.l.b16 %v1812
        %v2577 = vunpack.c.h.b16 %v1812
        %v2578 = vunpack.c.l.b16 %v1813
        %v2579 = vunpack.c.h.b16 %v1813
        %v2580 = vunpack.c.l.b16 %v1814
        %v2581 = vunpack.c.h.b16 %v1814
        %v2582 = vunpack.c.l.b16 %v1815
        %v2583 = vunpack.c.h.b16 %v1815
        %v2584 = vunpack.c.l.b16 %v1816
        %v2585 = vunpack.c.h.b16 %v1816
        %v2586 = vunpack.c.l.b16 %v1817
        %v2587 = vunpack.c.h.b16 %v1817
        %v2588 = vunpack.c.l.b16 %v1818
        %v2589 = vunpack.c.h.b16 %v1818
        %v2590 = vunpack.c.l.b16 %v1819
        %v2591 = vunpack.c.h.b16 %v1819
        %v2592 = vunpack.c.l.b16 %v1820
        %v2593 = vunpack.c.h.b16 %v1820
        %v2594 = vunpack.c.l.b16 %v1821
        %v2595 = vunpack.c.h.b16 %v1821
        %v2596 = vunpack.c.l.b16 %v1822
        %v2597 = vunpack.c.h.b16 %v1822
        %v2598 = vunpack.c.l.b16 %v1823
        %v2599 = vunpack.c.h.b16 %v1823
        %v2600 = vunpack.c.l.b16 %v1824
        %v2601 = vunpack.c.h.b16 %v1824
        %v2602 = vunpack.c.l.b16 %v1825
        %v2603 = vunpack.c.h.b16 %v1825
        %v2604 = vunpack.c.l.b16 %v1826
        %v2605 = vunpack.c.h.b16 %v1826
        %v2606 = vunpack.c.l.b16 %v1827
        %v2607 = vunpack.c.h.b16 %v1827
        %v2608 = vunpack.c.l.b16 %v1828
        %v2609 = vunpack.c.h.b16 %v1828
        %v2610 = vunpack.c.l.b16 %v1829
        %v2611 = vunpack.c.h.b16 %v1829
        %v2612 = vunpack.c.l.b16 %v1830
        %v2613 = vunpack.c.h.b16 %v1830
        %v2614 = vunpack.c.l.b16 %v1831
        %v2615 = vunpack.c.h.b16 %v1831
        %v2616 = vunpack.c.l.b16 %v1832
        %v2617 = vunpack.c.h.b16 %v1832
        %v2618 = vunpack.c.l.b16 %v1833
        %v2619 = vunpack.c.h.b16 %v1833
        %v2620 = vunpack.c.l.b16 %v1834
        %v2621 = vunpack.c.h.b16 %v1834
        %v2622 = vunpack.c.l.b16 %v1835
        %v2623 = vunpack.c.h.b16 %v1835
        %v2624 = vunpack.c.l.b16 %v1836
        %v2625 = vunpack.c.h.b16 %v1836
        %v2626 = vunpack.c.l.b16 %v1837
        %v2627 = vunpack.c.h.b16 %v1837
        %v2628 = vunpack.c.l.b16 %v1838
        %v2629 = vunpack.c.h.b16 %v1838
        %v2630 = vunpack.c.l.b16 %v1839
        %v2631 = vunpack.c.h.b16 %v1839
        %v2632 = vunpack.c.l.b16 %v1840
        %v2633 = vunpack.c.h.b16 %v1840
        %v2634 = vunpack.c.l.b16 %v1841
        %v2635 = vunpack.c.h.b16 %v1841
        %v2636 = vunpack.c.l.b16 %v1842
        %v2637 = vunpack.c.h.b16 %v1842
        %v2638 = vunpack.c.l.b16 %v1843
        %v2639 = vunpack.c.h.b16 %v1843
        %v2640 = vunpack.c.l.b16 %v1844
        %v2641 = vunpack.c.h.b16 %v1844
        %v2642 = vunpack.c.l.b16 %v1845
        %v2643 = vunpack.c.h.b16 %v1845
        %v2644 = vunpack.c.l.b16 %v1846
        %v2645 = vunpack.c.h.b16 %v1846
        %v2646 = vunpack.c.l.b16 %v1847
        %v2647 = vunpack.c.h.b16 %v1847
        %v2648 = vunpack.c.l.b16 %v1848
        %v2649 = vunpack.c.h.b16 %v1848
        %v2650 = vunpack.c.l.b16 %v1849
        %v2651 = vunpack.c.h.b16 %v1849
        %v2652 = vunpack.c.l.b16 %v1850
        %v2653 = vunpack.c.h.b16 %v1850
        %v2654 = vunpack.c.l.b16 %v1851
        %v2655 = vunpack.c.h.b16 %v1851
        %v2656 = vunpack.c.l.b16 %v1852
        %v2657 = vunpack.c.h.b16 %v1852
        %v2658 = vunpack.c.l.b16 %v1853
        %v2659 = vunpack.c.h.b16 %v1853
        %v2660 = vunpack.c.l.b16 %v1854
        %v2661 = vunpack.c.h.b16 %v1854
        %v2662 = vunpack.c.l.b16 %v1855
        %v2663 = vunpack.c.h.b16 %v1855
        %v2664 = vunpack.c.l.b16 %v1856
        %v2665 = vunpack.c.h.b16 %v1856
        %v2666 = vunpack.c.l.b16 %v1857
        %v2667 = vunpack.c.h.b16 %v1857
        %v2668 = vpack.c.b16 %v2164, %v2156
        %v2669 = vpack.c.b16 %v2165, %v2157
        %v2670 = vpack.c.b16 %v2166, %v2158
        %v2671 = vpack.c.b16 %v2167, %v2159
        %v2672 = vpack.c.b16 %v2168, %v2160
        %v2673 = vpack.c.b16 %v2169, %v2161
        %v2674 = vpack.c.b16 %v2170, %v2162
        %v2675 = vpack.c.b16 %v2171, %v2163
        %v2676 = vpack.c.b16 %v2180, %v2172
        %v2677 = vpack.c.b16 %v2181, %v2173
        %v2678 = vpack.c.b16 %v2182, %v2174
        %v2679 = vpack.c.b16 %v2183, %v2175
        %v2680 = vpack.c.b16 %v2184, %v2176
        %v2681 = vpack.c.b16 %v2185, %v2177
        %v2682 = vpack.c.b16 %v2186, %v2178
        %v2683 = vpack.c.b16 %v2187, %v2179
        %v2684 = vpack.c.b16 %v2196, %v2188
        %v2685 = vpack.c.b16 %v2197, %v2189
        %v2686 = vpack.c.b16 %v2198, %v2190
        %v2687 = vpack.c.b16 %v2199, %v2191
        %v2688 = vpack.c.b16 %v2200, %v2192
        %v2689 = vpack.c.b16 %v2201, %v2193
        %v2690 = vpack.c.b16 %v2202, %v2194
        %v2691 = vpack.c.b16 %v2203, %v2195
        %v2692 = vpack.c.b16 %v2212, %v2204
        %v2693 = vpack.c.b16 %v2213, %v2205
        %v2694 = vpack.c.b16 %v2214, %v2206
        %v2695 = vpack.c.b16 %v2215, %v2207
        %v2696 = vpack.c.b16 %v2216, %v2208
        %v2697 = vpack.c.b16 %v2217, %v2209
        %v2698 = vpack.c.b16 %v2218, %v2210
        %v2699 = vpack.c.b16 %v2219, %v2211
        %v2700 = vpack.c.b16 %v2228, %v2220
        %v2701 = vpack.c.b16 %v2229, %v2221
        %v2702 = vpack.c.b16 %v2230, %v2222
        %v2703 = vpack.c.b16 %v2231, %v2223
        %v2704 = vpack.c.b16 %v2232, %v2224
        %v2705 = vpack.c.b16 %v2233, %v2225
        %v2706 = vpack.c.b16 %v2234, %v2226
        %v2707 = vpack.c.b16 %v2235, %v2227
        %v2708 = vpack.c.b16 %v2244, %v2236
        %v2709 = vpack.c.b16 %v2245, %v2237
        %v2710 = vpack.c.b16 %v2246, %v2238
        %v2711 = vpack.c.b16 %v2247, %v2239
        %v2712 = vpack.c.b16 %v2248, %v2240
        %v2713 = vpack.c.b16 %v2249, %v2241
        %v2714 = vpack.c.b16 %v2250, %v2242
        %v2715 = vpack.c.b16 %v2251, %v2243
        %v2716 = vpack.c.b16 %v2260, %v2252
        %v2717 = vpack.c.b16 %v2261, %v2253
        %v2718 = vpack.c.b16 %v2262, %v2254
        %v2719 = vpack.c.b16 %v2263, %v2255
        %v2720 = vpack.c.b16 %v2264, %v2256
        %v2721 = vpack.c.b16 %v2265, %v2257
        %v2722 = vpack.c.b16 %v2266, %v2258
        %v2723 = vpack.c.b16 %v2267, %v2259
        %v2724 = vpack.c.b16 %v2276, %v2268
        %v2725 = vpack.c.b16 %v2277, %v2269
        %v2726 = vpack.c.b16 %v2278, %v2270
        %v2727 = vpack.c.b16 %v2279, %v2271
        %v2728 = vpack.c.b16 %v2280, %v2272
        %v2729 = vpack.c.b16 %v2281, %v2273
        %v2730 = vpack.c.b16 %v2282, %v2274
        %v2731 = vpack.c.b16 %v2283, %v2275
        %v2732 = vpack.c.b16 %v2292, %v2284
        %v2733 = vpack.c.b16 %v2293, %v2285
        %v2734 = vpack.c.b16 %v2294, %v2286
        %v2735 = vpack.c.b16 %v2295, %v2287
        %v2736 = vpack.c.b16 %v2296, %v2288
        %v2737 = vpack.c.b16 %v2297, %v2289
        %v2738 = vpack.c.b16 %v2298, %v2290
        %v2739 = vpack.c.b16 %v2299, %v2291
        %v2740 = vpack.c.b16 %v2308, %v2300
        %v2741 = vpack.c.b16 %v2309, %v2301
        %v2742 = vpack.c.b16 %v2310, %v2302
        %v2743 = vpack.c.b16 %v2311, %v2303
        %v2744 = vpack.c.b16 %v2312, %v2304
        %v2745 = vpack.c.b16 %v2313, %v2305
        %v2746 = vpack.c.b16 %v2314, %v2306
        %v2747 = vpack.c.b16 %v2315, %v2307
        %v2748 = vpack.c.b16 %v2324, %v2316
        %v2749 = vpack.c.b16 %v2325, %v2317
        %v2750 = vpack.c.b16 %v2326, %v2318
        %v2751 = vpack.c.b16 %v2327, %v2319
        %v2752 = vpack.c.b16 %v2328, %v2320
        %v2753 = vpack.c.b16 %v2329, %v2321
        %v2754 = vpack.c.b16 %v2330, %v2322
        %v2755 = vpack.c.b16 %v2331, %v2323
        %v2756 = vpack.c.b16 %v2340, %v2332
        %v2757 = vpack.c.b16 %v2341, %v2333
        %v2758 = vpack.c.b16 %v2342, %v2334
        %v2759 = vpack.c.b16 %v2343, %v2335
        %v2760 = vpack.c.b16 %v2344, %v2336
        %v2761 = vpack.c.b16 %v2345, %v2337
        %v2762 = vpack.c.b16 %v2346, %v2338
        %v2763 = vpack.c.b16 %v2347, %v2339
        %v2764 = vpack.c.b16 %v2356, %v2348
        %v2765 = vpack.c.b16 %v2357, %v2349
        %v2766 = vpack.c.b16 %v2358, %v2350
        %v2767 = vpack.c.b16 %v2359, %v2351
        %v2768 = vpack.c.b16 %v2360, %v2352
        %v2769 = vpack.c.b16 %v2361, %v2353
        %v2770 = vpack.c.b16 %v2362, %v2354
        %v2771 = vpack.c.b16 %v2363, %v2355
        %v2772 = vpack.c.b16 %v2372, %v2364
        %v2773 = vpack.c.b16 %v2373, %v2365
        %v2774 = vpack.c.b16 %v2374, %v2366
        %v2775 = vpack.c.b16 %v2375, %v2367
        %v2776 = vpack.c.b16 %v2376, %v2368
        %v2777 = vpack.c.b16 %v2377, %v2369
        %v2778 = vpack.c.b16 %v2378, %v2370
        %v2779 = vpack.c.b16 %v2379, %v2371
        %v2780 = vpack.c.b16 %v2388, %v2380
        %v2781 = vpack.c.b16 %v2389, %v2381
        %v2782 = vpack.c.b16 %v2390, %v2382
        %v2783 = vpack.c.b16 %v2391, %v2383
        %v2784 = vpack.c.b16 %v2392, %v2384
        %v2785 = vpack.c.b16 %v2393, %v2385
        %v2786 = vpack.c.b16 %v2394, %v2386
        %v2787 = vpack.c.b16 %v2395, %v2387
        %v2788 = vpack.c.b16 %v2404, %v2396
        %v2789 = vpack.c.b16 %v2405, %v2397
        %v2790 = vpack.c.b16 %v2406, %v2398
        %v2791 = vpack.c.b16 %v2407, %v2399
        %v2792 = vpack.c.b16 %v2408, %v2400
        %v2793 = vpack.c.b16 %v2409, %v2401
        %v2794 = vpack.c.b16 %v2410, %v2402
        %v2795 = vpack.c.b16 %v2411, %v2403
        %v2796 = vpack.c.b16 %v2420, %v2412
        %v2797 = vpack.c.b16 %v2421, %v2413
        %v2798 = vpack.c.b16 %v2422, %v2414
        %v2799 = vpack.c.b16 %v2423, %v2415
        %v2800 = vpack.c.b16 %v2424, %v2416
        %v2801 = vpack.c.b16 %v2425, %v2417
        %v2802 = vpack.c.b16 %v2426, %v2418
        %v2803 = vpack.c.b16 %v2427, %v2419
        %v2804 = vpack.c.b16 %v2436, %v2428
        %v2805 = vpack.c.b16 %v2437, %v2429
        %v2806 = vpack.c.b16 %v2438, %v2430
        %v2807 = vpack.c.b16 %v2439, %v2431
        %v2808 = vpack.c.b16 %v2440, %v2432
        %v2809 = vpack.c.b16 %v2441, %v2433
        %v2810 = vpack.c.b16 %v2442, %v2434
        %v2811 = vpack.c.b16 %v2443, %v2435
        %v2812 = vpack.c.b16 %v2452, %v2444
        %v2813 = vpack.c.b16 %v2453, %v2445
        %v2814 = vpack.c.b16 %v2454, %v2446
        %v2815 = vpack.c.b16 %v2455, %v2447
        %v2816 = vpack.c.b16 %v2456, %v2448
        %v2817 = vpack.c.b16 %v2457, %v2449
        %v2818 = vpack.c.b16 %v2458, %v2450
        %v2819 = vpack.c.b16 %v2459, %v2451
        %v2820 = vpack.c.b16 %v2468, %v2460
        %v2821 = vpack.c.b16 %v2469, %v2461
        %v2822 = vpack.c.b16 %v2470, %v2462
        %v2823 = vpack.c.b16 %v2471, %v2463
        %v2824 = vpack.c.b16 %v2472, %v2464
        %v2825 = vpack.c.b16 %v2473, %v2465
        %v2826 = vpack.c.b16 %v2474, %v2466
        %v2827 = vpack.c.b16 %v2475, %v2467
        %v2828 = vpack.c.b16 %v2484, %v2476
        %v2829 = vpack.c.b16 %v2485, %v2477
        %v2830 = vpack.c.b16 %v2486, %v2478
        %v2831 = vpack.c.b16 %v2487, %v2479
        %v2832 = vpack.c.b16 %v2488, %v2480
        %v2833 = vpack.c.b16 %v2489, %v2481
        %v2834 = vpack.c.b16 %v2490, %v2482
        %v2835 = vpack.c.b16 %v2491, %v2483
        %v2836 = vpack.c.b16 %v2500, %v2492
        %v2837 = vpack.c.b16 %v2501, %v2493
        %v2838 = vpack.c.b16 %v2502, %v2494
        %v2839 = vpack.c.b16 %v2503, %v2495
        %v2840 = vpack.c.b16 %v2504, %v2496
        %v2841 = vpack.c.b16 %v2505, %v2497
        %v2842 = vpack.c.b16 %v2506, %v2498
        %v2843 = vpack.c.b16 %v2507, %v2499
        %v2844 = vpack.c.b16 %v2516, %v2508
        %v2845 = vpack.c.b16 %v2517, %v2509
        %v2846 = vpack.c.b16 %v2518, %v2510
        %v2847 = vpack.c.b16 %v2519, %v2511
        %v2848 = vpack.c.b16 %v2520, %v2512
        %v2849 = vpack.c.b16 %v2521, %v2513
        %v2850 = vpack.c.b16 %v2522, %v2514
        %v2851 = vpack.c.b16 %v2523, %v2515
        %v2852 = vpack.c.b16 %v2532, %v2524
        %v2853 = vpack.c.b16 %v2533, %v2525
        %v2854 = vpack.c.b16 %v2534, %v2526
        %v2855 = vpack.c.b16 %v2535, %v2527
        %v2856 = vpack.c.b16 %v2536, %v2528
        %v2857 = vpack.c.b16 %v2537, %v2529
        %v2858 = vpack.c.b16 %v2538, %v2530
        %v2859 = vpack.c.b16 %v2539, %v2531
        %v2860 = vpack.c.b16 %v2548, %v2540
        %v2861 = vpack.c.b16 %v2549, %v2541
        %v2862 = vpack.c.b16 %v2550, %v2542
        %v2863 = vpack.c.b16 %v2551, %v2543
        %v2864 = vpack.c.b16 %v2552, %v2544
        %v2865 = vpack.c.b16 %v2553, %v2545
        %v2866 = vpack.c.b16 %v2554, %v2546
        %v2867 = vpack.c.b16 %v2555, %v2547
        %v2868 = vpack.c.b16 %v2564, %v2556
        %v2869 = vpack.c.b16 %v2565, %v2557
        %v2870 = vpack.c.b16 %v2566, %v2558
        %v2871 = vpack.c.b16 %v2567, %v2559
        %v2872 = vpack.c.b16 %v2568, %v2560
        %v2873 = vpack.c.b16 %v2569, %v2561
        %v2874 = vpack.c.b16 %v2570, %v2562
        %v2875 = vpack.c.b16 %v2571, %v2563
        %v2876 = vpack.c.b16 %v2580, %v2572
        %v2877 = vpack.c.b16 %v2581, %v2573
        %v2878 = vpack.c.b16 %v2582, %v2574
        %v2879 = vpack.c.b16 %v2583, %v2575
        %v2880 = vpack.c.b16 %v2584, %v2576
        %v2881 = vpack.c.b16 %v2585, %v2577
        %v2882 = vpack.c.b16 %v2586, %v2578
        %v2883 = vpack.c.b16 %v2587, %v2579
        %v2884 = vpack.c.b16 %v2596, %v2588
        %v2885 = vpack.c.b16 %v2597, %v2589
        %v2886 = vpack.c.b16 %v2598, %v2590
        %v2887 = vpack.c.b16 %v2599, %v2591
        %v2888 = vpack.c.b16 %v2600, %v2592
        %v2889 = vpack.c.b16 %v2601, %v2593
        %v2890 = vpack.c.b16 %v2602, %v2594
        %v2891 = vpack.c.b16 %v2603, %v2595
        %v2892 = vpack.c.b16 %v2612, %v2604
        %v2893 = vpack.c.b16 %v2613, %v2605
        %v2894 = vpack.c.b16 %v2614, %v2606
        %v2895 = vpack.c.b16 %v2615, %v2607
        %v2896 = vpack.c.b16 %v2616, %v2608
        %v2897 = vpack.c.b16 %v2617, %v2609
        %v2898 = vpack.c.b16 %v2618, %v2610
        %v2899 = vpack.c.b16 %v2619, %v2611
        %v2900 = vpack.c.b16 %v2628, %v2620
        %v2901 = vpack.c.b16 %v2629, %v2621
        %v2902 = vpack.c.b16 %v2630, %v2622
        %v2903 = vpack.c.b16 %v2631, %v2623
        %v2904 = vpack.c.b16 %v2632, %v2624
        %v2905 = vpack.c.b16 %v2633, %v2625
        %v2906 = vpack.c.b16 %v2634, %v2626
        %v2907 = vpack.c.b16 %v2635, %v2627
        %v2908 = vpack.c.b16 %v2644, %v2636
        %v2909 = vpack.c.b16 %v2645, %v2637
        %v2910 = vpack.c.b16 %v2646, %v2638
        %v2911 = vpack.c.b16 %v2647, %v2639
        %v2912 = vpack.c.b16 %v2648, %v2640
        %v2913 = vpack.c.b16 %v2649, %v2641
        %v2914 = vpack.c.b16 %v2650, %v2642
        %v2915 = vpack.c.b16 %v2651, %v2643
        %v2916 = vpack.c.b16 %v2660, %v2652
        %v2917 = vpack.c.b16 %v2661, %v2653
        %v2918 = vpack.c.b16 %v2662, %v2654
        %v2919 = vpack.c.b16 %v2663, %v2655
        %v2920 = vpack.c.b16 %v2664, %v2656
        %v2921 = vpack.c.b16 %v2665, %v2657
        %v2922 = vpack.c.b16 %v2666, %v2658
        %v2923 = vpack.c.b16 %v2667, %v2659
        %3180 = vmatprep.subr.bf16.mxu0 %v2725
        %3181 = vmatpush1.bf16.msra.mxu0 %v2724
        %3182 = vmatprep.subr.bf16.mxu0 %v2717
        %3183 = vmatpush1.bf16.msra.mxu0 %v2716
        %3184 = vmatprep.subr.bf16.mxu0 %v2709
        %3185 = vmatpush1.bf16.msra.mxu0 %v2708
        %3186 = vmatprep.subr.bf16.mxu0 %v2701
        %3187 = vmatpush1.bf16.msra.mxu0 %v2700
        %3188 = vmatprep.subr.bf16.mxu0 %v2693
        %3189 = vmatpush1.bf16.msra.mxu0 %v2692
        %3190 = vmatprep.subr.bf16.mxu0 %v2685
        %3191 = vmatpush1.bf16.msra.mxu0 %v2684
        %3192 = vmatprep.subr.bf16.mxu0 %v2677
        %3193 = vmatpush1.bf16.msra.mxu0 %v2676
        %3194 = vmatprep.subr.bf16.mxu0 %v2669
        %3195 = vmatpush1.bf16.msra.mxu0 %v2668
        %3196 = vmatprep.subr.bf16.mxu0 %v2789
        %3197 = vmatpush2.bf16.msra.mxu0 %v2788
        %3198 = vmatprep.subr.bf16.mxu0 %v2781
        %3199 = vmatpush2.bf16.msra.mxu0 %v2780
        %3200 = vmatprep.subr.bf16.mxu0 %v2773
        %3201 = vmatpush2.bf16.msra.mxu0 %v2772
        %3202 = vmatprep.subr.bf16.mxu0 %v2765
        %3203 = vmatpush2.bf16.msra.mxu0 %v2764
        %3204 = vmatprep.subr.bf16.mxu0 %v2757
        %3205 = vmatpush2.bf16.msra.mxu0 %v2756
        %3206 = vmatprep.subr.bf16.mxu0 %v2749
        %3207 = vmatpush2.bf16.msra.mxu0 %v2748
        %3208 = vmatprep.subr.bf16.mxu0 %v2741
        %3209 = vmatpush2.bf16.msra.mxu0 %v2740
        %3210 = vmatprep.subr.bf16.mxu0 %v2733
        %3211 = vmatpush2.bf16.msra.mxu0 %v2732
        %3212 = vmatprep.mubr.bf16.mxu0 %v645
        %3213 = vmatmul.mubr.bf16.gmra.mxu0 %v644
        %v3214 = vpop.f32.mrf.mxu0
        %v3215 = vadd.f32 %v1863, %v3214
        %v3216 = vpop.f32.mrf.mxu0
        %v3217 = vadd.f32 %v1867, %v3216
        %v3218 = vpop.f32.mrf.mxu0
        %v3219 = vpop.f32.mrf.mxu0
        %3220 = vdwg.mxu0
        %3221 = vmatprep.subr.bf16.mxu0 %v2853
        %3222 = vmatpush1.bf16.msra.mxu0 %v2852
        %3223 = vmatprep.subr.bf16.mxu0 %v2845
        %3224 = vmatpush1.bf16.msra.mxu0 %v2844
        %3225 = vmatprep.subr.bf16.mxu0 %v2837
        %3226 = vmatpush1.bf16.msra.mxu0 %v2836
        %3227 = vmatprep.subr.bf16.mxu0 %v2829
        %3228 = vmatpush1.bf16.msra.mxu0 %v2828
        %3229 = vmatprep.subr.bf16.mxu0 %v2821
        %3230 = vmatpush1.bf16.msra.mxu0 %v2820
        %3231 = vmatprep.subr.bf16.mxu0 %v2813
        %3232 = vmatpush1.bf16.msra.mxu0 %v2812
        %3233 = vmatprep.subr.bf16.mxu0 %v2805
        %3234 = vmatpush1.bf16.msra.mxu0 %v2804
        %3235 = vmatprep.subr.bf16.mxu0 %v2797
        %3236 = vmatpush1.bf16.msra.mxu0 %v2796
        %3237 = vmatprep.subr.bf16.mxu0 %v2917
        %3238 = vmatpush2.bf16.msra.mxu0 %v2916
        %3239 = vmatprep.subr.bf16.mxu0 %v2909
        %3240 = vmatpush2.bf16.msra.mxu0 %v2908
        %3241 = vmatprep.subr.bf16.mxu0 %v2901
        %3242 = vmatpush2.bf16.msra.mxu0 %v2900
        %3243 = vmatprep.subr.bf16.mxu0 %v2893
        %3244 = vmatpush2.bf16.msra.mxu0 %v2892
        %3245 = vmatprep.subr.bf16.mxu0 %v2885
        %3246 = vmatpush2.bf16.msra.mxu0 %v2884
        %3247 = vmatprep.subr.bf16.mxu0 %v2877
        %3248 = vmatpush2.bf16.msra.mxu0 %v2876
        %3249 = vmatprep.subr.bf16.mxu0 %v2869
        %3250 = vmatpush2.bf16.msra.mxu0 %v2868
        %3251 = vmatprep.subr.bf16.mxu0 %v2861
        %3252 = vmatpush2.bf16.msra.mxu0 %v2860
        %3253 = vmatprep.mubr.bf16.mxu0 %v647
        %3254 = vmatmul.mubr.bf16.gmra.mxu0 %v646
        %v3255 = vpop.f32.mrf.mxu0
        %v3256 = vadd.f32 %v3215, %v3255
        %v3257 = vpop.f32.mrf.mxu0
        %v3258 = vadd.f32 %v3217, %v3257
        %v3259 = vpop.f32.mrf.mxu0
        %v3260 = vpop.f32.mrf.mxu0
        %3261 = vdwg.mxu0
        %3262 = vmatprep.subr.bf16.mxu0 %v2727
        %3263 = vmatpush1.bf16.msra.mxu0 %v2726
        %3264 = vmatprep.subr.bf16.mxu0 %v2719
        %3265 = vmatpush1.bf16.msra.mxu0 %v2718
        %3266 = vmatprep.subr.bf16.mxu0 %v2711
        %3267 = vmatpush1.bf16.msra.mxu0 %v2710
        %3268 = vmatprep.subr.bf16.mxu0 %v2703
        %3269 = vmatpush1.bf16.msra.mxu0 %v2702
        %3270 = vmatprep.subr.bf16.mxu0 %v2695
        %3271 = vmatpush1.bf16.msra.mxu0 %v2694
        %3272 = vmatprep.subr.bf16.mxu0 %v2687
        %3273 = vmatpush1.bf16.msra.mxu0 %v2686
        %3274 = vmatprep.subr.bf16.mxu0 %v2679
        %3275 = vmatpush1.bf16.msra.mxu0 %v2678
        %3276 = vmatprep.subr.bf16.mxu0 %v2671
        %3277 = vmatpush1.bf16.msra.mxu0 %v2670
        %3278 = vmatprep.subr.bf16.mxu0 %v2791
        %3279 = vmatpush2.bf16.msra.mxu0 %v2790
        %3280 = vmatprep.subr.bf16.mxu0 %v2783
        %3281 = vmatpush2.bf16.msra.mxu0 %v2782
        %3282 = vmatprep.subr.bf16.mxu0 %v2775
        %3283 = vmatpush2.bf16.msra.mxu0 %v2774
        %3284 = vmatprep.subr.bf16.mxu0 %v2767
        %3285 = vmatpush2.bf16.msra.mxu0 %v2766
        %3286 = vmatprep.subr.bf16.mxu0 %v2759
        %3287 = vmatpush2.bf16.msra.mxu0 %v2758
        %3288 = vmatprep.subr.bf16.mxu0 %v2751
        %3289 = vmatpush2.bf16.msra.mxu0 %v2750
        %3290 = vmatprep.subr.bf16.mxu0 %v2743
        %3291 = vmatpush2.bf16.msra.mxu0 %v2742
        %3292 = vmatprep.subr.bf16.mxu0 %v2735
        %3293 = vmatpush2.bf16.msra.mxu0 %v2734
        %3294 = vmatprep.mubr.bf16.mxu0 %v645
        %3295 = vmatmul.mubr.bf16.gmra.mxu0 %v644
        %v3296 = vpop.f32.mrf.mxu0
        %v3297 = vadd.f32 %v1871, %v3296
        %v3298 = vpop.f32.mrf.mxu0
        %v3299 = vadd.f32 %v1875, %v3298
        %v3300 = vpop.f32.mrf.mxu0
        %v3301 = vpop.f32.mrf.mxu0
        %3302 = vdwg.mxu0
        %3303 = vmatprep.subr.bf16.mxu0 %v2855
        %3304 = vmatpush1.bf16.msra.mxu0 %v2854
        %3305 = vmatprep.subr.bf16.mxu0 %v2847
        %3306 = vmatpush1.bf16.msra.mxu0 %v2846
        %3307 = vmatprep.subr.bf16.mxu0 %v2839
        %3308 = vmatpush1.bf16.msra.mxu0 %v2838
        %3309 = vmatprep.subr.bf16.mxu0 %v2831
        %3310 = vmatpush1.bf16.msra.mxu0 %v2830
        %3311 = vmatprep.subr.bf16.mxu0 %v2823
        %3312 = vmatpush1.bf16.msra.mxu0 %v2822
        %3313 = vmatprep.subr.bf16.mxu0 %v2815
        %3314 = vmatpush1.bf16.msra.mxu0 %v2814
        %3315 = vmatprep.subr.bf16.mxu0 %v2807
        %3316 = vmatpush1.bf16.msra.mxu0 %v2806
        %3317 = vmatprep.subr.bf16.mxu0 %v2799
        %3318 = vmatpush1.bf16.msra.mxu0 %v2798
        %3319 = vmatprep.subr.bf16.mxu0 %v2919
        %3320 = vmatpush2.bf16.msra.mxu0 %v2918
        %3321 = vmatprep.subr.bf16.mxu0 %v2911
        %3322 = vmatpush2.bf16.msra.mxu0 %v2910
        %3323 = vmatprep.subr.bf16.mxu0 %v2903
        %3324 = vmatpush2.bf16.msra.mxu0 %v2902
        %3325 = vmatprep.subr.bf16.mxu0 %v2895
        %3326 = vmatpush2.bf16.msra.mxu0 %v2894
        %3327 = vmatprep.subr.bf16.mxu0 %v2887
        %3328 = vmatpush2.bf16.msra.mxu0 %v2886
        %3329 = vmatprep.subr.bf16.mxu0 %v2879
        %3330 = vmatpush2.bf16.msra.mxu0 %v2878
        %3331 = vmatprep.subr.bf16.mxu0 %v2871
        %3332 = vmatpush2.bf16.msra.mxu0 %v2870
        %3333 = vmatprep.subr.bf16.mxu0 %v2863
        %3334 = vmatpush2.bf16.msra.mxu0 %v2862
        %3335 = vmatprep.mubr.bf16.mxu0 %v647
        %3336 = vmatmul.mubr.bf16.gmra.mxu0 %v646
        %v3337 = vpop.f32.mrf.mxu0
        %v3338 = vadd.f32 %v3297, %v3337
        %v3339 = vpop.f32.mrf.mxu0
        %v3340 = vadd.f32 %v3299, %v3339
        %v3341 = vpop.f32.mrf.mxu0
        %v3342 = vpop.f32.mrf.mxu0
        %3343 = vdwg.mxu0
        %3344 = vmatprep.subr.bf16.mxu0 %v2729
        %3345 = vmatpush1.bf16.msra.mxu0 %v2728
        %3346 = vmatprep.subr.bf16.mxu0 %v2721
        %3347 = vmatpush1.bf16.msra.mxu0 %v2720
        %3348 = vmatprep.subr.bf16.mxu0 %v2713
        %3349 = vmatpush1.bf16.msra.mxu0 %v2712
        %3350 = vmatprep.subr.bf16.mxu0 %v2705
        %3351 = vmatpush1.bf16.msra.mxu0 %v2704
        %3352 = vmatprep.subr.bf16.mxu0 %v2697
        %3353 = vmatpush1.bf16.msra.mxu0 %v2696
        %3354 = vmatprep.subr.bf16.mxu0 %v2689
        %3355 = vmatpush1.bf16.msra.mxu0 %v2688
        %3356 = vmatprep.subr.bf16.mxu0 %v2681
        %3357 = vmatpush1.bf16.msra.mxu0 %v2680
        %3358 = vmatprep.subr.bf16.mxu0 %v2673
        %3359 = vmatpush1.bf16.msra.mxu0 %v2672
        %3360 = vmatprep.subr.bf16.mxu0 %v2793
        %3361 = vmatpush2.bf16.msra.mxu0 %v2792
        %3362 = vmatprep.subr.bf16.mxu0 %v2785
        %3363 = vmatpush2.bf16.msra.mxu0 %v2784
        %3364 = vmatprep.subr.bf16.mxu0 %v2777
        %3365 = vmatpush2.bf16.msra.mxu0 %v2776
        %3366 = vmatprep.subr.bf16.mxu0 %v2769
        %3367 = vmatpush2.bf16.msra.mxu0 %v2768
        %3368 = vmatprep.subr.bf16.mxu0 %v2761
        %3369 = vmatpush2.bf16.msra.mxu0 %v2760
        %3370 = vmatprep.subr.bf16.mxu0 %v2753
        %3371 = vmatpush2.bf16.msra.mxu0 %v2752
        %3372 = vmatprep.subr.bf16.mxu0 %v2745
        %3373 = vmatpush2.bf16.msra.mxu0 %v2744
        %3374 = vmatprep.subr.bf16.mxu0 %v2737
        %3375 = vmatpush2.bf16.msra.mxu0 %v2736
        %3376 = vmatprep.mubr.bf16.mxu0 %v645
        %3377 = vmatmul.mubr.bf16.gmra.mxu0 %v644
        %v3378 = vpop.f32.mrf.mxu0
        %v3379 = vadd.f32 %v1879, %v3378
        %v3380 = vpop.f32.mrf.mxu0
        %v3381 = vadd.f32 %v1883, %v3380
        %v3382 = vpop.f32.mrf.mxu0
        %v3383 = vpop.f32.mrf.mxu0
        %3384 = vdwg.mxu0
        %3385 = vmatprep.subr.bf16.mxu0 %v2857
        %3386 = vmatpush1.bf16.msra.mxu0 %v2856
        %3387 = vmatprep.subr.bf16.mxu0 %v2849
        %3388 = vmatpush1.bf16.msra.mxu0 %v2848
        %3389 = vmatprep.subr.bf16.mxu0 %v2841
        %3390 = vmatpush1.bf16.msra.mxu0 %v2840
        %3391 = vmatprep.subr.bf16.mxu0 %v2833
        %3392 = vmatpush1.bf16.msra.mxu0 %v2832
        %3393 = vmatprep.subr.bf16.mxu0 %v2825
        %3394 = vmatpush1.bf16.msra.mxu0 %v2824
        %3395 = vmatprep.subr.bf16.mxu0 %v2817
        %3396 = vmatpush1.bf16.msra.mxu0 %v2816
        %3397 = vmatprep.subr.bf16.mxu0 %v2809
        %3398 = vmatpush1.bf16.msra.mxu0 %v2808
        %3399 = vmatprep.subr.bf16.mxu0 %v2801
        %3400 = vmatpush1.bf16.msra.mxu0 %v2800
        %3401 = vmatprep.subr.bf16.mxu0 %v2921
        %3402 = vmatpush2.bf16.msra.mxu0 %v2920
        %3403 = vmatprep.subr.bf16.mxu0 %v2913
        %3404 = vmatpush2.bf16.msra.mxu0 %v2912
        %3405 = vmatprep.subr.bf16.mxu0 %v2905
        %3406 = vmatpush2.bf16.msra.mxu0 %v2904
        %3407 = vmatprep.subr.bf16.mxu0 %v2897
        %3408 = vmatpush2.bf16.msra.mxu0 %v2896
        %3409 = vmatprep.subr.bf16.mxu0 %v2889
        %3410 = vmatpush2.bf16.msra.mxu0 %v2888
        %3411 = vmatprep.subr.bf16.mxu0 %v2881
        %3412 = vmatpush2.bf16.msra.mxu0 %v2880
        %3413 = vmatprep.subr.bf16.mxu0 %v2873
        %3414 = vmatpush2.bf16.msra.mxu0 %v2872
        %3415 = vmatprep.subr.bf16.mxu0 %v2865
        %3416 = vmatpush2.bf16.msra.mxu0 %v2864
        %3417 = vmatprep.mubr.bf16.mxu0 %v647
        %3418 = vmatmul.mubr.bf16.gmra.mxu0 %v646
        %v3419 = vpop.f32.mrf.mxu0
        %v3420 = vadd.f32 %v3379, %v3419
        %v3421 = vpop.f32.mrf.mxu0
        %v3422 = vadd.f32 %v3381, %v3421
        %v3423 = vpop.f32.mrf.mxu0
        %v3424 = vpop.f32.mrf.mxu0
        %3425 = vdwg.mxu0
        %3426 = vmatprep.subr.bf16.mxu0 %v2731
        %3427 = vmatpush1.bf16.msra.mxu0 %v2730
        %3428 = vmatprep.subr.bf16.mxu0 %v2723
        %3429 = vmatpush1.bf16.msra.mxu0 %v2722
        %3430 = vmatprep.subr.bf16.mxu0 %v2715
        %3431 = vmatpush1.bf16.msra.mxu0 %v2714
        %3432 = vmatprep.subr.bf16.mxu0 %v2707
        %3433 = vmatpush1.bf16.msra.mxu0 %v2706
        %3434 = vmatprep.subr.bf16.mxu0 %v2699
        %3435 = vmatpush1.bf16.msra.mxu0 %v2698
        %3436 = vmatprep.subr.bf16.mxu0 %v2691
        %3437 = vmatpush1.bf16.msra.mxu0 %v2690
        %3438 = vmatprep.subr.bf16.mxu0 %v2683
        %3439 = vmatpush1.bf16.msra.mxu0 %v2682
        %3440 = vmatprep.subr.bf16.mxu0 %v2675
        %3441 = vmatpush1.bf16.msra.mxu0 %v2674
        %3442 = vmatprep.subr.bf16.mxu0 %v2795
        %3443 = vmatpush2.bf16.msra.mxu0 %v2794
        %3444 = vmatprep.subr.bf16.mxu0 %v2787
        %3445 = vmatpush2.bf16.msra.mxu0 %v2786
        %3446 = vmatprep.subr.bf16.mxu0 %v2779
        %3447 = vmatpush2.bf16.msra.mxu0 %v2778
        %3448 = vmatprep.subr.bf16.mxu0 %v2771
        %3449 = vmatpush2.bf16.msra.mxu0 %v2770
        %3450 = vmatprep.subr.bf16.mxu0 %v2763
        %3451 = vmatpush2.bf16.msra.mxu0 %v2762
        %3452 = vmatprep.subr.bf16.mxu0 %v2755
        %3453 = vmatpush2.bf16.msra.mxu0 %v2754
        %3454 = vmatprep.subr.bf16.mxu0 %v2747
        %3455 = vmatpush2.bf16.msra.mxu0 %v2746
        %3456 = vmatprep.subr.bf16.mxu0 %v2739
        %3457 = vmatpush2.bf16.msra.mxu0 %v2738
        %3458 = vmatprep.mubr.bf16.mxu0 %v645
        %3459 = vmatmul.mubr.bf16.gmra.mxu0 %v644
        %v3460 = vpop.f32.mrf.mxu0
        %v3461 = vadd.f32 %v1887, %v3460
        %v3462 = vpop.f32.mrf.mxu0
        %v3463 = vadd.f32 %v1891, %v3462
        %v3464 = vpop.f32.mrf.mxu0
        %v3465 = vpop.f32.mrf.mxu0
        %3466 = vdwg.mxu0
        %3467 = vmatprep.subr.bf16.mxu0 %v2859
        %3468 = vmatpush1.bf16.msra.mxu0 %v2858
        %3469 = vmatprep.subr.bf16.mxu0 %v2851
        %3470 = vmatpush1.bf16.msra.mxu0 %v2850
        %3471 = vmatprep.subr.bf16.mxu0 %v2843
        %3472 = vmatpush1.bf16.msra.mxu0 %v2842
        %3473 = vmatprep.subr.bf16.mxu0 %v2835
        %3474 = vmatpush1.bf16.msra.mxu0 %v2834
        %3475 = vmatprep.subr.bf16.mxu0 %v2827
        %3476 = vmatpush1.bf16.msra.mxu0 %v2826
        %3477 = vmatprep.subr.bf16.mxu0 %v2819
        %3478 = vmatpush1.bf16.msra.mxu0 %v2818
        %3479 = vmatprep.subr.bf16.mxu0 %v2811
        %3480 = vmatpush1.bf16.msra.mxu0 %v2810
        %3481 = vmatprep.subr.bf16.mxu0 %v2803
        %3482 = vmatpush1.bf16.msra.mxu0 %v2802
        %3483 = vmatprep.subr.bf16.mxu0 %v2923
        %3484 = vmatpush2.bf16.msra.mxu0 %v2922
        %3485 = vmatprep.subr.bf16.mxu0 %v2915
        %3486 = vmatpush2.bf16.msra.mxu0 %v2914
        %3487 = vmatprep.subr.bf16.mxu0 %v2907
        %3488 = vmatpush2.bf16.msra.mxu0 %v2906
        %3489 = vmatprep.subr.bf16.mxu0 %v2899
        %3490 = vmatpush2.bf16.msra.mxu0 %v2898
        %3491 = vmatprep.subr.bf16.mxu0 %v2891
        %3492 = vmatpush2.bf16.msra.mxu0 %v2890
        %3493 = vmatprep.subr.bf16.mxu0 %v2883
        %3494 = vmatpush2.bf16.msra.mxu0 %v2882
        %3495 = vmatprep.subr.bf16.mxu0 %v2875
        %3496 = vmatpush2.bf16.msra.mxu0 %v2874
        %3497 = vmatprep.subr.bf16.mxu0 %v2867
        %3498 = vmatpush2.bf16.msra.mxu0 %v2866
        %3499 = vmatprep.mubr.bf16.mxu0 %v647
        %3500 = vmatmul.mubr.bf16.gmra.mxu0 %v646
        %v3501 = vpop.f32.mrf.mxu0
        %v3502 = vadd.f32 %v3461, %v3501
        %v3503 = vpop.f32.mrf.mxu0
        %v3504 = vadd.f32 %v3463, %v3503
        %v3505 = vpop.f32.mrf.mxu0
        %v3506 = vpop.f32.mrf.mxu0
        %3507 = vdwg.mxu0
        %v3508 = vpack.c.bf16 %v1514, %v1514
        %v3509 = vpack.c.bf16 %v1516, %v1516
        %v3510 = vpack.c.bf16 %v1596, %v1596
        %v3511 = vpack.c.bf16 %v1598, %v1598
        %v3512 = vpack.c.bf16 %v3256, %v3256
        %v3513 = vpack.c.bf16 %v3258, %v3258
        %v3514 = vpack.c.bf16 %v3338, %v3338
        %v3515 = vpack.c.bf16 %v3340, %v3340
        %v3516 = vpack.c.bf16 %v3420, %v3420
        %v3517 = vpack.c.bf16 %v3422, %v3422
        %v3518 = vpack.c.bf16 %v3502, %v3502
        %v3519 = vpack.c.bf16 %v3504, %v3504
        %vm3520 = vcmask 523264
        %v3522 = vsel %vm3520, %v3508, 0
        %v3525 = vsel %vm3520, %v3512, 0
        %3527 = vmatprep.subr.bf16.mxu0 0
        %3528 = vmatpush1.bf16.xpose.msra.mxu0 0
        %3529 = vmatprep.subr.bf16.mxu0 0
        %3530 = vmatpush1.bf16.xpose.msra.mxu0 0
        %3531 = vmatprep.subr.bf16.mxu0 0
        %3532 = vmatpush1.bf16.xpose.msra.mxu0 0
        %3533 = vmatprep.subr.bf16.mxu0 0
        %3534 = vmatpush1.bf16.xpose.msra.mxu0 0
        %3535 = vmatprep.subr.bf16.mxu0 0
        %3536 = vmatpush1.bf16.xpose.msra.mxu0 0
        %3537 = vmatprep.subr.bf16.mxu0 0
        %3538 = vmatpush1.bf16.xpose.msra.mxu0 0
        %3539 = vmatprep.subr.bf16.mxu0 0
        %3540 = vmatpush1.bf16.xpose.msra.mxu0 0
        %3541 = vmatprep.subr.bf16.mxu0 0
        %3542 = vmatpush1.bf16.xpose.msra.mxu0 %v3525
        %3543 = vmatprep.subr.bf16.mxu0 0
        %3544 = vmatpush2.bf16.xpose.msra.mxu0 0
        %3545 = vmatprep.subr.bf16.mxu0 0
        %3546 = vmatpush2.bf16.xpose.msra.mxu0 0
        %3547 = vmatprep.subr.bf16.mxu0 0
        %3548 = vmatpush2.bf16.xpose.msra.mxu0 0
        %3549 = vmatprep.subr.bf16.mxu0 0
        %3550 = vmatpush2.bf16.xpose.msra.mxu0 0
        %3551 = vmatprep.subr.bf16.mxu0 0
        %3552 = vmatpush2.bf16.xpose.msra.mxu0 0
        %3553 = vmatprep.subr.bf16.mxu0 0
        %3554 = vmatpush2.bf16.xpose.msra.mxu0 0
        %3555 = vmatprep.subr.bf16.mxu0 0
        %3556 = vmatpush2.bf16.xpose.msra.mxu0 0
        %3557 = vmatprep.subr.bf16.mxu0 0
        %3558 = vmatpush2.bf16.xpose.msra.mxu0 0
        %3559 = vmatprep.mubr.bf16.mxu0 0
        %3560 = vmatmul.mubr.bf16.gmra.mxu0 %v3522
        %v3561 = vpop.f32.mrf.mxu0
        %v3562 = vadd.f32 0.0, %v3561
        %v3563 = vpop.f32.mrf.mxu0
        %v3564 = vpop.f32.mrf.mxu0
        %v3565 = vpop.f32.mrf.mxu0
        %3566 = vdwg.mxu0
        %vm3567 = vcmask 64512
        %v3568 = vsel %vm3567, %v3562, -inf
        %3569 = vmax.xlane.f32.xlu0 %v3568
        %v3570 = vpop.xlane.xlu0 %3569
        %v3571 = vsub.f32 %v3562, %v3570
        %v3572 = vmul.f32 %v3571, 1.442695
        %v3573 = vpow.pop %v3572
        %v3574 = vsel %vm3567, %v3573, 0.0
        %3575 = vadd.xlane.f32.xlu0 %v3574
        %v3576 = vpop.xlane.xlu0 %3575
        %v3577 = vrcp.pop %v3576
        %v3578 = vmul.f32 %v3573, %v3577
        %v3579 = vpack.c.bf16 %v3578, %v3578
        %v3581 = vsel %vm3567, %v3579, 0
        %vm3583 = vcmask 1043456
        %v3585 = vsel %vm3583, %v3516, 0
        %3587 = vmatprep.subr.bf16.mxu0 0
        %3588 = vmatpush1.bf16.msra.mxu0 0
        %3589 = vmatprep.subr.bf16.mxu0 0
        %3590 = vmatpush1.bf16.msra.mxu0 0
        %3591 = vmatprep.subr.bf16.mxu0 0
        %3592 = vmatpush1.bf16.msra.mxu0 0
        %3593 = vmatprep.subr.bf16.mxu0 0
        %3594 = vmatpush1.bf16.msra.mxu0 0
        %3595 = vmatprep.subr.bf16.mxu0 0
        %3596 = vmatpush1.bf16.msra.mxu0 0
        %3597 = vmatprep.subr.bf16.mxu0 0
        %3598 = vmatpush1.bf16.msra.mxu0 0
        %3599 = vmatprep.subr.bf16.mxu0 0
        %3600 = vmatpush1.bf16.msra.mxu0 0
        %3601 = vmatprep.subr.bf16.mxu0 0
        %3602 = vmatpush1.bf16.msra.mxu0 %v3585
        %3603 = vmatprep.subr.bf16.mxu0 0
        %3604 = vmatpush2.bf16.msra.mxu0 0
        %3605 = vmatprep.subr.bf16.mxu0 0
        %3606 = vmatpush2.bf16.msra.mxu0 0
        %3607 = vmatprep.subr.bf16.mxu0 0
        %3608 = vmatpush2.bf16.msra.mxu0 0
        %3609 = vmatprep.subr.bf16.mxu0 0
        %3610 = vmatpush2.bf16.msra.mxu0 0
        %3611 = vmatprep.subr.bf16.mxu0 0
        %3612 = vmatpush2.bf16.msra.mxu0 0
        %3613 = vmatprep.subr.bf16.mxu0 0
        %3614 = vmatpush2.bf16.msra.mxu0 0
        %3615 = vmatprep.subr.bf16.mxu0 0
        %3616 = vmatpush2.bf16.msra.mxu0 0
        %3617 = vmatprep.subr.bf16.mxu0 0
        %3618 = vmatpush2.bf16.msra.mxu0 0
        %3619 = vmatprep.mubr.bf16.mxu0 0
        %3620 = vmatmul.mubr.bf16.gmra.mxu0 %v3581
        %v3621 = vpop.f32.mrf.mxu0
        %v3622 = vadd.f32 0.0, %v3621
        %v3623 = vpop.f32.mrf.mxu0
        %v3624 = vpop.f32.mrf.mxu0
        %v3625 = vpop.f32.mrf.mxu0
        %3626 = vdwg.mxu0
        %3628 = vrot.lane.b32.xlu0 %v3508, 64
        %v3629 = vpop.permute.xlu0 %3628
        %3631 = vrot.lane.b32.xlu0 %v3512, 64
        %v3632 = vpop.permute.xlu0 %3631
        %v3634 = vsel %vm3520, %v3629, 0
        %v3637 = vsel %vm3520, %v3632, 0
        %3639 = vmatprep.subr.bf16.mxu0 0
        %3640 = vmatpush1.bf16.xpose.msra.mxu0 0
        %3641 = vmatprep.subr.bf16.mxu0 0
        %3642 = vmatpush1.bf16.xpose.msra.mxu0 0
        %3643 = vmatprep.subr.bf16.mxu0 0
        %3644 = vmatpush1.bf16.xpose.msra.mxu0 0
        %3645 = vmatprep.subr.bf16.mxu0 0
        %3646 = vmatpush1.bf16.xpose.msra.mxu0 0
        %3647 = vmatprep.subr.bf16.mxu0 0
        %3648 = vmatpush1.bf16.xpose.msra.mxu0 0
        %3649 = vmatprep.subr.bf16.mxu0 0
        %3650 = vmatpush1.bf16.xpose.msra.mxu0 0
        %3651 = vmatprep.subr.bf16.mxu0 0
        %3652 = vmatpush1.bf16.xpose.msra.mxu0 0
        %3653 = vmatprep.subr.bf16.mxu0 0
        %3654 = vmatpush1.bf16.xpose.msra.mxu0 %v3637
        %3655 = vmatprep.subr.bf16.mxu0 0
        %3656 = vmatpush2.bf16.xpose.msra.mxu0 0
        %3657 = vmatprep.subr.bf16.mxu0 0
        %3658 = vmatpush2.bf16.xpose.msra.mxu0 0
        %3659 = vmatprep.subr.bf16.mxu0 0
        %3660 = vmatpush2.bf16.xpose.msra.mxu0 0
        %3661 = vmatprep.subr.bf16.mxu0 0
        %3662 = vmatpush2.bf16.xpose.msra.mxu0 0
        %3663 = vmatprep.subr.bf16.mxu0 0
        %3664 = vmatpush2.bf16.xpose.msra.mxu0 0
        %3665 = vmatprep.subr.bf16.mxu0 0
        %3666 = vmatpush2.bf16.xpose.msra.mxu0 0
        %3667 = vmatprep.subr.bf16.mxu0 0
        %3668 = vmatpush2.bf16.xpose.msra.mxu0 0
        %3669 = vmatprep.subr.bf16.mxu0 0
        %3670 = vmatpush2.bf16.xpose.msra.mxu0 0
        %3671 = vmatprep.mubr.bf16.mxu0 0
        %3672 = vmatmul.mubr.bf16.gmra.mxu0 %v3634
        %v3673 = vpop.f32.mrf.mxu0
        %v3674 = vadd.f32 0.0, %v3673
        %v3675 = vpop.f32.mrf.mxu0
        %v3676 = vpop.f32.mrf.mxu0
        %v3677 = vpop.f32.mrf.mxu0
        %3678 = vdwg.mxu0
        %v3679 = vsel %vm3567, %v3674, -inf
        %3680 = vmax.xlane.f32.xlu0 %v3679
        %v3681 = vpop.xlane.xlu0 %3680
        %v3682 = vsub.f32 %v3674, %v3681
        %v3683 = vmul.f32 %v3682, 1.442695
        %v3684 = vpow.pop %v3683
        %v3685 = vsel %vm3567, %v3684, 0.0
        %3686 = vadd.xlane.f32.xlu0 %v3685
        %v3687 = vpop.xlane.xlu0 %3686
        %v3688 = vrcp.pop %v3687
        %v3689 = vmul.f32 %v3684, %v3688
        %v3690 = vpack.c.bf16 %v3689, %v3689
        %3692 = vrot.lane.b32.xlu0 %v3516, 64
        %v3693 = vpop.permute.xlu0 %3692
        %v3695 = vsel %vm3567, %v3690, 0
        %v3698 = vsel %vm3583, %v3693, 0
        %3700 = vmatprep.subr.bf16.mxu0 0
        %3701 = vmatpush1.bf16.msra.mxu0 0
        %3702 = vmatprep.subr.bf16.mxu0 0
        %3703 = vmatpush1.bf16.msra.mxu0 0
        %3704 = vmatprep.subr.bf16.mxu0 0
        %3705 = vmatpush1.bf16.msra.mxu0 0
        %3706 = vmatprep.subr.bf16.mxu0 0
        %3707 = vmatpush1.bf16.msra.mxu0 0
        %3708 = vmatprep.subr.bf16.mxu0 0
        %3709 = vmatpush1.bf16.msra.mxu0 0
        %3710 = vmatprep.subr.bf16.mxu0 0
        %3711 = vmatpush1.bf16.msra.mxu0 0
        %3712 = vmatprep.subr.bf16.mxu0 0
        %3713 = vmatpush1.bf16.msra.mxu0 0
        %3714 = vmatprep.subr.bf16.mxu0 0
        %3715 = vmatpush1.bf16.msra.mxu0 %v3698
        %3716 = vmatprep.subr.bf16.mxu0 0
        %3717 = vmatpush2.bf16.msra.mxu0 0
        %3718 = vmatprep.subr.bf16.mxu0 0
        %3719 = vmatpush2.bf16.msra.mxu0 0
        %3720 = vmatprep.subr.bf16.mxu0 0
        %3721 = vmatpush2.bf16.msra.mxu0 0
        %3722 = vmatprep.subr.bf16.mxu0 0
        %3723 = vmatpush2.bf16.msra.mxu0 0
        %3724 = vmatprep.subr.bf16.mxu0 0
        %3725 = vmatpush2.bf16.msra.mxu0 0
        %3726 = vmatprep.subr.bf16.mxu0 0
        %3727 = vmatpush2.bf16.msra.mxu0 0
        %3728 = vmatprep.subr.bf16.mxu0 0
        %3729 = vmatpush2.bf16.msra.mxu0 0
        %3730 = vmatprep.subr.bf16.mxu0 0
        %3731 = vmatpush2.bf16.msra.mxu0 0
        %3732 = vmatprep.mubr.bf16.mxu0 0
        %3733 = vmatmul.mubr.bf16.gmra.mxu0 %v3695
        %v3734 = vpop.f32.mrf.mxu0
        %v3735 = vadd.f32 0.0, %v3734
        %v3736 = vpop.f32.mrf.mxu0
        %v3737 = vpop.f32.mrf.mxu0
        %v3738 = vpop.f32.mrf.mxu0
        %3739 = vdwg.mxu0
        %v3741 = vsel %vm3520, %v3509, 0
        %v3744 = vsel %vm3520, %v3513, 0
        %3746 = vmatprep.subr.bf16.mxu0 0
        %3747 = vmatpush1.bf16.xpose.msra.mxu0 0
        %3748 = vmatprep.subr.bf16.mxu0 0
        %3749 = vmatpush1.bf16.xpose.msra.mxu0 0
        %3750 = vmatprep.subr.bf16.mxu0 0
        %3751 = vmatpush1.bf16.xpose.msra.mxu0 0
        %3752 = vmatprep.subr.bf16.mxu0 0
        %3753 = vmatpush1.bf16.xpose.msra.mxu0 0
        %3754 = vmatprep.subr.bf16.mxu0 0
        %3755 = vmatpush1.bf16.xpose.msra.mxu0 0
        %3756 = vmatprep.subr.bf16.mxu0 0
        %3757 = vmatpush1.bf16.xpose.msra.mxu0 0
        %3758 = vmatprep.subr.bf16.mxu0 0
        %3759 = vmatpush1.bf16.xpose.msra.mxu0 0
        %3760 = vmatprep.subr.bf16.mxu0 0
        %3761 = vmatpush1.bf16.xpose.msra.mxu0 %v3744
        %3762 = vmatprep.subr.bf16.mxu0 0
        %3763 = vmatpush2.bf16.xpose.msra.mxu0 0
        %3764 = vmatprep.subr.bf16.mxu0 0
        %3765 = vmatpush2.bf16.xpose.msra.mxu0 0
        %3766 = vmatprep.subr.bf16.mxu0 0
        %3767 = vmatpush2.bf16.xpose.msra.mxu0 0
        %3768 = vmatprep.subr.bf16.mxu0 0
        %3769 = vmatpush2.bf16.xpose.msra.mxu0 0
        %3770 = vmatprep.subr.bf16.mxu0 0
        %3771 = vmatpush2.bf16.xpose.msra.mxu0 0
        %3772 = vmatprep.subr.bf16.mxu0 0
        %3773 = vmatpush2.bf16.xpose.msra.mxu0 0
        %3774 = vmatprep.subr.bf16.mxu0 0
        %3775 = vmatpush2.bf16.xpose.msra.mxu0 0
        %3776 = vmatprep.subr.bf16.mxu0 0
        %3777 = vmatpush2.bf16.xpose.msra.mxu0 0
        %3778 = vmatprep.mubr.bf16.mxu0 0
        %3779 = vmatmul.mubr.bf16.gmra.mxu0 %v3741
        %v3780 = vpop.f32.mrf.mxu0
        %v3781 = vadd.f32 0.0, %v3780
        %v3782 = vpop.f32.mrf.mxu0
        %v3783 = vpop.f32.mrf.mxu0
        %v3784 = vpop.f32.mrf.mxu0
        %3785 = vdwg.mxu0
        %v3786 = vsel %vm3567, %v3781, -inf
        %3787 = vmax.xlane.f32.xlu0 %v3786
        %v3788 = vpop.xlane.xlu0 %3787
        %v3789 = vsub.f32 %v3781, %v3788
        %v3790 = vmul.f32 %v3789, 1.442695
        %v3791 = vpow.pop %v3790
        %v3792 = vsel %vm3567, %v3791, 0.0
        %3793 = vadd.xlane.f32.xlu0 %v3792
        %v3794 = vpop.xlane.xlu0 %3793
        %v3795 = vrcp.pop %v3794
        %v3796 = vmul.f32 %v3791, %v3795
        %v3797 = vpack.c.bf16 %v3796, %v3796
        %v3799 = vsel %vm3567, %v3797, 0
        %v3802 = vsel %vm3583, %v3517, 0
        %3804 = vmatprep.subr.bf16.mxu0 0
        %3805 = vmatpush1.bf16.msra.mxu0 0
        %3806 = vmatprep.subr.bf16.mxu0 0
        %3807 = vmatpush1.bf16.msra.mxu0 0
        %3808 = vmatprep.subr.bf16.mxu0 0
        %3809 = vmatpush1.bf16.msra.mxu0 0
        %3810 = vmatprep.subr.bf16.mxu0 0
        %3811 = vmatpush1.bf16.msra.mxu0 0
        %3812 = vmatprep.subr.bf16.mxu0 0
        %3813 = vmatpush1.bf16.msra.mxu0 0
        %3814 = vmatprep.subr.bf16.mxu0 0
        %3815 = vmatpush1.bf16.msra.mxu0 0
        %3816 = vmatprep.subr.bf16.mxu0 0
        %3817 = vmatpush1.bf16.msra.mxu0 0
        %3818 = vmatprep.subr.bf16.mxu0 0
        %3819 = vmatpush1.bf16.msra.mxu0 %v3802
        %3820 = vmatprep.subr.bf16.mxu0 0
        %3821 = vmatpush2.bf16.msra.mxu0 0
        %3822 = vmatprep.subr.bf16.mxu0 0
        %3823 = vmatpush2.bf16.msra.mxu0 0
        %3824 = vmatprep.subr.bf16.mxu0 0
        %3825 = vmatpush2.bf16.msra.mxu0 0
        %3826 = vmatprep.subr.bf16.mxu0 0
        %3827 = vmatpush2.bf16.msra.mxu0 0
        %3828 = vmatprep.subr.bf16.mxu0 0
        %3829 = vmatpush2.bf16.msra.mxu0 0
        %3830 = vmatprep.subr.bf16.mxu0 0
        %3831 = vmatpush2.bf16.msra.mxu0 0
        %3832 = vmatprep.subr.bf16.mxu0 0
        %3833 = vmatpush2.bf16.msra.mxu0 0
        %3834 = vmatprep.subr.bf16.mxu0 0
        %3835 = vmatpush2.bf16.msra.mxu0 0
        %3836 = vmatprep.mubr.bf16.mxu0 0
        %3837 = vmatmul.mubr.bf16.gmra.mxu0 %v3799
        %v3838 = vpop.f32.mrf.mxu0
        %v3839 = vadd.f32 0.0, %v3838
        %v3840 = vpop.f32.mrf.mxu0
        %v3841 = vpop.f32.mrf.mxu0
        %v3842 = vpop.f32.mrf.mxu0
        %3843 = vdwg.mxu0
        %3845 = vrot.lane.b32.xlu0 %v3509, 64
        %v3846 = vpop.permute.xlu0 %3845
        %3848 = vrot.lane.b32.xlu0 %v3513, 64
        %v3849 = vpop.permute.xlu0 %3848
        %v3851 = vsel %vm3520, %v3846, 0
        %v3854 = vsel %vm3520, %v3849, 0
        %3856 = vmatprep.subr.bf16.mxu0 0
        %3857 = vmatpush1.bf16.xpose.msra.mxu0 0
        %3858 = vmatprep.subr.bf16.mxu0 0
        %3859 = vmatpush1.bf16.xpose.msra.mxu0 0
        %3860 = vmatprep.subr.bf16.mxu0 0
        %3861 = vmatpush1.bf16.xpose.msra.mxu0 0
        %3862 = vmatprep.subr.bf16.mxu0 0
        %3863 = vmatpush1.bf16.xpose.msra.mxu0 0
        %3864 = vmatprep.subr.bf16.mxu0 0
        %3865 = vmatpush1.bf16.xpose.msra.mxu0 0
        %3866 = vmatprep.subr.bf16.mxu0 0
        %3867 = vmatpush1.bf16.xpose.msra.mxu0 0
        %3868 = vmatprep.subr.bf16.mxu0 0
        %3869 = vmatpush1.bf16.xpose.msra.mxu0 0
        %3870 = vmatprep.subr.bf16.mxu0 0
        %3871 = vmatpush1.bf16.xpose.msra.mxu0 %v3854
        %3872 = vmatprep.subr.bf16.mxu0 0
        %3873 = vmatpush2.bf16.xpose.msra.mxu0 0
        %3874 = vmatprep.subr.bf16.mxu0 0
        %3875 = vmatpush2.bf16.xpose.msra.mxu0 0
        %3876 = vmatprep.subr.bf16.mxu0 0
        %3877 = vmatpush2.bf16.xpose.msra.mxu0 0
        %3878 = vmatprep.subr.bf16.mxu0 0
        %3879 = vmatpush2.bf16.xpose.msra.mxu0 0
        %3880 = vmatprep.subr.bf16.mxu0 0
        %3881 = vmatpush2.bf16.xpose.msra.mxu0 0
        %3882 = vmatprep.subr.bf16.mxu0 0
        %3883 = vmatpush2.bf16.xpose.msra.mxu0 0
        %3884 = vmatprep.subr.bf16.mxu0 0
        %3885 = vmatpush2.bf16.xpose.msra.mxu0 0
        %3886 = vmatprep.subr.bf16.mxu0 0
        %3887 = vmatpush2.bf16.xpose.msra.mxu0 0
        %3888 = vmatprep.mubr.bf16.mxu0 0
        %3889 = vmatmul.mubr.bf16.gmra.mxu0 %v3851
        %v3890 = vpop.f32.mrf.mxu0
        %v3891 = vadd.f32 0.0, %v3890
        %v3892 = vpop.f32.mrf.mxu0
        %v3893 = vpop.f32.mrf.mxu0
        %v3894 = vpop.f32.mrf.mxu0
        %3895 = vdwg.mxu0
        %v3896 = vsel %vm3567, %v3891, -inf
        %3897 = vmax.xlane.f32.xlu0 %v3896
        %v3898 = vpop.xlane.xlu0 %3897
        %v3899 = vsub.f32 %v3891, %v3898
        %v3900 = vmul.f32 %v3899, 1.442695
        %v3901 = vpow.pop %v3900
        %v3902 = vsel %vm3567, %v3901, 0.0
        %3903 = vadd.xlane.f32.xlu0 %v3902
        %v3904 = vpop.xlane.xlu0 %3903
        %v3905 = vrcp.pop %v3904
        %v3906 = vmul.f32 %v3901, %v3905
        %v3907 = vpack.c.bf16 %v3906, %v3906
        %3909 = vrot.lane.b32.xlu0 %v3517, 64
        %v3910 = vpop.permute.xlu0 %3909
        %v3912 = vsel %vm3567, %v3907, 0
        %v3915 = vsel %vm3583, %v3910, 0
        %3917 = vmatprep.subr.bf16.mxu0 0
        %3918 = vmatpush1.bf16.msra.mxu0 0
        %3919 = vmatprep.subr.bf16.mxu0 0
        %3920 = vmatpush1.bf16.msra.mxu0 0
        %3921 = vmatprep.subr.bf16.mxu0 0
        %3922 = vmatpush1.bf16.msra.mxu0 0
        %3923 = vmatprep.subr.bf16.mxu0 0
        %3924 = vmatpush1.bf16.msra.mxu0 0
        %3925 = vmatprep.subr.bf16.mxu0 0
        %3926 = vmatpush1.bf16.msra.mxu0 0
        %3927 = vmatprep.subr.bf16.mxu0 0
        %3928 = vmatpush1.bf16.msra.mxu0 0
        %3929 = vmatprep.subr.bf16.mxu0 0
        %3930 = vmatpush1.bf16.msra.mxu0 0
        %3931 = vmatprep.subr.bf16.mxu0 0
        %3932 = vmatpush1.bf16.msra.mxu0 %v3915
        %3933 = vmatprep.subr.bf16.mxu0 0
        %3934 = vmatpush2.bf16.msra.mxu0 0
        %3935 = vmatprep.subr.bf16.mxu0 0
        %3936 = vmatpush2.bf16.msra.mxu0 0
        %3937 = vmatprep.subr.bf16.mxu0 0
        %3938 = vmatpush2.bf16.msra.mxu0 0
        %3939 = vmatprep.subr.bf16.mxu0 0
        %3940 = vmatpush2.bf16.msra.mxu0 0
        %3941 = vmatprep.subr.bf16.mxu0 0
        %3942 = vmatpush2.bf16.msra.mxu0 0
        %3943 = vmatprep.subr.bf16.mxu0 0
        %3944 = vmatpush2.bf16.msra.mxu0 0
        %3945 = vmatprep.subr.bf16.mxu0 0
        %3946 = vmatpush2.bf16.msra.mxu0 0
        %3947 = vmatprep.subr.bf16.mxu0 0
        %3948 = vmatpush2.bf16.msra.mxu0 0
        %3949 = vmatprep.mubr.bf16.mxu0 0
        %3950 = vmatmul.mubr.bf16.gmra.mxu0 %v3912
        %v3951 = vpop.f32.mrf.mxu0
        %v3952 = vadd.f32 0.0, %v3951
        %v3953 = vpop.f32.mrf.mxu0
        %v3954 = vpop.f32.mrf.mxu0
        %v3955 = vpop.f32.mrf.mxu0
        %3956 = vdwg.mxu0
        %v3958 = vsel %vm3520, %v3510, 0
        %v3961 = vsel %vm3520, %v3514, 0
        %3963 = vmatprep.subr.bf16.mxu0 0
        %3964 = vmatpush1.bf16.xpose.msra.mxu0 0
        %3965 = vmatprep.subr.bf16.mxu0 0
        %3966 = vmatpush1.bf16.xpose.msra.mxu0 0
        %3967 = vmatprep.subr.bf16.mxu0 0
        %3968 = vmatpush1.bf16.xpose.msra.mxu0 0
        %3969 = vmatprep.subr.bf16.mxu0 0
        %3970 = vmatpush1.bf16.xpose.msra.mxu0 0
        %3971 = vmatprep.subr.bf16.mxu0 0
        %3972 = vmatpush1.bf16.xpose.msra.mxu0 0
        %3973 = vmatprep.subr.bf16.mxu0 0
        %3974 = vmatpush1.bf16.xpose.msra.mxu0 0
        %3975 = vmatprep.subr.bf16.mxu0 0
        %3976 = vmatpush1.bf16.xpose.msra.mxu0 0
        %3977 = vmatprep.subr.bf16.mxu0 0
        %3978 = vmatpush1.bf16.xpose.msra.mxu0 %v3961
        %3979 = vmatprep.subr.bf16.mxu0 0
        %3980 = vmatpush2.bf16.xpose.msra.mxu0 0
        %3981 = vmatprep.subr.bf16.mxu0 0
        %3982 = vmatpush2.bf16.xpose.msra.mxu0 0
        %3983 = vmatprep.subr.bf16.mxu0 0
        %3984 = vmatpush2.bf16.xpose.msra.mxu0 0
        %3985 = vmatprep.subr.bf16.mxu0 0
        %3986 = vmatpush2.bf16.xpose.msra.mxu0 0
        %3987 = vmatprep.subr.bf16.mxu0 0
        %3988 = vmatpush2.bf16.xpose.msra.mxu0 0
        %3989 = vmatprep.subr.bf16.mxu0 0
        %3990 = vmatpush2.bf16.xpose.msra.mxu0 0
        %3991 = vmatprep.subr.bf16.mxu0 0
        %3992 = vmatpush2.bf16.xpose.msra.mxu0 0
        %3993 = vmatprep.subr.bf16.mxu0 0
        %3994 = vmatpush2.bf16.xpose.msra.mxu0 0
        %3995 = vmatprep.mubr.bf16.mxu0 0
        %3996 = vmatmul.mubr.bf16.gmra.mxu0 %v3958
        %v3997 = vpop.f32.mrf.mxu0
        %v3998 = vadd.f32 0.0, %v3997
        %v3999 = vpop.f32.mrf.mxu0
        %v4000 = vpop.f32.mrf.mxu0
        %v4001 = vpop.f32.mrf.mxu0
        %4002 = vdwg.mxu0
        %v4003 = vsel %vm3567, %v3998, -inf
        %4004 = vmax.xlane.f32.xlu0 %v4003
        %v4005 = vpop.xlane.xlu0 %4004
        %v4006 = vsub.f32 %v3998, %v4005
        %v4007 = vmul.f32 %v4006, 1.442695
        %v4008 = vpow.pop %v4007
        %v4009 = vsel %vm3567, %v4008, 0.0
        %4010 = vadd.xlane.f32.xlu0 %v4009
        %v4011 = vpop.xlane.xlu0 %4010
        %v4012 = vrcp.pop %v4011
        %v4013 = vmul.f32 %v4008, %v4012
        %v4014 = vpack.c.bf16 %v4013, %v4013
        %v4016 = vsel %vm3567, %v4014, 0
        %v4019 = vsel %vm3583, %v3518, 0
        %4021 = vmatprep.subr.bf16.mxu0 0
        %4022 = vmatpush1.bf16.msra.mxu0 0
        %4023 = vmatprep.subr.bf16.mxu0 0
        %4024 = vmatpush1.bf16.msra.mxu0 0
        %4025 = vmatprep.subr.bf16.mxu0 0
        %4026 = vmatpush1.bf16.msra.mxu0 0
        %4027 = vmatprep.subr.bf16.mxu0 0
        %4028 = vmatpush1.bf16.msra.mxu0 0
        %4029 = vmatprep.subr.bf16.mxu0 0
        %4030 = vmatpush1.bf16.msra.mxu0 0
        %4031 = vmatprep.subr.bf16.mxu0 0
        %4032 = vmatpush1.bf16.msra.mxu0 0
        %4033 = vmatprep.subr.bf16.mxu0 0
        %4034 = vmatpush1.bf16.msra.mxu0 0
        %4035 = vmatprep.subr.bf16.mxu0 0
        %4036 = vmatpush1.bf16.msra.mxu0 %v4019
        %4037 = vmatprep.subr.bf16.mxu0 0
        %4038 = vmatpush2.bf16.msra.mxu0 0
        %4039 = vmatprep.subr.bf16.mxu0 0
        %4040 = vmatpush2.bf16.msra.mxu0 0
        %4041 = vmatprep.subr.bf16.mxu0 0
        %4042 = vmatpush2.bf16.msra.mxu0 0
        %4043 = vmatprep.subr.bf16.mxu0 0
        %4044 = vmatpush2.bf16.msra.mxu0 0
        %4045 = vmatprep.subr.bf16.mxu0 0
        %4046 = vmatpush2.bf16.msra.mxu0 0
        %4047 = vmatprep.subr.bf16.mxu0 0
        %4048 = vmatpush2.bf16.msra.mxu0 0
        %4049 = vmatprep.subr.bf16.mxu0 0
        %4050 = vmatpush2.bf16.msra.mxu0 0
        %4051 = vmatprep.subr.bf16.mxu0 0
        %4052 = vmatpush2.bf16.msra.mxu0 0
        %4053 = vmatprep.mubr.bf16.mxu0 0
        %4054 = vmatmul.mubr.bf16.gmra.mxu0 %v4016
        %v4055 = vpop.f32.mrf.mxu0
        %v4056 = vadd.f32 0.0, %v4055
        %v4057 = vpop.f32.mrf.mxu0
        %v4058 = vpop.f32.mrf.mxu0
        %v4059 = vpop.f32.mrf.mxu0
        %4060 = vdwg.mxu0
        %4062 = vrot.lane.b32.xlu0 %v3510, 64
        %v4063 = vpop.permute.xlu0 %4062
        %4065 = vrot.lane.b32.xlu0 %v3514, 64
        %v4066 = vpop.permute.xlu0 %4065
        %v4068 = vsel %vm3520, %v4063, 0
        %v4071 = vsel %vm3520, %v4066, 0
        %4073 = vmatprep.subr.bf16.mxu0 0
        %4074 = vmatpush1.bf16.xpose.msra.mxu0 0
        %4075 = vmatprep.subr.bf16.mxu0 0
        %4076 = vmatpush1.bf16.xpose.msra.mxu0 0
        %4077 = vmatprep.subr.bf16.mxu0 0
        %4078 = vmatpush1.bf16.xpose.msra.mxu0 0
        %4079 = vmatprep.subr.bf16.mxu0 0
        %4080 = vmatpush1.bf16.xpose.msra.mxu0 0
        %4081 = vmatprep.subr.bf16.mxu0 0
        %4082 = vmatpush1.bf16.xpose.msra.mxu0 0
        %4083 = vmatprep.subr.bf16.mxu0 0
        %4084 = vmatpush1.bf16.xpose.msra.mxu0 0
        %4085 = vmatprep.subr.bf16.mxu0 0
        %4086 = vmatpush1.bf16.xpose.msra.mxu0 0
        %4087 = vmatprep.subr.bf16.mxu0 0
        %4088 = vmatpush1.bf16.xpose.msra.mxu0 %v4071
        %4089 = vmatprep.subr.bf16.mxu0 0
        %4090 = vmatpush2.bf16.xpose.msra.mxu0 0
        %4091 = vmatprep.subr.bf16.mxu0 0
        %4092 = vmatpush2.bf16.xpose.msra.mxu0 0
        %4093 = vmatprep.subr.bf16.mxu0 0
        %4094 = vmatpush2.bf16.xpose.msra.mxu0 0
        %4095 = vmatprep.subr.bf16.mxu0 0
        %4096 = vmatpush2.bf16.xpose.msra.mxu0 0
        %4097 = vmatprep.subr.bf16.mxu0 0
        %4098 = vmatpush2.bf16.xpose.msra.mxu0 0
        %4099 = vmatprep.subr.bf16.mxu0 0
        %4100 = vmatpush2.bf16.xpose.msra.mxu0 0
        %4101 = vmatprep.subr.bf16.mxu0 0
        %4102 = vmatpush2.bf16.xpose.msra.mxu0 0
        %4103 = vmatprep.subr.bf16.mxu0 0
        %4104 = vmatpush2.bf16.xpose.msra.mxu0 0
        %4105 = vmatprep.mubr.bf16.mxu0 0
        %4106 = vmatmul.mubr.bf16.gmra.mxu0 %v4068
        %v4107 = vpop.f32.mrf.mxu0
        %v4108 = vadd.f32 0.0, %v4107
        %v4109 = vpop.f32.mrf.mxu0
        %v4110 = vpop.f32.mrf.mxu0
        %v4111 = vpop.f32.mrf.mxu0
        %4112 = vdwg.mxu0
        %v4113 = vsel %vm3567, %v4108, -inf
        %4114 = vmax.xlane.f32.xlu0 %v4113
        %v4115 = vpop.xlane.xlu0 %4114
        %v4116 = vsub.f32 %v4108, %v4115
        %v4117 = vmul.f32 %v4116, 1.442695
        %v4118 = vpow.pop %v4117
        %v4119 = vsel %vm3567, %v4118, 0.0
        %4120 = vadd.xlane.f32.xlu0 %v4119
        %v4121 = vpop.xlane.xlu0 %4120
        %v4122 = vrcp.pop %v4121
        %v4123 = vmul.f32 %v4118, %v4122
        %v4124 = vpack.c.bf16 %v4123, %v4123
        %4126 = vrot.lane.b32.xlu0 %v3518, 64
        %v4127 = vpop.permute.xlu0 %4126
        %v4129 = vsel %vm3567, %v4124, 0
        %v4132 = vsel %vm3583, %v4127, 0
        %4134 = vmatprep.subr.bf16.mxu0 0
        %4135 = vmatpush1.bf16.msra.mxu0 0
        %4136 = vmatprep.subr.bf16.mxu0 0
        %4137 = vmatpush1.bf16.msra.mxu0 0
        %4138 = vmatprep.subr.bf16.mxu0 0
        %4139 = vmatpush1.bf16.msra.mxu0 0
        %4140 = vmatprep.subr.bf16.mxu0 0
        %4141 = vmatpush1.bf16.msra.mxu0 0
        %4142 = vmatprep.subr.bf16.mxu0 0
        %4143 = vmatpush1.bf16.msra.mxu0 0
        %4144 = vmatprep.subr.bf16.mxu0 0
        %4145 = vmatpush1.bf16.msra.mxu0 0
        %4146 = vmatprep.subr.bf16.mxu0 0
        %4147 = vmatpush1.bf16.msra.mxu0 0
        %4148 = vmatprep.subr.bf16.mxu0 0
        %4149 = vmatpush1.bf16.msra.mxu0 %v4132
        %4150 = vmatprep.subr.bf16.mxu0 0
        %4151 = vmatpush2.bf16.msra.mxu0 0
        %4152 = vmatprep.subr.bf16.mxu0 0
        %4153 = vmatpush2.bf16.msra.mxu0 0
        %4154 = vmatprep.subr.bf16.mxu0 0
        %4155 = vmatpush2.bf16.msra.mxu0 0
        %4156 = vmatprep.subr.bf16.mxu0 0
        %4157 = vmatpush2.bf16.msra.mxu0 0
        %4158 = vmatprep.subr.bf16.mxu0 0
        %4159 = vmatpush2.bf16.msra.mxu0 0
        %4160 = vmatprep.subr.bf16.mxu0 0
        %4161 = vmatpush2.bf16.msra.mxu0 0
        %4162 = vmatprep.subr.bf16.mxu0 0
        %4163 = vmatpush2.bf16.msra.mxu0 0
        %4164 = vmatprep.subr.bf16.mxu0 0
        %4165 = vmatpush2.bf16.msra.mxu0 0
        %4166 = vmatprep.mubr.bf16.mxu0 0
        %4167 = vmatmul.mubr.bf16.gmra.mxu0 %v4129
        %v4168 = vpop.f32.mrf.mxu0
        %v4169 = vadd.f32 0.0, %v4168
        %v4170 = vpop.f32.mrf.mxu0
        %v4171 = vpop.f32.mrf.mxu0
        %v4172 = vpop.f32.mrf.mxu0
        %4173 = vdwg.mxu0
        %v4175 = vsel %vm3520, %v3511, 0
        %v4178 = vsel %vm3520, %v3515, 0
        %4180 = vmatprep.subr.bf16.mxu0 0
        %4181 = vmatpush1.bf16.xpose.msra.mxu0 0
        %4182 = vmatprep.subr.bf16.mxu0 0
        %4183 = vmatpush1.bf16.xpose.msra.mxu0 0
        %4184 = vmatprep.subr.bf16.mxu0 0
        %4185 = vmatpush1.bf16.xpose.msra.mxu0 0
        %4186 = vmatprep.subr.bf16.mxu0 0
        %4187 = vmatpush1.bf16.xpose.msra.mxu0 0
        %4188 = vmatprep.subr.bf16.mxu0 0
        %4189 = vmatpush1.bf16.xpose.msra.mxu0 0
        %4190 = vmatprep.subr.bf16.mxu0 0
        %4191 = vmatpush1.bf16.xpose.msra.mxu0 0
        %4192 = vmatprep.subr.bf16.mxu0 0
        %4193 = vmatpush1.bf16.xpose.msra.mxu0 0
        %4194 = vmatprep.subr.bf16.mxu0 0
        %4195 = vmatpush1.bf16.xpose.msra.mxu0 %v4178
        %4196 = vmatprep.subr.bf16.mxu0 0
        %4197 = vmatpush2.bf16.xpose.msra.mxu0 0
        %4198 = vmatprep.subr.bf16.mxu0 0
        %4199 = vmatpush2.bf16.xpose.msra.mxu0 0
        %4200 = vmatprep.subr.bf16.mxu0 0
        %4201 = vmatpush2.bf16.xpose.msra.mxu0 0
        %4202 = vmatprep.subr.bf16.mxu0 0
        %4203 = vmatpush2.bf16.xpose.msra.mxu0 0
        %4204 = vmatprep.subr.bf16.mxu0 0
        %4205 = vmatpush2.bf16.xpose.msra.mxu0 0
        %4206 = vmatprep.subr.bf16.mxu0 0
        %4207 = vmatpush2.bf16.xpose.msra.mxu0 0
        %4208 = vmatprep.subr.bf16.mxu0 0
        %4209 = vmatpush2.bf16.xpose.msra.mxu0 0
        %4210 = vmatprep.subr.bf16.mxu0 0
        %4211 = vmatpush2.bf16.xpose.msra.mxu0 0
        %4212 = vmatprep.mubr.bf16.mxu0 0
        %4213 = vmatmul.mubr.bf16.gmra.mxu0 %v4175
        %v4214 = vpop.f32.mrf.mxu0
        %v4215 = vadd.f32 0.0, %v4214
        %v4216 = vpop.f32.mrf.mxu0
        %v4217 = vpop.f32.mrf.mxu0
        %v4218 = vpop.f32.mrf.mxu0
        %4219 = vdwg.mxu0
        %v4220 = vsel %vm3567, %v4215, -inf
        %4221 = vmax.xlane.f32.xlu0 %v4220
        %v4222 = vpop.xlane.xlu0 %4221
        %v4223 = vsub.f32 %v4215, %v4222
        %v4224 = vmul.f32 %v4223, 1.442695
        %v4225 = vpow.pop %v4224
        %v4226 = vsel %vm3567, %v4225, 0.0
        %4227 = vadd.xlane.f32.xlu0 %v4226
        %v4228 = vpop.xlane.xlu0 %4227
        %v4229 = vrcp.pop %v4228
        %v4230 = vmul.f32 %v4225, %v4229
        %v4231 = vpack.c.bf16 %v4230, %v4230
        %v4233 = vsel %vm3567, %v4231, 0
        %v4236 = vsel %vm3583, %v3519, 0
        %4238 = vmatprep.subr.bf16.mxu0 0
        %4239 = vmatpush1.bf16.msra.mxu0 0
        %4240 = vmatprep.subr.bf16.mxu0 0
        %4241 = vmatpush1.bf16.msra.mxu0 0
        %4242 = vmatprep.subr.bf16.mxu0 0
        %4243 = vmatpush1.bf16.msra.mxu0 0
        %4244 = vmatprep.subr.bf16.mxu0 0
        %4245 = vmatpush1.bf16.msra.mxu0 0
        %4246 = vmatprep.subr.bf16.mxu0 0
        %4247 = vmatpush1.bf16.msra.mxu0 0
        %4248 = vmatprep.subr.bf16.mxu0 0
        %4249 = vmatpush1.bf16.msra.mxu0 0
        %4250 = vmatprep.subr.bf16.mxu0 0
        %4251 = vmatpush1.bf16.msra.mxu0 0
        %4252 = vmatprep.subr.bf16.mxu0 0
        %4253 = vmatpush1.bf16.msra.mxu0 %v4236
        %4254 = vmatprep.subr.bf16.mxu0 0
        %4255 = vmatpush2.bf16.msra.mxu0 0
        %4256 = vmatprep.subr.bf16.mxu0 0
        %4257 = vmatpush2.bf16.msra.mxu0 0
        %4258 = vmatprep.subr.bf16.mxu0 0
        %4259 = vmatpush2.bf16.msra.mxu0 0
        %4260 = vmatprep.subr.bf16.mxu0 0
        %4261 = vmatpush2.bf16.msra.mxu0 0
        %4262 = vmatprep.subr.bf16.mxu0 0
        %4263 = vmatpush2.bf16.msra.mxu0 0
        %4264 = vmatprep.subr.bf16.mxu0 0
        %4265 = vmatpush2.bf16.msra.mxu0 0
        %4266 = vmatprep.subr.bf16.mxu0 0
        %4267 = vmatpush2.bf16.msra.mxu0 0
        %4268 = vmatprep.subr.bf16.mxu0 0
        %4269 = vmatpush2.bf16.msra.mxu0 0
        %4270 = vmatprep.mubr.bf16.mxu0 0
        %4271 = vmatmul.mubr.bf16.gmra.mxu0 %v4233
        %v4272 = vpop.f32.mrf.mxu0
        %v4273 = vadd.f32 0.0, %v4272
        %v4274 = vpop.f32.mrf.mxu0
        %v4275 = vpop.f32.mrf.mxu0
        %v4276 = vpop.f32.mrf.mxu0
        %4277 = vdwg.mxu0
        %4279 = vrot.lane.b32.xlu0 %v3511, 64
        %v4280 = vpop.permute.xlu0 %4279
        %4282 = vrot.lane.b32.xlu0 %v3515, 64
        %v4283 = vpop.permute.xlu0 %4282
        %v4285 = vsel %vm3520, %v4280, 0
        %v4288 = vsel %vm3520, %v4283, 0
        %4290 = vmatprep.subr.bf16.mxu0 0
        %4291 = vmatpush1.bf16.xpose.msra.mxu0 0
        %4292 = vmatprep.subr.bf16.mxu0 0
        %4293 = vmatpush1.bf16.xpose.msra.mxu0 0
        %4294 = vmatprep.subr.bf16.mxu0 0
        %4295 = vmatpush1.bf16.xpose.msra.mxu0 0
        %4296 = vmatprep.subr.bf16.mxu0 0
        %4297 = vmatpush1.bf16.xpose.msra.mxu0 0
        %4298 = vmatprep.subr.bf16.mxu0 0
        %4299 = vmatpush1.bf16.xpose.msra.mxu0 0
        %4300 = vmatprep.subr.bf16.mxu0 0
        %4301 = vmatpush1.bf16.xpose.msra.mxu0 0
        %4302 = vmatprep.subr.bf16.mxu0 0
        %4303 = vmatpush1.bf16.xpose.msra.mxu0 0
        %4304 = vmatprep.subr.bf16.mxu0 0
        %4305 = vmatpush1.bf16.xpose.msra.mxu0 %v4288
        %4306 = vmatprep.subr.bf16.mxu0 0
        %4307 = vmatpush2.bf16.xpose.msra.mxu0 0
        %4308 = vmatprep.subr.bf16.mxu0 0
        %4309 = vmatpush2.bf16.xpose.msra.mxu0 0
        %4310 = vmatprep.subr.bf16.mxu0 0
        %4311 = vmatpush2.bf16.xpose.msra.mxu0 0
        %4312 = vmatprep.subr.bf16.mxu0 0
        %4313 = vmatpush2.bf16.xpose.msra.mxu0 0
        %4314 = vmatprep.subr.bf16.mxu0 0
        %4315 = vmatpush2.bf16.xpose.msra.mxu0 0
        %4316 = vmatprep.subr.bf16.mxu0 0
        %4317 = vmatpush2.bf16.xpose.msra.mxu0 0
        %4318 = vmatprep.subr.bf16.mxu0 0
        %4319 = vmatpush2.bf16.xpose.msra.mxu0 0
        %4320 = vmatprep.subr.bf16.mxu0 0
        %4321 = vmatpush2.bf16.xpose.msra.mxu0 0
        %4322 = vmatprep.mubr.bf16.mxu0 0
        %4323 = vmatmul.mubr.bf16.gmra.mxu0 %v4285
        %v4324 = vpop.f32.mrf.mxu0
        %v4325 = vadd.f32 0.0, %v4324
        %v4326 = vpop.f32.mrf.mxu0
        %v4327 = vpop.f32.mrf.mxu0
        %v4328 = vpop.f32.mrf.mxu0
        %4329 = vdwg.mxu0
        %v4330 = vsel %vm3567, %v4325, -inf
        %4331 = vmax.xlane.f32.xlu0 %v4330
        %v4332 = vpop.xlane.xlu0 %4331
        %v4333 = vsub.f32 %v4325, %v4332
        %v4334 = vmul.f32 %v4333, 1.442695
        %v4335 = vpow.pop %v4334
        %v4336 = vsel %vm3567, %v4335, 0.0
        %4337 = vadd.xlane.f32.xlu0 %v4336
        %v4338 = vpop.xlane.xlu0 %4337
        %v4339 = vrcp.pop %v4338
        %v4340 = vmul.f32 %v4335, %v4339
        %v4341 = vpack.c.bf16 %v4340, %v4340
        %4343 = vrot.lane.b32.xlu0 %v3519, 64
        %v4344 = vpop.permute.xlu0 %4343
        %v4346 = vsel %vm3567, %v4341, 0
        %v4349 = vsel %vm3583, %v4344, 0
        %4351 = vmatprep.subr.bf16.mxu0 0
        %4352 = vmatpush1.bf16.msra.mxu0 0
        %4353 = vmatprep.subr.bf16.mxu0 0
        %4354 = vmatpush1.bf16.msra.mxu0 0
        %4355 = vmatprep.subr.bf16.mxu0 0
        %4356 = vmatpush1.bf16.msra.mxu0 0
        %4357 = vmatprep.subr.bf16.mxu0 0
        %4358 = vmatpush1.bf16.msra.mxu0 0
        %4359 = vmatprep.subr.bf16.mxu0 0
        %4360 = vmatpush1.bf16.msra.mxu0 0
        %4361 = vmatprep.subr.bf16.mxu0 0
        %4362 = vmatpush1.bf16.msra.mxu0 0
        %4363 = vmatprep.subr.bf16.mxu0 0
        %4364 = vmatpush1.bf16.msra.mxu0 0
        %4365 = vmatprep.subr.bf16.mxu0 0
        %4366 = vmatpush1.bf16.msra.mxu0 %v4349
        %4367 = vmatprep.subr.bf16.mxu0 0
        %4368 = vmatpush2.bf16.msra.mxu0 0
        %4369 = vmatprep.subr.bf16.mxu0 0
        %4370 = vmatpush2.bf16.msra.mxu0 0
        %4371 = vmatprep.subr.bf16.mxu0 0
        %4372 = vmatpush2.bf16.msra.mxu0 0
        %4373 = vmatprep.subr.bf16.mxu0 0
        %4374 = vmatpush2.bf16.msra.mxu0 0
        %4375 = vmatprep.subr.bf16.mxu0 0
        %4376 = vmatpush2.bf16.msra.mxu0 0
        %4377 = vmatprep.subr.bf16.mxu0 0
        %4378 = vmatpush2.bf16.msra.mxu0 0
        %4379 = vmatprep.subr.bf16.mxu0 0
        %4380 = vmatpush2.bf16.msra.mxu0 0
        %4381 = vmatprep.subr.bf16.mxu0 0
        %4382 = vmatpush2.bf16.msra.mxu0 0
        %4383 = vmatprep.mubr.bf16.mxu0 0
        %4384 = vmatmul.mubr.bf16.gmra.mxu0 %v4346
        %v4385 = vpop.f32.mrf.mxu0
        %v4386 = vadd.f32 0.0, %v4385
        %v4387 = vpop.f32.mrf.mxu0
        %v4388 = vpop.f32.mrf.mxu0
        %v4389 = vpop.f32.mrf.mxu0
        %4390 = vdwg.mxu0
        %4392 = vrot.lane.b32.xlu0 %v3735, 64
        %v4393 = vpop.permute.xlu0 %4392
        %4396 = vrot.lane.b32.xlu0 %v3952, 64
        %v4397 = vpop.permute.xlu0 %4396
        %4400 = vrot.lane.b32.xlu0 %v4169, 64
        %v4401 = vpop.permute.xlu0 %4400
        %4404 = vrot.lane.b32.xlu0 %v4386, 64
        %v4405 = vpop.permute.xlu0 %4404
        %v4407 = vsel %vm3520, %v3622, %v4393
        %v4408 = vsel %vm3520, %v3839, %v4397
        %v4409 = vsel %vm3520, %v4056, %v4401
        %v4410 = vsel %vm3520, %v4273, %v4405
        %v4411 = vpack.c.bf16 %v4407, %v4407
        %v4412 = vpack.c.bf16 %v4408, %v4408
        %v4413 = vpack.c.bf16 %v4409, %v4409
        %v4414 = vpack.c.bf16 %v4410, %v4410
        %v4415 = vld [vmem:[#allocation11] sm:$0xff]
        %v4416 = vld [vmem:[#allocation11 + $0x8] sm:$0xff]
        %v4417 = vld [vmem:[#allocation11 + $0x10] sm:$0xff]
        %v4418 = vld [vmem:[#allocation11 + $0x18] sm:$0xff]
        %v4419 = vld [vmem:[#allocation11 + $0x20] sm:$0xff]
        %v4420 = vld [vmem:[#allocation11 + $0x28] sm:$0xff]
        %v4421 = vld [vmem:[#allocation11 + $0x30] sm:$0xff]
        %v4422 = vld [vmem:[#allocation11 + $0x38] sm:$0xff]
        %v4423 = vld [vmem:[#allocation11 + $0x40] sm:$0xff]
        %v4424 = vld [vmem:[#allocation11 + $0x48] sm:$0xff]
        %v4425 = vld [vmem:[#allocation11 + $0x50] sm:$0xff]
        %v4426 = vld [vmem:[#allocation11 + $0x58] sm:$0xff]
        %v4427 = vld [vmem:[#allocation11 + $0x60] sm:$0xff]
        %v4428 = vld [vmem:[#allocation11 + $0x68] sm:$0xff]
        %v4429 = vld [vmem:[#allocation11 + $0x70] sm:$0xff]
        %v4430 = vld [vmem:[#allocation11 + $0x78] sm:$0xff]
        %v4431 = vld [vmem:[#allocation11 + $0x80] sm:$0xff]
        %v4432 = vld [vmem:[#allocation11 + $0x88] sm:$0xff]
        %v4433 = vld [vmem:[#allocation11 + $0x90] sm:$0xff]
        %v4434 = vld [vmem:[#allocation11 + $0x98] sm:$0xff]
        %v4435 = vld [vmem:[#allocation11 + $0xa0] sm:$0xff]
        %v4436 = vld [vmem:[#allocation11 + $0xa8] sm:$0xff]
        %v4437 = vld [vmem:[#allocation11 + $0xb0] sm:$0xff]
        %v4438 = vld [vmem:[#allocation11 + $0xb8] sm:$0xff]
        %v4439 = vld [vmem:[#allocation11 + $0xc0] sm:$0xff]
        %v4440 = vld [vmem:[#allocation11 + $0xc8] sm:$0xff]
        %v4441 = vld [vmem:[#allocation11 + $0xd0] sm:$0xff]
        %v4442 = vld [vmem:[#allocation11 + $0xd8] sm:$0xff]
        %v4443 = vld [vmem:[#allocation11 + $0xe0] sm:$0xff]
        %v4444 = vld [vmem:[#allocation11 + $0xe8] sm:$0xff]
        %v4445 = vld [vmem:[#allocation11 + $0xf0] sm:$0xff]
        %v4446 = vld [vmem:[#allocation11 + $0xf8] sm:$0xff]
        %v4447 = vld [vmem:[#allocation11 + $0x100] sm:$0xff]
        %v4448 = vld [vmem:[#allocation11 + $0x108] sm:$0xff]
        %v4449 = vld [vmem:[#allocation11 + $0x110] sm:$0xff]
        %v4450 = vld [vmem:[#allocation11 + $0x118] sm:$0xff]
        %v4451 = vld [vmem:[#allocation11 + $0x120] sm:$0xff]
        %v4452 = vld [vmem:[#allocation11 + $0x128] sm:$0xff]
        %v4453 = vld [vmem:[#allocation11 + $0x130] sm:$0xff]
        %v4454 = vld [vmem:[#allocation11 + $0x138] sm:$0xff]
        %v4455 = vld [vmem:[#allocation11 + $0x140] sm:$0xff]
        %v4456 = vld [vmem:[#allocation11 + $0x148] sm:$0xff]
        %v4457 = vld [vmem:[#allocation11 + $0x150] sm:$0xff]
        %v4458 = vld [vmem:[#allocation11 + $0x158] sm:$0xff]
        %v4459 = vld [vmem:[#allocation11 + $0x160] sm:$0xff]
        %v4460 = vld [vmem:[#allocation11 + $0x168] sm:$0xff]
        %v4461 = vld [vmem:[#allocation11 + $0x170] sm:$0xff]
        %v4462 = vld [vmem:[#allocation11 + $0x178] sm:$0xff]
        %v4463 = vld [vmem:[#allocation11 + $0x180] sm:$0xff]
        %v4464 = vld [vmem:[#allocation11 + $0x188] sm:$0xff]
        %v4465 = vld [vmem:[#allocation11 + $0x190] sm:$0xff]
        %v4466 = vld [vmem:[#allocation11 + $0x198] sm:$0xff]
        %v4467 = vld [vmem:[#allocation11 + $0x1a0] sm:$0xff]
        %v4468 = vld [vmem:[#allocation11 + $0x1a8] sm:$0xff]
        %v4469 = vld [vmem:[#allocation11 + $0x1b0] sm:$0xff]
        %v4470 = vld [vmem:[#allocation11 + $0x1b8] sm:$0xff]
        %v4471 = vld [vmem:[#allocation11 + $0x1c0] sm:$0xff]
        %v4472 = vld [vmem:[#allocation11 + $0x1c8] sm:$0xff]
        %v4473 = vld [vmem:[#allocation11 + $0x1d0] sm:$0xff]
        %v4474 = vld [vmem:[#allocation11 + $0x1d8] sm:$0xff]
        %v4475 = vld [vmem:[#allocation11 + $0x1e0] sm:$0xff]
        %v4476 = vld [vmem:[#allocation11 + $0x1e8] sm:$0xff]
        %v4477 = vld [vmem:[#allocation11 + $0x1f0] sm:$0xff]
        %v4478 = vld [vmem:[#allocation11 + $0x1f8] sm:$0xff]
        %v4479 = vld [vmem:[#allocation11 + $0x200] sm:$0xff]
        %v4480 = vld [vmem:[#allocation11 + $0x208] sm:$0xff]
        %v4481 = vld [vmem:[#allocation11 + $0x210] sm:$0xff]
        %v4482 = vld [vmem:[#allocation11 + $0x218] sm:$0xff]
        %v4483 = vld [vmem:[#allocation11 + $0x220] sm:$0xff]
        %v4484 = vld [vmem:[#allocation11 + $0x228] sm:$0xff]
        %v4485 = vld [vmem:[#allocation11 + $0x230] sm:$0xff]
        %v4486 = vld [vmem:[#allocation11 + $0x238] sm:$0xff]
        %v4487 = vld [vmem:[#allocation11 + $0x240] sm:$0xff]
        %v4488 = vld [vmem:[#allocation11 + $0x248] sm:$0xff]
        %v4489 = vld [vmem:[#allocation11 + $0x250] sm:$0xff]
        %v4490 = vld [vmem:[#allocation11 + $0x258] sm:$0xff]
        %v4491 = vld [vmem:[#allocation11 + $0x260] sm:$0xff]
        %v4492 = vld [vmem:[#allocation11 + $0x268] sm:$0xff]
        %v4493 = vld [vmem:[#allocation11 + $0x270] sm:$0xff]
        %v4494 = vld [vmem:[#allocation11 + $0x278] sm:$0xff]
        %v4495 = vld [vmem:[#allocation11 + $0x280] sm:$0xff]
        %v4496 = vld [vmem:[#allocation11 + $0x288] sm:$0xff]
        %v4497 = vld [vmem:[#allocation11 + $0x290] sm:$0xff]
        %v4498 = vld [vmem:[#allocation11 + $0x298] sm:$0xff]
        %v4499 = vld [vmem:[#allocation11 + $0x2a0] sm:$0xff]
        %v4500 = vld [vmem:[#allocation11 + $0x2a8] sm:$0xff]
        %v4501 = vld [vmem:[#allocation11 + $0x2b0] sm:$0xff]
        %v4502 = vld [vmem:[#allocation11 + $0x2b8] sm:$0xff]
        %v4503 = vld [vmem:[#allocation11 + $0x2c0] sm:$0xff]
        %v4504 = vld [vmem:[#allocation11 + $0x2c8] sm:$0xff]
        %v4505 = vld [vmem:[#allocation11 + $0x2d0] sm:$0xff]
        %v4506 = vld [vmem:[#allocation11 + $0x2d8] sm:$0xff]
        %v4507 = vld [vmem:[#allocation11 + $0x2e0] sm:$0xff]
        %v4508 = vld [vmem:[#allocation11 + $0x2e8] sm:$0xff]
        %v4509 = vld [vmem:[#allocation11 + $0x2f0] sm:$0xff]
        %v4510 = vld [vmem:[#allocation11 + $0x2f8] sm:$0xff]
        %v4511 = vld [vmem:[#allocation11 + $0x300] sm:$0xff]
        %v4512 = vld [vmem:[#allocation11 + $0x308] sm:$0xff]
        %v4513 = vld [vmem:[#allocation11 + $0x310] sm:$0xff]
        %v4514 = vld [vmem:[#allocation11 + $0x318] sm:$0xff]
        %v4515 = vld [vmem:[#allocation11 + $0x320] sm:$0xff]
        %v4516 = vld [vmem:[#allocation11 + $0x328] sm:$0xff]
        %v4517 = vld [vmem:[#allocation11 + $0x330] sm:$0xff]
        %v4518 = vld [vmem:[#allocation11 + $0x338] sm:$0xff]
        %v4519 = vld [vmem:[#allocation11 + $0x340] sm:$0xff]
        %v4520 = vld [vmem:[#allocation11 + $0x348] sm:$0xff]
        %v4521 = vld [vmem:[#allocation11 + $0x350] sm:$0xff]
        %v4522 = vld [vmem:[#allocation11 + $0x358] sm:$0xff]
        %v4523 = vld [vmem:[#allocation11 + $0x360] sm:$0xff]
        %v4524 = vld [vmem:[#allocation11 + $0x368] sm:$0xff]
        %v4525 = vld [vmem:[#allocation11 + $0x370] sm:$0xff]
        %v4526 = vld [vmem:[#allocation11 + $0x378] sm:$0xff]
        %v4527 = vld [vmem:[#allocation11 + $0x380] sm:$0xff]
        %v4528 = vld [vmem:[#allocation11 + $0x388] sm:$0xff]
        %v4529 = vld [vmem:[#allocation11 + $0x390] sm:$0xff]
        %v4530 = vld [vmem:[#allocation11 + $0x398] sm:$0xff]
        %v4531 = vld [vmem:[#allocation11 + $0x3a0] sm:$0xff]
        %v4532 = vld [vmem:[#allocation11 + $0x3a8] sm:$0xff]
        %v4533 = vld [vmem:[#allocation11 + $0x3b0] sm:$0xff]
        %v4534 = vld [vmem:[#allocation11 + $0x3b8] sm:$0xff]
        %v4535 = vld [vmem:[#allocation11 + $0x3c0] sm:$0xff]
        %v4536 = vld [vmem:[#allocation11 + $0x3c8] sm:$0xff]
        %v4537 = vld [vmem:[#allocation11 + $0x3d0] sm:$0xff]
        %v4538 = vld [vmem:[#allocation11 + $0x3d8] sm:$0xff]
        %v4539 = vld [vmem:[#allocation11 + $0x3e0] sm:$0xff]
        %v4540 = vld [vmem:[#allocation11 + $0x3e8] sm:$0xff]
        %v4541 = vld [vmem:[#allocation11 + $0x3f0] sm:$0xff]
        %v4542 = vld [vmem:[#allocation11 + $0x3f8] sm:$0xff]
        %v4543 = vld [vmem:[%s6] sm:$0xf]
        %v4545 = vlaneseq
        %v4546 = vshrl.u32 %v4545, 7
        %v4547 = vsub.s32 0, %v4546
        %v4548 = vrot.slane %v4543, %v4547
        %v4549 = vlaneseq
        %v4550 = vshrl.u32 %v4549, 7
        %v4551 = vsub.s32 1, %v4550
        %v4552 = vrot.slane %v4543, %v4551
        %v4553 = vlaneseq
        %v4554 = vshrl.u32 %v4553, 7
        %v4555 = vsub.s32 2, %v4554
        %v4556 = vrot.slane %v4543, %v4555
        %v4557 = vlaneseq
        %v4558 = vshrl.u32 %v4557, 7
        %v4559 = vsub.s32 3, %v4558
        %v4560 = vrot.slane %v4543, %v4559
        %v4693 = vunpack.c.l.b16 %v4415
        %v4694 = vunpack.c.h.b16 %v4415
        %v4695 = vunpack.c.l.b16 %v4416
        %v4696 = vunpack.c.h.b16 %v4416
        %v4697 = vunpack.c.l.b16 %v4417
        %v4698 = vunpack.c.h.b16 %v4417
        %v4699 = vunpack.c.l.b16 %v4418
        %v4700 = vunpack.c.h.b16 %v4418
        %v4701 = vunpack.c.l.b16 %v4419
        %v4702 = vunpack.c.h.b16 %v4419
        %v4703 = vunpack.c.l.b16 %v4420
        %v4704 = vunpack.c.h.b16 %v4420
        %v4705 = vunpack.c.l.b16 %v4421
        %v4706 = vunpack.c.h.b16 %v4421
        %v4707 = vunpack.c.l.b16 %v4422
        %v4708 = vunpack.c.h.b16 %v4422
        %v4709 = vunpack.c.l.b16 %v4423
        %v4710 = vunpack.c.h.b16 %v4423
        %v4711 = vunpack.c.l.b16 %v4424
        %v4712 = vunpack.c.h.b16 %v4424
        %v4713 = vunpack.c.l.b16 %v4425
        %v4714 = vunpack.c.h.b16 %v4425
        %v4715 = vunpack.c.l.b16 %v4426
        %v4716 = vunpack.c.h.b16 %v4426
        %v4717 = vunpack.c.l.b16 %v4427
        %v4718 = vunpack.c.h.b16 %v4427
        %v4719 = vunpack.c.l.b16 %v4428
        %v4720 = vunpack.c.h.b16 %v4428
        %v4721 = vunpack.c.l.b16 %v4429
        %v4722 = vunpack.c.h.b16 %v4429
        %v4723 = vunpack.c.l.b16 %v4430
        %v4724 = vunpack.c.h.b16 %v4430
        %v4725 = vunpack.c.l.b16 %v4431
        %v4726 = vunpack.c.h.b16 %v4431
        %v4727 = vunpack.c.l.b16 %v4432
        %v4728 = vunpack.c.h.b16 %v4432
        %v4729 = vunpack.c.l.b16 %v4433
        %v4730 = vunpack.c.h.b16 %v4433
        %v4731 = vunpack.c.l.b16 %v4434
        %v4732 = vunpack.c.h.b16 %v4434
        %v4733 = vunpack.c.l.b16 %v4435
        %v4734 = vunpack.c.h.b16 %v4435
        %v4735 = vunpack.c.l.b16 %v4436
        %v4736 = vunpack.c.h.b16 %v4436
        %v4737 = vunpack.c.l.b16 %v4437
        %v4738 = vunpack.c.h.b16 %v4437
        %v4739 = vunpack.c.l.b16 %v4438
        %v4740 = vunpack.c.h.b16 %v4438
        %v4741 = vunpack.c.l.b16 %v4439
        %v4742 = vunpack.c.h.b16 %v4439
        %v4743 = vunpack.c.l.b16 %v4440
        %v4744 = vunpack.c.h.b16 %v4440
        %v4745 = vunpack.c.l.b16 %v4441
        %v4746 = vunpack.c.h.b16 %v4441
        %v4747 = vunpack.c.l.b16 %v4442
        %v4748 = vunpack.c.h.b16 %v4442
        %v4749 = vunpack.c.l.b16 %v4443
        %v4750 = vunpack.c.h.b16 %v4443
        %v4751 = vunpack.c.l.b16 %v4444
        %v4752 = vunpack.c.h.b16 %v4444
        %v4753 = vunpack.c.l.b16 %v4445
        %v4754 = vunpack.c.h.b16 %v4445
        %v4755 = vunpack.c.l.b16 %v4446
        %v4756 = vunpack.c.h.b16 %v4446
        %v4757 = vunpack.c.l.b16 %v4447
        %v4758 = vunpack.c.h.b16 %v4447
        %v4759 = vunpack.c.l.b16 %v4448
        %v4760 = vunpack.c.h.b16 %v4448
        %v4761 = vunpack.c.l.b16 %v4449
        %v4762 = vunpack.c.h.b16 %v4449
        %v4763 = vunpack.c.l.b16 %v4450
        %v4764 = vunpack.c.h.b16 %v4450
        %v4765 = vunpack.c.l.b16 %v4451
        %v4766 = vunpack.c.h.b16 %v4451
        %v4767 = vunpack.c.l.b16 %v4452
        %v4768 = vunpack.c.h.b16 %v4452
        %v4769 = vunpack.c.l.b16 %v4453
        %v4770 = vunpack.c.h.b16 %v4453
        %v4771 = vunpack.c.l.b16 %v4454
        %v4772 = vunpack.c.h.b16 %v4454
        %v4773 = vunpack.c.l.b16 %v4455
        %v4774 = vunpack.c.h.b16 %v4455
        %v4775 = vunpack.c.l.b16 %v4456
        %v4776 = vunpack.c.h.b16 %v4456
        %v4777 = vunpack.c.l.b16 %v4457
        %v4778 = vunpack.c.h.b16 %v4457
        %v4779 = vunpack.c.l.b16 %v4458
        %v4780 = vunpack.c.h.b16 %v4458
        %v4781 = vunpack.c.l.b16 %v4459
        %v4782 = vunpack.c.h.b16 %v4459
        %v4783 = vunpack.c.l.b16 %v4460
        %v4784 = vunpack.c.h.b16 %v4460
        %v4785 = vunpack.c.l.b16 %v4461
        %v4786 = vunpack.c.h.b16 %v4461
        %v4787 = vunpack.c.l.b16 %v4462
        %v4788 = vunpack.c.h.b16 %v4462
        %v4789 = vunpack.c.l.b16 %v4463
        %v4790 = vunpack.c.h.b16 %v4463
        %v4791 = vunpack.c.l.b16 %v4464
        %v4792 = vunpack.c.h.b16 %v4464
        %v4793 = vunpack.c.l.b16 %v4465
        %v4794 = vunpack.c.h.b16 %v4465
        %v4795 = vunpack.c.l.b16 %v4466
        %v4796 = vunpack.c.h.b16 %v4466
        %v4797 = vunpack.c.l.b16 %v4467
        %v4798 = vunpack.c.h.b16 %v4467
        %v4799 = vunpack.c.l.b16 %v4468
        %v4800 = vunpack.c.h.b16 %v4468
        %v4801 = vunpack.c.l.b16 %v4469
        %v4802 = vunpack.c.h.b16 %v4469
        %v4803 = vunpack.c.l.b16 %v4470
        %v4804 = vunpack.c.h.b16 %v4470
        %v4805 = vunpack.c.l.b16 %v4471
        %v4806 = vunpack.c.h.b16 %v4471
        %v4807 = vunpack.c.l.b16 %v4472
        %v4808 = vunpack.c.h.b16 %v4472
        %v4809 = vunpack.c.l.b16 %v4473
        %v4810 = vunpack.c.h.b16 %v4473
        %v4811 = vunpack.c.l.b16 %v4474
        %v4812 = vunpack.c.h.b16 %v4474
        %v4813 = vunpack.c.l.b16 %v4475
        %v4814 = vunpack.c.h.b16 %v4475
        %v4815 = vunpack.c.l.b16 %v4476
        %v4816 = vunpack.c.h.b16 %v4476
        %v4817 = vunpack.c.l.b16 %v4477
        %v4818 = vunpack.c.h.b16 %v4477
        %v4819 = vunpack.c.l.b16 %v4478
        %v4820 = vunpack.c.h.b16 %v4478
        %v4821 = vunpack.c.l.b16 %v4479
        %v4822 = vunpack.c.h.b16 %v4479
        %v4823 = vunpack.c.l.b16 %v4480
        %v4824 = vunpack.c.h.b16 %v4480
        %v4825 = vunpack.c.l.b16 %v4481
        %v4826 = vunpack.c.h.b16 %v4481
        %v4827 = vunpack.c.l.b16 %v4482
        %v4828 = vunpack.c.h.b16 %v4482
        %v4829 = vunpack.c.l.b16 %v4483
        %v4830 = vunpack.c.h.b16 %v4483
        %v4831 = vunpack.c.l.b16 %v4484
        %v4832 = vunpack.c.h.b16 %v4484
        %v4833 = vunpack.c.l.b16 %v4485
        %v4834 = vunpack.c.h.b16 %v4485
        %v4835 = vunpack.c.l.b16 %v4486
        %v4836 = vunpack.c.h.b16 %v4486
        %v4837 = vunpack.c.l.b16 %v4487
        %v4838 = vunpack.c.h.b16 %v4487
        %v4839 = vunpack.c.l.b16 %v4488
        %v4840 = vunpack.c.h.b16 %v4488
        %v4841 = vunpack.c.l.b16 %v4489
        %v4842 = vunpack.c.h.b16 %v4489
        %v4843 = vunpack.c.l.b16 %v4490
        %v4844 = vunpack.c.h.b16 %v4490
        %v4845 = vunpack.c.l.b16 %v4491
        %v4846 = vunpack.c.h.b16 %v4491
        %v4847 = vunpack.c.l.b16 %v4492
        %v4848 = vunpack.c.h.b16 %v4492
        %v4849 = vunpack.c.l.b16 %v4493
        %v4850 = vunpack.c.h.b16 %v4493
        %v4851 = vunpack.c.l.b16 %v4494
        %v4852 = vunpack.c.h.b16 %v4494
        %v4853 = vunpack.c.l.b16 %v4495
        %v4854 = vunpack.c.h.b16 %v4495
        %v4855 = vunpack.c.l.b16 %v4496
        %v4856 = vunpack.c.h.b16 %v4496
        %v4857 = vunpack.c.l.b16 %v4497
        %v4858 = vunpack.c.h.b16 %v4497
        %v4859 = vunpack.c.l.b16 %v4498
        %v4860 = vunpack.c.h.b16 %v4498
        %v4861 = vunpack.c.l.b16 %v4499
        %v4862 = vunpack.c.h.b16 %v4499
        %v4863 = vunpack.c.l.b16 %v4500
        %v4864 = vunpack.c.h.b16 %v4500
        %v4865 = vunpack.c.l.b16 %v4501
        %v4866 = vunpack.c.h.b16 %v4501
        %v4867 = vunpack.c.l.b16 %v4502
        %v4868 = vunpack.c.h.b16 %v4502
        %v4869 = vunpack.c.l.b16 %v4503
        %v4870 = vunpack.c.h.b16 %v4503
        %v4871 = vunpack.c.l.b16 %v4504
        %v4872 = vunpack.c.h.b16 %v4504
        %v4873 = vunpack.c.l.b16 %v4505
        %v4874 = vunpack.c.h.b16 %v4505
        %v4875 = vunpack.c.l.b16 %v4506
        %v4876 = vunpack.c.h.b16 %v4506
        %v4877 = vunpack.c.l.b16 %v4507
        %v4878 = vunpack.c.h.b16 %v4507
        %v4879 = vunpack.c.l.b16 %v4508
        %v4880 = vunpack.c.h.b16 %v4508
        %v4881 = vunpack.c.l.b16 %v4509
        %v4882 = vunpack.c.h.b16 %v4509
        %v4883 = vunpack.c.l.b16 %v4510
        %v4884 = vunpack.c.h.b16 %v4510
        %v4885 = vunpack.c.l.b16 %v4511
        %v4886 = vunpack.c.h.b16 %v4511
        %v4887 = vunpack.c.l.b16 %v4512
        %v4888 = vunpack.c.h.b16 %v4512
        %v4889 = vunpack.c.l.b16 %v4513
        %v4890 = vunpack.c.h.b16 %v4513
        %v4891 = vunpack.c.l.b16 %v4514
        %v4892 = vunpack.c.h.b16 %v4514
        %v4893 = vunpack.c.l.b16 %v4515
        %v4894 = vunpack.c.h.b16 %v4515
        %v4895 = vunpack.c.l.b16 %v4516
        %v4896 = vunpack.c.h.b16 %v4516
        %v4897 = vunpack.c.l.b16 %v4517
        %v4898 = vunpack.c.h.b16 %v4517
        %v4899 = vunpack.c.l.b16 %v4518
        %v4900 = vunpack.c.h.b16 %v4518
        %v4901 = vunpack.c.l.b16 %v4519
        %v4902 = vunpack.c.h.b16 %v4519
        %v4903 = vunpack.c.l.b16 %v4520
        %v4904 = vunpack.c.h.b16 %v4520
        %v4905 = vunpack.c.l.b16 %v4521
        %v4906 = vunpack.c.h.b16 %v4521
        %v4907 = vunpack.c.l.b16 %v4522
        %v4908 = vunpack.c.h.b16 %v4522
        %v4909 = vunpack.c.l.b16 %v4523
        %v4910 = vunpack.c.h.b16 %v4523
        %v4911 = vunpack.c.l.b16 %v4524
        %v4912 = vunpack.c.h.b16 %v4524
        %v4913 = vunpack.c.l.b16 %v4525
        %v4914 = vunpack.c.h.b16 %v4525
        %v4915 = vunpack.c.l.b16 %v4526
        %v4916 = vunpack.c.h.b16 %v4526
        %v4917 = vunpack.c.l.b16 %v4527
        %v4918 = vunpack.c.h.b16 %v4527
        %v4919 = vunpack.c.l.b16 %v4528
        %v4920 = vunpack.c.h.b16 %v4528
        %v4921 = vunpack.c.l.b16 %v4529
        %v4922 = vunpack.c.h.b16 %v4529
        %v4923 = vunpack.c.l.b16 %v4530
        %v4924 = vunpack.c.h.b16 %v4530
        %v4925 = vunpack.c.l.b16 %v4531
        %v4926 = vunpack.c.h.b16 %v4531
        %v4927 = vunpack.c.l.b16 %v4532
        %v4928 = vunpack.c.h.b16 %v4532
        %v4929 = vunpack.c.l.b16 %v4533
        %v4930 = vunpack.c.h.b16 %v4533
        %v4931 = vunpack.c.l.b16 %v4534
        %v4932 = vunpack.c.h.b16 %v4534
        %v4933 = vunpack.c.l.b16 %v4535
        %v4934 = vunpack.c.h.b16 %v4535
        %v4935 = vunpack.c.l.b16 %v4536
        %v4936 = vunpack.c.h.b16 %v4536
        %v4937 = vunpack.c.l.b16 %v4537
        %v4938 = vunpack.c.h.b16 %v4537
        %v4939 = vunpack.c.l.b16 %v4538
        %v4940 = vunpack.c.h.b16 %v4538
        %v4941 = vunpack.c.l.b16 %v4539
        %v4942 = vunpack.c.h.b16 %v4539
        %v4943 = vunpack.c.l.b16 %v4540
        %v4944 = vunpack.c.h.b16 %v4540
        %v4945 = vunpack.c.l.b16 %v4541
        %v4946 = vunpack.c.h.b16 %v4541
        %v4947 = vunpack.c.l.b16 %v4542
        %v4948 = vunpack.c.h.b16 %v4542
        %v4949 = vpack.c.b16 %v4697, %v4693
        %v4950 = vpack.c.b16 %v4698, %v4694
        %v4951 = vpack.c.b16 %v4699, %v4695
        %v4952 = vpack.c.b16 %v4700, %v4696
        %v4953 = vpack.c.b16 %v4705, %v4701
        %v4954 = vpack.c.b16 %v4706, %v4702
        %v4955 = vpack.c.b16 %v4707, %v4703
        %v4956 = vpack.c.b16 %v4708, %v4704
        %v4957 = vpack.c.b16 %v4713, %v4709
        %v4958 = vpack.c.b16 %v4714, %v4710
        %v4959 = vpack.c.b16 %v4715, %v4711
        %v4960 = vpack.c.b16 %v4716, %v4712
        %v4961 = vpack.c.b16 %v4721, %v4717
        %v4962 = vpack.c.b16 %v4722, %v4718
        %v4963 = vpack.c.b16 %v4723, %v4719
        %v4964 = vpack.c.b16 %v4724, %v4720
        %v4965 = vpack.c.b16 %v4729, %v4725
        %v4966 = vpack.c.b16 %v4730, %v4726
        %v4967 = vpack.c.b16 %v4731, %v4727
        %v4968 = vpack.c.b16 %v4732, %v4728
        %v4969 = vpack.c.b16 %v4737, %v4733
        %v4970 = vpack.c.b16 %v4738, %v4734
        %v4971 = vpack.c.b16 %v4739, %v4735
        %v4972 = vpack.c.b16 %v4740, %v4736
        %v4973 = vpack.c.b16 %v4745, %v4741
        %v4974 = vpack.c.b16 %v4746, %v4742
        %v4975 = vpack.c.b16 %v4747, %v4743
        %v4976 = vpack.c.b16 %v4748, %v4744
        %v4977 = vpack.c.b16 %v4753, %v4749
        %v4978 = vpack.c.b16 %v4754, %v4750
        %v4979 = vpack.c.b16 %v4755, %v4751
        %v4980 = vpack.c.b16 %v4756, %v4752
        %v4981 = vpack.c.b16 %v4761, %v4757
        %v4982 = vpack.c.b16 %v4762, %v4758
        %v4983 = vpack.c.b16 %v4763, %v4759
        %v4984 = vpack.c.b16 %v4764, %v4760
        %v4985 = vpack.c.b16 %v4769, %v4765
        %v4986 = vpack.c.b16 %v4770, %v4766
        %v4987 = vpack.c.b16 %v4771, %v4767
        %v4988 = vpack.c.b16 %v4772, %v4768
        %v4989 = vpack.c.b16 %v4777, %v4773
        %v4990 = vpack.c.b16 %v4778, %v4774
        %v4991 = vpack.c.b16 %v4779, %v4775
        %v4992 = vpack.c.b16 %v4780, %v4776
        %v4993 = vpack.c.b16 %v4785, %v4781
        %v4994 = vpack.c.b16 %v4786, %v4782
        %v4995 = vpack.c.b16 %v4787, %v4783
        %v4996 = vpack.c.b16 %v4788, %v4784
        %v4997 = vpack.c.b16 %v4793, %v4789
        %v4998 = vpack.c.b16 %v4794, %v4790
        %v4999 = vpack.c.b16 %v4795, %v4791
        %v5000 = vpack.c.b16 %v4796, %v4792
        %v5001 = vpack.c.b16 %v4801, %v4797
        %v5002 = vpack.c.b16 %v4802, %v4798
        %v5003 = vpack.c.b16 %v4803, %v4799
        %v5004 = vpack.c.b16 %v4804, %v4800
        %v5005 = vpack.c.b16 %v4809, %v4805
        %v5006 = vpack.c.b16 %v4810, %v4806
        %v5007 = vpack.c.b16 %v4811, %v4807
        %v5008 = vpack.c.b16 %v4812, %v4808
        %v5009 = vpack.c.b16 %v4817, %v4813
        %v5010 = vpack.c.b16 %v4818, %v4814
        %v5011 = vpack.c.b16 %v4819, %v4815
        %v5012 = vpack.c.b16 %v4820, %v4816
        %v5013 = vpack.c.b16 %v4825, %v4821
        %v5014 = vpack.c.b16 %v4826, %v4822
        %v5015 = vpack.c.b16 %v4827, %v4823
        %v5016 = vpack.c.b16 %v4828, %v4824
        %v5017 = vpack.c.b16 %v4833, %v4829
        %v5018 = vpack.c.b16 %v4834, %v4830
        %v5019 = vpack.c.b16 %v4835, %v4831
        %v5020 = vpack.c.b16 %v4836, %v4832
        %v5021 = vpack.c.b16 %v4841, %v4837
        %v5022 = vpack.c.b16 %v4842, %v4838
        %v5023 = vpack.c.b16 %v4843, %v4839
        %v5024 = vpack.c.b16 %v4844, %v4840
        %v5025 = vpack.c.b16 %v4849, %v4845
        %v5026 = vpack.c.b16 %v4850, %v4846
        %v5027 = vpack.c.b16 %v4851, %v4847
        %v5028 = vpack.c.b16 %v4852, %v4848
        %v5029 = vpack.c.b16 %v4857, %v4853
        %v5030 = vpack.c.b16 %v4858, %v4854
        %v5031 = vpack.c.b16 %v4859, %v4855
        %v5032 = vpack.c.b16 %v4860, %v4856
        %v5033 = vpack.c.b16 %v4865, %v4861
        %v5034 = vpack.c.b16 %v4866, %v4862
        %v5035 = vpack.c.b16 %v4867, %v4863
        %v5036 = vpack.c.b16 %v4868, %v4864
        %v5037 = vpack.c.b16 %v4873, %v4869
        %v5038 = vpack.c.b16 %v4874, %v4870
        %v5039 = vpack.c.b16 %v4875, %v4871
        %v5040 = vpack.c.b16 %v4876, %v4872
        %v5041 = vpack.c.b16 %v4881, %v4877
        %v5042 = vpack.c.b16 %v4882, %v4878
        %v5043 = vpack.c.b16 %v4883, %v4879
        %v5044 = vpack.c.b16 %v4884, %v4880
        %v5045 = vpack.c.b16 %v4889, %v4885
        %v5046 = vpack.c.b16 %v4890, %v4886
        %v5047 = vpack.c.b16 %v4891, %v4887
        %v5048 = vpack.c.b16 %v4892, %v4888
        %v5049 = vpack.c.b16 %v4897, %v4893
        %v5050 = vpack.c.b16 %v4898, %v4894
        %v5051 = vpack.c.b16 %v4899, %v4895
        %v5052 = vpack.c.b16 %v4900, %v4896
        %v5053 = vpack.c.b16 %v4905, %v4901
        %v5054 = vpack.c.b16 %v4906, %v4902
        %v5055 = vpack.c.b16 %v4907, %v4903
        %v5056 = vpack.c.b16 %v4908, %v4904
        %v5057 = vpack.c.b16 %v4913, %v4909
        %v5058 = vpack.c.b16 %v4914, %v4910
        %v5059 = vpack.c.b16 %v4915, %v4911
        %v5060 = vpack.c.b16 %v4916, %v4912
        %v5061 = vpack.c.b16 %v4921, %v4917
        %v5062 = vpack.c.b16 %v4922, %v4918
        %v5063 = vpack.c.b16 %v4923, %v4919
        %v5064 = vpack.c.b16 %v4924, %v4920
        %v5065 = vpack.c.b16 %v4929, %v4925
        %v5066 = vpack.c.b16 %v4930, %v4926
        %v5067 = vpack.c.b16 %v4931, %v4927
        %v5068 = vpack.c.b16 %v4932, %v4928
        %v5069 = vpack.c.b16 %v4937, %v4933
        %v5070 = vpack.c.b16 %v4938, %v4934
        %v5071 = vpack.c.b16 %v4939, %v4935
        %v5072 = vpack.c.b16 %v4940, %v4936
        %v5073 = vpack.c.b16 %v4945, %v4941
        %v5074 = vpack.c.b16 %v4946, %v4942
        %v5075 = vpack.c.b16 %v4947, %v4943
        %v5076 = vpack.c.b16 %v4948, %v4944
        %5205 = vmatprep.subr.bf16.mxu0 %v4978
        %5206 = vmatpush1.bf16.msra.mxu0 %v4977
        %5207 = vmatprep.subr.bf16.mxu0 %v4974
        %5208 = vmatpush1.bf16.msra.mxu0 %v4973
        %5209 = vmatprep.subr.bf16.mxu0 %v4970
        %5210 = vmatpush1.bf16.msra.mxu0 %v4969
        %5211 = vmatprep.subr.bf16.mxu0 %v4966
        %5212 = vmatpush1.bf16.msra.mxu0 %v4965
        %5213 = vmatprep.subr.bf16.mxu0 %v4962
        %5214 = vmatpush1.bf16.msra.mxu0 %v4961
        %5215 = vmatprep.subr.bf16.mxu0 %v4958
        %5216 = vmatpush1.bf16.msra.mxu0 %v4957
        %5217 = vmatprep.subr.bf16.mxu0 %v4954
        %5218 = vmatpush1.bf16.msra.mxu0 %v4953
        %5219 = vmatprep.subr.bf16.mxu0 %v4950
        %5220 = vmatpush1.bf16.msra.mxu0 %v4949
        %5221 = vmatprep.subr.bf16.mxu0 %v5010
        %5222 = vmatpush2.bf16.msra.mxu0 %v5009
        %5223 = vmatprep.subr.bf16.mxu0 %v5006
        %5224 = vmatpush2.bf16.msra.mxu0 %v5005
        %5225 = vmatprep.subr.bf16.mxu0 %v5002
        %5226 = vmatpush2.bf16.msra.mxu0 %v5001
        %5227 = vmatprep.subr.bf16.mxu0 %v4998
        %5228 = vmatpush2.bf16.msra.mxu0 %v4997
        %5229 = vmatprep.subr.bf16.mxu0 %v4994
        %5230 = vmatpush2.bf16.msra.mxu0 %v4993
        %5231 = vmatprep.subr.bf16.mxu0 %v4990
        %5232 = vmatpush2.bf16.msra.mxu0 %v4989
        %5233 = vmatprep.subr.bf16.mxu0 %v4986
        %5234 = vmatpush2.bf16.msra.mxu0 %v4985
        %5235 = vmatprep.subr.bf16.mxu0 %v4982
        %5236 = vmatpush2.bf16.msra.mxu0 %v4981
        %5237 = vmatprep.mubr.bf16.mxu0 %v4412
        %5238 = vmatmul.mubr.bf16.gmra.mxu0 %v4411
        %v5239 = vpop.f32.mrf.mxu0
        %v5240 = vadd.f32 %v4548, %v5239
        %v5241 = vpop.f32.mrf.mxu0
        %v5242 = vadd.f32 %v4552, %v5241
        %v5243 = vpop.f32.mrf.mxu0
        %v5244 = vpop.f32.mrf.mxu0
        %5245 = vdwg.mxu0
        %5246 = vmatprep.subr.bf16.mxu0 %v5042
        %5247 = vmatpush1.bf16.msra.mxu0 %v5041
        %5248 = vmatprep.subr.bf16.mxu0 %v5038
        %5249 = vmatpush1.bf16.msra.mxu0 %v5037
        %5250 = vmatprep.subr.bf16.mxu0 %v5034
        %5251 = vmatpush1.bf16.msra.mxu0 %v5033
        %5252 = vmatprep.subr.bf16.mxu0 %v5030
        %5253 = vmatpush1.bf16.msra.mxu0 %v5029
        %5254 = vmatprep.subr.bf16.mxu0 %v5026
        %5255 = vmatpush1.bf16.msra.mxu0 %v5025
        %5256 = vmatprep.subr.bf16.mxu0 %v5022
        %5257 = vmatpush1.bf16.msra.mxu0 %v5021
        %5258 = vmatprep.subr.bf16.mxu0 %v5018
        %5259 = vmatpush1.bf16.msra.mxu0 %v5017
        %5260 = vmatprep.subr.bf16.mxu0 %v5014
        %5261 = vmatpush1.bf16.msra.mxu0 %v5013
        %5262 = vmatprep.subr.bf16.mxu0 %v5074
        %5263 = vmatpush2.bf16.msra.mxu0 %v5073
        %5264 = vmatprep.subr.bf16.mxu0 %v5070
        %5265 = vmatpush2.bf16.msra.mxu0 %v5069
        %5266 = vmatprep.subr.bf16.mxu0 %v5066
        %5267 = vmatpush2.bf16.msra.mxu0 %v5065
        %5268 = vmatprep.subr.bf16.mxu0 %v5062
        %5269 = vmatpush2.bf16.msra.mxu0 %v5061
        %5270 = vmatprep.subr.bf16.mxu0 %v5058
        %5271 = vmatpush2.bf16.msra.mxu0 %v5057
        %5272 = vmatprep.subr.bf16.mxu0 %v5054
        %5273 = vmatpush2.bf16.msra.mxu0 %v5053
        %5274 = vmatprep.subr.bf16.mxu0 %v5050
        %5275 = vmatpush2.bf16.msra.mxu0 %v5049
        %5276 = vmatprep.subr.bf16.mxu0 %v5046
        %5277 = vmatpush2.bf16.msra.mxu0 %v5045
        %5278 = vmatprep.mubr.bf16.mxu0 %v4414
        %5279 = vmatmul.mubr.bf16.gmra.mxu0 %v4413
        %v5280 = vpop.f32.mrf.mxu0
        %v5281 = vadd.f32 %v5240, %v5280
        %v5282 = vpop.f32.mrf.mxu0
        %v5283 = vadd.f32 %v5242, %v5282
        %v5284 = vpop.f32.mrf.mxu0
        %v5285 = vpop.f32.mrf.mxu0
        %5286 = vdwg.mxu0
        %5287 = vmatprep.subr.bf16.mxu0 %v4980
        %5288 = vmatpush1.bf16.msra.mxu0 %v4979
        %5289 = vmatprep.subr.bf16.mxu0 %v4976
        %5290 = vmatpush1.bf16.msra.mxu0 %v4975
        %5291 = vmatprep.subr.bf16.mxu0 %v4972
        %5292 = vmatpush1.bf16.msra.mxu0 %v4971
        %5293 = vmatprep.subr.bf16.mxu0 %v4968
        %5294 = vmatpush1.bf16.msra.mxu0 %v4967
        %5295 = vmatprep.subr.bf16.mxu0 %v4964
        %5296 = vmatpush1.bf16.msra.mxu0 %v4963
        %5297 = vmatprep.subr.bf16.mxu0 %v4960
        %5298 = vmatpush1.bf16.msra.mxu0 %v4959
        %5299 = vmatprep.subr.bf16.mxu0 %v4956
        %5300 = vmatpush1.bf16.msra.mxu0 %v4955
        %5301 = vmatprep.subr.bf16.mxu0 %v4952
        %5302 = vmatpush1.bf16.msra.mxu0 %v4951
        %5303 = vmatprep.subr.bf16.mxu0 %v5012
        %5304 = vmatpush2.bf16.msra.mxu0 %v5011
        %5305 = vmatprep.subr.bf16.mxu0 %v5008
        %5306 = vmatpush2.bf16.msra.mxu0 %v5007
        %5307 = vmatprep.subr.bf16.mxu0 %v5004
        %5308 = vmatpush2.bf16.msra.mxu0 %v5003
        %5309 = vmatprep.subr.bf16.mxu0 %v5000
        %5310 = vmatpush2.bf16.msra.mxu0 %v4999
        %5311 = vmatprep.subr.bf16.mxu0 %v4996
        %5312 = vmatpush2.bf16.msra.mxu0 %v4995
        %5313 = vmatprep.subr.bf16.mxu0 %v4992
        %5314 = vmatpush2.bf16.msra.mxu0 %v4991
        %5315 = vmatprep.subr.bf16.mxu0 %v4988
        %5316 = vmatpush2.bf16.msra.mxu0 %v4987
        %5317 = vmatprep.subr.bf16.mxu0 %v4984
        %5318 = vmatpush2.bf16.msra.mxu0 %v4983
        %5319 = vmatprep.mubr.bf16.mxu0 %v4412
        %5320 = vmatmul.mubr.bf16.gmra.mxu0 %v4411
        %v5321 = vpop.f32.mrf.mxu0
        %v5322 = vadd.f32 %v4556, %v5321
        %v5323 = vpop.f32.mrf.mxu0
        %v5324 = vadd.f32 %v4560, %v5323
        %v5325 = vpop.f32.mrf.mxu0
        %v5326 = vpop.f32.mrf.mxu0
        %5327 = vdwg.mxu0
        %5328 = vmatprep.subr.bf16.mxu0 %v5044
        %5329 = vmatpush1.bf16.msra.mxu0 %v5043
        %5330 = vmatprep.subr.bf16.mxu0 %v5040
        %5331 = vmatpush1.bf16.msra.mxu0 %v5039
        %5332 = vmatprep.subr.bf16.mxu0 %v5036
        %5333 = vmatpush1.bf16.msra.mxu0 %v5035
        %5334 = vmatprep.subr.bf16.mxu0 %v5032
        %5335 = vmatpush1.bf16.msra.mxu0 %v5031
        %5336 = vmatprep.subr.bf16.mxu0 %v5028
        %5337 = vmatpush1.bf16.msra.mxu0 %v5027
        %5338 = vmatprep.subr.bf16.mxu0 %v5024
        %5339 = vmatpush1.bf16.msra.mxu0 %v5023
        %5340 = vmatprep.subr.bf16.mxu0 %v5020
        %5341 = vmatpush1.bf16.msra.mxu0 %v5019
        %5342 = vmatprep.subr.bf16.mxu0 %v5016
        %5343 = vmatpush1.bf16.msra.mxu0 %v5015
        %5344 = vmatprep.subr.bf16.mxu0 %v5076
        %5345 = vmatpush2.bf16.msra.mxu0 %v5075
        %5346 = vmatprep.subr.bf16.mxu0 %v5072
        %5347 = vmatpush2.bf16.msra.mxu0 %v5071
        %5348 = vmatprep.subr.bf16.mxu0 %v5068
        %5349 = vmatpush2.bf16.msra.mxu0 %v5067
        %5350 = vmatprep.subr.bf16.mxu0 %v5064
        %5351 = vmatpush2.bf16.msra.mxu0 %v5063
        %5352 = vmatprep.subr.bf16.mxu0 %v5060
        %5353 = vmatpush2.bf16.msra.mxu0 %v5059
        %5354 = vmatprep.subr.bf16.mxu0 %v5056
        %5355 = vmatpush2.bf16.msra.mxu0 %v5055
        %5356 = vmatprep.subr.bf16.mxu0 %v5052
        %5357 = vmatpush2.bf16.msra.mxu0 %v5051
        %5358 = vmatprep.subr.bf16.mxu0 %v5048
        %5359 = vmatpush2.bf16.msra.mxu0 %v5047
        %5360 = vmatprep.mubr.bf16.mxu0 %v4414
        %5361 = vmatmul.mubr.bf16.gmra.mxu0 %v4413
        %v5362 = vpop.f32.mrf.mxu0
        %v5363 = vadd.f32 %v5322, %v5362
        %v5364 = vpop.f32.mrf.mxu0
        %v5365 = vadd.f32 %v5324, %v5364
        %v5366 = vpop.f32.mrf.mxu0
        %v5367 = vpop.f32.mrf.mxu0
        %5368 = vdwg.mxu0
        %v5369 = vadd.f32 %v640, %v5281
        %v5370 = vadd.f32 %v641, %v5283
        %v5371 = vadd.f32 %v642, %v5363
        %v5372 = vadd.f32 %v643, %v5365
        %v5373 = vadd.f32 %v5369, %v5370
        %v5374 = vadd.f32 %v5373, %v5371
        %v5375 = vadd.f32 %v5374, %v5372
        %5376 = vadd.xlane.f32.xlu0 %v5375
        %v5377 = vpop.xlane.xlu0 %5376
        %v5378 = vrcp.pop 512.0
        %v5379 = vmul.f32 %v5377, %v5378
        %v5380 = vsub.f32 %v5369, %v5379
        %v5381 = vsub.f32 %v5370, %v5379
        %v5382 = vsub.f32 %v5371, %v5379
        %v5383 = vsub.f32 %v5372, %v5379
        %v5384 = vmul.f32 %v5380, %v5380
        %v5385 = vmul.f32 %v5381, %v5381
        %v5386 = vmul.f32 %v5382, %v5382
        %v5387 = vmul.f32 %v5383, %v5383
        %v5388 = vadd.f32 %v5384, %v5385
        %v5389 = vadd.f32 %v5388, %v5386
        %v5390 = vadd.f32 %v5389, %v5387
        %5391 = vadd.xlane.f32.xlu0 %v5390
        %v5392 = vpop.xlane.xlu0 %5391
        %v5393 = vmul.f32 %v5392, %v5378
        %v5394 = vadd.f32 %v5393, 1e-05
        %v5395 = vrsqrt.pop %v5394
        %v5396 = vmul.f32 %v5380, %v5395
        %v5397 = vmul.f32 %v5381, %v5395
        %v5398 = vmul.f32 %v5382, %v5395
        %v5399 = vmul.f32 %v5383, %v5395
        %v5400 = vld [vmem:[%s7] sm:$0xf]
        %v5402 = vlaneseq
        %v5403 = vshrl.u32 %v5402, 7
        %v5404 = vsub.s32 0, %v5403
        %v5405 = vrot.slane %v5400, %v5404
        %v5406 = vlaneseq
        %v5407 = vshrl.u32 %v5406, 7
        %v5408 = vsub.s32 1, %v5407
        %v5409 = vrot.slane %v5400, %v5408
        %v5410 = vlaneseq
        %v5411 = vshrl.u32 %v5410, 7
        %v5412 = vsub.s32 2, %v5411
        %v5413 = vrot.slane %v5400, %v5412
        %v5414 = vlaneseq
        %v5415 = vshrl.u32 %v5414, 7
        %v5416 = vsub.s32 3, %v5415
        %v5417 = vrot.slane %v5400, %v5416
        %v5422 = vmul.f32 %v5396, %v5405
        %v5423 = vmul.f32 %v5397, %v5409
        %v5424 = vmul.f32 %v5398, %v5413
        %v5425 = vmul.f32 %v5399, %v5417
        %v5426 = vld [vmem:[%s8] sm:$0xf]
        %v5428 = vlaneseq
        %v5429 = vshrl.u32 %v5428, 7
        %v5430 = vsub.s32 0, %v5429
        %v5431 = vrot.slane %v5426, %v5430
        %v5432 = vlaneseq
        %v5433 = vshrl.u32 %v5432, 7
        %v5434 = vsub.s32 1, %v5433
        %v5435 = vrot.slane %v5426, %v5434
        %v5436 = vlaneseq
        %v5437 = vshrl.u32 %v5436, 7
        %v5438 = vsub.s32 2, %v5437
        %v5439 = vrot.slane %v5426, %v5438
        %v5440 = vlaneseq
        %v5441 = vshrl.u32 %v5440, 7
        %v5442 = vsub.s32 3, %v5441
        %v5443 = vrot.slane %v5426, %v5442
        %v5448 = vadd.f32 %v5422, %v5431
        %v5449 = vadd.f32 %v5423, %v5435
        %v5450 = vadd.f32 %v5424, %v5439
        %v5451 = vadd.f32 %v5425, %v5443
        %v5452 = vpack.c.bf16 %v5448, %v5448
        %v5453 = vpack.c.bf16 %v5449, %v5449
        %v5454 = vpack.c.bf16 %v5450, %v5450
        %v5455 = vpack.c.bf16 %v5451, %v5451
        %v5456 = vld [vmem:[#allocation13] sm:$0xff]
        %v5457 = vld [vmem:[#allocation13 + $0x8] sm:$0xff]
        %v5458 = vld [vmem:[#allocation13 + $0x10] sm:$0xff]
        %v5459 = vld [vmem:[#allocation13 + $0x18] sm:$0xff]
        %v5460 = vld [vmem:[#allocation13 + $0x20] sm:$0xff]
        %v5461 = vld [vmem:[#allocation13 + $0x28] sm:$0xff]
        %v5462 = vld [vmem:[#allocation13 + $0x30] sm:$0xff]
        %v5463 = vld [vmem:[#allocation13 + $0x38] sm:$0xff]
        %v5464 = vld [vmem:[#allocation13 + $0x40] sm:$0xff]
        %v5465 = vld [vmem:[#allocation13 + $0x48] sm:$0xff]
        %v5466 = vld [vmem:[#allocation13 + $0x50] sm:$0xff]
        %v5467 = vld [vmem:[#allocation13 + $0x58] sm:$0xff]
        %v5468 = vld [vmem:[#allocation13 + $0x60] sm:$0xff]
        %v5469 = vld [vmem:[#allocation13 + $0x68] sm:$0xff]
        %v5470 = vld [vmem:[#allocation13 + $0x70] sm:$0xff]
        %v5471 = vld [vmem:[#allocation13 + $0x78] sm:$0xff]
        %v5472 = vld [vmem:[#allocation13 + $0x80] sm:$0xff]
        %v5473 = vld [vmem:[#allocation13 + $0x88] sm:$0xff]
        %v5474 = vld [vmem:[#allocation13 + $0x90] sm:$0xff]
        %v5475 = vld [vmem:[#allocation13 + $0x98] sm:$0xff]
        %v5476 = vld [vmem:[#allocation13 + $0xa0] sm:$0xff]
        %v5477 = vld [vmem:[#allocation13 + $0xa8] sm:$0xff]
        %v5478 = vld [vmem:[#allocation13 + $0xb0] sm:$0xff]
        %v5479 = vld [vmem:[#allocation13 + $0xb8] sm:$0xff]
        %v5480 = vld [vmem:[#allocation13 + $0xc0] sm:$0xff]
        %v5481 = vld [vmem:[#allocation13 + $0xc8] sm:$0xff]
        %v5482 = vld [vmem:[#allocation13 + $0xd0] sm:$0xff]
        %v5483 = vld [vmem:[#allocation13 + $0xd8] sm:$0xff]
        %v5484 = vld [vmem:[#allocation13 + $0xe0] sm:$0xff]
        %v5485 = vld [vmem:[#allocation13 + $0xe8] sm:$0xff]
        %v5486 = vld [vmem:[#allocation13 + $0xf0] sm:$0xff]
        %v5487 = vld [vmem:[#allocation13 + $0xf8] sm:$0xff]
        %v5488 = vld [vmem:[#allocation13 + $0x100] sm:$0xff]
        %v5489 = vld [vmem:[#allocation13 + $0x108] sm:$0xff]
        %v5490 = vld [vmem:[#allocation13 + $0x110] sm:$0xff]
        %v5491 = vld [vmem:[#allocation13 + $0x118] sm:$0xff]
        %v5492 = vld [vmem:[#allocation13 + $0x120] sm:$0xff]
        %v5493 = vld [vmem:[#allocation13 + $0x128] sm:$0xff]
        %v5494 = vld [vmem:[#allocation13 + $0x130] sm:$0xff]
        %v5495 = vld [vmem:[#allocation13 + $0x138] sm:$0xff]
        %v5496 = vld [vmem:[#allocation13 + $0x140] sm:$0xff]
        %v5497 = vld [vmem:[#allocation13 + $0x148] sm:$0xff]
        %v5498 = vld [vmem:[#allocation13 + $0x150] sm:$0xff]
        %v5499 = vld [vmem:[#allocation13 + $0x158] sm:$0xff]
        %v5500 = vld [vmem:[#allocation13 + $0x160] sm:$0xff]
        %v5501 = vld [vmem:[#allocation13 + $0x168] sm:$0xff]
        %v5502 = vld [vmem:[#allocation13 + $0x170] sm:$0xff]
        %v5503 = vld [vmem:[#allocation13 + $0x178] sm:$0xff]
        %v5504 = vld [vmem:[#allocation13 + $0x180] sm:$0xff]
        %v5505 = vld [vmem:[#allocation13 + $0x188] sm:$0xff]
        %v5506 = vld [vmem:[#allocation13 + $0x190] sm:$0xff]
        %v5507 = vld [vmem:[#allocation13 + $0x198] sm:$0xff]
        %v5508 = vld [vmem:[#allocation13 + $0x1a0] sm:$0xff]
        %v5509 = vld [vmem:[#allocation13 + $0x1a8] sm:$0xff]
        %v5510 = vld [vmem:[#allocation13 + $0x1b0] sm:$0xff]
        %v5511 = vld [vmem:[#allocation13 + $0x1b8] sm:$0xff]
        %v5512 = vld [vmem:[#allocation13 + $0x1c0] sm:$0xff]
        %v5513 = vld [vmem:[#allocation13 + $0x1c8] sm:$0xff]
        %v5514 = vld [vmem:[#allocation13 + $0x1d0] sm:$0xff]
        %v5515 = vld [vmem:[#allocation13 + $0x1d8] sm:$0xff]
        %v5516 = vld [vmem:[#allocation13 + $0x1e0] sm:$0xff]
        %v5517 = vld [vmem:[#allocation13 + $0x1e8] sm:$0xff]
        %v5518 = vld [vmem:[#allocation13 + $0x1f0] sm:$0xff]
        %v5519 = vld [vmem:[#allocation13 + $0x1f8] sm:$0xff]
        %v5520 = vld [vmem:[#allocation13 + $0x200] sm:$0xff]
        %v5521 = vld [vmem:[#allocation13 + $0x208] sm:$0xff]
        %v5522 = vld [vmem:[#allocation13 + $0x210] sm:$0xff]
        %v5523 = vld [vmem:[#allocation13 + $0x218] sm:$0xff]
        %v5524 = vld [vmem:[#allocation13 + $0x220] sm:$0xff]
        %v5525 = vld [vmem:[#allocation13 + $0x228] sm:$0xff]
        %v5526 = vld [vmem:[#allocation13 + $0x230] sm:$0xff]
        %v5527 = vld [vmem:[#allocation13 + $0x238] sm:$0xff]
        %v5528 = vld [vmem:[#allocation13 + $0x240] sm:$0xff]
        %v5529 = vld [vmem:[#allocation13 + $0x248] sm:$0xff]
        %v5530 = vld [vmem:[#allocation13 + $0x250] sm:$0xff]
        %v5531 = vld [vmem:[#allocation13 + $0x258] sm:$0xff]
        %v5532 = vld [vmem:[#allocation13 + $0x260] sm:$0xff]
        %v5533 = vld [vmem:[#allocation13 + $0x268] sm:$0xff]
        %v5534 = vld [vmem:[#allocation13 + $0x270] sm:$0xff]
        %v5535 = vld [vmem:[#allocation13 + $0x278] sm:$0xff]
        %v5536 = vld [vmem:[#allocation13 + $0x280] sm:$0xff]
        %v5537 = vld [vmem:[#allocation13 + $0x288] sm:$0xff]
        %v5538 = vld [vmem:[#allocation13 + $0x290] sm:$0xff]
        %v5539 = vld [vmem:[#allocation13 + $0x298] sm:$0xff]
        %v5540 = vld [vmem:[#allocation13 + $0x2a0] sm:$0xff]
        %v5541 = vld [vmem:[#allocation13 + $0x2a8] sm:$0xff]
        %v5542 = vld [vmem:[#allocation13 + $0x2b0] sm:$0xff]
        %v5543 = vld [vmem:[#allocation13 + $0x2b8] sm:$0xff]
        %v5544 = vld [vmem:[#allocation13 + $0x2c0] sm:$0xff]
        %v5545 = vld [vmem:[#allocation13 + $0x2c8] sm:$0xff]
        %v5546 = vld [vmem:[#allocation13 + $0x2d0] sm:$0xff]
        %v5547 = vld [vmem:[#allocation13 + $0x2d8] sm:$0xff]
        %v5548 = vld [vmem:[#allocation13 + $0x2e0] sm:$0xff]
        %v5549 = vld [vmem:[#allocation13 + $0x2e8] sm:$0xff]
        %v5550 = vld [vmem:[#allocation13 + $0x2f0] sm:$0xff]
        %v5551 = vld [vmem:[#allocation13 + $0x2f8] sm:$0xff]
        %v5552 = vld [vmem:[#allocation13 + $0x300] sm:$0xff]
        %v5553 = vld [vmem:[#allocation13 + $0x308] sm:$0xff]
        %v5554 = vld [vmem:[#allocation13 + $0x310] sm:$0xff]
        %v5555 = vld [vmem:[#allocation13 + $0x318] sm:$0xff]
        %v5556 = vld [vmem:[#allocation13 + $0x320] sm:$0xff]
        %v5557 = vld [vmem:[#allocation13 + $0x328] sm:$0xff]
        %v5558 = vld [vmem:[#allocation13 + $0x330] sm:$0xff]
        %v5559 = vld [vmem:[#allocation13 + $0x338] sm:$0xff]
        %v5560 = vld [vmem:[#allocation13 + $0x340] sm:$0xff]
        %v5561 = vld [vmem:[#allocation13 + $0x348] sm:$0xff]
        %v5562 = vld [vmem:[#allocation13 + $0x350] sm:$0xff]
        %v5563 = vld [vmem:[#allocation13 + $0x358] sm:$0xff]
        %v5564 = vld [vmem:[#allocation13 + $0x360] sm:$0xff]
        %v5565 = vld [vmem:[#allocation13 + $0x368] sm:$0xff]
        %v5566 = vld [vmem:[#allocation13 + $0x370] sm:$0xff]
        %v5567 = vld [vmem:[#allocation13 + $0x378] sm:$0xff]
        %v5568 = vld [vmem:[#allocation13 + $0x380] sm:$0xff]
        %v5569 = vld [vmem:[#allocation13 + $0x388] sm:$0xff]
        %v5570 = vld [vmem:[#allocation13 + $0x390] sm:$0xff]
        %v5571 = vld [vmem:[#allocation13 + $0x398] sm:$0xff]
        %v5572 = vld [vmem:[#allocation13 + $0x3a0] sm:$0xff]
        %v5573 = vld [vmem:[#allocation13 + $0x3a8] sm:$0xff]
        %v5574 = vld [vmem:[#allocation13 + $0x3b0] sm:$0xff]
        %v5575 = vld [vmem:[#allocation13 + $0x3b8] sm:$0xff]
        %v5576 = vld [vmem:[#allocation13 + $0x3c0] sm:$0xff]
        %v5577 = vld [vmem:[#allocation13 + $0x3c8] sm:$0xff]
        %v5578 = vld [vmem:[#allocation13 + $0x3d0] sm:$0xff]
        %v5579 = vld [vmem:[#allocation13 + $0x3d8] sm:$0xff]
        %v5580 = vld [vmem:[#allocation13 + $0x3e0] sm:$0xff]
        %v5581 = vld [vmem:[#allocation13 + $0x3e8] sm:$0xff]
        %v5582 = vld [vmem:[#allocation13 + $0x3f0] sm:$0xff]
        %v5583 = vld [vmem:[#allocation13 + $0x3f8] sm:$0xff]
        %v5584 = vld [vmem:[%s10] sm:$0xf]
        %v5586 = vlaneseq
        %v5587 = vshrl.u32 %v5586, 7
        %v5588 = vsub.s32 0, %v5587
        %v5589 = vrot.slane %v5584, %v5588
        %v5590 = vlaneseq
        %v5591 = vshrl.u32 %v5590, 7
        %v5592 = vsub.s32 1, %v5591
        %v5593 = vrot.slane %v5584, %v5592
        %v5594 = vlaneseq
        %v5595 = vshrl.u32 %v5594, 7
        %v5596 = vsub.s32 2, %v5595
        %v5597 = vrot.slane %v5584, %v5596
        %v5598 = vlaneseq
        %v5599 = vshrl.u32 %v5598, 7
        %v5600 = vsub.s32 3, %v5599
        %v5601 = vrot.slane %v5584, %v5600
        %v5734 = vunpack.c.l.b16 %v5456
        %v5735 = vunpack.c.h.b16 %v5456
        %v5736 = vunpack.c.l.b16 %v5457
        %v5737 = vunpack.c.h.b16 %v5457
        %v5738 = vunpack.c.l.b16 %v5458
        %v5739 = vunpack.c.h.b16 %v5458
        %v5740 = vunpack.c.l.b16 %v5459
        %v5741 = vunpack.c.h.b16 %v5459
        %v5742 = vunpack.c.l.b16 %v5460
        %v5743 = vunpack.c.h.b16 %v5460
        %v5744 = vunpack.c.l.b16 %v5461
        %v5745 = vunpack.c.h.b16 %v5461
        %v5746 = vunpack.c.l.b16 %v5462
        %v5747 = vunpack.c.h.b16 %v5462
        %v5748 = vunpack.c.l.b16 %v5463
        %v5749 = vunpack.c.h.b16 %v5463
        %v5750 = vunpack.c.l.b16 %v5464
        %v5751 = vunpack.c.h.b16 %v5464
        %v5752 = vunpack.c.l.b16 %v5465
        %v5753 = vunpack.c.h.b16 %v5465
        %v5754 = vunpack.c.l.b16 %v5466
        %v5755 = vunpack.c.h.b16 %v5466
        %v5756 = vunpack.c.l.b16 %v5467
        %v5757 = vunpack.c.h.b16 %v5467
        %v5758 = vunpack.c.l.b16 %v5468
        %v5759 = vunpack.c.h.b16 %v5468
        %v5760 = vunpack.c.l.b16 %v5469
        %v5761 = vunpack.c.h.b16 %v5469
        %v5762 = vunpack.c.l.b16 %v5470
        %v5763 = vunpack.c.h.b16 %v5470
        %v5764 = vunpack.c.l.b16 %v5471
        %v5765 = vunpack.c.h.b16 %v5471
        %v5766 = vunpack.c.l.b16 %v5472
        %v5767 = vunpack.c.h.b16 %v5472
        %v5768 = vunpack.c.l.b16 %v5473
        %v5769 = vunpack.c.h.b16 %v5473
        %v5770 = vunpack.c.l.b16 %v5474
        %v5771 = vunpack.c.h.b16 %v5474
        %v5772 = vunpack.c.l.b16 %v5475
        %v5773 = vunpack.c.h.b16 %v5475
        %v5774 = vunpack.c.l.b16 %v5476
        %v5775 = vunpack.c.h.b16 %v5476
        %v5776 = vunpack.c.l.b16 %v5477
        %v5777 = vunpack.c.h.b16 %v5477
        %v5778 = vunpack.c.l.b16 %v5478
        %v5779 = vunpack.c.h.b16 %v5478
        %v5780 = vunpack.c.l.b16 %v5479
        %v5781 = vunpack.c.h.b16 %v5479
        %v5782 = vunpack.c.l.b16 %v5480
        %v5783 = vunpack.c.h.b16 %v5480
        %v5784 = vunpack.c.l.b16 %v5481
        %v5785 = vunpack.c.h.b16 %v5481
        %v5786 = vunpack.c.l.b16 %v5482
        %v5787 = vunpack.c.h.b16 %v5482
        %v5788 = vunpack.c.l.b16 %v5483
        %v5789 = vunpack.c.h.b16 %v5483
        %v5790 = vunpack.c.l.b16 %v5484
        %v5791 = vunpack.c.h.b16 %v5484
        %v5792 = vunpack.c.l.b16 %v5485
        %v5793 = vunpack.c.h.b16 %v5485
        %v5794 = vunpack.c.l.b16 %v5486
        %v5795 = vunpack.c.h.b16 %v5486
        %v5796 = vunpack.c.l.b16 %v5487
        %v5797 = vunpack.c.h.b16 %v5487
        %v5798 = vunpack.c.l.b16 %v5488
        %v5799 = vunpack.c.h.b16 %v5488
        %v5800 = vunpack.c.l.b16 %v5489
        %v5801 = vunpack.c.h.b16 %v5489
        %v5802 = vunpack.c.l.b16 %v5490
        %v5803 = vunpack.c.h.b16 %v5490
        %v5804 = vunpack.c.l.b16 %v5491
        %v5805 = vunpack.c.h.b16 %v5491
        %v5806 = vunpack.c.l.b16 %v5492
        %v5807 = vunpack.c.h.b16 %v5492
        %v5808 = vunpack.c.l.b16 %v5493
        %v5809 = vunpack.c.h.b16 %v5493
        %v5810 = vunpack.c.l.b16 %v5494
        %v5811 = vunpack.c.h.b16 %v5494
        %v5812 = vunpack.c.l.b16 %v5495
        %v5813 = vunpack.c.h.b16 %v5495
        %v5814 = vunpack.c.l.b16 %v5496
        %v5815 = vunpack.c.h.b16 %v5496
        %v5816 = vunpack.c.l.b16 %v5497
        %v5817 = vunpack.c.h.b16 %v5497
        %v5818 = vunpack.c.l.b16 %v5498
        %v5819 = vunpack.c.h.b16 %v5498
        %v5820 = vunpack.c.l.b16 %v5499
        %v5821 = vunpack.c.h.b16 %v5499
        %v5822 = vunpack.c.l.b16 %v5500
        %v5823 = vunpack.c.h.b16 %v5500
        %v5824 = vunpack.c.l.b16 %v5501
        %v5825 = vunpack.c.h.b16 %v5501
        %v5826 = vunpack.c.l.b16 %v5502
        %v5827 = vunpack.c.h.b16 %v5502
        %v5828 = vunpack.c.l.b16 %v5503
        %v5829 = vunpack.c.h.b16 %v5503
        %v5830 = vunpack.c.l.b16 %v5504
        %v5831 = vunpack.c.h.b16 %v5504
        %v5832 = vunpack.c.l.b16 %v5505
        %v5833 = vunpack.c.h.b16 %v5505
        %v5834 = vunpack.c.l.b16 %v5506
        %v5835 = vunpack.c.h.b16 %v5506
        %v5836 = vunpack.c.l.b16 %v5507
        %v5837 = vunpack.c.h.b16 %v5507
        %v5838 = vunpack.c.l.b16 %v5508
        %v5839 = vunpack.c.h.b16 %v5508
        %v5840 = vunpack.c.l.b16 %v5509
        %v5841 = vunpack.c.h.b16 %v5509
        %v5842 = vunpack.c.l.b16 %v5510
        %v5843 = vunpack.c.h.b16 %v5510
        %v5844 = vunpack.c.l.b16 %v5511
        %v5845 = vunpack.c.h.b16 %v5511
        %v5846 = vunpack.c.l.b16 %v5512
        %v5847 = vunpack.c.h.b16 %v5512
        %v5848 = vunpack.c.l.b16 %v5513
        %v5849 = vunpack.c.h.b16 %v5513
        %v5850 = vunpack.c.l.b16 %v5514
        %v5851 = vunpack.c.h.b16 %v5514
        %v5852 = vunpack.c.l.b16 %v5515
        %v5853 = vunpack.c.h.b16 %v5515
        %v5854 = vunpack.c.l.b16 %v5516
        %v5855 = vunpack.c.h.b16 %v5516
        %v5856 = vunpack.c.l.b16 %v5517
        %v5857 = vunpack.c.h.b16 %v5517
        %v5858 = vunpack.c.l.b16 %v5518
        %v5859 = vunpack.c.h.b16 %v5518
        %v5860 = vunpack.c.l.b16 %v5519
        %v5861 = vunpack.c.h.b16 %v5519
        %v5862 = vunpack.c.l.b16 %v5520
        %v5863 = vunpack.c.h.b16 %v5520
        %v5864 = vunpack.c.l.b16 %v5521
        %v5865 = vunpack.c.h.b16 %v5521
        %v5866 = vunpack.c.l.b16 %v5522
        %v5867 = vunpack.c.h.b16 %v5522
        %v5868 = vunpack.c.l.b16 %v5523
        %v5869 = vunpack.c.h.b16 %v5523
        %v5870 = vunpack.c.l.b16 %v5524
        %v5871 = vunpack.c.h.b16 %v5524
        %v5872 = vunpack.c.l.b16 %v5525
        %v5873 = vunpack.c.h.b16 %v5525
        %v5874 = vunpack.c.l.b16 %v5526
        %v5875 = vunpack.c.h.b16 %v5526
        %v5876 = vunpack.c.l.b16 %v5527
        %v5877 = vunpack.c.h.b16 %v5527
        %v5878 = vunpack.c.l.b16 %v5528
        %v5879 = vunpack.c.h.b16 %v5528
        %v5880 = vunpack.c.l.b16 %v5529
        %v5881 = vunpack.c.h.b16 %v5529
        %v5882 = vunpack.c.l.b16 %v5530
        %v5883 = vunpack.c.h.b16 %v5530
        %v5884 = vunpack.c.l.b16 %v5531
        %v5885 = vunpack.c.h.b16 %v5531
        %v5886 = vunpack.c.l.b16 %v5532
        %v5887 = vunpack.c.h.b16 %v5532
        %v5888 = vunpack.c.l.b16 %v5533
        %v5889 = vunpack.c.h.b16 %v5533
        %v5890 = vunpack.c.l.b16 %v5534
        %v5891 = vunpack.c.h.b16 %v5534
        %v5892 = vunpack.c.l.b16 %v5535
        %v5893 = vunpack.c.h.b16 %v5535
        %v5894 = vunpack.c.l.b16 %v5536
        %v5895 = vunpack.c.h.b16 %v5536
        %v5896 = vunpack.c.l.b16 %v5537
        %v5897 = vunpack.c.h.b16 %v5537
        %v5898 = vunpack.c.l.b16 %v5538
        %v5899 = vunpack.c.h.b16 %v5538
        %v5900 = vunpack.c.l.b16 %v5539
        %v5901 = vunpack.c.h.b16 %v5539
        %v5902 = vunpack.c.l.b16 %v5540
        %v5903 = vunpack.c.h.b16 %v5540
        %v5904 = vunpack.c.l.b16 %v5541
        %v5905 = vunpack.c.h.b16 %v5541
        %v5906 = vunpack.c.l.b16 %v5542
        %v5907 = vunpack.c.h.b16 %v5542
        %v5908 = vunpack.c.l.b16 %v5543
        %v5909 = vunpack.c.h.b16 %v5543
        %v5910 = vunpack.c.l.b16 %v5544
        %v5911 = vunpack.c.h.b16 %v5544
        %v5912 = vunpack.c.l.b16 %v5545
        %v5913 = vunpack.c.h.b16 %v5545
        %v5914 = vunpack.c.l.b16 %v5546
        %v5915 = vunpack.c.h.b16 %v5546
        %v5916 = vunpack.c.l.b16 %v5547
        %v5917 = vunpack.c.h.b16 %v5547
        %v5918 = vunpack.c.l.b16 %v5548
        %v5919 = vunpack.c.h.b16 %v5548
        %v5920 = vunpack.c.l.b16 %v5549
        %v5921 = vunpack.c.h.b16 %v5549
        %v5922 = vunpack.c.l.b16 %v5550
        %v5923 = vunpack.c.h.b16 %v5550
        %v5924 = vunpack.c.l.b16 %v5551
        %v5925 = vunpack.c.h.b16 %v5551
        %v5926 = vunpack.c.l.b16 %v5552
        %v5927 = vunpack.c.h.b16 %v5552
        %v5928 = vunpack.c.l.b16 %v5553
        %v5929 = vunpack.c.h.b16 %v5553
        %v5930 = vunpack.c.l.b16 %v5554
        %v5931 = vunpack.c.h.b16 %v5554
        %v5932 = vunpack.c.l.b16 %v5555
        %v5933 = vunpack.c.h.b16 %v5555
        %v5934 = vunpack.c.l.b16 %v5556
        %v5935 = vunpack.c.h.b16 %v5556
        %v5936 = vunpack.c.l.b16 %v5557
        %v5937 = vunpack.c.h.b16 %v5557
        %v5938 = vunpack.c.l.b16 %v5558
        %v5939 = vunpack.c.h.b16 %v5558
        %v5940 = vunpack.c.l.b16 %v5559
        %v5941 = vunpack.c.h.b16 %v5559
        %v5942 = vunpack.c.l.b16 %v5560
        %v5943 = vunpack.c.h.b16 %v5560
        %v5944 = vunpack.c.l.b16 %v5561
        %v5945 = vunpack.c.h.b16 %v5561
        %v5946 = vunpack.c.l.b16 %v5562
        %v5947 = vunpack.c.h.b16 %v5562
        %v5948 = vunpack.c.l.b16 %v5563
        %v5949 = vunpack.c.h.b16 %v5563
        %v5950 = vunpack.c.l.b16 %v5564
        %v5951 = vunpack.c.h.b16 %v5564
        %v5952 = vunpack.c.l.b16 %v5565
        %v5953 = vunpack.c.h.b16 %v5565
        %v5954 = vunpack.c.l.b16 %v5566
        %v5955 = vunpack.c.h.b16 %v5566
        %v5956 = vunpack.c.l.b16 %v5567
        %v5957 = vunpack.c.h.b16 %v5567
        %v5958 = vunpack.c.l.b16 %v5568
        %v5959 = vunpack.c.h.b16 %v5568
        %v5960 = vunpack.c.l.b16 %v5569
        %v5961 = vunpack.c.h.b16 %v5569
        %v5962 = vunpack.c.l.b16 %v5570
        %v5963 = vunpack.c.h.b16 %v5570
        %v5964 = vunpack.c.l.b16 %v5571
        %v5965 = vunpack.c.h.b16 %v5571
        %v5966 = vunpack.c.l.b16 %v5572
        %v5967 = vunpack.c.h.b16 %v5572
        %v5968 = vunpack.c.l.b16 %v5573
        %v5969 = vunpack.c.h.b16 %v5573
        %v5970 = vunpack.c.l.b16 %v5574
        %v5971 = vunpack.c.h.b16 %v5574
        %v5972 = vunpack.c.l.b16 %v5575
        %v5973 = vunpack.c.h.b16 %v5575
        %v5974 = vunpack.c.l.b16 %v5576
        %v5975 = vunpack.c.h.b16 %v5576
        %v5976 = vunpack.c.l.b16 %v5577
        %v5977 = vunpack.c.h.b16 %v5577
        %v5978 = vunpack.c.l.b16 %v5578
        %v5979 = vunpack.c.h.b16 %v5578
        %v5980 = vunpack.c.l.b16 %v5579
        %v5981 = vunpack.c.h.b16 %v5579
        %v5982 = vunpack.c.l.b16 %v5580
        %v5983 = vunpack.c.h.b16 %v5580
        %v5984 = vunpack.c.l.b16 %v5581
        %v5985 = vunpack.c.h.b16 %v5581
        %v5986 = vunpack.c.l.b16 %v5582
        %v5987 = vunpack.c.h.b16 %v5582
        %v5988 = vunpack.c.l.b16 %v5583
        %v5989 = vunpack.c.h.b16 %v5583
        %v5990 = vpack.c.b16 %v5738, %v5734
        %v5991 = vpack.c.b16 %v5739, %v5735
        %v5992 = vpack.c.b16 %v5740, %v5736
        %v5993 = vpack.c.b16 %v5741, %v5737
        %v5994 = vpack.c.b16 %v5746, %v5742
        %v5995 = vpack.c.b16 %v5747, %v5743
        %v5996 = vpack.c.b16 %v5748, %v5744
        %v5997 = vpack.c.b16 %v5749, %v5745
        %v5998 = vpack.c.b16 %v5754, %v5750
        %v5999 = vpack.c.b16 %v5755, %v5751
        %v6000 = vpack.c.b16 %v5756, %v5752
        %v6001 = vpack.c.b16 %v5757, %v5753
        %v6002 = vpack.c.b16 %v5762, %v5758
        %v6003 = vpack.c.b16 %v5763, %v5759
        %v6004 = vpack.c.b16 %v5764, %v5760
        %v6005 = vpack.c.b16 %v5765, %v5761
        %v6006 = vpack.c.b16 %v5770, %v5766
        %v6007 = vpack.c.b16 %v5771, %v5767
        %v6008 = vpack.c.b16 %v5772, %v5768
        %v6009 = vpack.c.b16 %v5773, %v5769
        %v6010 = vpack.c.b16 %v5778, %v5774
        %v6011 = vpack.c.b16 %v5779, %v5775
        %v6012 = vpack.c.b16 %v5780, %v5776
        %v6013 = vpack.c.b16 %v5781, %v5777
        %v6014 = vpack.c.b16 %v5786, %v5782
        %v6015 = vpack.c.b16 %v5787, %v5783
        %v6016 = vpack.c.b16 %v5788, %v5784
        %v6017 = vpack.c.b16 %v5789, %v5785
        %v6018 = vpack.c.b16 %v5794, %v5790
        %v6019 = vpack.c.b16 %v5795, %v5791
        %v6020 = vpack.c.b16 %v5796, %v5792
        %v6021 = vpack.c.b16 %v5797, %v5793
        %v6022 = vpack.c.b16 %v5802, %v5798
        %v6023 = vpack.c.b16 %v5803, %v5799
        %v6024 = vpack.c.b16 %v5804, %v5800
        %v6025 = vpack.c.b16 %v5805, %v5801
        %v6026 = vpack.c.b16 %v5810, %v5806
        %v6027 = vpack.c.b16 %v5811, %v5807
        %v6028 = vpack.c.b16 %v5812, %v5808
        %v6029 = vpack.c.b16 %v5813, %v5809
        %v6030 = vpack.c.b16 %v5818, %v5814
        %v6031 = vpack.c.b16 %v5819, %v5815
        %v6032 = vpack.c.b16 %v5820, %v5816
        %v6033 = vpack.c.b16 %v5821, %v5817
        %v6034 = vpack.c.b16 %v5826, %v5822
        %v6035 = vpack.c.b16 %v5827, %v5823
        %v6036 = vpack.c.b16 %v5828, %v5824
        %v6037 = vpack.c.b16 %v5829, %v5825
        %v6038 = vpack.c.b16 %v5834, %v5830
        %v6039 = vpack.c.b16 %v5835, %v5831
        %v6040 = vpack.c.b16 %v5836, %v5832
        %v6041 = vpack.c.b16 %v5837, %v5833
        %v6042 = vpack.c.b16 %v5842, %v5838
        %v6043 = vpack.c.b16 %v5843, %v5839
        %v6044 = vpack.c.b16 %v5844, %v5840
        %v6045 = vpack.c.b16 %v5845, %v5841
        %v6046 = vpack.c.b16 %v5850, %v5846
        %v6047 = vpack.c.b16 %v5851, %v5847
        %v6048 = vpack.c.b16 %v5852, %v5848
        %v6049 = vpack.c.b16 %v5853, %v5849
        %v6050 = vpack.c.b16 %v5858, %v5854
        %v6051 = vpack.c.b16 %v5859, %v5855
        %v6052 = vpack.c.b16 %v5860, %v5856
        %v6053 = vpack.c.b16 %v5861, %v5857
        %v6054 = vpack.c.b16 %v5866, %v5862
        %v6055 = vpack.c.b16 %v5867, %v5863
        %v6056 = vpack.c.b16 %v5868, %v5864
        %v6057 = vpack.c.b16 %v5869, %v5865
        %v6058 = vpack.c.b16 %v5874, %v5870
        %v6059 = vpack.c.b16 %v5875, %v5871
        %v6060 = vpack.c.b16 %v5876, %v5872
        %v6061 = vpack.c.b16 %v5877, %v5873
        %v6062 = vpack.c.b16 %v5882, %v5878
        %v6063 = vpack.c.b16 %v5883, %v5879
        %v6064 = vpack.c.b16 %v5884, %v5880
        %v6065 = vpack.c.b16 %v5885, %v5881
        %v6066 = vpack.c.b16 %v5890, %v5886
        %v6067 = vpack.c.b16 %v5891, %v5887
        %v6068 = vpack.c.b16 %v5892, %v5888
        %v6069 = vpack.c.b16 %v5893, %v5889
        %v6070 = vpack.c.b16 %v5898, %v5894
        %v6071 = vpack.c.b16 %v5899, %v5895
        %v6072 = vpack.c.b16 %v5900, %v5896
        %v6073 = vpack.c.b16 %v5901, %v5897
        %v6074 = vpack.c.b16 %v5906, %v5902
        %v6075 = vpack.c.b16 %v5907, %v5903
        %v6076 = vpack.c.b16 %v5908, %v5904
        %v6077 = vpack.c.b16 %v5909, %v5905
        %v6078 = vpack.c.b16 %v5914, %v5910
        %v6079 = vpack.c.b16 %v5915, %v5911
        %v6080 = vpack.c.b16 %v5916, %v5912
        %v6081 = vpack.c.b16 %v5917, %v5913
        %v6082 = vpack.c.b16 %v5922, %v5918
        %v6083 = vpack.c.b16 %v5923, %v5919
        %v6084 = vpack.c.b16 %v5924, %v5920
        %v6085 = vpack.c.b16 %v5925, %v5921
        %v6086 = vpack.c.b16 %v5930, %v5926
        %v6087 = vpack.c.b16 %v5931, %v5927
        %v6088 = vpack.c.b16 %v5932, %v5928
        %v6089 = vpack.c.b16 %v5933, %v5929
        %v6090 = vpack.c.b16 %v5938, %v5934
        %v6091 = vpack.c.b16 %v5939, %v5935
        %v6092 = vpack.c.b16 %v5940, %v5936
        %v6093 = vpack.c.b16 %v5941, %v5937
        %v6094 = vpack.c.b16 %v5946, %v5942
        %v6095 = vpack.c.b16 %v5947, %v5943
        %v6096 = vpack.c.b16 %v5948, %v5944
        %v6097 = vpack.c.b16 %v5949, %v5945
        %v6098 = vpack.c.b16 %v5954, %v5950
        %v6099 = vpack.c.b16 %v5955, %v5951
        %v6100 = vpack.c.b16 %v5956, %v5952
        %v6101 = vpack.c.b16 %v5957, %v5953
        %v6102 = vpack.c.b16 %v5962, %v5958
        %v6103 = vpack.c.b16 %v5963, %v5959
        %v6104 = vpack.c.b16 %v5964, %v5960
        %v6105 = vpack.c.b16 %v5965, %v5961
        %v6106 = vpack.c.b16 %v5970, %v5966
        %v6107 = vpack.c.b16 %v5971, %v5967
        %v6108 = vpack.c.b16 %v5972, %v5968
        %v6109 = vpack.c.b16 %v5973, %v5969
        %v6110 = vpack.c.b16 %v5978, %v5974
        %v6111 = vpack.c.b16 %v5979, %v5975
        %v6112 = vpack.c.b16 %v5980, %v5976
        %v6113 = vpack.c.b16 %v5981, %v5977
        %v6114 = vpack.c.b16 %v5986, %v5982
        %v6115 = vpack.c.b16 %v5987, %v5983
        %v6116 = vpack.c.b16 %v5988, %v5984
        %v6117 = vpack.c.b16 %v5989, %v5985
        %6246 = vmatprep.subr.bf16.mxu0 %v6019
        %6247 = vmatpush1.bf16.msra.mxu0 %v6018
        %6248 = vmatprep.subr.bf16.mxu0 %v6015
        %6249 = vmatpush1.bf16.msra.mxu0 %v6014
        %6250 = vmatprep.subr.bf16.mxu0 %v6011
        %6251 = vmatpush1.bf16.msra.mxu0 %v6010
        %6252 = vmatprep.subr.bf16.mxu0 %v6007
        %6253 = vmatpush1.bf16.msra.mxu0 %v6006
        %6254 = vmatprep.subr.bf16.mxu0 %v6003
        %6255 = vmatpush1.bf16.msra.mxu0 %v6002
        %6256 = vmatprep.subr.bf16.mxu0 %v5999
        %6257 = vmatpush1.bf16.msra.mxu0 %v5998
        %6258 = vmatprep.subr.bf16.mxu0 %v5995
        %6259 = vmatpush1.bf16.msra.mxu0 %v5994
        %6260 = vmatprep.subr.bf16.mxu0 %v5991
        %6261 = vmatpush1.bf16.msra.mxu0 %v5990
        %6262 = vmatprep.subr.bf16.mxu0 %v6051
        %6263 = vmatpush2.bf16.msra.mxu0 %v6050
        %6264 = vmatprep.subr.bf16.mxu0 %v6047
        %6265 = vmatpush2.bf16.msra.mxu0 %v6046
        %6266 = vmatprep.subr.bf16.mxu0 %v6043
        %6267 = vmatpush2.bf16.msra.mxu0 %v6042
        %6268 = vmatprep.subr.bf16.mxu0 %v6039
        %6269 = vmatpush2.bf16.msra.mxu0 %v6038
        %6270 = vmatprep.subr.bf16.mxu0 %v6035
        %6271 = vmatpush2.bf16.msra.mxu0 %v6034
        %6272 = vmatprep.subr.bf16.mxu0 %v6031
        %6273 = vmatpush2.bf16.msra.mxu0 %v6030
        %6274 = vmatprep.subr.bf16.mxu0 %v6027
        %6275 = vmatpush2.bf16.msra.mxu0 %v6026
        %6276 = vmatprep.subr.bf16.mxu0 %v6023
        %6277 = vmatpush2.bf16.msra.mxu0 %v6022
        %6278 = vmatprep.mubr.bf16.mxu0 %v5453
        %6279 = vmatmul.mubr.bf16.gmra.mxu0 %v5452
        %v6280 = vpop.f32.mrf.mxu0
        %v6281 = vadd.f32 %v5589, %v6280
        %v6282 = vpop.f32.mrf.mxu0
        %v6283 = vadd.f32 %v5593, %v6282
        %v6284 = vpop.f32.mrf.mxu0
        %v6285 = vpop.f32.mrf.mxu0
        %6286 = vdwg.mxu0
        %6287 = vmatprep.subr.bf16.mxu0 %v6083
        %6288 = vmatpush1.bf16.msra.mxu0 %v6082
        %6289 = vmatprep.subr.bf16.mxu0 %v6079
        %6290 = vmatpush1.bf16.msra.mxu0 %v6078
        %6291 = vmatprep.subr.bf16.mxu0 %v6075
        %6292 = vmatpush1.bf16.msra.mxu0 %v6074
        %6293 = vmatprep.subr.bf16.mxu0 %v6071
        %6294 = vmatpush1.bf16.msra.mxu0 %v6070
        %6295 = vmatprep.subr.bf16.mxu0 %v6067
        %6296 = vmatpush1.bf16.msra.mxu0 %v6066
        %6297 = vmatprep.subr.bf16.mxu0 %v6063
        %6298 = vmatpush1.bf16.msra.mxu0 %v6062
        %6299 = vmatprep.subr.bf16.mxu0 %v6059
        %6300 = vmatpush1.bf16.msra.mxu0 %v6058
        %6301 = vmatprep.subr.bf16.mxu0 %v6055
        %6302 = vmatpush1.bf16.msra.mxu0 %v6054
        %6303 = vmatprep.subr.bf16.mxu0 %v6115
        %6304 = vmatpush2.bf16.msra.mxu0 %v6114
        %6305 = vmatprep.subr.bf16.mxu0 %v6111
        %6306 = vmatpush2.bf16.msra.mxu0 %v6110
        %6307 = vmatprep.subr.bf16.mxu0 %v6107
        %6308 = vmatpush2.bf16.msra.mxu0 %v6106
        %6309 = vmatprep.subr.bf16.mxu0 %v6103
        %6310 = vmatpush2.bf16.msra.mxu0 %v6102
        %6311 = vmatprep.subr.bf16.mxu0 %v6099
        %6312 = vmatpush2.bf16.msra.mxu0 %v6098
        %6313 = vmatprep.subr.bf16.mxu0 %v6095
        %6314 = vmatpush2.bf16.msra.mxu0 %v6094
        %6315 = vmatprep.subr.bf16.mxu0 %v6091
        %6316 = vmatpush2.bf16.msra.mxu0 %v6090
        %6317 = vmatprep.subr.bf16.mxu0 %v6087
        %6318 = vmatpush2.bf16.msra.mxu0 %v6086
        %6319 = vmatprep.mubr.bf16.mxu0 %v5455
        %6320 = vmatmul.mubr.bf16.gmra.mxu0 %v5454
        %v6321 = vpop.f32.mrf.mxu0
        %v6322 = vadd.f32 %v6281, %v6321
        %v6323 = vpop.f32.mrf.mxu0
        %v6324 = vadd.f32 %v6283, %v6323
        %v6325 = vpop.f32.mrf.mxu0
        %v6326 = vpop.f32.mrf.mxu0
        %6327 = vdwg.mxu0
        %6328 = vmatprep.subr.bf16.mxu0 %v6021
        %6329 = vmatpush1.bf16.msra.mxu0 %v6020
        %6330 = vmatprep.subr.bf16.mxu0 %v6017
        %6331 = vmatpush1.bf16.msra.mxu0 %v6016
        %6332 = vmatprep.subr.bf16.mxu0 %v6013
        %6333 = vmatpush1.bf16.msra.mxu0 %v6012
        %6334 = vmatprep.subr.bf16.mxu0 %v6009
        %6335 = vmatpush1.bf16.msra.mxu0 %v6008
        %6336 = vmatprep.subr.bf16.mxu0 %v6005
        %6337 = vmatpush1.bf16.msra.mxu0 %v6004
        %6338 = vmatprep.subr.bf16.mxu0 %v6001
        %6339 = vmatpush1.bf16.msra.mxu0 %v6000
        %6340 = vmatprep.subr.bf16.mxu0 %v5997
        %6341 = vmatpush1.bf16.msra.mxu0 %v5996
        %6342 = vmatprep.subr.bf16.mxu0 %v5993
        %6343 = vmatpush1.bf16.msra.mxu0 %v5992
        %6344 = vmatprep.subr.bf16.mxu0 %v6053
        %6345 = vmatpush2.bf16.msra.mxu0 %v6052
        %6346 = vmatprep.subr.bf16.mxu0 %v6049
        %6347 = vmatpush2.bf16.msra.mxu0 %v6048
        %6348 = vmatprep.subr.bf16.mxu0 %v6045
        %6349 = vmatpush2.bf16.msra.mxu0 %v6044
        %6350 = vmatprep.subr.bf16.mxu0 %v6041
        %6351 = vmatpush2.bf16.msra.mxu0 %v6040
        %6352 = vmatprep.subr.bf16.mxu0 %v6037
        %6353 = vmatpush2.bf16.msra.mxu0 %v6036
        %6354 = vmatprep.subr.bf16.mxu0 %v6033
        %6355 = vmatpush2.bf16.msra.mxu0 %v6032
        %6356 = vmatprep.subr.bf16.mxu0 %v6029
        %6357 = vmatpush2.bf16.msra.mxu0 %v6028
        %6358 = vmatprep.subr.bf16.mxu0 %v6025
        %6359 = vmatpush2.bf16.msra.mxu0 %v6024
        %6360 = vmatprep.mubr.bf16.mxu0 %v5453
        %6361 = vmatmul.mubr.bf16.gmra.mxu0 %v5452
        %v6362 = vpop.f32.mrf.mxu0
        %v6363 = vadd.f32 %v5597, %v6362
        %v6364 = vpop.f32.mrf.mxu0
        %v6365 = vadd.f32 %v5601, %v6364
        %v6366 = vpop.f32.mrf.mxu0
        %v6367 = vpop.f32.mrf.mxu0
        %6368 = vdwg.mxu0
        %6369 = vmatprep.subr.bf16.mxu0 %v6085
        %6370 = vmatpush1.bf16.msra.mxu0 %v6084
        %6371 = vmatprep.subr.bf16.mxu0 %v6081
        %6372 = vmatpush1.bf16.msra.mxu0 %v6080
        %6373 = vmatprep.subr.bf16.mxu0 %v6077
        %6374 = vmatpush1.bf16.msra.mxu0 %v6076
        %6375 = vmatprep.subr.bf16.mxu0 %v6073
        %6376 = vmatpush1.bf16.msra.mxu0 %v6072
        %6377 = vmatprep.subr.bf16.mxu0 %v6069
        %6378 = vmatpush1.bf16.msra.mxu0 %v6068
        %6379 = vmatprep.subr.bf16.mxu0 %v6065
        %6380 = vmatpush1.bf16.msra.mxu0 %v6064
        %6381 = vmatprep.subr.bf16.mxu0 %v6061
        %6382 = vmatpush1.bf16.msra.mxu0 %v6060
        %6383 = vmatprep.subr.bf16.mxu0 %v6057
        %6384 = vmatpush1.bf16.msra.mxu0 %v6056
        %6385 = vmatprep.subr.bf16.mxu0 %v6117
        %6386 = vmatpush2.bf16.msra.mxu0 %v6116
        %6387 = vmatprep.subr.bf16.mxu0 %v6113
        %6388 = vmatpush2.bf16.msra.mxu0 %v6112
        %6389 = vmatprep.subr.bf16.mxu0 %v6109
        %6390 = vmatpush2.bf16.msra.mxu0 %v6108
        %6391 = vmatprep.subr.bf16.mxu0 %v6105
        %6392 = vmatpush2.bf16.msra.mxu0 %v6104
        %6393 = vmatprep.subr.bf16.mxu0 %v6101
        %6394 = vmatpush2.bf16.msra.mxu0 %v6100
        %6395 = vmatprep.subr.bf16.mxu0 %v6097
        %6396 = vmatpush2.bf16.msra.mxu0 %v6096
        %6397 = vmatprep.subr.bf16.mxu0 %v6093
        %6398 = vmatpush2.bf16.msra.mxu0 %v6092
        %6399 = vmatprep.subr.bf16.mxu0 %v6089
        %6400 = vmatpush2.bf16.msra.mxu0 %v6088
        %6401 = vmatprep.mubr.bf16.mxu0 %v5455
        %6402 = vmatmul.mubr.bf16.gmra.mxu0 %v5454
        %v6403 = vpop.f32.mrf.mxu0
        %v6404 = vadd.f32 %v6363, %v6403
        %v6405 = vpop.f32.mrf.mxu0
        %v6406 = vadd.f32 %v6365, %v6405
        %v6407 = vpop.f32.mrf.mxu0
        %v6408 = vpop.f32.mrf.mxu0
        %6409 = vdwg.mxu0
        %v6410 = vmax.f32 %v6322, 0.0
        %v6411 = vmax.f32 %v6324, 0.0
        %v6412 = vmax.f32 %v6404, 0.0
        %v6413 = vmax.f32 %v6406, 0.0
        %v6414 = vpack.c.bf16 %v6410, %v6410
        %v6415 = vpack.c.bf16 %v6411, %v6411
        %v6416 = vpack.c.bf16 %v6412, %v6412
        %v6417 = vpack.c.bf16 %v6413, %v6413
        %v6418 = vld [vmem:[#allocation14] sm:$0xff]
        %v6419 = vld [vmem:[#allocation14 + $0x8] sm:$0xff]
        %v6420 = vld [vmem:[#allocation14 + $0x10] sm:$0xff]
        %v6421 = vld [vmem:[#allocation14 + $0x18] sm:$0xff]
        %v6422 = vld [vmem:[#allocation14 + $0x20] sm:$0xff]
        %v6423 = vld [vmem:[#allocation14 + $0x28] sm:$0xff]
        %v6424 = vld [vmem:[#allocation14 + $0x30] sm:$0xff]
        %v6425 = vld [vmem:[#allocation14 + $0x38] sm:$0xff]
        %v6426 = vld [vmem:[#allocation14 + $0x40] sm:$0xff]
        %v6427 = vld [vmem:[#allocation14 + $0x48] sm:$0xff]
        %v6428 = vld [vmem:[#allocation14 + $0x50] sm:$0xff]
        %v6429 = vld [vmem:[#allocation14 + $0x58] sm:$0xff]
        %v6430 = vld [vmem:[#allocation14 + $0x60] sm:$0xff]
        %v6431 = vld [vmem:[#allocation14 + $0x68] sm:$0xff]
        %v6432 = vld [vmem:[#allocation14 + $0x70] sm:$0xff]
        %v6433 = vld [vmem:[#allocation14 + $0x78] sm:$0xff]
        %v6434 = vld [vmem:[#allocation14 + $0x80] sm:$0xff]
        %v6435 = vld [vmem:[#allocation14 + $0x88] sm:$0xff]
        %v6436 = vld [vmem:[#allocation14 + $0x90] sm:$0xff]
        %v6437 = vld [vmem:[#allocation14 + $0x98] sm:$0xff]
        %v6438 = vld [vmem:[#allocation14 + $0xa0] sm:$0xff]
        %v6439 = vld [vmem:[#allocation14 + $0xa8] sm:$0xff]
        %v6440 = vld [vmem:[#allocation14 + $0xb0] sm:$0xff]
        %v6441 = vld [vmem:[#allocation14 + $0xb8] sm:$0xff]
        %v6442 = vld [vmem:[#allocation14 + $0xc0] sm:$0xff]
        %v6443 = vld [vmem:[#allocation14 + $0xc8] sm:$0xff]
        %v6444 = vld [vmem:[#allocation14 + $0xd0] sm:$0xff]
        %v6445 = vld [vmem:[#allocation14 + $0xd8] sm:$0xff]
        %v6446 = vld [vmem:[#allocation14 + $0xe0] sm:$0xff]
        %v6447 = vld [vmem:[#allocation14 + $0xe8] sm:$0xff]
        %v6448 = vld [vmem:[#allocation14 + $0xf0] sm:$0xff]
        %v6449 = vld [vmem:[#allocation14 + $0xf8] sm:$0xff]
        %v6450 = vld [vmem:[#allocation14 + $0x100] sm:$0xff]
        %v6451 = vld [vmem:[#allocation14 + $0x108] sm:$0xff]
        %v6452 = vld [vmem:[#allocation14 + $0x110] sm:$0xff]
        %v6453 = vld [vmem:[#allocation14 + $0x118] sm:$0xff]
        %v6454 = vld [vmem:[#allocation14 + $0x120] sm:$0xff]
        %v6455 = vld [vmem:[#allocation14 + $0x128] sm:$0xff]
        %v6456 = vld [vmem:[#allocation14 + $0x130] sm:$0xff]
        %v6457 = vld [vmem:[#allocation14 + $0x138] sm:$0xff]
        %v6458 = vld [vmem:[#allocation14 + $0x140] sm:$0xff]
        %v6459 = vld [vmem:[#allocation14 + $0x148] sm:$0xff]
        %v6460 = vld [vmem:[#allocation14 + $0x150] sm:$0xff]
        %v6461 = vld [vmem:[#allocation14 + $0x158] sm:$0xff]
        %v6462 = vld [vmem:[#allocation14 + $0x160] sm:$0xff]
        %v6463 = vld [vmem:[#allocation14 + $0x168] sm:$0xff]
        %v6464 = vld [vmem:[#allocation14 + $0x170] sm:$0xff]
        %v6465 = vld [vmem:[#allocation14 + $0x178] sm:$0xff]
        %v6466 = vld [vmem:[#allocation14 + $0x180] sm:$0xff]
        %v6467 = vld [vmem:[#allocation14 + $0x188] sm:$0xff]
        %v6468 = vld [vmem:[#allocation14 + $0x190] sm:$0xff]
        %v6469 = vld [vmem:[#allocation14 + $0x198] sm:$0xff]
        %v6470 = vld [vmem:[#allocation14 + $0x1a0] sm:$0xff]
        %v6471 = vld [vmem:[#allocation14 + $0x1a8] sm:$0xff]
        %v6472 = vld [vmem:[#allocation14 + $0x1b0] sm:$0xff]
        %v6473 = vld [vmem:[#allocation14 + $0x1b8] sm:$0xff]
        %v6474 = vld [vmem:[#allocation14 + $0x1c0] sm:$0xff]
        %v6475 = vld [vmem:[#allocation14 + $0x1c8] sm:$0xff]
        %v6476 = vld [vmem:[#allocation14 + $0x1d0] sm:$0xff]
        %v6477 = vld [vmem:[#allocation14 + $0x1d8] sm:$0xff]
        %v6478 = vld [vmem:[#allocation14 + $0x1e0] sm:$0xff]
        %v6479 = vld [vmem:[#allocation14 + $0x1e8] sm:$0xff]
        %v6480 = vld [vmem:[#allocation14 + $0x1f0] sm:$0xff]
        %v6481 = vld [vmem:[#allocation14 + $0x1f8] sm:$0xff]
        %v6482 = vld [vmem:[#allocation14 + $0x200] sm:$0xff]
        %v6483 = vld [vmem:[#allocation14 + $0x208] sm:$0xff]
        %v6484 = vld [vmem:[#allocation14 + $0x210] sm:$0xff]
        %v6485 = vld [vmem:[#allocation14 + $0x218] sm:$0xff]
        %v6486 = vld [vmem:[#allocation14 + $0x220] sm:$0xff]
        %v6487 = vld [vmem:[#allocation14 + $0x228] sm:$0xff]
        %v6488 = vld [vmem:[#allocation14 + $0x230] sm:$0xff]
        %v6489 = vld [vmem:[#allocation14 + $0x238] sm:$0xff]
        %v6490 = vld [vmem:[#allocation14 + $0x240] sm:$0xff]
        %v6491 = vld [vmem:[#allocation14 + $0x248] sm:$0xff]
        %v6492 = vld [vmem:[#allocation14 + $0x250] sm:$0xff]
        %v6493 = vld [vmem:[#allocation14 + $0x258] sm:$0xff]
        %v6494 = vld [vmem:[#allocation14 + $0x260] sm:$0xff]
        %v6495 = vld [vmem:[#allocation14 + $0x268] sm:$0xff]
        %v6496 = vld [vmem:[#allocation14 + $0x270] sm:$0xff]
        %v6497 = vld [vmem:[#allocation14 + $0x278] sm:$0xff]
        %v6498 = vld [vmem:[#allocation14 + $0x280] sm:$0xff]
        %v6499 = vld [vmem:[#allocation14 + $0x288] sm:$0xff]
        %v6500 = vld [vmem:[#allocation14 + $0x290] sm:$0xff]
        %v6501 = vld [vmem:[#allocation14 + $0x298] sm:$0xff]
        %v6502 = vld [vmem:[#allocation14 + $0x2a0] sm:$0xff]
        %v6503 = vld [vmem:[#allocation14 + $0x2a8] sm:$0xff]
        %v6504 = vld [vmem:[#allocation14 + $0x2b0] sm:$0xff]
        %v6505 = vld [vmem:[#allocation14 + $0x2b8] sm:$0xff]
        %v6506 = vld [vmem:[#allocation14 + $0x2c0] sm:$0xff]
        %v6507 = vld [vmem:[#allocation14 + $0x2c8] sm:$0xff]
        %v6508 = vld [vmem:[#allocation14 + $0x2d0] sm:$0xff]
        %v6509 = vld [vmem:[#allocation14 + $0x2d8] sm:$0xff]
        %v6510 = vld [vmem:[#allocation14 + $0x2e0] sm:$0xff]
        %v6511 = vld [vmem:[#allocation14 + $0x2e8] sm:$0xff]
        %v6512 = vld [vmem:[#allocation14 + $0x2f0] sm:$0xff]
        %v6513 = vld [vmem:[#allocation14 + $0x2f8] sm:$0xff]
        %v6514 = vld [vmem:[#allocation14 + $0x300] sm:$0xff]
        %v6515 = vld [vmem:[#allocation14 + $0x308] sm:$0xff]
        %v6516 = vld [vmem:[#allocation14 + $0x310] sm:$0xff]
        %v6517 = vld [vmem:[#allocation14 + $0x318] sm:$0xff]
        %v6518 = vld [vmem:[#allocation14 + $0x320] sm:$0xff]
        %v6519 = vld [vmem:[#allocation14 + $0x328] sm:$0xff]
        %v6520 = vld [vmem:[#allocation14 + $0x330] sm:$0xff]
        %v6521 = vld [vmem:[#allocation14 + $0x338] sm:$0xff]
        %v6522 = vld [vmem:[#allocation14 + $0x340] sm:$0xff]
        %v6523 = vld [vmem:[#allocation14 + $0x348] sm:$0xff]
        %v6524 = vld [vmem:[#allocation14 + $0x350] sm:$0xff]
        %v6525 = vld [vmem:[#allocation14 + $0x358] sm:$0xff]
        %v6526 = vld [vmem:[#allocation14 + $0x360] sm:$0xff]
        %v6527 = vld [vmem:[#allocation14 + $0x368] sm:$0xff]
        %v6528 = vld [vmem:[#allocation14 + $0x370] sm:$0xff]
        %v6529 = vld [vmem:[#allocation14 + $0x378] sm:$0xff]
        %v6530 = vld [vmem:[#allocation14 + $0x380] sm:$0xff]
        %v6531 = vld [vmem:[#allocation14 + $0x388] sm:$0xff]
        %v6532 = vld [vmem:[#allocation14 + $0x390] sm:$0xff]
        %v6533 = vld [vmem:[#allocation14 + $0x398] sm:$0xff]
        %v6534 = vld [vmem:[#allocation14 + $0x3a0] sm:$0xff]
        %v6535 = vld [vmem:[#allocation14 + $0x3a8] sm:$0xff]
        %v6536 = vld [vmem:[#allocation14 + $0x3b0] sm:$0xff]
        %v6537 = vld [vmem:[#allocation14 + $0x3b8] sm:$0xff]
        %v6538 = vld [vmem:[#allocation14 + $0x3c0] sm:$0xff]
        %v6539 = vld [vmem:[#allocation14 + $0x3c8] sm:$0xff]
        %v6540 = vld [vmem:[#allocation14 + $0x3d0] sm:$0xff]
        %v6541 = vld [vmem:[#allocation14 + $0x3d8] sm:$0xff]
        %v6542 = vld [vmem:[#allocation14 + $0x3e0] sm:$0xff]
        %v6543 = vld [vmem:[#allocation14 + $0x3e8] sm:$0xff]
        %v6544 = vld [vmem:[#allocation14 + $0x3f0] sm:$0xff]
        %v6545 = vld [vmem:[#allocation14 + $0x3f8] sm:$0xff]
        %v6546 = vld [vmem:[%s12] sm:$0xf]
        %v6548 = vlaneseq
        %v6549 = vshrl.u32 %v6548, 7
        %v6550 = vsub.s32 0, %v6549
        %v6551 = vrot.slane %v6546, %v6550
        %v6552 = vlaneseq
        %v6553 = vshrl.u32 %v6552, 7
        %v6554 = vsub.s32 1, %v6553
        %v6555 = vrot.slane %v6546, %v6554
        %v6556 = vlaneseq
        %v6557 = vshrl.u32 %v6556, 7
        %v6558 = vsub.s32 2, %v6557
        %v6559 = vrot.slane %v6546, %v6558
        %v6560 = vlaneseq
        %v6561 = vshrl.u32 %v6560, 7
        %v6562 = vsub.s32 3, %v6561
        %v6563 = vrot.slane %v6546, %v6562
        %v6696 = vunpack.c.l.b16 %v6418
        %v6697 = vunpack.c.h.b16 %v6418
        %v6698 = vunpack.c.l.b16 %v6419
        %v6699 = vunpack.c.h.b16 %v6419
        %v6700 = vunpack.c.l.b16 %v6420
        %v6701 = vunpack.c.h.b16 %v6420
        %v6702 = vunpack.c.l.b16 %v6421
        %v6703 = vunpack.c.h.b16 %v6421
        %v6704 = vunpack.c.l.b16 %v6422
        %v6705 = vunpack.c.h.b16 %v6422
        %v6706 = vunpack.c.l.b16 %v6423
        %v6707 = vunpack.c.h.b16 %v6423
        %v6708 = vunpack.c.l.b16 %v6424
        %v6709 = vunpack.c.h.b16 %v6424
        %v6710 = vunpack.c.l.b16 %v6425
        %v6711 = vunpack.c.h.b16 %v6425
        %v6712 = vunpack.c.l.b16 %v6426
        %v6713 = vunpack.c.h.b16 %v6426
        %v6714 = vunpack.c.l.b16 %v6427
        %v6715 = vunpack.c.h.b16 %v6427
        %v6716 = vunpack.c.l.b16 %v6428
        %v6717 = vunpack.c.h.b16 %v6428
        %v6718 = vunpack.c.l.b16 %v6429
        %v6719 = vunpack.c.h.b16 %v6429
        %v6720 = vunpack.c.l.b16 %v6430
        %v6721 = vunpack.c.h.b16 %v6430
        %v6722 = vunpack.c.l.b16 %v6431
        %v6723 = vunpack.c.h.b16 %v6431
        %v6724 = vunpack.c.l.b16 %v6432
        %v6725 = vunpack.c.h.b16 %v6432
        %v6726 = vunpack.c.l.b16 %v6433
        %v6727 = vunpack.c.h.b16 %v6433
        %v6728 = vunpack.c.l.b16 %v6434
        %v6729 = vunpack.c.h.b16 %v6434
        %v6730 = vunpack.c.l.b16 %v6435
        %v6731 = vunpack.c.h.b16 %v6435
        %v6732 = vunpack.c.l.b16 %v6436
        %v6733 = vunpack.c.h.b16 %v6436
        %v6734 = vunpack.c.l.b16 %v6437
        %v6735 = vunpack.c.h.b16 %v6437
        %v6736 = vunpack.c.l.b16 %v6438
        %v6737 = vunpack.c.h.b16 %v6438
        %v6738 = vunpack.c.l.b16 %v6439
        %v6739 = vunpack.c.h.b16 %v6439
        %v6740 = vunpack.c.l.b16 %v6440
        %v6741 = vunpack.c.h.b16 %v6440
        %v6742 = vunpack.c.l.b16 %v6441
        %v6743 = vunpack.c.h.b16 %v6441
        %v6744 = vunpack.c.l.b16 %v6442
        %v6745 = vunpack.c.h.b16 %v6442
        %v6746 = vunpack.c.l.b16 %v6443
        %v6747 = vunpack.c.h.b16 %v6443
        %v6748 = vunpack.c.l.b16 %v6444
        %v6749 = vunpack.c.h.b16 %v6444
        %v6750 = vunpack.c.l.b16 %v6445
        %v6751 = vunpack.c.h.b16 %v6445
        %v6752 = vunpack.c.l.b16 %v6446
        %v6753 = vunpack.c.h.b16 %v6446
        %v6754 = vunpack.c.l.b16 %v6447
        %v6755 = vunpack.c.h.b16 %v6447
        %v6756 = vunpack.c.l.b16 %v6448
        %v6757 = vunpack.c.h.b16 %v6448
        %v6758 = vunpack.c.l.b16 %v6449
        %v6759 = vunpack.c.h.b16 %v6449
        %v6760 = vunpack.c.l.b16 %v6450
        %v6761 = vunpack.c.h.b16 %v6450
        %v6762 = vunpack.c.l.b16 %v6451
        %v6763 = vunpack.c.h.b16 %v6451
        %v6764 = vunpack.c.l.b16 %v6452
        %v6765 = vunpack.c.h.b16 %v6452
        %v6766 = vunpack.c.l.b16 %v6453
        %v6767 = vunpack.c.h.b16 %v6453
        %v6768 = vunpack.c.l.b16 %v6454
        %v6769 = vunpack.c.h.b16 %v6454
        %v6770 = vunpack.c.l.b16 %v6455
        %v6771 = vunpack.c.h.b16 %v6455
        %v6772 = vunpack.c.l.b16 %v6456
        %v6773 = vunpack.c.h.b16 %v6456
        %v6774 = vunpack.c.l.b16 %v6457
        %v6775 = vunpack.c.h.b16 %v6457
        %v6776 = vunpack.c.l.b16 %v6458
        %v6777 = vunpack.c.h.b16 %v6458
        %v6778 = vunpack.c.l.b16 %v6459
        %v6779 = vunpack.c.h.b16 %v6459
        %v6780 = vunpack.c.l.b16 %v6460
        %v6781 = vunpack.c.h.b16 %v6460
        %v6782 = vunpack.c.l.b16 %v6461
        %v6783 = vunpack.c.h.b16 %v6461
        %v6784 = vunpack.c.l.b16 %v6462
        %v6785 = vunpack.c.h.b16 %v6462
        %v6786 = vunpack.c.l.b16 %v6463
        %v6787 = vunpack.c.h.b16 %v6463
        %v6788 = vunpack.c.l.b16 %v6464
        %v6789 = vunpack.c.h.b16 %v6464
        %v6790 = vunpack.c.l.b16 %v6465
        %v6791 = vunpack.c.h.b16 %v6465
        %v6792 = vunpack.c.l.b16 %v6466
        %v6793 = vunpack.c.h.b16 %v6466
        %v6794 = vunpack.c.l.b16 %v6467
        %v6795 = vunpack.c.h.b16 %v6467
        %v6796 = vunpack.c.l.b16 %v6468
        %v6797 = vunpack.c.h.b16 %v6468
        %v6798 = vunpack.c.l.b16 %v6469
        %v6799 = vunpack.c.h.b16 %v6469
        %v6800 = vunpack.c.l.b16 %v6470
        %v6801 = vunpack.c.h.b16 %v6470
        %v6802 = vunpack.c.l.b16 %v6471
        %v6803 = vunpack.c.h.b16 %v6471
        %v6804 = vunpack.c.l.b16 %v6472
        %v6805 = vunpack.c.h.b16 %v6472
        %v6806 = vunpack.c.l.b16 %v6473
        %v6807 = vunpack.c.h.b16 %v6473
        %v6808 = vunpack.c.l.b16 %v6474
        %v6809 = vunpack.c.h.b16 %v6474
        %v6810 = vunpack.c.l.b16 %v6475
        %v6811 = vunpack.c.h.b16 %v6475
        %v6812 = vunpack.c.l.b16 %v6476
        %v6813 = vunpack.c.h.b16 %v6476
        %v6814 = vunpack.c.l.b16 %v6477
        %v6815 = vunpack.c.h.b16 %v6477
        %v6816 = vunpack.c.l.b16 %v6478
        %v6817 = vunpack.c.h.b16 %v6478
        %v6818 = vunpack.c.l.b16 %v6479
        %v6819 = vunpack.c.h.b16 %v6479
        %v6820 = vunpack.c.l.b16 %v6480
        %v6821 = vunpack.c.h.b16 %v6480
        %v6822 = vunpack.c.l.b16 %v6481
        %v6823 = vunpack.c.h.b16 %v6481
        %v6824 = vunpack.c.l.b16 %v6482
        %v6825 = vunpack.c.h.b16 %v6482
        %v6826 = vunpack.c.l.b16 %v6483
        %v6827 = vunpack.c.h.b16 %v6483
        %v6828 = vunpack.c.l.b16 %v6484
        %v6829 = vunpack.c.h.b16 %v6484
        %v6830 = vunpack.c.l.b16 %v6485
        %v6831 = vunpack.c.h.b16 %v6485
        %v6832 = vunpack.c.l.b16 %v6486
        %v6833 = vunpack.c.h.b16 %v6486
        %v6834 = vunpack.c.l.b16 %v6487
        %v6835 = vunpack.c.h.b16 %v6487
        %v6836 = vunpack.c.l.b16 %v6488
        %v6837 = vunpack.c.h.b16 %v6488
        %v6838 = vunpack.c.l.b16 %v6489
        %v6839 = vunpack.c.h.b16 %v6489
        %v6840 = vunpack.c.l.b16 %v6490
        %v6841 = vunpack.c.h.b16 %v6490
        %v6842 = vunpack.c.l.b16 %v6491
        %v6843 = vunpack.c.h.b16 %v6491
        %v6844 = vunpack.c.l.b16 %v6492
        %v6845 = vunpack.c.h.b16 %v6492
        %v6846 = vunpack.c.l.b16 %v6493
        %v6847 = vunpack.c.h.b16 %v6493
        %v6848 = vunpack.c.l.b16 %v6494
        %v6849 = vunpack.c.h.b16 %v6494
        %v6850 = vunpack.c.l.b16 %v6495
        %v6851 = vunpack.c.h.b16 %v6495
        %v6852 = vunpack.c.l.b16 %v6496
        %v6853 = vunpack.c.h.b16 %v6496
        %v6854 = vunpack.c.l.b16 %v6497
        %v6855 = vunpack.c.h.b16 %v6497
        %v6856 = vunpack.c.l.b16 %v6498
        %v6857 = vunpack.c.h.b16 %v6498
        %v6858 = vunpack.c.l.b16 %v6499
        %v6859 = vunpack.c.h.b16 %v6499
        %v6860 = vunpack.c.l.b16 %v6500
        %v6861 = vunpack.c.h.b16 %v6500
        %v6862 = vunpack.c.l.b16 %v6501
        %v6863 = vunpack.c.h.b16 %v6501
        %v6864 = vunpack.c.l.b16 %v6502
        %v6865 = vunpack.c.h.b16 %v6502
        %v6866 = vunpack.c.l.b16 %v6503
        %v6867 = vunpack.c.h.b16 %v6503
        %v6868 = vunpack.c.l.b16 %v6504
        %v6869 = vunpack.c.h.b16 %v6504
        %v6870 = vunpack.c.l.b16 %v6505
        %v6871 = vunpack.c.h.b16 %v6505
        %v6872 = vunpack.c.l.b16 %v6506
        %v6873 = vunpack.c.h.b16 %v6506
        %v6874 = vunpack.c.l.b16 %v6507
        %v6875 = vunpack.c.h.b16 %v6507
        %v6876 = vunpack.c.l.b16 %v6508
        %v6877 = vunpack.c.h.b16 %v6508
        %v6878 = vunpack.c.l.b16 %v6509
        %v6879 = vunpack.c.h.b16 %v6509
        %v6880 = vunpack.c.l.b16 %v6510
        %v6881 = vunpack.c.h.b16 %v6510
        %v6882 = vunpack.c.l.b16 %v6511
        %v6883 = vunpack.c.h.b16 %v6511
        %v6884 = vunpack.c.l.b16 %v6512
        %v6885 = vunpack.c.h.b16 %v6512
        %v6886 = vunpack.c.l.b16 %v6513
        %v6887 = vunpack.c.h.b16 %v6513
        %v6888 = vunpack.c.l.b16 %v6514
        %v6889 = vunpack.c.h.b16 %v6514
        %v6890 = vunpack.c.l.b16 %v6515
        %v6891 = vunpack.c.h.b16 %v6515
        %v6892 = vunpack.c.l.b16 %v6516
        %v6893 = vunpack.c.h.b16 %v6516
        %v6894 = vunpack.c.l.b16 %v6517
        %v6895 = vunpack.c.h.b16 %v6517
        %v6896 = vunpack.c.l.b16 %v6518
        %v6897 = vunpack.c.h.b16 %v6518
        %v6898 = vunpack.c.l.b16 %v6519
        %v6899 = vunpack.c.h.b16 %v6519
        %v6900 = vunpack.c.l.b16 %v6520
        %v6901 = vunpack.c.h.b16 %v6520
        %v6902 = vunpack.c.l.b16 %v6521
        %v6903 = vunpack.c.h.b16 %v6521
        %v6904 = vunpack.c.l.b16 %v6522
        %v6905 = vunpack.c.h.b16 %v6522
        %v6906 = vunpack.c.l.b16 %v6523
        %v6907 = vunpack.c.h.b16 %v6523
        %v6908 = vunpack.c.l.b16 %v6524
        %v6909 = vunpack.c.h.b16 %v6524
        %v6910 = vunpack.c.l.b16 %v6525
        %v6911 = vunpack.c.h.b16 %v6525
        %v6912 = vunpack.c.l.b16 %v6526
        %v6913 = vunpack.c.h.b16 %v6526
        %v6914 = vunpack.c.l.b16 %v6527
        %v6915 = vunpack.c.h.b16 %v6527
        %v6916 = vunpack.c.l.b16 %v6528
        %v6917 = vunpack.c.h.b16 %v6528
        %v6918 = vunpack.c.l.b16 %v6529
        %v6919 = vunpack.c.h.b16 %v6529
        %v6920 = vunpack.c.l.b16 %v6530
        %v6921 = vunpack.c.h.b16 %v6530
        %v6922 = vunpack.c.l.b16 %v6531
        %v6923 = vunpack.c.h.b16 %v6531
        %v6924 = vunpack.c.l.b16 %v6532
        %v6925 = vunpack.c.h.b16 %v6532
        %v6926 = vunpack.c.l.b16 %v6533
        %v6927 = vunpack.c.h.b16 %v6533
        %v6928 = vunpack.c.l.b16 %v6534
        %v6929 = vunpack.c.h.b16 %v6534
        %v6930 = vunpack.c.l.b16 %v6535
        %v6931 = vunpack.c.h.b16 %v6535
        %v6932 = vunpack.c.l.b16 %v6536
        %v6933 = vunpack.c.h.b16 %v6536
        %v6934 = vunpack.c.l.b16 %v6537
        %v6935 = vunpack.c.h.b16 %v6537
        %v6936 = vunpack.c.l.b16 %v6538
        %v6937 = vunpack.c.h.b16 %v6538
        %v6938 = vunpack.c.l.b16 %v6539
        %v6939 = vunpack.c.h.b16 %v6539
        %v6940 = vunpack.c.l.b16 %v6540
        %v6941 = vunpack.c.h.b16 %v6540
        %v6942 = vunpack.c.l.b16 %v6541
        %v6943 = vunpack.c.h.b16 %v6541
        %v6944 = vunpack.c.l.b16 %v6542
        %v6945 = vunpack.c.h.b16 %v6542
        %v6946 = vunpack.c.l.b16 %v6543
        %v6947 = vunpack.c.h.b16 %v6543
        %v6948 = vunpack.c.l.b16 %v6544
        %v6949 = vunpack.c.h.b16 %v6544
        %v6950 = vunpack.c.l.b16 %v6545
        %v6951 = vunpack.c.h.b16 %v6545
        %v6952 = vpack.c.b16 %v6700, %v6696
        %v6953 = vpack.c.b16 %v6701, %v6697
        %v6954 = vpack.c.b16 %v6702, %v6698
        %v6955 = vpack.c.b16 %v6703, %v6699
        %v6956 = vpack.c.b16 %v6708, %v6704
        %v6957 = vpack.c.b16 %v6709, %v6705
        %v6958 = vpack.c.b16 %v6710, %v6706
        %v6959 = vpack.c.b16 %v6711, %v6707
        %v6960 = vpack.c.b16 %v6716, %v6712
        %v6961 = vpack.c.b16 %v6717, %v6713
        %v6962 = vpack.c.b16 %v6718, %v6714
        %v6963 = vpack.c.b16 %v6719, %v6715
        %v6964 = vpack.c.b16 %v6724, %v6720
        %v6965 = vpack.c.b16 %v6725, %v6721
        %v6966 = vpack.c.b16 %v6726, %v6722
        %v6967 = vpack.c.b16 %v6727, %v6723
        %v6968 = vpack.c.b16 %v6732, %v6728
        %v6969 = vpack.c.b16 %v6733, %v6729
        %v6970 = vpack.c.b16 %v6734, %v6730
        %v6971 = vpack.c.b16 %v6735, %v6731
        %v6972 = vpack.c.b16 %v6740, %v6736
        %v6973 = vpack.c.b16 %v6741, %v6737
        %v6974 = vpack.c.b16 %v6742, %v6738
        %v6975 = vpack.c.b16 %v6743, %v6739
        %v6976 = vpack.c.b16 %v6748, %v6744
        %v6977 = vpack.c.b16 %v6749, %v6745
        %v6978 = vpack.c.b16 %v6750, %v6746
        %v6979 = vpack.c.b16 %v6751, %v6747
        %v6980 = vpack.c.b16 %v6756, %v6752
        %v6981 = vpack.c.b16 %v6757, %v6753
        %v6982 = vpack.c.b16 %v6758, %v6754
        %v6983 = vpack.c.b16 %v6759, %v6755
        %v6984 = vpack.c.b16 %v6764, %v6760
        %v6985 = vpack.c.b16 %v6765, %v6761
        %v6986 = vpack.c.b16 %v6766, %v6762
        %v6987 = vpack.c.b16 %v6767, %v6763
        %v6988 = vpack.c.b16 %v6772, %v6768
        %v6989 = vpack.c.b16 %v6773, %v6769
        %v6990 = vpack.c.b16 %v6774, %v6770
        %v6991 = vpack.c.b16 %v6775, %v6771
        %v6992 = vpack.c.b16 %v6780, %v6776
        %v6993 = vpack.c.b16 %v6781, %v6777
        %v6994 = vpack.c.b16 %v6782, %v6778
        %v6995 = vpack.c.b16 %v6783, %v6779
        %v6996 = vpack.c.b16 %v6788, %v6784
        %v6997 = vpack.c.b16 %v6789, %v6785
        %v6998 = vpack.c.b16 %v6790, %v6786
        %v6999 = vpack.c.b16 %v6791, %v6787
        %v7000 = vpack.c.b16 %v6796, %v6792
        %v7001 = vpack.c.b16 %v6797, %v6793
        %v7002 = vpack.c.b16 %v6798, %v6794
        %v7003 = vpack.c.b16 %v6799, %v6795
        %v7004 = vpack.c.b16 %v6804, %v6800
        %v7005 = vpack.c.b16 %v6805, %v6801
        %v7006 = vpack.c.b16 %v6806, %v6802
        %v7007 = vpack.c.b16 %v6807, %v6803
        %v7008 = vpack.c.b16 %v6812, %v6808
        %v7009 = vpack.c.b16 %v6813, %v6809
        %v7010 = vpack.c.b16 %v6814, %v6810
        %v7011 = vpack.c.b16 %v6815, %v6811
        %v7012 = vpack.c.b16 %v6820, %v6816
        %v7013 = vpack.c.b16 %v6821, %v6817
        %v7014 = vpack.c.b16 %v6822, %v6818
        %v7015 = vpack.c.b16 %v6823, %v6819
        %v7016 = vpack.c.b16 %v6828, %v6824
        %v7017 = vpack.c.b16 %v6829, %v6825
        %v7018 = vpack.c.b16 %v6830, %v6826
        %v7019 = vpack.c.b16 %v6831, %v6827
        %v7020 = vpack.c.b16 %v6836, %v6832
        %v7021 = vpack.c.b16 %v6837, %v6833
        %v7022 = vpack.c.b16 %v6838, %v6834
        %v7023 = vpack.c.b16 %v6839, %v6835
        %v7024 = vpack.c.b16 %v6844, %v6840
        %v7025 = vpack.c.b16 %v6845, %v6841
        %v7026 = vpack.c.b16 %v6846, %v6842
        %v7027 = vpack.c.b16 %v6847, %v6843
        %v7028 = vpack.c.b16 %v6852, %v6848
        %v7029 = vpack.c.b16 %v6853, %v6849
        %v7030 = vpack.c.b16 %v6854, %v6850
        %v7031 = vpack.c.b16 %v6855, %v6851
        %v7032 = vpack.c.b16 %v6860, %v6856
        %v7033 = vpack.c.b16 %v6861, %v6857
        %v7034 = vpack.c.b16 %v6862, %v6858
        %v7035 = vpack.c.b16 %v6863, %v6859
        %v7036 = vpack.c.b16 %v6868, %v6864
        %v7037 = vpack.c.b16 %v6869, %v6865
        %v7038 = vpack.c.b16 %v6870, %v6866
        %v7039 = vpack.c.b16 %v6871, %v6867
        %v7040 = vpack.c.b16 %v6876, %v6872
        %v7041 = vpack.c.b16 %v6877, %v6873
        %v7042 = vpack.c.b16 %v6878, %v6874
        %v7043 = vpack.c.b16 %v6879, %v6875
        %v7044 = vpack.c.b16 %v6884, %v6880
        %v7045 = vpack.c.b16 %v6885, %v6881
        %v7046 = vpack.c.b16 %v6886, %v6882
        %v7047 = vpack.c.b16 %v6887, %v6883
        %v7048 = vpack.c.b16 %v6892, %v6888
        %v7049 = vpack.c.b16 %v6893, %v6889
        %v7050 = vpack.c.b16 %v6894, %v6890
        %v7051 = vpack.c.b16 %v6895, %v6891
        %v7052 = vpack.c.b16 %v6900, %v6896
        %v7053 = vpack.c.b16 %v6901, %v6897
        %v7054 = vpack.c.b16 %v6902, %v6898
        %v7055 = vpack.c.b16 %v6903, %v6899
        %v7056 = vpack.c.b16 %v6908, %v6904
        %v7057 = vpack.c.b16 %v6909, %v6905
        %v7058 = vpack.c.b16 %v6910, %v6906
        %v7059 = vpack.c.b16 %v6911, %v6907
        %v7060 = vpack.c.b16 %v6916, %v6912
        %v7061 = vpack.c.b16 %v6917, %v6913
        %v7062 = vpack.c.b16 %v6918, %v6914
        %v7063 = vpack.c.b16 %v6919, %v6915
        %v7064 = vpack.c.b16 %v6924, %v6920
        %v7065 = vpack.c.b16 %v6925, %v6921
        %v7066 = vpack.c.b16 %v6926, %v6922
        %v7067 = vpack.c.b16 %v6927, %v6923
        %v7068 = vpack.c.b16 %v6932, %v6928
        %v7069 = vpack.c.b16 %v6933, %v6929
        %v7070 = vpack.c.b16 %v6934, %v6930
        %v7071 = vpack.c.b16 %v6935, %v6931
        %v7072 = vpack.c.b16 %v6940, %v6936
        %v7073 = vpack.c.b16 %v6941, %v6937
        %v7074 = vpack.c.b16 %v6942, %v6938
        %v7075 = vpack.c.b16 %v6943, %v6939
        %v7076 = vpack.c.b16 %v6948, %v6944
        %v7077 = vpack.c.b16 %v6949, %v6945
        %v7078 = vpack.c.b16 %v6950, %v6946
        %v7079 = vpack.c.b16 %v6951, %v6947
        %7208 = vmatprep.subr.bf16.mxu0 %v6981
        %7209 = vmatpush1.bf16.msra.mxu0 %v6980
        %7210 = vmatprep.subr.bf16.mxu0 %v6977
        %7211 = vmatpush1.bf16.msra.mxu0 %v6976
        %7212 = vmatprep.subr.bf16.mxu0 %v6973
        %7213 = vmatpush1.bf16.msra.mxu0 %v6972
        %7214 = vmatprep.subr.bf16.mxu0 %v6969
        %7215 = vmatpush1.bf16.msra.mxu0 %v6968
        %7216 = vmatprep.subr.bf16.mxu0 %v6965
        %7217 = vmatpush1.bf16.msra.mxu0 %v6964
        %7218 = vmatprep.subr.bf16.mxu0 %v6961
        %7219 = vmatpush1.bf16.msra.mxu0 %v6960
        %7220 = vmatprep.subr.bf16.mxu0 %v6957
        %7221 = vmatpush1.bf16.msra.mxu0 %v6956
        %7222 = vmatprep.subr.bf16.mxu0 %v6953
        %7223 = vmatpush1.bf16.msra.mxu0 %v6952
        %7224 = vmatprep.subr.bf16.mxu0 %v7013
        %7225 = vmatpush2.bf16.msra.mxu0 %v7012
        %7226 = vmatprep.subr.bf16.mxu0 %v7009
        %7227 = vmatpush2.bf16.msra.mxu0 %v7008
        %7228 = vmatprep.subr.bf16.mxu0 %v7005
        %7229 = vmatpush2.bf16.msra.mxu0 %v7004
        %7230 = vmatprep.subr.bf16.mxu0 %v7001
        %7231 = vmatpush2.bf16.msra.mxu0 %v7000
        %7232 = vmatprep.subr.bf16.mxu0 %v6997
        %7233 = vmatpush2.bf16.msra.mxu0 %v6996
        %7234 = vmatprep.subr.bf16.mxu0 %v6993
        %7235 = vmatpush2.bf16.msra.mxu0 %v6992
        %7236 = vmatprep.subr.bf16.mxu0 %v6989
        %7237 = vmatpush2.bf16.msra.mxu0 %v6988
        %7238 = vmatprep.subr.bf16.mxu0 %v6985
        %7239 = vmatpush2.bf16.msra.mxu0 %v6984
        %7240 = vmatprep.mubr.bf16.mxu0 %v6415
        %7241 = vmatmul.mubr.bf16.gmra.mxu0 %v6414
        %v7242 = vpop.f32.mrf.mxu0
        %v7243 = vadd.f32 %v6551, %v7242
        %v7244 = vpop.f32.mrf.mxu0
        %v7245 = vadd.f32 %v6555, %v7244
        %v7246 = vpop.f32.mrf.mxu0
        %v7247 = vpop.f32.mrf.mxu0
        %7248 = vdwg.mxu0
        %7249 = vmatprep.subr.bf16.mxu0 %v7045
        %7250 = vmatpush1.bf16.msra.mxu0 %v7044
        %7251 = vmatprep.subr.bf16.mxu0 %v7041
        %7252 = vmatpush1.bf16.msra.mxu0 %v7040
        %7253 = vmatprep.subr.bf16.mxu0 %v7037
        %7254 = vmatpush1.bf16.msra.mxu0 %v7036
        %7255 = vmatprep.subr.bf16.mxu0 %v7033
        %7256 = vmatpush1.bf16.msra.mxu0 %v7032
        %7257 = vmatprep.subr.bf16.mxu0 %v7029
        %7258 = vmatpush1.bf16.msra.mxu0 %v7028
        %7259 = vmatprep.subr.bf16.mxu0 %v7025
        %7260 = vmatpush1.bf16.msra.mxu0 %v7024
        %7261 = vmatprep.subr.bf16.mxu0 %v7021
        %7262 = vmatpush1.bf16.msra.mxu0 %v7020
        %7263 = vmatprep.subr.bf16.mxu0 %v7017
        %7264 = vmatpush1.bf16.msra.mxu0 %v7016
        %7265 = vmatprep.subr.bf16.mxu0 %v7077
        %7266 = vmatpush2.bf16.msra.mxu0 %v7076
        %7267 = vmatprep.subr.bf16.mxu0 %v7073
        %7268 = vmatpush2.bf16.msra.mxu0 %v7072
        %7269 = vmatprep.subr.bf16.mxu0 %v7069
        %7270 = vmatpush2.bf16.msra.mxu0 %v7068
        %7271 = vmatprep.subr.bf16.mxu0 %v7065
        %7272 = vmatpush2.bf16.msra.mxu0 %v7064
        %7273 = vmatprep.subr.bf16.mxu0 %v7061
        %7274 = vmatpush2.bf16.msra.mxu0 %v7060
        %7275 = vmatprep.subr.bf16.mxu0 %v7057
        %7276 = vmatpush2.bf16.msra.mxu0 %v7056
        %7277 = vmatprep.subr.bf16.mxu0 %v7053
        %7278 = vmatpush2.bf16.msra.mxu0 %v7052
        %7279 = vmatprep.subr.bf16.mxu0 %v7049
        %7280 = vmatpush2.bf16.msra.mxu0 %v7048
        %7281 = vmatprep.mubr.bf16.mxu0 %v6417
        %7282 = vmatmul.mubr.bf16.gmra.mxu0 %v6416
        %v7283 = vpop.f32.mrf.mxu0
        %v7284 = vadd.f32 %v7243, %v7283
        %v7285 = vpop.f32.mrf.mxu0
        %v7286 = vadd.f32 %v7245, %v7285
        %v7287 = vpop.f32.mrf.mxu0
        %v7288 = vpop.f32.mrf.mxu0
        %7289 = vdwg.mxu0
        %7290 = vmatprep.subr.bf16.mxu0 %v6983
        %7291 = vmatpush1.bf16.msra.mxu0 %v6982
        %7292 = vmatprep.subr.bf16.mxu0 %v6979
        %7293 = vmatpush1.bf16.msra.mxu0 %v6978
        %7294 = vmatprep.subr.bf16.mxu0 %v6975
        %7295 = vmatpush1.bf16.msra.mxu0 %v6974
        %7296 = vmatprep.subr.bf16.mxu0 %v6971
        %7297 = vmatpush1.bf16.msra.mxu0 %v6970
        %7298 = vmatprep.subr.bf16.mxu0 %v6967
        %7299 = vmatpush1.bf16.msra.mxu0 %v6966
        %7300 = vmatprep.subr.bf16.mxu0 %v6963
        %7301 = vmatpush1.bf16.msra.mxu0 %v6962
        %7302 = vmatprep.subr.bf16.mxu0 %v6959
        %7303 = vmatpush1.bf16.msra.mxu0 %v6958
        %7304 = vmatprep.subr.bf16.mxu0 %v6955
        %7305 = vmatpush1.bf16.msra.mxu0 %v6954
        %7306 = vmatprep.subr.bf16.mxu0 %v7015
        %7307 = vmatpush2.bf16.msra.mxu0 %v7014
        %7308 = vmatprep.subr.bf16.mxu0 %v7011
        %7309 = vmatpush2.bf16.msra.mxu0 %v7010
        %7310 = vmatprep.subr.bf16.mxu0 %v7007
        %7311 = vmatpush2.bf16.msra.mxu0 %v7006
        %7312 = vmatprep.subr.bf16.mxu0 %v7003
        %7313 = vmatpush2.bf16.msra.mxu0 %v7002
        %7314 = vmatprep.subr.bf16.mxu0 %v6999
        %7315 = vmatpush2.bf16.msra.mxu0 %v6998
        %7316 = vmatprep.subr.bf16.mxu0 %v6995
        %7317 = vmatpush2.bf16.msra.mxu0 %v6994
        %7318 = vmatprep.subr.bf16.mxu0 %v6991
        %7319 = vmatpush2.bf16.msra.mxu0 %v6990
        %7320 = vmatprep.subr.bf16.mxu0 %v6987
        %7321 = vmatpush2.bf16.msra.mxu0 %v6986
        %7322 = vmatprep.mubr.bf16.mxu0 %v6415
        %7323 = vmatmul.mubr.bf16.gmra.mxu0 %v6414
        %v7324 = vpop.f32.mrf.mxu0
        %v7325 = vadd.f32 %v6559, %v7324
        %v7326 = vpop.f32.mrf.mxu0
        %v7327 = vadd.f32 %v6563, %v7326
        %v7328 = vpop.f32.mrf.mxu0
        %v7329 = vpop.f32.mrf.mxu0
        %7330 = vdwg.mxu0
        %7331 = vmatprep.subr.bf16.mxu0 %v7047
        %7332 = vmatpush1.bf16.msra.mxu0 %v7046
        %7333 = vmatprep.subr.bf16.mxu0 %v7043
        %7334 = vmatpush1.bf16.msra.mxu0 %v7042
        %7335 = vmatprep.subr.bf16.mxu0 %v7039
        %7336 = vmatpush1.bf16.msra.mxu0 %v7038
        %7337 = vmatprep.subr.bf16.mxu0 %v7035
        %7338 = vmatpush1.bf16.msra.mxu0 %v7034
        %7339 = vmatprep.subr.bf16.mxu0 %v7031
        %7340 = vmatpush1.bf16.msra.mxu0 %v7030
        %7341 = vmatprep.subr.bf16.mxu0 %v7027
        %7342 = vmatpush1.bf16.msra.mxu0 %v7026
        %7343 = vmatprep.subr.bf16.mxu0 %v7023
        %7344 = vmatpush1.bf16.msra.mxu0 %v7022
        %7345 = vmatprep.subr.bf16.mxu0 %v7019
        %7346 = vmatpush1.bf16.msra.mxu0 %v7018
        %7347 = vmatprep.subr.bf16.mxu0 %v7079
        %7348 = vmatpush2.bf16.msra.mxu0 %v7078
        %7349 = vmatprep.subr.bf16.mxu0 %v7075
        %7350 = vmatpush2.bf16.msra.mxu0 %v7074
        %7351 = vmatprep.subr.bf16.mxu0 %v7071
        %7352 = vmatpush2.bf16.msra.mxu0 %v7070
        %7353 = vmatprep.subr.bf16.mxu0 %v7067
        %7354 = vmatpush2.bf16.msra.mxu0 %v7066
        %7355 = vmatprep.subr.bf16.mxu0 %v7063
        %7356 = vmatpush2.bf16.msra.mxu0 %v7062
        %7357 = vmatprep.subr.bf16.mxu0 %v7059
        %7358 = vmatpush2.bf16.msra.mxu0 %v7058
        %7359 = vmatprep.subr.bf16.mxu0 %v7055
        %7360 = vmatpush2.bf16.msra.mxu0 %v7054
        %7361 = vmatprep.subr.bf16.mxu0 %v7051
        %7362 = vmatpush2.bf16.msra.mxu0 %v7050
        %7363 = vmatprep.mubr.bf16.mxu0 %v6417
        %7364 = vmatmul.mubr.bf16.gmra.mxu0 %v6416
        %v7365 = vpop.f32.mrf.mxu0
        %v7366 = vadd.f32 %v7325, %v7365
        %v7367 = vpop.f32.mrf.mxu0
        %v7368 = vadd.f32 %v7327, %v7367
        %v7369 = vpop.f32.mrf.mxu0
        %v7370 = vpop.f32.mrf.mxu0
        %7371 = vdwg.mxu0
        %v7372 = vadd.f32 %v5448, %v7284
        %v7373 = vadd.f32 %v5449, %v7286
        %v7374 = vadd.f32 %v5450, %v7366
        %v7375 = vadd.f32 %v5451, %v7368
        %v7376 = vadd.f32 %v7372, %v7373
        %v7377 = vadd.f32 %v7376, %v7374
        %v7378 = vadd.f32 %v7377, %v7375
        %7379 = vadd.xlane.f32.xlu0 %v7378
        %v7380 = vpop.xlane.xlu0 %7379
        %v7381 = vmul.f32 %v7380, %v5378
        %v7382 = vsub.f32 %v7372, %v7381
        %v7383 = vsub.f32 %v7373, %v7381
        %v7384 = vsub.f32 %v7374, %v7381
        %v7385 = vsub.f32 %v7375, %v7381
        %v7386 = vmul.f32 %v7382, %v7382
        %v7387 = vmul.f32 %v7383, %v7383
        %v7388 = vmul.f32 %v7384, %v7384
        %v7389 = vmul.f32 %v7385, %v7385
        %v7390 = vadd.f32 %v7386, %v7387
        %v7391 = vadd.f32 %v7390, %v7388
        %v7392 = vadd.f32 %v7391, %v7389
        %7393 = vadd.xlane.f32.xlu0 %v7392
        %v7394 = vpop.xlane.xlu0 %7393
        %v7395 = vmul.f32 %v7394, %v5378
        %v7396 = vadd.f32 %v7395, 1e-05
        %v7397 = vrsqrt.pop %v7396
        %v7398 = vmul.f32 %v7382, %v7397
        %v7399 = vmul.f32 %v7383, %v7397
        %v7400 = vmul.f32 %v7384, %v7397
        %v7401 = vmul.f32 %v7385, %v7397
        %v7402 = vld [vmem:[#allocation16] sm:$0xf]
        %v7404 = vlaneseq
        %v7405 = vshrl.u32 %v7404, 7
        %v7406 = vsub.s32 0, %v7405
        %v7407 = vrot.slane %v7402, %v7406
        %v7408 = vlaneseq
        %v7409 = vshrl.u32 %v7408, 7
        %v7410 = vsub.s32 1, %v7409
        %v7411 = vrot.slane %v7402, %v7410
        %v7412 = vlaneseq
        %v7413 = vshrl.u32 %v7412, 7
        %v7414 = vsub.s32 2, %v7413
        %v7415 = vrot.slane %v7402, %v7414
        %v7416 = vlaneseq
        %v7417 = vshrl.u32 %v7416, 7
        %v7418 = vsub.s32 3, %v7417
        %v7419 = vrot.slane %v7402, %v7418
        %v7424 = vmul.f32 %v7398, %v7407
        %v7425 = vmul.f32 %v7399, %v7411
        %v7426 = vmul.f32 %v7400, %v7415
        %v7427 = vmul.f32 %v7401, %v7419
        %v7428 = vld [vmem:[%s14] sm:$0xf]
        %v7430 = vlaneseq
        %v7431 = vshrl.u32 %v7430, 7
        %v7432 = vsub.s32 0, %v7431
        %v7433 = vrot.slane %v7428, %v7432
        %v7434 = vlaneseq
        %v7435 = vshrl.u32 %v7434, 7
        %v7436 = vsub.s32 1, %v7435
        %v7437 = vrot.slane %v7428, %v7436
        %v7438 = vlaneseq
        %v7439 = vshrl.u32 %v7438, 7
        %v7440 = vsub.s32 2, %v7439
        %v7441 = vrot.slane %v7428, %v7440
        %v7442 = vlaneseq
        %v7443 = vshrl.u32 %v7442, 7
        %v7444 = vsub.s32 3, %v7443
        %v7445 = vrot.slane %v7428, %v7444
        %v7450 = vadd.f32 %v7424, %v7433
        %v7451 = vadd.f32 %v7425, %v7437
        %v7452 = vadd.f32 %v7426, %v7441
        %v7453 = vadd.f32 %v7427, %v7445
        %7454 = vst [vmem:[%s638] sm:$0xff] %v7450
        %7455 = vst [vmem:[%s638 + $0x8] sm:$0xff] %v7451
        %7456 = vst [vmem:[%s638 + $0x10] sm:$0xff] %v7452
        %7457 = vst [vmem:[%s638 + $0x18] sm:$0xff] %v7453
        %s7458 = sand.u32 %s380, 1
        %s7459 = scalar_lea.sflag [#allocation4], %s7458
        %s7460 = sand.u32 %s380, 1
        %s7461 = smul.addr %s7460, 32
        %s7462 = scalar_lea.vmem [#allocation17], %s7461
        // Predicated region
        $region117: #{tpu_custom_call.1} parent=79 // pred_check
          %p7463 = pneg %p390
        $region118: #{tpu_custom_call.1} parent=79 // pred_check_branch
          %7465 = sbr.rel (%p7463) target = $region120
        $region119: #{tpu_custom_call.1} parent=79 // pred_region
          %s7467 = ssub.s32 512, 512
          %7468 = vsyncadd %s7459, %s7467
          %s7469 = smul.addr %s41, 4
          %s7470 = smul.addr %s40, 4
          %s7471 = sadd.s32 %s7469, %s7470
          %s7472 = smul.addr %s7471, 128
          %s7473 = scalar_lea.hbm %s15, %s7472
          %s7475 = sshll.u32 %s7462, 4
          %s7476 = int_to_ptr.vmem [resolvable:$true] %s7475
          %7478 = dma.vmem_to_hbm [thread:$0]  %s7476, 512, %s7473, %s7459
        $region120: #{tpu_custom_call.1} parent=79 // pred_fallthru
          _
      $region80: #{tpu_custom_call.1} parent=5 // pred_fallthru
        _
      %p7479 = scmp.le.s32.totalorder 2, %s31
      // Predicated region
      $region121: #{tpu_custom_call.1} parent=5 // pred_check
        %p7480 = pneg %p7479
      $region122: #{tpu_custom_call.1} parent=5 // pred_check_branch
        %7482 = sbr.rel (%p7480) target = $region124
      $region123: #{tpu_custom_call.1} parent=5 // pred_region
        %s7483 = ssub.s32 %s31, 2
        // Predicated region
        $region125: #{tpu_custom_call.1} parent=123 // pred_check
          %p7484 = pneg %p396
        $region126: #{tpu_custom_call.1} parent=123 // pred_check_branch
          %7486 = sbr.rel (%p7484) target = $region128
        $region127: #{tpu_custom_call.1} parent=123 // pred_region
          %s7487 = sand.u32 %s381, 1
          %s7488 = scalar_lea.sflag [#allocation4], %s7487
          %s7489 = sand.u32 %s381, 1
          %s7490 = smul.addr %s7489, 32
          %s7491 = scalar_lea.vmem [#allocation17], %s7490
          %7492 = dma.done %s7488, 512
        $region128: #{tpu_custom_call.1} parent=123 // pred_fallthru
          _
      $region124: #{tpu_custom_call.1} parent=5 // pred_fallthru
        _
    $region6: #{tpu_custom_call.1} parent=1 // loop_footer
      %s35 = sadd.s32 1, %s31
    $region7: #{tpu_custom_call.1} parent=1 // loop_footer_branch
      %30 = sbr.rel target = $region3
    $region8: #{tpu_custom_call.1} parent=1 // loop_exit
      _
    %7493 = vsyncpa [#allocation3], 1
    %s7494 = scalar_lea.sflag [#allocation3], 1
    %7495 = vsyncpa %s7494, 1
    %7496 = vsyncpa [#allocation6], 1
    %7497 = vsyncpa [#allocation9], 1
    %7498 = vsyncpa [#allocation12], 1
    %7499 = vsyncpa [#allocation15], 1
    %7500 = vsyncpa [#allocation4], 1
    %s7501 = scalar_lea.sflag [#allocation4], 1
    %7502 = vsyncpa %s7501, 1

</llo_original>
